<compile_context>
chip_gen: v7x
topology: tpu7x:2x2x1
jax: 0.10.0
libtpu: 0.0.40
codegen_flags: <defaults>
</compile_context>

<pallas_src>
import math

import jax
import jax.numpy as jnp
from jax.experimental import pallas as pl
from jax.experimental.pallas import tpu as pltpu

CONV_OUT = 174   # 176 - 3 + 1
POOL_OUT = 87    # (174 - 2)//2 + 1
N_CH = 4
N_CLS = 2
N_PHASE = 4      # 2x2 pooling phases


def classifn_kernel(xph_ref, wconv_ref, bconv_ref, wlin_hbm, blin_ref, out_ref,
                    xsh_ref, pooled_ref, wlin_vmem, wlin_sem):
    """Fused conv3x3 -> ReLU -> maxpool2x2 -> linear -> softmax.

    xph_ref  : (4, 88, 88)     f32 VMEM -- pooling phases, xph[a*2+b][i,j] = x[2i+a, 2j+b]
    wconv_ref: (4, 9)          f32 SMEM -- conv weights, [c, ki*3+kj]
    bconv_ref: (4,)            f32 SMEM -- conv bias
    wlin_hbm : (2, 4, 87, 87)  f32 HBM (pl.ANY) -- linear weight, fetched manually
    blin_ref : (2,)            f32 SMEM -- linear bias
    out_ref  : (1, 2)          f32 VMEM -- softmax probabilities
    xsh_ref  : (4, 88, 87)     f32 VMEM scratch -- lane-shift-by-1 copies of the phases
    pooled_ref:(4, 87, 87)     f32 VMEM scratch -- pooled conv output per channel
    wlin_vmem: (2, 4, 87, 87)  f32 VMEM scratch -- DMA landing buffer for wlin
    wlin_sem :                 DMA semaphore for the wlin copy
    """
    P = POOL_OUT

    # --- Item 1: kick off the 242 KB linear-weight fetch immediately; it overlaps
    # with all of the conv/pool compute below and is waited on only just before
    # the (deferred) linear layer.
    wlin_copy = pltpu.make_async_copy(wlin_hbm, wlin_vmem, wlin_sem)
    wlin_copy.start()

    # Stage the lane-shift-by-1 copy of each phase ONCE; every tap load below is
    # then lane-aligned (sublane offsets are cheap; lane rotates paid 4x total,
    # not per use).
    for ph in range(N_PHASE):
        xsh_ref[ph, :, :] = xph_ref[ph, :, 1:88]

    for c in range(N_CH):
        # Valid 3x3 cross-correlation evaluated on the four pooling phases, fused
        # with the 2x2/2 max-pool via a running max.  Bias/ReLU commute with max.
        mx = None
        for di in range(2):
            for dj in range(2):
                acc = None
                for ki in range(3):
                    for kj in range(3):
                        u = di + ki          # 0..3
                        v = dj + kj          # 0..3
                        ph = (u % 2) * 2 + (v % 2)
                        r0 = u // 2
                        if v < 2:            # column offset 0 -> original phase plane
                            xv = xph_ref[ph, r0:r0 + P, 0:P]
                        else:                # column offset 1 -> pre-shifted plane
                            xv = xsh_ref[ph, r0:r0 + P, 0:P]
                        term = wconv_ref[c, ki * 3 + kj] * xv
                        acc = term if acc is None else acc + term
                mx = acc if mx is None else jnp.maximum(mx, acc)
        # Stash the pooled plane; the linear layer is fully deferred so the wlin
        # DMA has the whole channel loop to complete.
        pooled_ref[c, :, :] = jnp.maximum(mx + bconv_ref[c], 0.0)           # (87, 87)

    # --- Deferred linear layer: wait as late as possible on the weight DMA.
    wlin_copy.wait()

    logits = []
    for o in range(N_CLS):
        acc = None
        for c in range(N_CH):
            term = wlin_vmem[o, c, :, :] * pooled_ref[c, :, :]              # (87, 87)
            acc = term if acc is None else acc + term
        # One expensive cross-lane/sublane reduction per class (2 total).
        s = jnp.sum(jnp.sum(acc, axis=1, keepdims=True),
                    axis=0, keepdims=True)                                   # (1, 1)
        logits.append(s + blin_ref[o])

    # Item 3: exact softmax epilogue (EUP is idle; approx reciprocal bought nothing).
    m = jnp.maximum(logits[0], logits[1])
    e0 = jnp.exp(logits[0] - m)
    e1 = jnp.exp(logits[1] - m)
    inv = pl.reciprocal(e0 + e1, approx=False)
    out_ref[0:1, 0:1] = e0 * inv
    out_ref[0:1, 1:2] = e1 * inv


@jax.jit
def classifn_forward(x, conv_w, conv_b, lin_w, lin_b):
    # --- glue: layout plumbing only (phase split + weight reshapes).  The phase
    # split is allowed to fuse into the pallas input DMA (allow_input_fusion);
    # it is a perf assumption only and cannot affect correctness. ---
    img = x[0, 0]                                                            # (176, 176)
    xph = jnp.stack([img[0::2, 0::2], img[0::2, 1::2],
                     img[1::2, 0::2], img[1::2, 1::2]])                      # (4, 88, 88)
    wconv = conv_w.reshape(N_CH, 9)
    wlin = lin_w.reshape(N_CLS, N_CH, POOL_OUT, POOL_OUT)                    # matches C-order flatten
    blin = lin_b

    probs = pl.pallas_call(
        classifn_kernel,
        out_shape=jax.ShapeDtypeStruct((1, N_CLS), jnp.float32),
        in_specs=[
            pl.BlockSpec(memory_space=pltpu.MemorySpace.VMEM),   # xph
            pl.BlockSpec(memory_space=pltpu.MemorySpace.SMEM),   # conv weights (scalars)
            pl.BlockSpec(memory_space=pltpu.MemorySpace.SMEM),   # conv bias
            pl.BlockSpec(memory_space=pl.ANY),                   # linear weight: stays in HBM, manual DMA
            pl.BlockSpec(memory_space=pltpu.MemorySpace.SMEM),   # linear bias
        ],
        out_specs=pl.BlockSpec(memory_space=pltpu.MemorySpace.VMEM),
        scratch_shapes=[
            pltpu.VMEM((N_PHASE, 88, POOL_OUT), jnp.float32),            # lane-shifted phases
            pltpu.VMEM((N_CH, POOL_OUT, POOL_OUT), jnp.float32),         # pooled conv planes
            pltpu.VMEM((N_CLS, N_CH, POOL_OUT, POOL_OUT), jnp.float32),  # wlin DMA landing buffer
            pltpu.SemaphoreType.DMA(()),                                 # wlin DMA semaphore
        ],
        compiler_params=pltpu.CompilerParams(
            # let XLA fuse the strided phase-split gather into the xph input DMA
            allow_input_fusion=[True, False, False, False, False],
        ),
    )(xph, wconv, conv_b, wlin, blin)
    return probs[0]                                                          # (2,)


def reference_forward(x, conv_w, conv_b, lin_w, lin_b):
    """Pure-JAX reference (mirrors the PyTorch forward)."""
    img = x[0, 0]
    chans = []
    for c in range(N_CH):
        acc = jnp.full((CONV_OUT, CONV_OUT), conv_b[c], jnp.float32)
        for ki in range(3):
            for kj in range(3):
                acc = acc + conv_w[c, 0, ki, kj] * img[ki:ki + CONV_OUT, kj:kj + CONV_OUT]
        chans.append(acc)
    conv = jnp.maximum(jnp.stack(chans), 0.0)                                # (4, 174, 174)
    pooled = conv.reshape(N_CH, POOL_OUT, 2, POOL_OUT, 2).max(axis=(2, 4))   # (4, 87, 87)
    flat = pooled.reshape(-1)                                                # (30276,)
    logits = lin_w @ flat + lin_b
    return jax.nn.softmax(logits, axis=0)


if __name__ == "__main__":
    key = jax.random.PRNGKey(0)
    kx, k1, k2, k3, k4 = jax.random.split(key, 5)

    # Input: NCHW, batch must be 1 (Flatten(0) + Linear(4*87*87, 2) imply (1, 1, 176, 176)).
    x = jax.random.normal(kx, (1, 1, 176, 176), dtype=jnp.float32)

    # Deterministic parameter init (PyTorch-style uniform bounds).
    kb = 1.0 / 3.0                                  # conv fan_in = 1*3*3
    conv_w = jax.random.uniform(k1, (4, 1, 3, 3), minval=-kb, maxval=kb, dtype=jnp.float32)
    conv_b = jax.random.uniform(k2, (4,), minval=-kb, maxval=kb, dtype=jnp.float32)
    lbnd = 1.0 / math.sqrt(4 * 87 * 87)             # linear fan_in
    lin_w = jax.random.uniform(k3, (2, 4 * 87 * 87), minval=-lbnd, maxval=lbnd, dtype=jnp.float32)
    lin_b = jax.random.uniform(k4, (2,), minval=-lbnd, maxval=lbnd, dtype=jnp.float32)

    out = classifn_forward(x, conv_w, conv_b, lin_w, lin_b)
    out = jax.block_until_ready(out)

    ref = reference_forward(x, conv_w, conv_b, lin_w, lin_b)
    assert out.shape == (2,)
    # Tight tolerance restored: softmax now uses the exact reciprocal, all math f32.
    assert jnp.allclose(out, ref, rtol=1e-4, atol=1e-5), (out, ref)
    print("KERNEL_OK")
</pallas_src>

<mosaic_0001>
module attributes {stable_mosaic.version = 11 : i64} {
  func.func @classifn_kernel(%arg0: memref<4x88x88xf32, #tpu.memory_space<vmem>>, %arg1: memref<4x9xf32, #tpu.memory_space<smem>>, %arg2: memref<4xf32, #tpu.memory_space<smem>>, %arg3: memref<2x4x87x87xf32, #tpu.memory_space<any>>, %arg4: memref<2xf32, #tpu.memory_space<smem>>, %arg5: memref<1x2xf32, #tpu.memory_space<vmem>>, %arg6: memref<4x88x87xf32, #tpu.memory_space<vmem>>, %arg7: memref<4x87x87xf32, #tpu.memory_space<vmem>>, %arg8: memref<2x4x87x87xf32, #tpu.memory_space<vmem>>, %arg9: memref<!tpu.dma_semaphore, #tpu.memory_space<semaphore_mem>>) attributes {dimension_semantics = [], scalar_prefetch = 0 : i64, scratch_operands = 4 : i64, tpu.core_type = #tpu.core_type<tc>} {
    tpu.enqueue_dma source(%arg3 : memref<2x4x87x87xf32, #tpu.memory_space<any>>) target(%arg8 : memref<2x4x87x87xf32, #tpu.memory_space<vmem>>) target_semaphore(%arg9 : memref<!tpu.dma_semaphore, #tpu.memory_space<semaphore_mem>>)
    %c0 = arith.constant 0 : index
    %c0_0 = arith.constant 0 : index
    %c1 = arith.constant 1 : index
    %0 = vector.load %arg0[%c0, %c0_0, %c1] : memref<4x88x88xf32, #tpu.memory_space<vmem>>, vector<1x88x87xf32>
    %1 = vector.shape_cast %0 : vector<1x88x87xf32> to vector<88x87xf32>
    %c0_1 = arith.constant 0 : index
    %c0_2 = arith.constant 0 : index
    %c0_3 = arith.constant 0 : index
    %2 = vector.load %arg6[%c0_1, %c0_2, %c0_3] : memref<4x88x87xf32, #tpu.memory_space<vmem>>, vector<1x88x87xf32>
    %3 = vector.shape_cast %2 : vector<1x88x87xf32> to vector<88x87xf32>
    %4 = vector.shape_cast %1 : vector<88x87xf32> to vector<1x88x87xf32>
    tpu.vector_store %arg6[%c0_1, %c0_2, %c0_3], %4 {strides = array<i32>} : memref<4x88x87xf32, #tpu.memory_space<vmem>>, vector<1x88x87xf32>,
    %c1_4 = arith.constant 1 : index
    %c0_5 = arith.constant 0 : index
    %c1_6 = arith.constant 1 : index
    %5 = vector.load %arg0[%c1_4, %c0_5, %c1_6] : memref<4x88x88xf32, #tpu.memory_space<vmem>>, vector<1x88x87xf32>
    %6 = vector.shape_cast %5 : vector<1x88x87xf32> to vector<88x87xf32>
    %c1_7 = arith.constant 1 : index
    %c0_8 = arith.constant 0 : index
    %c0_9 = arith.constant 0 : index
    %7 = vector.load %arg6[%c1_7, %c0_8, %c0_9] : memref<4x88x87xf32, #tpu.memory_space<vmem>>, vector<1x88x87xf32>
    %8 = vector.shape_cast %7 : vector<1x88x87xf32> to vector<88x87xf32>
    %9 = vector.shape_cast %6 : vector<88x87xf32> to vector<1x88x87xf32>
    tpu.vector_store %arg6[%c1_7, %c0_8, %c0_9], %9 {strides = array<i32>} : memref<4x88x87xf32, #tpu.memory_space<vmem>>, vector<1x88x87xf32>,
    %c2 = arith.constant 2 : index
    %c0_10 = arith.constant 0 : index
    %c1_11 = arith.constant 1 : index
    %10 = vector.load %arg0[%c2, %c0_10, %c1_11] : memref<4x88x88xf32, #tpu.memory_space<vmem>>, vector<1x88x87xf32>
    %11 = vector.shape_cast %10 : vector<1x88x87xf32> to vector<88x87xf32>
    %c2_12 = arith.constant 2 : index
    %c0_13 = arith.constant 0 : index
    %c0_14 = arith.constant 0 : index
    %12 = vector.load %arg6[%c2_12, %c0_13, %c0_14] : memref<4x88x87xf32, #tpu.memory_space<vmem>>, vector<1x88x87xf32>
    %13 = vector.shape_cast %12 : vector<1x88x87xf32> to vector<88x87xf32>
    %14 = vector.shape_cast %11 : vector<88x87xf32> to vector<1x88x87xf32>
    tpu.vector_store %arg6[%c2_12, %c0_13, %c0_14], %14 {strides = array<i32>} : memref<4x88x87xf32, #tpu.memory_space<vmem>>, vector<1x88x87xf32>,
    %c3 = arith.constant 3 : index
    %c0_15 = arith.constant 0 : index
    %c1_16 = arith.constant 1 : index
    %15 = vector.load %arg0[%c3, %c0_15, %c1_16] : memref<4x88x88xf32, #tpu.memory_space<vmem>>, vector<1x88x87xf32>
    %16 = vector.shape_cast %15 : vector<1x88x87xf32> to vector<88x87xf32>
    %c3_17 = arith.constant 3 : index
    %c0_18 = arith.constant 0 : index
    %c0_19 = arith.constant 0 : index
    %17 = vector.load %arg6[%c3_17, %c0_18, %c0_19] : memref<4x88x87xf32, #tpu.memory_space<vmem>>, vector<1x88x87xf32>
    %18 = vector.shape_cast %17 : vector<1x88x87xf32> to vector<88x87xf32>
    %19 = vector.shape_cast %16 : vector<88x87xf32> to vector<1x88x87xf32>
    tpu.vector_store %arg6[%c3_17, %c0_18, %c0_19], %19 {strides = array<i32>} : memref<4x88x87xf32, #tpu.memory_space<vmem>>, vector<1x88x87xf32>,
    %c0_20 = arith.constant 0 : index
    %c0_21 = arith.constant 0 : index
    %c0_22 = arith.constant 0 : index
    %20 = vector.load %arg0[%c0_20, %c0_21, %c0_22] : memref<4x88x88xf32, #tpu.memory_space<vmem>>, vector<1x87x87xf32>
    %21 = vector.shape_cast %20 : vector<1x87x87xf32> to vector<87x87xf32>
    %c0_23 = arith.constant 0 : index
    %c0_24 = arith.constant 0 : index
    %22 = memref.load %arg1[%c0_23, %c0_24] : memref<4x9xf32, #tpu.memory_space<smem>>
    %23 = vector.broadcast %22 : f32 to vector<87x87xf32>
    %24 = arith.mulf %23, %21 : vector<87x87xf32>
    %c1_25 = arith.constant 1 : index
    %c0_26 = arith.constant 0 : index
    %c0_27 = arith.constant 0 : index
    %25 = vector.load %arg0[%c1_25, %c0_26, %c0_27] : memref<4x88x88xf32, #tpu.memory_space<vmem>>, vector<1x87x87xf32>
    %26 = vector.shape_cast %25 : vector<1x87x87xf32> to vector<87x87xf32>
    %c0_28 = arith.constant 0 : index
    %c1_29 = arith.constant 1 : index
    %27 = memref.load %arg1[%c0_28, %c1_29] : memref<4x9xf32, #tpu.memory_space<smem>>
    %28 = vector.broadcast %27 : f32 to vector<87x87xf32>
    %29 = arith.mulf %28, %26 : vector<87x87xf32>
    %30 = arith.addf %24, %29 : vector<87x87xf32>
    %c0_30 = arith.constant 0 : index
    %c0_31 = arith.constant 0 : index
    %c0_32 = arith.constant 0 : index
    %31 = vector.load %arg6[%c0_30, %c0_31, %c0_32] : memref<4x88x87xf32, #tpu.memory_space<vmem>>, vector<1x87x87xf32>
    %32 = vector.shape_cast %31 : vector<1x87x87xf32> to vector<87x87xf32>
    %c0_33 = arith.constant 0 : index
    %c2_34 = arith.constant 2 : index
    %33 = memref.load %arg1[%c0_33, %c2_34] : memref<4x9xf32, #tpu.memory_space<smem>>
    %34 = vector.broadcast %33 : f32 to vector<87x87xf32>
    %35 = arith.mulf %34, %32 : vector<87x87xf32>
    %36 = arith.addf %30, %35 : vector<87x87xf32>
    %c2_35 = arith.constant 2 : index
    %c0_36 = arith.constant 0 : index
    %c0_37 = arith.constant 0 : index
    %37 = vector.load %arg0[%c2_35, %c0_36, %c0_37] : memref<4x88x88xf32, #tpu.memory_space<vmem>>, vector<1x87x87xf32>
    %38 = vector.shape_cast %37 : vector<1x87x87xf32> to vector<87x87xf32>
    %c0_38 = arith.constant 0 : index
    %c3_39 = arith.constant 3 : index
    %39 = memref.load %arg1[%c0_38, %c3_39] : memref<4x9xf32, #tpu.memory_space<smem>>
    %40 = vector.broadcast %39 : f32 to vector<87x87xf32>
    %41 = arith.mulf %40, %38 : vector<87x87xf32>
    %42 = arith.addf %36, %41 : vector<87x87xf32>
    %c3_40 = arith.constant 3 : index
    %c0_41 = arith.constant 0 : index
    %c0_42 = arith.constant 0 : index
    %43 = vector.load %arg0[%c3_40, %c0_41, %c0_42] : memref<4x88x88xf32, #tpu.memory_space<vmem>>, vector<1x87x87xf32>
    %44 = vector.shape_cast %43 : vector<1x87x87xf32> to vector<87x87xf32>
    %c0_43 = arith.constant 0 : index
    %c4 = arith.constant 4 : index
    %45 = memref.load %arg1[%c0_43, %c4] : memref<4x9xf32, #tpu.memory_space<smem>>
    %46 = vector.broadcast %45 : f32 to vector<87x87xf32>
    %47 = arith.mulf %46, %44 : vector<87x87xf32>
    %48 = arith.addf %42, %47 : vector<87x87xf32>
    %c2_44 = arith.constant 2 : index
    %c0_45 = arith.constant 0 : index
    %c0_46 = arith.constant 0 : index
    %49 = vector.load %arg6[%c2_44, %c0_45, %c0_46] : memref<4x88x87xf32, #tpu.memory_space<vmem>>, vector<1x87x87xf32>
    %50 = vector.shape_cast %49 : vector<1x87x87xf32> to vector<87x87xf32>
    %c0_47 = arith.constant 0 : index
    %c5 = arith.constant 5 : index
    %51 = memref.load %arg1[%c0_47, %c5] : memref<4x9xf32, #tpu.memory_space<smem>>
    %52 = vector.broadcast %51 : f32 to vector<87x87xf32>
    %53 = arith.mulf %52, %50 : vector<87x87xf32>
    %54 = arith.addf %48, %53 : vector<87x87xf32>
    %c0_48 = arith.constant 0 : index
    %c1_49 = arith.constant 1 : index
    %c0_50 = arith.constant 0 : index
    %55 = vector.load %arg0[%c0_48, %c1_49, %c0_50] : memref<4x88x88xf32, #tpu.memory_space<vmem>>, vector<1x87x87xf32>
    %56 = vector.shape_cast %55 : vector<1x87x87xf32> to vector<87x87xf32>
    %c0_51 = arith.constant 0 : index
    %c6 = arith.constant 6 : index
    %57 = memref.load %arg1[%c0_51, %c6] : memref<4x9xf32, #tpu.memory_space<smem>>
    %58 = vector.broadcast %57 : f32 to vector<87x87xf32>
    %59 = arith.mulf %58, %56 : vector<87x87xf32>
    %60 = arith.addf %54, %59 : vector<87x87xf32>
    %c1_52 = arith.constant 1 : index
    %c1_53 = arith.constant 1 : index
    %c0_54 = arith.constant 0 : index
    %61 = vector.load %arg0[%c1_52, %c1_53, %c0_54] : memref<4x88x88xf32, #tpu.memory_space<vmem>>, vector<1x87x87xf32>
    %62 = vector.shape_cast %61 : vector<1x87x87xf32> to vector<87x87xf32>
    %c0_55 = arith.constant 0 : index
    %c7 = arith.constant 7 : index
    %63 = memref.load %arg1[%c0_55, %c7] : memref<4x9xf32, #tpu.memory_space<smem>>
    %64 = vector.broadcast %63 : f32 to vector<87x87xf32>
    %65 = arith.mulf %64, %62 : vector<87x87xf32>
    %66 = arith.addf %60, %65 : vector<87x87xf32>
    %c0_56 = arith.constant 0 : index
    %c1_57 = arith.constant 1 : index
    %c0_58 = arith.constant 0 : index
    %67 = vector.load %arg6[%c0_56, %c1_57, %c0_58] : memref<4x88x87xf32, #tpu.memory_space<vmem>>, vector<1x87x87xf32>
    %68 = vector.shape_cast %67 : vector<1x87x87xf32> to vector<87x87xf32>
    %c0_59 = arith.constant 0 : index
    %c8 = arith.constant 8 : index
    %69 = memref.load %arg1[%c0_59, %c8] : memref<4x9xf32, #tpu.memory_space<smem>>
    %70 = vector.broadcast %69 : f32 to vector<87x87xf32>
    %71 = arith.mulf %70, %68 : vector<87x87xf32>
    %72 = arith.addf %66, %71 : vector<87x87xf32>
    %c1_60 = arith.constant 1 : index
    %c0_61 = arith.constant 0 : index
    %c0_62 = arith.constant 0 : index
    %73 = vector.load %arg0[%c1_60, %c0_61, %c0_62] : memref<4x88x88xf32, #tpu.memory_space<vmem>>, vector<1x87x87xf32>
    %74 = vector.shape_cast %73 : vector<1x87x87xf32> to vector<87x87xf32>
    %c0_63 = arith.constant 0 : index
    %c0_64 = arith.constant 0 : index
    %75 = memref.load %arg1[%c0_63, %c0_64] : memref<4x9xf32, #tpu.memory_space<smem>>
    %76 = vector.broadcast %75 : f32 to vector<87x87xf32>
    %77 = arith.mulf %76, %74 : vector<87x87xf32>
    %c0_65 = arith.constant 0 : index
    %c0_66 = arith.constant 0 : index
    %c0_67 = arith.constant 0 : index
    %78 = vector.load %arg6[%c0_65, %c0_66, %c0_67] : memref<4x88x87xf32, #tpu.memory_space<vmem>>, vector<1x87x87xf32>
    %79 = vector.shape_cast %78 : vector<1x87x87xf32> to vector<87x87xf32>
    %c0_68 = arith.constant 0 : index
    %c1_69 = arith.constant 1 : index
    %80 = memref.load %arg1[%c0_68, %c1_69] : memref<4x9xf32, #tpu.memory_space<smem>>
    %81 = vector.broadcast %80 : f32 to vector<87x87xf32>
    %82 = arith.mulf %81, %79 : vector<87x87xf32>
    %83 = arith.addf %77, %82 : vector<87x87xf32>
    %c1_70 = arith.constant 1 : index
    %c0_71 = arith.constant 0 : index
    %c0_72 = arith.constant 0 : index
    %84 = vector.load %arg6[%c1_70, %c0_71, %c0_72] : memref<4x88x87xf32, #tpu.memory_space<vmem>>, vector<1x87x87xf32>
    %85 = vector.shape_cast %84 : vector<1x87x87xf32> to vector<87x87xf32>
    %c0_73 = arith.constant 0 : index
    %c2_74 = arith.constant 2 : index
    %86 = memref.load %arg1[%c0_73, %c2_74] : memref<4x9xf32, #tpu.memory_space<smem>>
    %87 = vector.broadcast %86 : f32 to vector<87x87xf32>
    %88 = arith.mulf %87, %85 : vector<87x87xf32>
    %89 = arith.addf %83, %88 : vector<87x87xf32>
    %c3_75 = arith.constant 3 : index
    %c0_76 = arith.constant 0 : index
    %c0_77 = arith.constant 0 : index
    %90 = vector.load %arg0[%c3_75, %c0_76, %c0_77] : memref<4x88x88xf32, #tpu.memory_space<vmem>>, vector<1x87x87xf32>
    %91 = vector.shape_cast %90 : vector<1x87x87xf32> to vector<87x87xf32>
    %c0_78 = arith.constant 0 : index
    %c3_79 = arith.constant 3 : index
    %92 = memref.load %arg1[%c0_78, %c3_79] : memref<4x9xf32, #tpu.memory_space<smem>>
    %93 = vector.broadcast %92 : f32 to vector<87x87xf32>
    %94 = arith.mulf %93, %91 : vector<87x87xf32>
    %95 = arith.addf %89, %94 : vector<87x87xf32>
    %c2_80 = arith.constant 2 : index
    %c0_81 = arith.constant 0 : index
    %c0_82 = arith.constant 0 : index
    %96 = vector.load %arg6[%c2_80, %c0_81, %c0_82] : memref<4x88x87xf32, #tpu.memory_space<vmem>>, vector<1x87x87xf32>
    %97 = vector.shape_cast %96 : vector<1x87x87xf32> to vector<87x87xf32>
    %c0_83 = arith.constant 0 : index
    %c4_84 = arith.constant 4 : index
    %98 = memref.load %arg1[%c0_83, %c4_84] : memref<4x9xf32, #tpu.memory_space<smem>>
    %99 = vector.broadcast %98 : f32 to vector<87x87xf32>
    %100 = arith.mulf %99, %97 : vector<87x87xf32>
    %101 = arith.addf %95, %100 : vector<87x87xf32>
    %c3_85 = arith.constant 3 : index
    %c0_86 = arith.constant 0 : index
    %c0_87 = arith.constant 0 : index
    %102 = vector.load %arg6[%c3_85, %c0_86, %c0_87] : memref<4x88x87xf32, #tpu.memory_space<vmem>>, vector<1x87x87xf32>
    %103 = vector.shape_cast %102 : vector<1x87x87xf32> to vector<87x87xf32>
    %c0_88 = arith.constant 0 : index
    %c5_89 = arith.constant 5 : index
    %104 = memref.load %arg1[%c0_88, %c5_89] : memref<4x9xf32, #tpu.memory_space<smem>>
    %105 = vector.broadcast %104 : f32 to vector<87x87xf32>
    %106 = arith.mulf %105, %103 : vector<87x87xf32>
    %107 = arith.addf %101, %106 : vector<87x87xf32>
    %c1_90 = arith.constant 1 : index
    %c1_91 = arith.constant 1 : index
    %c0_92 = arith.constant 0 : index
    %108 = vector.load %arg0[%c1_90, %c1_91, %c0_92] : memref<4x88x88xf32, #tpu.memory_space<vmem>>, vector<1x87x87xf32>
    %109 = vector.shape_cast %108 : vector<1x87x87xf32> to vector<87x87xf32>
    %c0_93 = arith.constant 0 : index
    %c6_94 = arith.constant 6 : index
    %110 = memref.load %arg1[%c0_93, %c6_94] : memref<4x9xf32, #tpu.memory_space<smem>>
    %111 = vector.broadcast %110 : f32 to vector<87x87xf32>
    %112 = arith.mulf %111, %109 : vector<87x87xf32>
    %113 = arith.addf %107, %112 : vector<87x87xf32>
    %c0_95 = arith.constant 0 : index
    %c1_96 = arith.constant 1 : index
    %c0_97 = arith.constant 0 : index
    %114 = vector.load %arg6[%c0_95, %c1_96, %c0_97] : memref<4x88x87xf32, #tpu.memory_space<vmem>>, vector<1x87x87xf32>
    %115 = vector.shape_cast %114 : vector<1x87x87xf32> to vector<87x87xf32>
    %c0_98 = arith.constant 0 : index
    %c7_99 = arith.constant 7 : index
    %116 = memref.load %arg1[%c0_98, %c7_99] : memref<4x9xf32, #tpu.memory_space<smem>>
    %117 = vector.broadcast %116 : f32 to vector<87x87xf32>
    %118 = arith.mulf %117, %115 : vector<87x87xf32>
    %119 = arith.addf %113, %118 : vector<87x87xf32>
    %c1_100 = arith.constant 1 : index
    %c1_101 = arith.constant 1 : index
    %c0_102 = arith.constant 0 : index
    %120 = vector.load %arg6[%c1_100, %c1_101, %c0_102] : memref<4x88x87xf32, #tpu.memory_space<vmem>>, vector<1x87x87xf32>
    %121 = vector.shape_cast %120 : vector<1x87x87xf32> to vector<87x87xf32>
    %c0_103 = arith.constant 0 : index
    %c8_104 = arith.constant 8 : index
    %122 = memref.load %arg1[%c0_103, %c8_104] : memref<4x9xf32, #tpu.memory_space<smem>>
    %123 = vector.broadcast %122 : f32 to vector<87x87xf32>
    %124 = arith.mulf %123, %121 : vector<87x87xf32>
    %125 = arith.addf %119, %124 : vector<87x87xf32>
    %126 = arith.maximumf %72, %125 : vector<87x87xf32>
    %c2_105 = arith.constant 2 : index
    %c0_106 = arith.constant 0 : index
    %c0_107 = arith.constant 0 : index
    %127 = vector.load %arg0[%c2_105, %c0_106, %c0_107] : memref<4x88x88xf32, #tpu.memory_space<vmem>>, vector<1x87x87xf32>
    %128 = vector.shape_cast %127 : vector<1x87x87xf32> to vector<87x87xf32>
    %c0_108 = arith.constant 0 : index
    %c0_109 = arith.constant 0 : index
    %129 = memref.load %arg1[%c0_108, %c0_109] : memref<4x9xf32, #tpu.memory_space<smem>>
    %130 = vector.broadcast %129 : f32 to vector<87x87xf32>
    %131 = arith.mulf %130, %128 : vector<87x87xf32>
    %c3_110 = arith.constant 3 : index
    %c0_111 = arith.constant 0 : index
    %c0_112 = arith.constant 0 : index
    %132 = vector.load %arg0[%c3_110, %c0_111, %c0_112] : memref<4x88x88xf32, #tpu.memory_space<vmem>>, vector<1x87x87xf32>
    %133 = vector.shape_cast %132 : vector<1x87x87xf32> to vector<87x87xf32>
    %c0_113 = arith.constant 0 : index
    %c1_114 = arith.constant 1 : index
    %134 = memref.load %arg1[%c0_113, %c1_114] : memref<4x9xf32, #tpu.memory_space<smem>>
    %135 = vector.broadcast %134 : f32 to vector<87x87xf32>
    %136 = arith.mulf %135, %133 : vector<87x87xf32>
    %137 = arith.addf %131, %136 : vector<87x87xf32>
    %c2_115 = arith.constant 2 : index
    %c0_116 = arith.constant 0 : index
    %c0_117 = arith.constant 0 : index
    %138 = vector.load %arg6[%c2_115, %c0_116, %c0_117] : memref<4x88x87xf32, #tpu.memory_space<vmem>>, vector<1x87x87xf32>
    %139 = vector.shape_cast %138 : vector<1x87x87xf32> to vector<87x87xf32>
    %c0_118 = arith.constant 0 : index
    %c2_119 = arith.constant 2 : index
    %140 = memref.load %arg1[%c0_118, %c2_119] : memref<4x9xf32, #tpu.memory_space<smem>>
    %141 = vector.broadcast %140 : f32 to vector<87x87xf32>
    %142 = arith.mulf %141, %139 : vector<87x87xf32>
    %143 = arith.addf %137, %142 : vector<87x87xf32>
    %c0_120 = arith.constant 0 : index
    %c1_121 = arith.constant 1 : index
    %c0_122 = arith.constant 0 : index
    %144 = vector.load %arg0[%c0_120, %c1_121, %c0_122] : memref<4x88x88xf32, #tpu.memory_space<vmem>>, vector<1x87x87xf32>
    %145 = vector.shape_cast %144 : vector<1x87x87xf32> to vector<87x87xf32>
    %c0_123 = arith.constant 0 : index
    %c3_124 = arith.constant 3 : index
    %146 = memref.load %arg1[%c0_123, %c3_124] : memref<4x9xf32, #tpu.memory_space<smem>>
    %147 = vector.broadcast %146 : f32 to vector<87x87xf32>
    %148 = arith.mulf %147, %145 : vector<87x87xf32>
    %149 = arith.addf %143, %148 : vector<87x87xf32>
    %c1_125 = arith.constant 1 : index
    %c1_126 = arith.constant 1 : index
    %c0_127 = arith.constant 0 : index
    %150 = vector.load %arg0[%c1_125, %c1_126, %c0_127] : memref<4x88x88xf32, #tpu.memory_space<vmem>>, vector<1x87x87xf32>
    %151 = vector.shape_cast %150 : vector<1x87x87xf32> to vector<87x87xf32>
    %c0_128 = arith.constant 0 : index
    %c4_129 = arith.constant 4 : index
    %152 = memref.load %arg1[%c0_128, %c4_129] : memref<4x9xf32, #tpu.memory_space<smem>>
    %153 = vector.broadcast %152 : f32 to vector<87x87xf32>
    %154 = arith.mulf %153, %151 : vector<87x87xf32>
    %155 = arith.addf %149, %154 : vector<87x87xf32>
    %c0_130 = arith.constant 0 : index
    %c1_131 = arith.constant 1 : index
    %c0_132 = arith.constant 0 : index
    %156 = vector.load %arg6[%c0_130, %c1_131, %c0_132] : memref<4x88x87xf32, #tpu.memory_space<vmem>>, vector<1x87x87xf32>
    %157 = vector.shape_cast %156 : vector<1x87x87xf32> to vector<87x87xf32>
    %c0_133 = arith.constant 0 : index
    %c5_134 = arith.constant 5 : index
    %158 = memref.load %arg1[%c0_133, %c5_134] : memref<4x9xf32, #tpu.memory_space<smem>>
    %159 = vector.broadcast %158 : f32 to vector<87x87xf32>
    %160 = arith.mulf %159, %157 : vector<87x87xf32>
    %161 = arith.addf %155, %160 : vector<87x87xf32>
    %c2_135 = arith.constant 2 : index
    %c1_136 = arith.constant 1 : index
    %c0_137 = arith.constant 0 : index
    %162 = vector.load %arg0[%c2_135, %c1_136, %c0_137] : memref<4x88x88xf32, #tpu.memory_space<vmem>>, vector<1x87x87xf32>
    %163 = vector.shape_cast %162 : vector<1x87x87xf32> to vector<87x87xf32>
    %c0_138 = arith.constant 0 : index
    %c6_139 = arith.constant 6 : index
    %164 = memref.load %arg1[%c0_138, %c6_139] : memref<4x9xf32, #tpu.memory_space<smem>>
    %165 = vector.broadcast %164 : f32 to vector<87x87xf32>
    %166 = arith.mulf %165, %163 : vector<87x87xf32>
    %167 = arith.addf %161, %166 : vector<87x87xf32>
    %c3_140 = arith.constant 3 : index
    %c1_141 = arith.constant 1 : index
    %c0_142 = arith.constant 0 : index
    %168 = vector.load %arg0[%c3_140, %c1_141, %c0_142] : memref<4x88x88xf32, #tpu.memory_space<vmem>>, vector<1x87x87xf32>
    %169 = vector.shape_cast %168 : vector<1x87x87xf32> to vector<87x87xf32>
    %c0_143 = arith.constant 0 : index
    %c7_144 = arith.constant 7 : index
    %170 = memref.load %arg1[%c0_143, %c7_144] : memref<4x9xf32, #tpu.memory_space<smem>>
    %171 = vector.broadcast %170 : f32 to vector<87x87xf32>
    %172 = arith.mulf %171, %169 : vector<87x87xf32>
    %173 = arith.addf %167, %172 : vector<87x87xf32>
    %c2_145 = arith.constant 2 : index
    %c1_146 = arith.constant 1 : index
    %c0_147 = arith.constant 0 : index
    %174 = vector.load %arg6[%c2_145, %c1_146, %c0_147] : memref<4x88x87xf32, #tpu.memory_space<vmem>>, vector<1x87x87xf32>
    %175 = vector.shape_cast %174 : vector<1x87x87xf32> to vector<87x87xf32>
    %c0_148 = arith.constant 0 : index
    %c8_149 = arith.constant 8 : index
    %176 = memref.load %arg1[%c0_148, %c8_149] : memref<4x9xf32, #tpu.memory_space<smem>>
    %177 = vector.broadcast %176 : f32 to vector<87x87xf32>
    %178 = arith.mulf %177, %175 : vector<87x87xf32>
    %179 = arith.addf %173, %178 : vector<87x87xf32>
    %180 = arith.maximumf %126, %179 : vector<87x87xf32>
    %c3_150 = arith.constant 3 : index
    %c0_151 = arith.constant 0 : index
    %c0_152 = arith.constant 0 : index
    %181 = vector.load %arg0[%c3_150, %c0_151, %c0_152] : memref<4x88x88xf32, #tpu.memory_space<vmem>>, vector<1x87x87xf32>
    %182 = vector.shape_cast %181 : vector<1x87x87xf32> to vector<87x87xf32>
    %c0_153 = arith.constant 0 : index
    %c0_154 = arith.constant 0 : index
    %183 = memref.load %arg1[%c0_153, %c0_154] : memref<4x9xf32, #tpu.memory_space<smem>>
    %184 = vector.broadcast %183 : f32 to vector<87x87xf32>
    %185 = arith.mulf %184, %182 : vector<87x87xf32>
    %c2_155 = arith.constant 2 : index
    %c0_156 = arith.constant 0 : index
    %c0_157 = arith.constant 0 : index
    %186 = vector.load %arg6[%c2_155, %c0_156, %c0_157] : memref<4x88x87xf32, #tpu.memory_space<vmem>>, vector<1x87x87xf32>
    %187 = vector.shape_cast %186 : vector<1x87x87xf32> to vector<87x87xf32>
    %c0_158 = arith.constant 0 : index
    %c1_159 = arith.constant 1 : index
    %188 = memref.load %arg1[%c0_158, %c1_159] : memref<4x9xf32, #tpu.memory_space<smem>>
    %189 = vector.broadcast %188 : f32 to vector<87x87xf32>
    %190 = arith.mulf %189, %187 : vector<87x87xf32>
    %191 = arith.addf %185, %190 : vector<87x87xf32>
    %c3_160 = arith.constant 3 : index
    %c0_161 = arith.constant 0 : index
    %c0_162 = arith.constant 0 : index
    %192 = vector.load %arg6[%c3_160, %c0_161, %c0_162] : memref<4x88x87xf32, #tpu.memory_space<vmem>>, vector<1x87x87xf32>
    %193 = vector.shape_cast %192 : vector<1x87x87xf32> to vector<87x87xf32>
    %c0_163 = arith.constant 0 : index
    %c2_164 = arith.constant 2 : index
    %194 = memref.load %arg1[%c0_163, %c2_164] : memref<4x9xf32, #tpu.memory_space<smem>>
    %195 = vector.broadcast %194 : f32 to vector<87x87xf32>
    %196 = arith.mulf %195, %193 : vector<87x87xf32>
    %197 = arith.addf %191, %196 : vector<87x87xf32>
    %c1_165 = arith.constant 1 : index
    %c1_166 = arith.constant 1 : index
    %c0_167 = arith.constant 0 : index
    %198 = vector.load %arg0[%c1_165, %c1_166, %c0_167] : memref<4x88x88xf32, #tpu.memory_space<vmem>>, vector<1x87x87xf32>
    %199 = vector.shape_cast %198 : vector<1x87x87xf32> to vector<87x87xf32>
    %c0_168 = arith.constant 0 : index
    %c3_169 = arith.constant 3 : index
    %200 = memref.load %arg1[%c0_168, %c3_169] : memref<4x9xf32, #tpu.memory_space<smem>>
    %201 = vector.broadcast %200 : f32 to vector<87x87xf32>
    %202 = arith.mulf %201, %199 : vector<87x87xf32>
    %203 = arith.addf %197, %202 : vector<87x87xf32>
    %c0_170 = arith.constant 0 : index
    %c1_171 = arith.constant 1 : index
    %c0_172 = arith.constant 0 : index
    %204 = vector.load %arg6[%c0_170, %c1_171, %c0_172] : memref<4x88x87xf32, #tpu.memory_space<vmem>>, vector<1x87x87xf32>
    %205 = vector.shape_cast %204 : vector<1x87x87xf32> to vector<87x87xf32>
    %c0_173 = arith.constant 0 : index
    %c4_174 = arith.constant 4 : index
    %206 = memref.load %arg1[%c0_173, %c4_174] : memref<4x9xf32, #tpu.memory_space<smem>>
    %207 = vector.broadcast %206 : f32 to vector<87x87xf32>
    %208 = arith.mulf %207, %205 : vector<87x87xf32>
    %209 = arith.addf %203, %208 : vector<87x87xf32>
    %c1_175 = arith.constant 1 : index
    %c1_176 = arith.constant 1 : index
    %c0_177 = arith.constant 0 : index
    %210 = vector.load %arg6[%c1_175, %c1_176, %c0_177] : memref<4x88x87xf32, #tpu.memory_space<vmem>>, vector<1x87x87xf32>
    %211 = vector.shape_cast %210 : vector<1x87x87xf32> to vector<87x87xf32>
    %c0_178 = arith.constant 0 : index
    %c5_179 = arith.constant 5 : index
    %212 = memref.load %arg1[%c0_178, %c5_179] : memref<4x9xf32, #tpu.memory_space<smem>>
    %213 = vector.broadcast %212 : f32 to vector<87x87xf32>
    %214 = arith.mulf %213, %211 : vector<87x87xf32>
    %215 = arith.addf %209, %214 : vector<87x87xf32>
    %c3_180 = arith.constant 3 : index
    %c1_181 = arith.constant 1 : index
    %c0_182 = arith.constant 0 : index
    %216 = vector.load %arg0[%c3_180, %c1_181, %c0_182] : memref<4x88x88xf32, #tpu.memory_space<vmem>>, vector<1x87x87xf32>
    %217 = vector.shape_cast %216 : vector<1x87x87xf32> to vector<87x87xf32>
    %c0_183 = arith.constant 0 : index
    %c6_184 = arith.constant 6 : index
    %218 = memref.load %arg1[%c0_183, %c6_184] : memref<4x9xf32, #tpu.memory_space<smem>>
    %219 = vector.broadcast %218 : f32 to vector<87x87xf32>
    %220 = arith.mulf %219, %217 : vector<87x87xf32>
    %221 = arith.addf %215, %220 : vector<87x87xf32>
    %c2_185 = arith.constant 2 : index
    %c1_186 = arith.constant 1 : index
    %c0_187 = arith.constant 0 : index
    %222 = vector.load %arg6[%c2_185, %c1_186, %c0_187] : memref<4x88x87xf32, #tpu.memory_space<vmem>>, vector<1x87x87xf32>
    %223 = vector.shape_cast %222 : vector<1x87x87xf32> to vector<87x87xf32>
    %c0_188 = arith.constant 0 : index
    %c7_189 = arith.constant 7 : index
    %224 = memref.load %arg1[%c0_188, %c7_189] : memref<4x9xf32, #tpu.memory_space<smem>>
    %225 = vector.broadcast %224 : f32 to vector<87x87xf32>
    %226 = arith.mulf %225, %223 : vector<87x87xf32>
    %227 = arith.addf %221, %226 : vector<87x87xf32>
    %c3_190 = arith.constant 3 : index
    %c1_191 = arith.constant 1 : index
    %c0_192 = arith.constant 0 : index
    %228 = vector.load %arg6[%c3_190, %c1_191, %c0_192] : memref<4x88x87xf32, #tpu.memory_space<vmem>>, vector<1x87x87xf32>
    %229 = vector.shape_cast %228 : vector<1x87x87xf32> to vector<87x87xf32>
    %c0_193 = arith.constant 0 : index
    %c8_194 = arith.constant 8 : index
    %230 = memref.load %arg1[%c0_193, %c8_194] : memref<4x9xf32, #tpu.memory_space<smem>>
    %231 = vector.broadcast %230 : f32 to vector<87x87xf32>
    %232 = arith.mulf %231, %229 : vector<87x87xf32>
    %233 = arith.addf %227, %232 : vector<87x87xf32>
    %234 = arith.maximumf %180, %233 : vector<87x87xf32>
    %c0_195 = arith.constant 0 : index
    %235 = memref.load %arg2[%c0_195] : memref<4xf32, #tpu.memory_space<smem>>
    %236 = vector.broadcast %235 : f32 to vector<87x87xf32>
    %237 = arith.addf %234, %236 : vector<87x87xf32>
    %cst = arith.constant 0.000000e+00 : f32
    %238 = vector.broadcast %cst : f32 to vector<87x87xf32>
    %239 = arith.maximumf %237, %238 : vector<87x87xf32>
    %c0_196 = arith.constant 0 : index
    %c0_197 = arith.constant 0 : index
    %c0_198 = arith.constant 0 : index
    %240 = vector.load %arg7[%c0_196, %c0_197, %c0_198] : memref<4x87x87xf32, #tpu.memory_space<vmem>>, vector<1x87x87xf32>
    %241 = vector.shape_cast %240 : vector<1x87x87xf32> to vector<87x87xf32>
    %242 = vector.shape_cast %239 : vector<87x87xf32> to vector<1x87x87xf32>
    tpu.vector_store %arg7[%c0_196, %c0_197, %c0_198], %242 {strides = array<i32>} : memref<4x87x87xf32, #tpu.memory_space<vmem>>, vector<1x87x87xf32>,
    %c0_199 = arith.constant 0 : index
    %c0_200 = arith.constant 0 : index
    %c0_201 = arith.constant 0 : index
    %243 = vector.load %arg0[%c0_199, %c0_200, %c0_201] : memref<4x88x88xf32, #tpu.memory_space<vmem>>, vector<1x87x87xf32>
    %244 = vector.shape_cast %243 : vector<1x87x87xf32> to vector<87x87xf32>
    %c1_202 = arith.constant 1 : index
    %c0_203 = arith.constant 0 : index
    %245 = memref.load %arg1[%c1_202, %c0_203] : memref<4x9xf32, #tpu.memory_space<smem>>
    %246 = vector.broadcast %245 : f32 to vector<87x87xf32>
    %247 = arith.mulf %246, %244 : vector<87x87xf32>
    %c1_204 = arith.constant 1 : index
    %c0_205 = arith.constant 0 : index
    %c0_206 = arith.constant 0 : index
    %248 = vector.load %arg0[%c1_204, %c0_205, %c0_206] : memref<4x88x88xf32, #tpu.memory_space<vmem>>, vector<1x87x87xf32>
    %249 = vector.shape_cast %248 : vector<1x87x87xf32> to vector<87x87xf32>
    %c1_207 = arith.constant 1 : index
    %c1_208 = arith.constant 1 : index
    %250 = memref.load %arg1[%c1_207, %c1_208] : memref<4x9xf32, #tpu.memory_space<smem>>
    %251 = vector.broadcast %250 : f32 to vector<87x87xf32>
    %252 = arith.mulf %251, %249 : vector<87x87xf32>
    %253 = arith.addf %247, %252 : vector<87x87xf32>
    %c0_209 = arith.constant 0 : index
    %c0_210 = arith.constant 0 : index
    %c0_211 = arith.constant 0 : index
    %254 = vector.load %arg6[%c0_209, %c0_210, %c0_211] : memref<4x88x87xf32, #tpu.memory_space<vmem>>, vector<1x87x87xf32>
    %255 = vector.shape_cast %254 : vector<1x87x87xf32> to vector<87x87xf32>
    %c1_212 = arith.constant 1 : index
    %c2_213 = arith.constant 2 : index
    %256 = memref.load %arg1[%c1_212, %c2_213] : memref<4x9xf32, #tpu.memory_space<smem>>
    %257 = vector.broadcast %256 : f32 to vector<87x87xf32>
    %258 = arith.mulf %257, %255 : vector<87x87xf32>
    %259 = arith.addf %253, %258 : vector<87x87xf32>
    %c2_214 = arith.constant 2 : index
    %c0_215 = arith.constant 0 : index
    %c0_216 = arith.constant 0 : index
    %260 = vector.load %arg0[%c2_214, %c0_215, %c0_216] : memref<4x88x88xf32, #tpu.memory_space<vmem>>, vector<1x87x87xf32>
    %261 = vector.shape_cast %260 : vector<1x87x87xf32> to vector<87x87xf32>
    %c1_217 = arith.constant 1 : index
    %c3_218 = arith.constant 3 : index
    %262 = memref.load %arg1[%c1_217, %c3_218] : memref<4x9xf32, #tpu.memory_space<smem>>
    %263 = vector.broadcast %262 : f32 to vector<87x87xf32>
    %264 = arith.mulf %263, %261 : vector<87x87xf32>
    %265 = arith.addf %259, %264 : vector<87x87xf32>
    %c3_219 = arith.constant 3 : index
    %c0_220 = arith.constant 0 : index
    %c0_221 = arith.constant 0 : index
    %266 = vector.load %arg0[%c3_219, %c0_220, %c0_221] : memref<4x88x88xf32, #tpu.memory_space<vmem>>, vector<1x87x87xf32>
    %267 = vector.shape_cast %266 : vector<1x87x87xf32> to vector<87x87xf32>
    %c1_222 = arith.constant 1 : index
    %c4_223 = arith.constant 4 : index
    %268 = memref.load %arg1[%c1_222, %c4_223] : memref<4x9xf32, #tpu.memory_space<smem>>
    %269 = vector.broadcast %268 : f32 to vector<87x87xf32>
    %270 = arith.mulf %269, %267 : vector<87x87xf32>
    %271 = arith.addf %265, %270 : vector<87x87xf32>
    %c2_224 = arith.constant 2 : index
    %c0_225 = arith.constant 0 : index
    %c0_226 = arith.constant 0 : index
    %272 = vector.load %arg6[%c2_224, %c0_225, %c0_226] : memref<4x88x87xf32, #tpu.memory_space<vmem>>, vector<1x87x87xf32>
    %273 = vector.shape_cast %272 : vector<1x87x87xf32> to vector<87x87xf32>
    %c1_227 = arith.constant 1 : index
    %c5_228 = arith.constant 5 : index
    %274 = memref.load %arg1[%c1_227, %c5_228] : memref<4x9xf32, #tpu.memory_space<smem>>
    %275 = vector.broadcast %274 : f32 to vector<87x87xf32>
    %276 = arith.mulf %275, %273 : vector<87x87xf32>
    %277 = arith.addf %271, %276 : vector<87x87xf32>
    %c0_229 = arith.constant 0 : index
    %c1_230 = arith.constant 1 : index
    %c0_231 = arith.constant 0 : index
    %278 = vector.load %arg0[%c0_229, %c1_230, %c0_231] : memref<4x88x88xf32, #tpu.memory_space<vmem>>, vector<1x87x87xf32>
    %279 = vector.shape_cast %278 : vector<1x87x87xf32> to vector<87x87xf32>
    %c1_232 = arith.constant 1 : index
    %c6_233 = arith.constant 6 : index
    %280 = memref.load %arg1[%c1_232, %c6_233] : memref<4x9xf32, #tpu.memory_space<smem>>
    %281 = vector.broadcast %280 : f32 to vector<87x87xf32>
    %282 = arith.mulf %281, %279 : vector<87x87xf32>
    %283 = arith.addf %277, %282 : vector<87x87xf32>
    %c1_234 = arith.constant 1 : index
    %c1_235 = arith.constant 1 : index
    %c0_236 = arith.constant 0 : index
    %284 = vector.load %arg0[%c1_234, %c1_235, %c0_236] : memref<4x88x88xf32, #tpu.memory_space<vmem>>, vector<1x87x87xf32>
    %285 = vector.shape_cast %284 : vector<1x87x87xf32> to vector<87x87xf32>
    %c1_237 = arith.constant 1 : index
    %c7_238 = arith.constant 7 : index
    %286 = memref.load %arg1[%c1_237, %c7_238] : memref<4x9xf32, #tpu.memory_space<smem>>
    %287 = vector.broadcast %286 : f32 to vector<87x87xf32>
    %288 = arith.mulf %287, %285 : vector<87x87xf32>
    %289 = arith.addf %283, %288 : vector<87x87xf32>
    %c0_239 = arith.constant 0 : index
    %c1_240 = arith.constant 1 : index
    %c0_241 = arith.constant 0 : index
    %290 = vector.load %arg6[%c0_239, %c1_240, %c0_241] : memref<4x88x87xf32, #tpu.memory_space<vmem>>, vector<1x87x87xf32>
    %291 = vector.shape_cast %290 : vector<1x87x87xf32> to vector<87x87xf32>
    %c1_242 = arith.constant 1 : index
    %c8_243 = arith.constant 8 : index
    %292 = memref.load %arg1[%c1_242, %c8_243] : memref<4x9xf32, #tpu.memory_space<smem>>
    %293 = vector.broadcast %292 : f32 to vector<87x87xf32>
    %294 = arith.mulf %293, %291 : vector<87x87xf32>
    %295 = arith.addf %289, %294 : vector<87x87xf32>
    %c1_244 = arith.constant 1 : index
    %c0_245 = arith.constant 0 : index
    %c0_246 = arith.constant 0 : index
    %296 = vector.load %arg0[%c1_244, %c0_245, %c0_246] : memref<4x88x88xf32, #tpu.memory_space<vmem>>, vector<1x87x87xf32>
    %297 = vector.shape_cast %296 : vector<1x87x87xf32> to vector<87x87xf32>
    %c1_247 = arith.constant 1 : index
    %c0_248 = arith.constant 0 : index
    %298 = memref.load %arg1[%c1_247, %c0_248] : memref<4x9xf32, #tpu.memory_space<smem>>
    %299 = vector.broadcast %298 : f32 to vector<87x87xf32>
    %300 = arith.mulf %299, %297 : vector<87x87xf32>
    %c0_249 = arith.constant 0 : index
    %c0_250 = arith.constant 0 : index
    %c0_251 = arith.constant 0 : index
    %301 = vector.load %arg6[%c0_249, %c0_250, %c0_251] : memref<4x88x87xf32, #tpu.memory_space<vmem>>, vector<1x87x87xf32>
    %302 = vector.shape_cast %301 : vector<1x87x87xf32> to vector<87x87xf32>
    %c1_252 = arith.constant 1 : index
    %c1_253 = arith.constant 1 : index
    %303 = memref.load %arg1[%c1_252, %c1_253] : memref<4x9xf32, #tpu.memory_space<smem>>
    %304 = vector.broadcast %303 : f32 to vector<87x87xf32>
    %305 = arith.mulf %304, %302 : vector<87x87xf32>
    %306 = arith.addf %300, %305 : vector<87x87xf32>
    %c1_254 = arith.constant 1 : index
    %c0_255 = arith.constant 0 : index
    %c0_256 = arith.constant 0 : index
    %307 = vector.load %arg6[%c1_254, %c0_255, %c0_256] : memref<4x88x87xf32, #tpu.memory_space<vmem>>, vector<1x87x87xf32>
    %308 = vector.shape_cast %307 : vector<1x87x87xf32> to vector<87x87xf32>
    %c1_257 = arith.constant 1 : index
    %c2_258 = arith.constant 2 : index
    %309 = memref.load %arg1[%c1_257, %c2_258] : memref<4x9xf32, #tpu.memory_space<smem>>
    %310 = vector.broadcast %309 : f32 to vector<87x87xf32>
    %311 = arith.mulf %310, %308 : vector<87x87xf32>
    %312 = arith.addf %306, %311 : vector<87x87xf32>
    %c3_259 = arith.constant 3 : index
    %c0_260 = arith.constant 0 : index
    %c0_261 = arith.constant 0 : index
    %313 = vector.load %arg0[%c3_259, %c0_260, %c0_261] : memref<4x88x88xf32, #tpu.memory_space<vmem>>, vector<1x87x87xf32>
    %314 = vector.shape_cast %313 : vector<1x87x87xf32> to vector<87x87xf32>
    %c1_262 = arith.constant 1 : index
    %c3_263 = arith.constant 3 : index
    %315 = memref.load %arg1[%c1_262, %c3_263] : memref<4x9xf32, #tpu.memory_space<smem>>
    %316 = vector.broadcast %315 : f32 to vector<87x87xf32>
    %317 = arith.mulf %316, %314 : vector<87x87xf32>
    %318 = arith.addf %312, %317 : vector<87x87xf32>
    %c2_264 = arith.constant 2 : index
    %c0_265 = arith.constant 0 : index
    %c0_266 = arith.constant 0 : index
    %319 = vector.load %arg6[%c2_264, %c0_265, %c0_266] : memref<4x88x87xf32, #tpu.memory_space<vmem>>, vector<1x87x87xf32>
    %320 = vector.shape_cast %319 : vector<1x87x87xf32> to vector<87x87xf32>
    %c1_267 = arith.constant 1 : index
    %c4_268 = arith.constant 4 : index
    %321 = memref.load %arg1[%c1_267, %c4_268] : memref<4x9xf32, #tpu.memory_space<smem>>
    %322 = vector.broadcast %321 : f32 to vector<87x87xf32>
    %323 = arith.mulf %322, %320 : vector<87x87xf32>
    %324 = arith.addf %318, %323 : vector<87x87xf32>
    %c3_269 = arith.constant 3 : index
    %c0_270 = arith.constant 0 : index
    %c0_271 = arith.constant 0 : index
    %325 = vector.load %arg6[%c3_269, %c0_270, %c0_271] : memref<4x88x87xf32, #tpu.memory_space<vmem>>, vector<1x87x87xf32>
    %326 = vector.shape_cast %325 : vector<1x87x87xf32> to vector<87x87xf32>
    %c1_272 = arith.constant 1 : index
    %c5_273 = arith.constant 5 : index
    %327 = memref.load %arg1[%c1_272, %c5_273] : memref<4x9xf32, #tpu.memory_space<smem>>
    %328 = vector.broadcast %327 : f32 to vector<87x87xf32>
    %329 = arith.mulf %328, %326 : vector<87x87xf32>
    %330 = arith.addf %324, %329 : vector<87x87xf32>
    %c1_274 = arith.constant 1 : index
    %c1_275 = arith.constant 1 : index
    %c0_276 = arith.constant 0 : index
    %331 = vector.load %arg0[%c1_274, %c1_275, %c0_276] : memref<4x88x88xf32, #tpu.memory_space<vmem>>, vector<1x87x87xf32>
    %332 = vector.shape_cast %331 : vector<1x87x87xf32> to vector<87x87xf32>
    %c1_277 = arith.constant 1 : index
    %c6_278 = arith.constant 6 : index
    %333 = memref.load %arg1[%c1_277, %c6_278] : memref<4x9xf32, #tpu.memory_space<smem>>
    %334 = vector.broadcast %333 : f32 to vector<87x87xf32>
    %335 = arith.mulf %334, %332 : vector<87x87xf32>
    %336 = arith.addf %330, %335 : vector<87x87xf32>
    %c0_279 = arith.constant 0 : index
    %c1_280 = arith.constant 1 : index
    %c0_281 = arith.constant 0 : index
    %337 = vector.load %arg6[%c0_279, %c1_280, %c0_281] : memref<4x88x87xf32, #tpu.memory_space<vmem>>, vector<1x87x87xf32>
    %338 = vector.shape_cast %337 : vector<1x87x87xf32> to vector<87x87xf32>
    %c1_282 = arith.constant 1 : index
    %c7_283 = arith.constant 7 : index
    %339 = memref.load %arg1[%c1_282, %c7_283] : memref<4x9xf32, #tpu.memory_space<smem>>
    %340 = vector.broadcast %339 : f32 to vector<87x87xf32>
    %341 = arith.mulf %340, %338 : vector<87x87xf32>
    %342 = arith.addf %336, %341 : vector<87x87xf32>
    %c1_284 = arith.constant 1 : index
    %c1_285 = arith.constant 1 : index
    %c0_286 = arith.constant 0 : index
    %343 = vector.load %arg6[%c1_284, %c1_285, %c0_286] : memref<4x88x87xf32, #tpu.memory_space<vmem>>, vector<1x87x87xf32>
    %344 = vector.shape_cast %343 : vector<1x87x87xf32> to vector<87x87xf32>
    %c1_287 = arith.constant 1 : index
    %c8_288 = arith.constant 8 : index
    %345 = memref.load %arg1[%c1_287, %c8_288] : memref<4x9xf32, #tpu.memory_space<smem>>
    %346 = vector.broadcast %345 : f32 to vector<87x87xf32>
    %347 = arith.mulf %346, %344 : vector<87x87xf32>
    %348 = arith.addf %342, %347 : vector<87x87xf32>
    %349 = arith.maximumf %295, %348 : vector<87x87xf32>
    %c2_289 = arith.constant 2 : index
    %c0_290 = arith.constant 0 : index
    %c0_291 = arith.constant 0 : index
    %350 = vector.load %arg0[%c2_289, %c0_290, %c0_291] : memref<4x88x88xf32, #tpu.memory_space<vmem>>, vector<1x87x87xf32>
    %351 = vector.shape_cast %350 : vector<1x87x87xf32> to vector<87x87xf32>
    %c1_292 = arith.constant 1 : index
    %c0_293 = arith.constant 0 : index
    %352 = memref.load %arg1[%c1_292, %c0_293] : memref<4x9xf32, #tpu.memory_space<smem>>
    %353 = vector.broadcast %352 : f32 to vector<87x87xf32>
    %354 = arith.mulf %353, %351 : vector<87x87xf32>
    %c3_294 = arith.constant 3 : index
    %c0_295 = arith.constant 0 : index
    %c0_296 = arith.constant 0 : index
    %355 = vector.load %arg0[%c3_294, %c0_295, %c0_296] : memref<4x88x88xf32, #tpu.memory_space<vmem>>, vector<1x87x87xf32>
    %356 = vector.shape_cast %355 : vector<1x87x87xf32> to vector<87x87xf32>
    %c1_297 = arith.constant 1 : index
    %c1_298 = arith.constant 1 : index
    %357 = memref.load %arg1[%c1_297, %c1_298] : memref<4x9xf32, #tpu.memory_space<smem>>
    %358 = vector.broadcast %357 : f32 to vector<87x87xf32>
    %359 = arith.mulf %358, %356 : vector<87x87xf32>
    %360 = arith.addf %354, %359 : vector<87x87xf32>
    %c2_299 = arith.constant 2 : index
    %c0_300 = arith.constant 0 : index
    %c0_301 = arith.constant 0 : index
    %361 = vector.load %arg6[%c2_299, %c0_300, %c0_301] : memref<4x88x87xf32, #tpu.memory_space<vmem>>, vector<1x87x87xf32>
    %362 = vector.shape_cast %361 : vector<1x87x87xf32> to vector<87x87xf32>
    %c1_302 = arith.constant 1 : index
    %c2_303 = arith.constant 2 : index
    %363 = memref.load %arg1[%c1_302, %c2_303] : memref<4x9xf32, #tpu.memory_space<smem>>
    %364 = vector.broadcast %363 : f32 to vector<87x87xf32>
    %365 = arith.mulf %364, %362 : vector<87x87xf32>
    %366 = arith.addf %360, %365 : vector<87x87xf32>
    %c0_304 = arith.constant 0 : index
    %c1_305 = arith.constant 1 : index
    %c0_306 = arith.constant 0 : index
    %367 = vector.load %arg0[%c0_304, %c1_305, %c0_306] : memref<4x88x88xf32, #tpu.memory_space<vmem>>, vector<1x87x87xf32>
    %368 = vector.shape_cast %367 : vector<1x87x87xf32> to vector<87x87xf32>
    %c1_307 = arith.constant 1 : index
    %c3_308 = arith.constant 3 : index
    %369 = memref.load %arg1[%c1_307, %c3_308] : memref<4x9xf32, #tpu.memory_space<smem>>
    %370 = vector.broadcast %369 : f32 to vector<87x87xf32>
    %371 = arith.mulf %370, %368 : vector<87x87xf32>
    %372 = arith.addf %366, %371 : vector<87x87xf32>
    %c1_309 = arith.constant 1 : index
    %c1_310 = arith.constant 1 : index
    %c0_311 = arith.constant 0 : index
    %373 = vector.load %arg0[%c1_309, %c1_310, %c0_311] : memref<4x88x88xf32, #tpu.memory_space<vmem>>, vector<1x87x87xf32>
    %374 = vector.shape_cast %373 : vector<1x87x87xf32> to vector<87x87xf32>
    %c1_312 = arith.constant 1 : index
    %c4_313 = arith.constant 4 : index
    %375 = memref.load %arg1[%c1_312, %c4_313] : memref<4x9xf32, #tpu.memory_space<smem>>
    %376 = vector.broadcast %375 : f32 to vector<87x87xf32>
    %377 = arith.mulf %376, %374 : vector<87x87xf32>
    %378 = arith.addf %372, %377 : vector<87x87xf32>
    %c0_314 = arith.constant 0 : index
    %c1_315 = arith.constant 1 : index
    %c0_316 = arith.constant 0 : index
    %379 = vector.load %arg6[%c0_314, %c1_315, %c0_316] : memref<4x88x87xf32, #tpu.memory_space<vmem>>, vector<1x87x87xf32>
    %380 = vector.shape_cast %379 : vector<1x87x87xf32> to vector<87x87xf32>
    %c1_317 = arith.constant 1 : index
    %c5_318 = arith.constant 5 : index
    %381 = memref.load %arg1[%c1_317, %c5_318] : memref<4x9xf32, #tpu.memory_space<smem>>
    %382 = vector.broadcast %381 : f32 to vector<87x87xf32>
    %383 = arith.mulf %382, %380 : vector<87x87xf32>
    %384 = arith.addf %378, %383 : vector<87x87xf32>
    %c2_319 = arith.constant 2 : index
    %c1_320 = arith.constant 1 : index
    %c0_321 = arith.constant 0 : index
    %385 = vector.load %arg0[%c2_319, %c1_320, %c0_321] : memref<4x88x88xf32, #tpu.memory_space<vmem>>, vector<1x87x87xf32>
    %386 = vector.shape_cast %385 : vector<1x87x87xf32> to vector<87x87xf32>
    %c1_322 = arith.constant 1 : index
    %c6_323 = arith.constant 6 : index
    %387 = memref.load %arg1[%c1_322, %c6_323] : memref<4x9xf32, #tpu.memory_space<smem>>
    %388 = vector.broadcast %387 : f32 to vector<87x87xf32>
    %389 = arith.mulf %388, %386 : vector<87x87xf32>
    %390 = arith.addf %384, %389 : vector<87x87xf32>
    %c3_324 = arith.constant 3 : index
    %c1_325 = arith.constant 1 : index
    %c0_326 = arith.constant 0 : index
    %391 = vector.load %arg0[%c3_324, %c1_325, %c0_326] : memref<4x88x88xf32, #tpu.memory_space<vmem>>, vector<1x87x87xf32>
    %392 = vector.shape_cast %391 : vector<1x87x87xf32> to vector<87x87xf32>
    %c1_327 = arith.constant 1 : index
    %c7_328 = arith.constant 7 : index
    %393 = memref.load %arg1[%c1_327, %c7_328] : memref<4x9xf32, #tpu.memory_space<smem>>
    %394 = vector.broadcast %393 : f32 to vector<87x87xf32>
    %395 = arith.mulf %394, %392 : vector<87x87xf32>
    %396 = arith.addf %390, %395 : vector<87x87xf32>
    %c2_329 = arith.constant 2 : index
    %c1_330 = arith.constant 1 : index
    %c0_331 = arith.constant 0 : index
    %397 = vector.load %arg6[%c2_329, %c1_330, %c0_331] : memref<4x88x87xf32, #tpu.memory_space<vmem>>, vector<1x87x87xf32>
    %398 = vector.shape_cast %397 : vector<1x87x87xf32> to vector<87x87xf32>
    %c1_332 = arith.constant 1 : index
    %c8_333 = arith.constant 8 : index
    %399 = memref.load %arg1[%c1_332, %c8_333] : memref<4x9xf32, #tpu.memory_space<smem>>
    %400 = vector.broadcast %399 : f32 to vector<87x87xf32>
    %401 = arith.mulf %400, %398 : vector<87x87xf32>
    %402 = arith.addf %396, %401 : vector<87x87xf32>
    %403 = arith.maximumf %349, %402 : vector<87x87xf32>
    %c3_334 = arith.constant 3 : index
    %c0_335 = arith.constant 0 : index
    %c0_336 = arith.constant 0 : index
    %404 = vector.load %arg0[%c3_334, %c0_335, %c0_336] : memref<4x88x88xf32, #tpu.memory_space<vmem>>, vector<1x87x87xf32>
    %405 = vector.shape_cast %404 : vector<1x87x87xf32> to vector<87x87xf32>
    %c1_337 = arith.constant 1 : index
    %c0_338 = arith.constant 0 : index
    %406 = memref.load %arg1[%c1_337, %c0_338] : memref<4x9xf32, #tpu.memory_space<smem>>
    %407 = vector.broadcast %406 : f32 to vector<87x87xf32>
    %408 = arith.mulf %407, %405 : vector<87x87xf32>
    %c2_339 = arith.constant 2 : index
    %c0_340 = arith.constant 0 : index
    %c0_341 = arith.constant 0 : index
    %409 = vector.load %arg6[%c2_339, %c0_340, %c0_341] : memref<4x88x87xf32, #tpu.memory_space<vmem>>, vector<1x87x87xf32>
    %410 = vector.shape_cast %409 : vector<1x87x87xf32> to vector<87x87xf32>
    %c1_342 = arith.constant 1 : index
    %c1_343 = arith.constant 1 : index
    %411 = memref.load %arg1[%c1_342, %c1_343] : memref<4x9xf32, #tpu.memory_space<smem>>
    %412 = vector.broadcast %411 : f32 to vector<87x87xf32>
    %413 = arith.mulf %412, %410 : vector<87x87xf32>
    %414 = arith.addf %408, %413 : vector<87x87xf32>
    %c3_344 = arith.constant 3 : index
    %c0_345 = arith.constant 0 : index
    %c0_346 = arith.constant 0 : index
    %415 = vector.load %arg6[%c3_344, %c0_345, %c0_346] : memref<4x88x87xf32, #tpu.memory_space<vmem>>, vector<1x87x87xf32>
    %416 = vector.shape_cast %415 : vector<1x87x87xf32> to vector<87x87xf32>
    %c1_347 = arith.constant 1 : index
    %c2_348 = arith.constant 2 : index
    %417 = memref.load %arg1[%c1_347, %c2_348] : memref<4x9xf32, #tpu.memory_space<smem>>
    %418 = vector.broadcast %417 : f32 to vector<87x87xf32>
    %419 = arith.mulf %418, %416 : vector<87x87xf32>
    %420 = arith.addf %414, %419 : vector<87x87xf32>
    %c1_349 = arith.constant 1 : index
    %c1_350 = arith.constant 1 : index
    %c0_351 = arith.constant 0 : index
    %421 = vector.load %arg0[%c1_349, %c1_350, %c0_351] : memref<4x88x88xf32, #tpu.memory_space<vmem>>, vector<1x87x87xf32>
    %422 = vector.shape_cast %421 : vector<1x87x87xf32> to vector<87x87xf32>
    %c1_352 = arith.constant 1 : index
    %c3_353 = arith.constant 3 : index
    %423 = memref.load %arg1[%c1_352, %c3_353] : memref<4x9xf32, #tpu.memory_space<smem>>
    %424 = vector.broadcast %423 : f32 to vector<87x87xf32>
    %425 = arith.mulf %424, %422 : vector<87x87xf32>
    %426 = arith.addf %420, %425 : vector<87x87xf32>
    %c0_354 = arith.constant 0 : index
    %c1_355 = arith.constant 1 : index
    %c0_356 = arith.constant 0 : index
    %427 = vector.load %arg6[%c0_354, %c1_355, %c0_356] : memref<4x88x87xf32, #tpu.memory_space<vmem>>, vector<1x87x87xf32>
    %428 = vector.shape_cast %427 : vector<1x87x87xf32> to vector<87x87xf32>
    %c1_357 = arith.constant 1 : index
    %c4_358 = arith.constant 4 : index
    %429 = memref.load %arg1[%c1_357, %c4_358] : memref<4x9xf32, #tpu.memory_space<smem>>
    %430 = vector.broadcast %429 : f32 to vector<87x87xf32>
    %431 = arith.mulf %430, %428 : vector<87x87xf32>
    %432 = arith.addf %426, %431 : vector<87x87xf32>
    %c1_359 = arith.constant 1 : index
    %c1_360 = arith.constant 1 : index
    %c0_361 = arith.constant 0 : index
    %433 = vector.load %arg6[%c1_359, %c1_360, %c0_361] : memref<4x88x87xf32, #tpu.memory_space<vmem>>, vector<1x87x87xf32>
    %434 = vector.shape_cast %433 : vector<1x87x87xf32> to vector<87x87xf32>
    %c1_362 = arith.constant 1 : index
    %c5_363 = arith.constant 5 : index
    %435 = memref.load %arg1[%c1_362, %c5_363] : memref<4x9xf32, #tpu.memory_space<smem>>
    %436 = vector.broadcast %435 : f32 to vector<87x87xf32>
    %437 = arith.mulf %436, %434 : vector<87x87xf32>
    %438 = arith.addf %432, %437 : vector<87x87xf32>
    %c3_364 = arith.constant 3 : index
    %c1_365 = arith.constant 1 : index
    %c0_366 = arith.constant 0 : index
    %439 = vector.load %arg0[%c3_364, %c1_365, %c0_366] : memref<4x88x88xf32, #tpu.memory_space<vmem>>, vector<1x87x87xf32>
    %440 = vector.shape_cast %439 : vector<1x87x87xf32> to vector<87x87xf32>
    %c1_367 = arith.constant 1 : index
    %c6_368 = arith.constant 6 : index
    %441 = memref.load %arg1[%c1_367, %c6_368] : memref<4x9xf32, #tpu.memory_space<smem>>
    %442 = vector.broadcast %441 : f32 to vector<87x87xf32>
    %443 = arith.mulf %442, %440 : vector<87x87xf32>
    %444 = arith.addf %438, %443 : vector<87x87xf32>
    %c2_369 = arith.constant 2 : index
    %c1_370 = arith.constant 1 : index
    %c0_371 = arith.constant 0 : index
    %445 = vector.load %arg6[%c2_369, %c1_370, %c0_371] : memref<4x88x87xf32, #tpu.memory_space<vmem>>, vector<1x87x87xf32>
    %446 = vector.shape_cast %445 : vector<1x87x87xf32> to vector<87x87xf32>
    %c1_372 = arith.constant 1 : index
    %c7_373 = arith.constant 7 : index
    %447 = memref.load %arg1[%c1_372, %c7_373] : memref<4x9xf32, #tpu.memory_space<smem>>
    %448 = vector.broadcast %447 : f32 to vector<87x87xf32>
    %449 = arith.mulf %448, %446 : vector<87x87xf32>
    %450 = arith.addf %444, %449 : vector<87x87xf32>
    %c3_374 = arith.constant 3 : index
    %c1_375 = arith.constant 1 : index
    %c0_376 = arith.constant 0 : index
    %451 = vector.load %arg6[%c3_374, %c1_375, %c0_376] : memref<4x88x87xf32, #tpu.memory_space<vmem>>, vector<1x87x87xf32>
    %452 = vector.shape_cast %451 : vector<1x87x87xf32> to vector<87x87xf32>
    %c1_377 = arith.constant 1 : index
    %c8_378 = arith.constant 8 : index
    %453 = memref.load %arg1[%c1_377, %c8_378] : memref<4x9xf32, #tpu.memory_space<smem>>
    %454 = vector.broadcast %453 : f32 to vector<87x87xf32>
    %455 = arith.mulf %454, %452 : vector<87x87xf32>
    %456 = arith.addf %450, %455 : vector<87x87xf32>
    %457 = arith.maximumf %403, %456 : vector<87x87xf32>
    %c1_379 = arith.constant 1 : index
    %458 = memref.load %arg2[%c1_379] : memref<4xf32, #tpu.memory_space<smem>>
    %459 = vector.broadcast %458 : f32 to vector<87x87xf32>
    %460 = arith.addf %457, %459 : vector<87x87xf32>
    %cst_380 = arith.constant 0.000000e+00 : f32
    %461 = vector.broadcast %cst_380 : f32 to vector<87x87xf32>
    %462 = arith.maximumf %460, %461 : vector<87x87xf32>
    %c1_381 = arith.constant 1 : index
    %c0_382 = arith.constant 0 : index
    %c0_383 = arith.constant 0 : index
    %463 = vector.load %arg7[%c1_381, %c0_382, %c0_383] : memref<4x87x87xf32, #tpu.memory_space<vmem>>, vector<1x87x87xf32>
    %464 = vector.shape_cast %463 : vector<1x87x87xf32> to vector<87x87xf32>
    %465 = vector.shape_cast %462 : vector<87x87xf32> to vector<1x87x87xf32>
    tpu.vector_store %arg7[%c1_381, %c0_382, %c0_383], %465 {strides = array<i32>} : memref<4x87x87xf32, #tpu.memory_space<vmem>>, vector<1x87x87xf32>,
    %c0_384 = arith.constant 0 : index
    %c0_385 = arith.constant 0 : index
    %c0_386 = arith.constant 0 : index
    %466 = vector.load %arg0[%c0_384, %c0_385, %c0_386] : memref<4x88x88xf32, #tpu.memory_space<vmem>>, vector<1x87x87xf32>
    %467 = vector.shape_cast %466 : vector<1x87x87xf32> to vector<87x87xf32>
    %c2_387 = arith.constant 2 : index
    %c0_388 = arith.constant 0 : index
    %468 = memref.load %arg1[%c2_387, %c0_388] : memref<4x9xf32, #tpu.memory_space<smem>>
    %469 = vector.broadcast %468 : f32 to vector<87x87xf32>
    %470 = arith.mulf %469, %467 : vector<87x87xf32>
    %c1_389 = arith.constant 1 : index
    %c0_390 = arith.constant 0 : index
    %c0_391 = arith.constant 0 : index
    %471 = vector.load %arg0[%c1_389, %c0_390, %c0_391] : memref<4x88x88xf32, #tpu.memory_space<vmem>>, vector<1x87x87xf32>
    %472 = vector.shape_cast %471 : vector<1x87x87xf32> to vector<87x87xf32>
    %c2_392 = arith.constant 2 : index
    %c1_393 = arith.constant 1 : index
    %473 = memref.load %arg1[%c2_392, %c1_393] : memref<4x9xf32, #tpu.memory_space<smem>>
    %474 = vector.broadcast %473 : f32 to vector<87x87xf32>
    %475 = arith.mulf %474, %472 : vector<87x87xf32>
    %476 = arith.addf %470, %475 : vector<87x87xf32>
    %c0_394 = arith.constant 0 : index
    %c0_395 = arith.constant 0 : index
    %c0_396 = arith.constant 0 : index
    %477 = vector.load %arg6[%c0_394, %c0_395, %c0_396] : memref<4x88x87xf32, #tpu.memory_space<vmem>>, vector<1x87x87xf32>
    %478 = vector.shape_cast %477 : vector<1x87x87xf32> to vector<87x87xf32>
    %c2_397 = arith.constant 2 : index
    %c2_398 = arith.constant 2 : index
    %479 = memref.load %arg1[%c2_397, %c2_398] : memref<4x9xf32, #tpu.memory_space<smem>>
    %480 = vector.broadcast %479 : f32 to vector<87x87xf32>
    %481 = arith.mulf %480, %478 : vector<87x87xf32>
    %482 = arith.addf %476, %481 : vector<87x87xf32>
    %c2_399 = arith.constant 2 : index
    %c0_400 = arith.constant 0 : index
    %c0_401 = arith.constant 0 : index
    %483 = vector.load %arg0[%c2_399, %c0_400, %c0_401] : memref<4x88x88xf32, #tpu.memory_space<vmem>>, vector<1x87x87xf32>
    %484 = vector.shape_cast %483 : vector<1x87x87xf32> to vector<87x87xf32>
    %c2_402 = arith.constant 2 : index
    %c3_403 = arith.constant 3 : index
    %485 = memref.load %arg1[%c2_402, %c3_403] : memref<4x9xf32, #tpu.memory_space<smem>>
    %486 = vector.broadcast %485 : f32 to vector<87x87xf32>
    %487 = arith.mulf %486, %484 : vector<87x87xf32>
    %488 = arith.addf %482, %487 : vector<87x87xf32>
    %c3_404 = arith.constant 3 : index
    %c0_405 = arith.constant 0 : index
    %c0_406 = arith.constant 0 : index
    %489 = vector.load %arg0[%c3_404, %c0_405, %c0_406] : memref<4x88x88xf32, #tpu.memory_space<vmem>>, vector<1x87x87xf32>
    %490 = vector.shape_cast %489 : vector<1x87x87xf32> to vector<87x87xf32>
    %c2_407 = arith.constant 2 : index
    %c4_408 = arith.constant 4 : index
    %491 = memref.load %arg1[%c2_407, %c4_408] : memref<4x9xf32, #tpu.memory_space<smem>>
    %492 = vector.broadcast %491 : f32 to vector<87x87xf32>
    %493 = arith.mulf %492, %490 : vector<87x87xf32>
    %494 = arith.addf %488, %493 : vector<87x87xf32>
    %c2_409 = arith.constant 2 : index
    %c0_410 = arith.constant 0 : index
    %c0_411 = arith.constant 0 : index
    %495 = vector.load %arg6[%c2_409, %c0_410, %c0_411] : memref<4x88x87xf32, #tpu.memory_space<vmem>>, vector<1x87x87xf32>
    %496 = vector.shape_cast %495 : vector<1x87x87xf32> to vector<87x87xf32>
    %c2_412 = arith.constant 2 : index
    %c5_413 = arith.constant 5 : index
    %497 = memref.load %arg1[%c2_412, %c5_413] : memref<4x9xf32, #tpu.memory_space<smem>>
    %498 = vector.broadcast %497 : f32 to vector<87x87xf32>
    %499 = arith.mulf %498, %496 : vector<87x87xf32>
    %500 = arith.addf %494, %499 : vector<87x87xf32>
    %c0_414 = arith.constant 0 : index
    %c1_415 = arith.constant 1 : index
    %c0_416 = arith.constant 0 : index
    %501 = vector.load %arg0[%c0_414, %c1_415, %c0_416] : memref<4x88x88xf32, #tpu.memory_space<vmem>>, vector<1x87x87xf32>
    %502 = vector.shape_cast %501 : vector<1x87x87xf32> to vector<87x87xf32>
    %c2_417 = arith.constant 2 : index
    %c6_418 = arith.constant 6 : index
    %503 = memref.load %arg1[%c2_417, %c6_418] : memref<4x9xf32, #tpu.memory_space<smem>>
    %504 = vector.broadcast %503 : f32 to vector<87x87xf32>
    %505 = arith.mulf %504, %502 : vector<87x87xf32>
    %506 = arith.addf %500, %505 : vector<87x87xf32>
    %c1_419 = arith.constant 1 : index
    %c1_420 = arith.constant 1 : index
    %c0_421 = arith.constant 0 : index
    %507 = vector.load %arg0[%c1_419, %c1_420, %c0_421] : memref<4x88x88xf32, #tpu.memory_space<vmem>>, vector<1x87x87xf32>
    %508 = vector.shape_cast %507 : vector<1x87x87xf32> to vector<87x87xf32>
    %c2_422 = arith.constant 2 : index
    %c7_423 = arith.constant 7 : index
    %509 = memref.load %arg1[%c2_422, %c7_423] : memref<4x9xf32, #tpu.memory_space<smem>>
    %510 = vector.broadcast %509 : f32 to vector<87x87xf32>
    %511 = arith.mulf %510, %508 : vector<87x87xf32>
    %512 = arith.addf %506, %511 : vector<87x87xf32>
    %c0_424 = arith.constant 0 : index
    %c1_425 = arith.constant 1 : index
    %c0_426 = arith.constant 0 : index
    %513 = vector.load %arg6[%c0_424, %c1_425, %c0_426] : memref<4x88x87xf32, #tpu.memory_space<vmem>>, vector<1x87x87xf32>
    %514 = vector.shape_cast %513 : vector<1x87x87xf32> to vector<87x87xf32>
    %c2_427 = arith.constant 2 : index
    %c8_428 = arith.constant 8 : index
    %515 = memref.load %arg1[%c2_427, %c8_428] : memref<4x9xf32, #tpu.memory_space<smem>>
    %516 = vector.broadcast %515 : f32 to vector<87x87xf32>
    %517 = arith.mulf %516, %514 : vector<87x87xf32>
    %518 = arith.addf %512, %517 : vector<87x87xf32>
    %c1_429 = arith.constant 1 : index
    %c0_430 = arith.constant 0 : index
    %c0_431 = arith.constant 0 : index
    %519 = vector.load %arg0[%c1_429, %c0_430, %c0_431] : memref<4x88x88xf32, #tpu.memory_space<vmem>>, vector<1x87x87xf32>
    %520 = vector.shape_cast %519 : vector<1x87x87xf32> to vector<87x87xf32>
    %c2_432 = arith.constant 2 : index
    %c0_433 = arith.constant 0 : index
    %521 = memref.load %arg1[%c2_432, %c0_433] : memref<4x9xf32, #tpu.memory_space<smem>>
    %522 = vector.broadcast %521 : f32 to vector<87x87xf32>
    %523 = arith.mulf %522, %520 : vector<87x87xf32>
    %c0_434 = arith.constant 0 : index
    %c0_435 = arith.constant 0 : index
    %c0_436 = arith.constant 0 : index
    %524 = vector.load %arg6[%c0_434, %c0_435, %c0_436] : memref<4x88x87xf32, #tpu.memory_space<vmem>>, vector<1x87x87xf32>
    %525 = vector.shape_cast %524 : vector<1x87x87xf32> to vector<87x87xf32>
    %c2_437 = arith.constant 2 : index
    %c1_438 = arith.constant 1 : index
    %526 = memref.load %arg1[%c2_437, %c1_438] : memref<4x9xf32, #tpu.memory_space<smem>>
    %527 = vector.broadcast %526 : f32 to vector<87x87xf32>
    %528 = arith.mulf %527, %525 : vector<87x87xf32>
    %529 = arith.addf %523, %528 : vector<87x87xf32>
    %c1_439 = arith.constant 1 : index
    %c0_440 = arith.constant 0 : index
    %c0_441 = arith.constant 0 : index
    %530 = vector.load %arg6[%c1_439, %c0_440, %c0_441] : memref<4x88x87xf32, #tpu.memory_space<vmem>>, vector<1x87x87xf32>
    %531 = vector.shape_cast %530 : vector<1x87x87xf32> to vector<87x87xf32>
    %c2_442 = arith.constant 2 : index
    %c2_443 = arith.constant 2 : index
    %532 = memref.load %arg1[%c2_442, %c2_443] : memref<4x9xf32, #tpu.memory_space<smem>>
    %533 = vector.broadcast %532 : f32 to vector<87x87xf32>
    %534 = arith.mulf %533, %531 : vector<87x87xf32>
    %535 = arith.addf %529, %534 : vector<87x87xf32>
    %c3_444 = arith.constant 3 : index
    %c0_445 = arith.constant 0 : index
    %c0_446 = arith.constant 0 : index
    %536 = vector.load %arg0[%c3_444, %c0_445, %c0_446] : memref<4x88x88xf32, #tpu.memory_space<vmem>>, vector<1x87x87xf32>
    %537 = vector.shape_cast %536 : vector<1x87x87xf32> to vector<87x87xf32>
    %c2_447 = arith.constant 2 : index
    %c3_448 = arith.constant 3 : index
    %538 = memref.load %arg1[%c2_447, %c3_448] : memref<4x9xf32, #tpu.memory_space<smem>>
    %539 = vector.broadcast %538 : f32 to vector<87x87xf32>
    %540 = arith.mulf %539, %537 : vector<87x87xf32>
    %541 = arith.addf %535, %540 : vector<87x87xf32>
    %c2_449 = arith.constant 2 : index
    %c0_450 = arith.constant 0 : index
    %c0_451 = arith.constant 0 : index
    %542 = vector.load %arg6[%c2_449, %c0_450, %c0_451] : memref<4x88x87xf32, #tpu.memory_space<vmem>>, vector<1x87x87xf32>
    %543 = vector.shape_cast %542 : vector<1x87x87xf32> to vector<87x87xf32>
    %c2_452 = arith.constant 2 : index
    %c4_453 = arith.constant 4 : index
    %544 = memref.load %arg1[%c2_452, %c4_453] : memref<4x9xf32, #tpu.memory_space<smem>>
    %545 = vector.broadcast %544 : f32 to vector<87x87xf32>
    %546 = arith.mulf %545, %543 : vector<87x87xf32>
    %547 = arith.addf %541, %546 : vector<87x87xf32>
    %c3_454 = arith.constant 3 : index
    %c0_455 = arith.constant 0 : index
    %c0_456 = arith.constant 0 : index
    %548 = vector.load %arg6[%c3_454, %c0_455, %c0_456] : memref<4x88x87xf32, #tpu.memory_space<vmem>>, vector<1x87x87xf32>
    %549 = vector.shape_cast %548 : vector<1x87x87xf32> to vector<87x87xf32>
    %c2_457 = arith.constant 2 : index
    %c5_458 = arith.constant 5 : index
    %550 = memref.load %arg1[%c2_457, %c5_458] : memref<4x9xf32, #tpu.memory_space<smem>>
    %551 = vector.broadcast %550 : f32 to vector<87x87xf32>
    %552 = arith.mulf %551, %549 : vector<87x87xf32>
    %553 = arith.addf %547, %552 : vector<87x87xf32>
    %c1_459 = arith.constant 1 : index
    %c1_460 = arith.constant 1 : index
    %c0_461 = arith.constant 0 : index
    %554 = vector.load %arg0[%c1_459, %c1_460, %c0_461] : memref<4x88x88xf32, #tpu.memory_space<vmem>>, vector<1x87x87xf32>
    %555 = vector.shape_cast %554 : vector<1x87x87xf32> to vector<87x87xf32>
    %c2_462 = arith.constant 2 : index
    %c6_463 = arith.constant 6 : index
    %556 = memref.load %arg1[%c2_462, %c6_463] : memref<4x9xf32, #tpu.memory_space<smem>>
    %557 = vector.broadcast %556 : f32 to vector<87x87xf32>
    %558 = arith.mulf %557, %555 : vector<87x87xf32>
    %559 = arith.addf %553, %558 : vector<87x87xf32>
    %c0_464 = arith.constant 0 : index
    %c1_465 = arith.constant 1 : index
    %c0_466 = arith.constant 0 : index
    %560 = vector.load %arg6[%c0_464, %c1_465, %c0_466] : memref<4x88x87xf32, #tpu.memory_space<vmem>>, vector<1x87x87xf32>
    %561 = vector.shape_cast %560 : vector<1x87x87xf32> to vector<87x87xf32>
    %c2_467 = arith.constant 2 : index
    %c7_468 = arith.constant 7 : index
    %562 = memref.load %arg1[%c2_467, %c7_468] : memref<4x9xf32, #tpu.memory_space<smem>>
    %563 = vector.broadcast %562 : f32 to vector<87x87xf32>
    %564 = arith.mulf %563, %561 : vector<87x87xf32>
    %565 = arith.addf %559, %564 : vector<87x87xf32>
    %c1_469 = arith.constant 1 : index
    %c1_470 = arith.constant 1 : index
    %c0_471 = arith.constant 0 : index
    %566 = vector.load %arg6[%c1_469, %c1_470, %c0_471] : memref<4x88x87xf32, #tpu.memory_space<vmem>>, vector<1x87x87xf32>
    %567 = vector.shape_cast %566 : vector<1x87x87xf32> to vector<87x87xf32>
    %c2_472 = arith.constant 2 : index
    %c8_473 = arith.constant 8 : index
    %568 = memref.load %arg1[%c2_472, %c8_473] : memref<4x9xf32, #tpu.memory_space<smem>>
    %569 = vector.broadcast %568 : f32 to vector<87x87xf32>
    %570 = arith.mulf %569, %567 : vector<87x87xf32>
    %571 = arith.addf %565, %570 : vector<87x87xf32>
    %572 = arith.maximumf %518, %571 : vector<87x87xf32>
    %c2_474 = arith.constant 2 : index
    %c0_475 = arith.constant 0 : index
    %c0_476 = arith.constant 0 : index
    %573 = vector.load %arg0[%c2_474, %c0_475, %c0_476] : memref<4x88x88xf32, #tpu.memory_space<vmem>>, vector<1x87x87xf32>
    %574 = vector.shape_cast %573 : vector<1x87x87xf32> to vector<87x87xf32>
    %c2_477 = arith.constant 2 : index
    %c0_478 = arith.constant 0 : index
    %575 = memref.load %arg1[%c2_477, %c0_478] : memref<4x9xf32, #tpu.memory_space<smem>>
    %576 = vector.broadcast %575 : f32 to vector<87x87xf32>
    %577 = arith.mulf %576, %574 : vector<87x87xf32>
    %c3_479 = arith.constant 3 : index
    %c0_480 = arith.constant 0 : index
    %c0_481 = arith.constant 0 : index
    %578 = vector.load %arg0[%c3_479, %c0_480, %c0_481] : memref<4x88x88xf32, #tpu.memory_space<vmem>>, vector<1x87x87xf32>
    %579 = vector.shape_cast %578 : vector<1x87x87xf32> to vector<87x87xf32>
    %c2_482 = arith.constant 2 : index
    %c1_483 = arith.constant 1 : index
    %580 = memref.load %arg1[%c2_482, %c1_483] : memref<4x9xf32, #tpu.memory_space<smem>>
    %581 = vector.broadcast %580 : f32 to vector<87x87xf32>
    %582 = arith.mulf %581, %579 : vector<87x87xf32>
    %583 = arith.addf %577, %582 : vector<87x87xf32>
    %c2_484 = arith.constant 2 : index
    %c0_485 = arith.constant 0 : index
    %c0_486 = arith.constant 0 : index
    %584 = vector.load %arg6[%c2_484, %c0_485, %c0_486] : memref<4x88x87xf32, #tpu.memory_space<vmem>>, vector<1x87x87xf32>
    %585 = vector.shape_cast %584 : vector<1x87x87xf32> to vector<87x87xf32>
    %c2_487 = arith.constant 2 : index
    %c2_488 = arith.constant 2 : index
    %586 = memref.load %arg1[%c2_487, %c2_488] : memref<4x9xf32, #tpu.memory_space<smem>>
    %587 = vector.broadcast %586 : f32 to vector<87x87xf32>
    %588 = arith.mulf %587, %585 : vector<87x87xf32>
    %589 = arith.addf %583, %588 : vector<87x87xf32>
    %c0_489 = arith.constant 0 : index
    %c1_490 = arith.constant 1 : index
    %c0_491 = arith.constant 0 : index
    %590 = vector.load %arg0[%c0_489, %c1_490, %c0_491] : memref<4x88x88xf32, #tpu.memory_space<vmem>>, vector<1x87x87xf32>
    %591 = vector.shape_cast %590 : vector<1x87x87xf32> to vector<87x87xf32>
    %c2_492 = arith.constant 2 : index
    %c3_493 = arith.constant 3 : index
    %592 = memref.load %arg1[%c2_492, %c3_493] : memref<4x9xf32, #tpu.memory_space<smem>>
    %593 = vector.broadcast %592 : f32 to vector<87x87xf32>
    %594 = arith.mulf %593, %591 : vector<87x87xf32>
    %595 = arith.addf %589, %594 : vector<87x87xf32>
    %c1_494 = arith.constant 1 : index
    %c1_495 = arith.constant 1 : index
    %c0_496 = arith.constant 0 : index
    %596 = vector.load %arg0[%c1_494, %c1_495, %c0_496] : memref<4x88x88xf32, #tpu.memory_space<vmem>>, vector<1x87x87xf32>
    %597 = vector.shape_cast %596 : vector<1x87x87xf32> to vector<87x87xf32>
    %c2_497 = arith.constant 2 : index
    %c4_498 = arith.constant 4 : index
    %598 = memref.load %arg1[%c2_497, %c4_498] : memref<4x9xf32, #tpu.memory_space<smem>>
    %599 = vector.broadcast %598 : f32 to vector<87x87xf32>
    %600 = arith.mulf %599, %597 : vector<87x87xf32>
    %601 = arith.addf %595, %600 : vector<87x87xf32>
    %c0_499 = arith.constant 0 : index
    %c1_500 = arith.constant 1 : index
    %c0_501 = arith.constant 0 : index
    %602 = vector.load %arg6[%c0_499, %c1_500, %c0_501] : memref<4x88x87xf32, #tpu.memory_space<vmem>>, vector<1x87x87xf32>
    %603 = vector.shape_cast %602 : vector<1x87x87xf32> to vector<87x87xf32>
    %c2_502 = arith.constant 2 : index
    %c5_503 = arith.constant 5 : index
    %604 = memref.load %arg1[%c2_502, %c5_503] : memref<4x9xf32, #tpu.memory_space<smem>>
    %605 = vector.broadcast %604 : f32 to vector<87x87xf32>
    %606 = arith.mulf %605, %603 : vector<87x87xf32>
    %607 = arith.addf %601, %606 : vector<87x87xf32>
    %c2_504 = arith.constant 2 : index
    %c1_505 = arith.constant 1 : index
    %c0_506 = arith.constant 0 : index
    %608 = vector.load %arg0[%c2_504, %c1_505, %c0_506] : memref<4x88x88xf32, #tpu.memory_space<vmem>>, vector<1x87x87xf32>
    %609 = vector.shape_cast %608 : vector<1x87x87xf32> to vector<87x87xf32>
    %c2_507 = arith.constant 2 : index
    %c6_508 = arith.constant 6 : index
    %610 = memref.load %arg1[%c2_507, %c6_508] : memref<4x9xf32, #tpu.memory_space<smem>>
    %611 = vector.broadcast %610 : f32 to vector<87x87xf32>
    %612 = arith.mulf %611, %609 : vector<87x87xf32>
    %613 = arith.addf %607, %612 : vector<87x87xf32>
    %c3_509 = arith.constant 3 : index
    %c1_510 = arith.constant 1 : index
    %c0_511 = arith.constant 0 : index
    %614 = vector.load %arg0[%c3_509, %c1_510, %c0_511] : memref<4x88x88xf32, #tpu.memory_space<vmem>>, vector<1x87x87xf32>
    %615 = vector.shape_cast %614 : vector<1x87x87xf32> to vector<87x87xf32>
    %c2_512 = arith.constant 2 : index
    %c7_513 = arith.constant 7 : index
    %616 = memref.load %arg1[%c2_512, %c7_513] : memref<4x9xf32, #tpu.memory_space<smem>>
    %617 = vector.broadcast %616 : f32 to vector<87x87xf32>
    %618 = arith.mulf %617, %615 : vector<87x87xf32>
    %619 = arith.addf %613, %618 : vector<87x87xf32>
    %c2_514 = arith.constant 2 : index
    %c1_515 = arith.constant 1 : index
    %c0_516 = arith.constant 0 : index
    %620 = vector.load %arg6[%c2_514, %c1_515, %c0_516] : memref<4x88x87xf32, #tpu.memory_space<vmem>>, vector<1x87x87xf32>
    %621 = vector.shape_cast %620 : vector<1x87x87xf32> to vector<87x87xf32>
    %c2_517 = arith.constant 2 : index
    %c8_518 = arith.constant 8 : index
    %622 = memref.load %arg1[%c2_517, %c8_518] : memref<4x9xf32, #tpu.memory_space<smem>>
    %623 = vector.broadcast %622 : f32 to vector<87x87xf32>
    %624 = arith.mulf %623, %621 : vector<87x87xf32>
    %625 = arith.addf %619, %624 : vector<87x87xf32>
    %626 = arith.maximumf %572, %625 : vector<87x87xf32>
    %c3_519 = arith.constant 3 : index
    %c0_520 = arith.constant 0 : index
    %c0_521 = arith.constant 0 : index
    %627 = vector.load %arg0[%c3_519, %c0_520, %c0_521] : memref<4x88x88xf32, #tpu.memory_space<vmem>>, vector<1x87x87xf32>
    %628 = vector.shape_cast %627 : vector<1x87x87xf32> to vector<87x87xf32>
    %c2_522 = arith.constant 2 : index
    %c0_523 = arith.constant 0 : index
    %629 = memref.load %arg1[%c2_522, %c0_523] : memref<4x9xf32, #tpu.memory_space<smem>>
    %630 = vector.broadcast %629 : f32 to vector<87x87xf32>
    %631 = arith.mulf %630, %628 : vector<87x87xf32>
    %c2_524 = arith.constant 2 : index
    %c0_525 = arith.constant 0 : index
    %c0_526 = arith.constant 0 : index
    %632 = vector.load %arg6[%c2_524, %c0_525, %c0_526] : memref<4x88x87xf32, #tpu.memory_space<vmem>>, vector<1x87x87xf32>
    %633 = vector.shape_cast %632 : vector<1x87x87xf32> to vector<87x87xf32>
    %c2_527 = arith.constant 2 : index
    %c1_528 = arith.constant 1 : index
    %634 = memref.load %arg1[%c2_527, %c1_528] : memref<4x9xf32, #tpu.memory_space<smem>>
    %635 = vector.broadcast %634 : f32 to vector<87x87xf32>
    %636 = arith.mulf %635, %633 : vector<87x87xf32>
    %637 = arith.addf %631, %636 : vector<87x87xf32>
    %c3_529 = arith.constant 3 : index
    %c0_530 = arith.constant 0 : index
    %c0_531 = arith.constant 0 : index
    %638 = vector.load %arg6[%c3_529, %c0_530, %c0_531] : memref<4x88x87xf32, #tpu.memory_space<vmem>>, vector<1x87x87xf32>
    %639 = vector.shape_cast %638 : vector<1x87x87xf32> to vector<87x87xf32>
    %c2_532 = arith.constant 2 : index
    %c2_533 = arith.constant 2 : index
    %640 = memref.load %arg1[%c2_532, %c2_533] : memref<4x9xf32, #tpu.memory_space<smem>>
    %641 = vector.broadcast %640 : f32 to vector<87x87xf32>
    %642 = arith.mulf %641, %639 : vector<87x87xf32>
    %643 = arith.addf %637, %642 : vector<87x87xf32>
    %c1_534 = arith.constant 1 : index
    %c1_535 = arith.constant 1 : index
    %c0_536 = arith.constant 0 : index
    %644 = vector.load %arg0[%c1_534, %c1_535, %c0_536] : memref<4x88x88xf32, #tpu.memory_space<vmem>>, vector<1x87x87xf32>
    %645 = vector.shape_cast %644 : vector<1x87x87xf32> to vector<87x87xf32>
    %c2_537 = arith.constant 2 : index
    %c3_538 = arith.constant 3 : index
    %646 = memref.load %arg1[%c2_537, %c3_538] : memref<4x9xf32, #tpu.memory_space<smem>>
    %647 = vector.broadcast %646 : f32 to vector<87x87xf32>
    %648 = arith.mulf %647, %645 : vector<87x87xf32>
    %649 = arith.addf %643, %648 : vector<87x87xf32>
    %c0_539 = arith.constant 0 : index
    %c1_540 = arith.constant 1 : index
    %c0_541 = arith.constant 0 : index
    %650 = vector.load %arg6[%c0_539, %c1_540, %c0_541] : memref<4x88x87xf32, #tpu.memory_space<vmem>>, vector<1x87x87xf32>
    %651 = vector.shape_cast %650 : vector<1x87x87xf32> to vector<87x87xf32>
    %c2_542 = arith.constant 2 : index
    %c4_543 = arith.constant 4 : index
    %652 = memref.load %arg1[%c2_542, %c4_543] : memref<4x9xf32, #tpu.memory_space<smem>>
    %653 = vector.broadcast %652 : f32 to vector<87x87xf32>
    %654 = arith.mulf %653, %651 : vector<87x87xf32>
    %655 = arith.addf %649, %654 : vector<87x87xf32>
    %c1_544 = arith.constant 1 : index
    %c1_545 = arith.constant 1 : index
    %c0_546 = arith.constant 0 : index
    %656 = vector.load %arg6[%c1_544, %c1_545, %c0_546] : memref<4x88x87xf32, #tpu.memory_space<vmem>>, vector<1x87x87xf32>
    %657 = vector.shape_cast %656 : vector<1x87x87xf32> to vector<87x87xf32>
    %c2_547 = arith.constant 2 : index
    %c5_548 = arith.constant 5 : index
    %658 = memref.load %arg1[%c2_547, %c5_548] : memref<4x9xf32, #tpu.memory_space<smem>>
    %659 = vector.broadcast %658 : f32 to vector<87x87xf32>
    %660 = arith.mulf %659, %657 : vector<87x87xf32>
    %661 = arith.addf %655, %660 : vector<87x87xf32>
    %c3_549 = arith.constant 3 : index
    %c1_550 = arith.constant 1 : index
    %c0_551 = arith.constant 0 : index
    %662 = vector.load %arg0[%c3_549, %c1_550, %c0_551] : memref<4x88x88xf32, #tpu.memory_space<vmem>>, vector<1x87x87xf32>
    %663 = vector.shape_cast %662 : vector<1x87x87xf32> to vector<87x87xf32>
    %c2_552 = arith.constant 2 : index
    %c6_553 = arith.constant 6 : index
    %664 = memref.load %arg1[%c2_552, %c6_553] : memref<4x9xf32, #tpu.memory_space<smem>>
    %665 = vector.broadcast %664 : f32 to vector<87x87xf32>
    %666 = arith.mulf %665, %663 : vector<87x87xf32>
    %667 = arith.addf %661, %666 : vector<87x87xf32>
    %c2_554 = arith.constant 2 : index
    %c1_555 = arith.constant 1 : index
    %c0_556 = arith.constant 0 : index
    %668 = vector.load %arg6[%c2_554, %c1_555, %c0_556] : memref<4x88x87xf32, #tpu.memory_space<vmem>>, vector<1x87x87xf32>
    %669 = vector.shape_cast %668 : vector<1x87x87xf32> to vector<87x87xf32>
    %c2_557 = arith.constant 2 : index
    %c7_558 = arith.constant 7 : index
    %670 = memref.load %arg1[%c2_557, %c7_558] : memref<4x9xf32, #tpu.memory_space<smem>>
    %671 = vector.broadcast %670 : f32 to vector<87x87xf32>
    %672 = arith.mulf %671, %669 : vector<87x87xf32>
    %673 = arith.addf %667, %672 : vector<87x87xf32>
    %c3_559 = arith.constant 3 : index
    %c1_560 = arith.constant 1 : index
    %c0_561 = arith.constant 0 : index
    %674 = vector.load %arg6[%c3_559, %c1_560, %c0_561] : memref<4x88x87xf32, #tpu.memory_space<vmem>>, vector<1x87x87xf32>
    %675 = vector.shape_cast %674 : vector<1x87x87xf32> to vector<87x87xf32>
    %c2_562 = arith.constant 2 : index
    %c8_563 = arith.constant 8 : index
    %676 = memref.load %arg1[%c2_562, %c8_563] : memref<4x9xf32, #tpu.memory_space<smem>>
    %677 = vector.broadcast %676 : f32 to vector<87x87xf32>
    %678 = arith.mulf %677, %675 : vector<87x87xf32>
    %679 = arith.addf %673, %678 : vector<87x87xf32>
    %680 = arith.maximumf %626, %679 : vector<87x87xf32>
    %c2_564 = arith.constant 2 : index
    %681 = memref.load %arg2[%c2_564] : memref<4xf32, #tpu.memory_space<smem>>
    %682 = vector.broadcast %681 : f32 to vector<87x87xf32>
    %683 = arith.addf %680, %682 : vector<87x87xf32>
    %cst_565 = arith.constant 0.000000e+00 : f32
    %684 = vector.broadcast %cst_565 : f32 to vector<87x87xf32>
    %685 = arith.maximumf %683, %684 : vector<87x87xf32>
    %c2_566 = arith.constant 2 : index
    %c0_567 = arith.constant 0 : index
    %c0_568 = arith.constant 0 : index
    %686 = vector.load %arg7[%c2_566, %c0_567, %c0_568] : memref<4x87x87xf32, #tpu.memory_space<vmem>>, vector<1x87x87xf32>
    %687 = vector.shape_cast %686 : vector<1x87x87xf32> to vector<87x87xf32>
    %688 = vector.shape_cast %685 : vector<87x87xf32> to vector<1x87x87xf32>
    tpu.vector_store %arg7[%c2_566, %c0_567, %c0_568], %688 {strides = array<i32>} : memref<4x87x87xf32, #tpu.memory_space<vmem>>, vector<1x87x87xf32>,
    %c0_569 = arith.constant 0 : index
    %c0_570 = arith.constant 0 : index
    %c0_571 = arith.constant 0 : index
    %689 = vector.load %arg0[%c0_569, %c0_570, %c0_571] : memref<4x88x88xf32, #tpu.memory_space<vmem>>, vector<1x87x87xf32>
    %690 = vector.shape_cast %689 : vector<1x87x87xf32> to vector<87x87xf32>
    %c3_572 = arith.constant 3 : index
    %c0_573 = arith.constant 0 : index
    %691 = memref.load %arg1[%c3_572, %c0_573] : memref<4x9xf32, #tpu.memory_space<smem>>
    %692 = vector.broadcast %691 : f32 to vector<87x87xf32>
    %693 = arith.mulf %692, %690 : vector<87x87xf32>
    %c1_574 = arith.constant 1 : index
    %c0_575 = arith.constant 0 : index
    %c0_576 = arith.constant 0 : index
    %694 = vector.load %arg0[%c1_574, %c0_575, %c0_576] : memref<4x88x88xf32, #tpu.memory_space<vmem>>, vector<1x87x87xf32>
    %695 = vector.shape_cast %694 : vector<1x87x87xf32> to vector<87x87xf32>
    %c3_577 = arith.constant 3 : index
    %c1_578 = arith.constant 1 : index
    %696 = memref.load %arg1[%c3_577, %c1_578] : memref<4x9xf32, #tpu.memory_space<smem>>
    %697 = vector.broadcast %696 : f32 to vector<87x87xf32>
    %698 = arith.mulf %697, %695 : vector<87x87xf32>
    %699 = arith.addf %693, %698 : vector<87x87xf32>
    %c0_579 = arith.constant 0 : index
    %c0_580 = arith.constant 0 : index
    %c0_581 = arith.constant 0 : index
    %700 = vector.load %arg6[%c0_579, %c0_580, %c0_581] : memref<4x88x87xf32, #tpu.memory_space<vmem>>, vector<1x87x87xf32>
    %701 = vector.shape_cast %700 : vector<1x87x87xf32> to vector<87x87xf32>
    %c3_582 = arith.constant 3 : index
    %c2_583 = arith.constant 2 : index
    %702 = memref.load %arg1[%c3_582, %c2_583] : memref<4x9xf32, #tpu.memory_space<smem>>
    %703 = vector.broadcast %702 : f32 to vector<87x87xf32>
    %704 = arith.mulf %703, %701 : vector<87x87xf32>
    %705 = arith.addf %699, %704 : vector<87x87xf32>
    %c2_584 = arith.constant 2 : index
    %c0_585 = arith.constant 0 : index
    %c0_586 = arith.constant 0 : index
    %706 = vector.load %arg0[%c2_584, %c0_585, %c0_586] : memref<4x88x88xf32, #tpu.memory_space<vmem>>, vector<1x87x87xf32>
    %707 = vector.shape_cast %706 : vector<1x87x87xf32> to vector<87x87xf32>
    %c3_587 = arith.constant 3 : index
    %c3_588 = arith.constant 3 : index
    %708 = memref.load %arg1[%c3_587, %c3_588] : memref<4x9xf32, #tpu.memory_space<smem>>
    %709 = vector.broadcast %708 : f32 to vector<87x87xf32>
    %710 = arith.mulf %709, %707 : vector<87x87xf32>
    %711 = arith.addf %705, %710 : vector<87x87xf32>
    %c3_589 = arith.constant 3 : index
    %c0_590 = arith.constant 0 : index
    %c0_591 = arith.constant 0 : index
    %712 = vector.load %arg0[%c3_589, %c0_590, %c0_591] : memref<4x88x88xf32, #tpu.memory_space<vmem>>, vector<1x87x87xf32>
    %713 = vector.shape_cast %712 : vector<1x87x87xf32> to vector<87x87xf32>
    %c3_592 = arith.constant 3 : index
    %c4_593 = arith.constant 4 : index
    %714 = memref.load %arg1[%c3_592, %c4_593] : memref<4x9xf32, #tpu.memory_space<smem>>
    %715 = vector.broadcast %714 : f32 to vector<87x87xf32>
    %716 = arith.mulf %715, %713 : vector<87x87xf32>
    %717 = arith.addf %711, %716 : vector<87x87xf32>
    %c2_594 = arith.constant 2 : index
    %c0_595 = arith.constant 0 : index
    %c0_596 = arith.constant 0 : index
    %718 = vector.load %arg6[%c2_594, %c0_595, %c0_596] : memref<4x88x87xf32, #tpu.memory_space<vmem>>, vector<1x87x87xf32>
    %719 = vector.shape_cast %718 : vector<1x87x87xf32> to vector<87x87xf32>
    %c3_597 = arith.constant 3 : index
    %c5_598 = arith.constant 5 : index
    %720 = memref.load %arg1[%c3_597, %c5_598] : memref<4x9xf32, #tpu.memory_space<smem>>
    %721 = vector.broadcast %720 : f32 to vector<87x87xf32>
    %722 = arith.mulf %721, %719 : vector<87x87xf32>
    %723 = arith.addf %717, %722 : vector<87x87xf32>
    %c0_599 = arith.constant 0 : index
    %c1_600 = arith.constant 1 : index
    %c0_601 = arith.constant 0 : index
    %724 = vector.load %arg0[%c0_599, %c1_600, %c0_601] : memref<4x88x88xf32, #tpu.memory_space<vmem>>, vector<1x87x87xf32>
    %725 = vector.shape_cast %724 : vector<1x87x87xf32> to vector<87x87xf32>
    %c3_602 = arith.constant 3 : index
    %c6_603 = arith.constant 6 : index
    %726 = memref.load %arg1[%c3_602, %c6_603] : memref<4x9xf32, #tpu.memory_space<smem>>
    %727 = vector.broadcast %726 : f32 to vector<87x87xf32>
    %728 = arith.mulf %727, %725 : vector<87x87xf32>
    %729 = arith.addf %723, %728 : vector<87x87xf32>
    %c1_604 = arith.constant 1 : index
    %c1_605 = arith.constant 1 : index
    %c0_606 = arith.constant 0 : index
    %730 = vector.load %arg0[%c1_604, %c1_605, %c0_606] : memref<4x88x88xf32, #tpu.memory_space<vmem>>, vector<1x87x87xf32>
    %731 = vector.shape_cast %730 : vector<1x87x87xf32> to vector<87x87xf32>
    %c3_607 = arith.constant 3 : index
    %c7_608 = arith.constant 7 : index
    %732 = memref.load %arg1[%c3_607, %c7_608] : memref<4x9xf32, #tpu.memory_space<smem>>
    %733 = vector.broadcast %732 : f32 to vector<87x87xf32>
    %734 = arith.mulf %733, %731 : vector<87x87xf32>
    %735 = arith.addf %729, %734 : vector<87x87xf32>
    %c0_609 = arith.constant 0 : index
    %c1_610 = arith.constant 1 : index
    %c0_611 = arith.constant 0 : index
    %736 = vector.load %arg6[%c0_609, %c1_610, %c0_611] : memref<4x88x87xf32, #tpu.memory_space<vmem>>, vector<1x87x87xf32>
    %737 = vector.shape_cast %736 : vector<1x87x87xf32> to vector<87x87xf32>
    %c3_612 = arith.constant 3 : index
    %c8_613 = arith.constant 8 : index
    %738 = memref.load %arg1[%c3_612, %c8_613] : memref<4x9xf32, #tpu.memory_space<smem>>
    %739 = vector.broadcast %738 : f32 to vector<87x87xf32>
    %740 = arith.mulf %739, %737 : vector<87x87xf32>
    %741 = arith.addf %735, %740 : vector<87x87xf32>
    %c1_614 = arith.constant 1 : index
    %c0_615 = arith.constant 0 : index
    %c0_616 = arith.constant 0 : index
    %742 = vector.load %arg0[%c1_614, %c0_615, %c0_616] : memref<4x88x88xf32, #tpu.memory_space<vmem>>, vector<1x87x87xf32>
    %743 = vector.shape_cast %742 : vector<1x87x87xf32> to vector<87x87xf32>
    %c3_617 = arith.constant 3 : index
    %c0_618 = arith.constant 0 : index
    %744 = memref.load %arg1[%c3_617, %c0_618] : memref<4x9xf32, #tpu.memory_space<smem>>
    %745 = vector.broadcast %744 : f32 to vector<87x87xf32>
    %746 = arith.mulf %745, %743 : vector<87x87xf32>
    %c0_619 = arith.constant 0 : index
    %c0_620 = arith.constant 0 : index
    %c0_621 = arith.constant 0 : index
    %747 = vector.load %arg6[%c0_619, %c0_620, %c0_621] : memref<4x88x87xf32, #tpu.memory_space<vmem>>, vector<1x87x87xf32>
    %748 = vector.shape_cast %747 : vector<1x87x87xf32> to vector<87x87xf32>
    %c3_622 = arith.constant 3 : index
    %c1_623 = arith.constant 1 : index
    %749 = memref.load %arg1[%c3_622, %c1_623] : memref<4x9xf32, #tpu.memory_space<smem>>
    %750 = vector.broadcast %749 : f32 to vector<87x87xf32>
    %751 = arith.mulf %750, %748 : vector<87x87xf32>
    %752 = arith.addf %746, %751 : vector<87x87xf32>
    %c1_624 = arith.constant 1 : index
    %c0_625 = arith.constant 0 : index
    %c0_626 = arith.constant 0 : index
    %753 = vector.load %arg6[%c1_624, %c0_625, %c0_626] : memref<4x88x87xf32, #tpu.memory_space<vmem>>, vector<1x87x87xf32>
    %754 = vector.shape_cast %753 : vector<1x87x87xf32> to vector<87x87xf32>
    %c3_627 = arith.constant 3 : index
    %c2_628 = arith.constant 2 : index
    %755 = memref.load %arg1[%c3_627, %c2_628] : memref<4x9xf32, #tpu.memory_space<smem>>
    %756 = vector.broadcast %755 : f32 to vector<87x87xf32>
    %757 = arith.mulf %756, %754 : vector<87x87xf32>
    %758 = arith.addf %752, %757 : vector<87x87xf32>
    %c3_629 = arith.constant 3 : index
    %c0_630 = arith.constant 0 : index
    %c0_631 = arith.constant 0 : index
    %759 = vector.load %arg0[%c3_629, %c0_630, %c0_631] : memref<4x88x88xf32, #tpu.memory_space<vmem>>, vector<1x87x87xf32>
    %760 = vector.shape_cast %759 : vector<1x87x87xf32> to vector<87x87xf32>
    %c3_632 = arith.constant 3 : index
    %c3_633 = arith.constant 3 : index
    %761 = memref.load %arg1[%c3_632, %c3_633] : memref<4x9xf32, #tpu.memory_space<smem>>
    %762 = vector.broadcast %761 : f32 to vector<87x87xf32>
    %763 = arith.mulf %762, %760 : vector<87x87xf32>
    %764 = arith.addf %758, %763 : vector<87x87xf32>
    %c2_634 = arith.constant 2 : index
    %c0_635 = arith.constant 0 : index
    %c0_636 = arith.constant 0 : index
    %765 = vector.load %arg6[%c2_634, %c0_635, %c0_636] : memref<4x88x87xf32, #tpu.memory_space<vmem>>, vector<1x87x87xf32>
    %766 = vector.shape_cast %765 : vector<1x87x87xf32> to vector<87x87xf32>
    %c3_637 = arith.constant 3 : index
    %c4_638 = arith.constant 4 : index
    %767 = memref.load %arg1[%c3_637, %c4_638] : memref<4x9xf32, #tpu.memory_space<smem>>
    %768 = vector.broadcast %767 : f32 to vector<87x87xf32>
    %769 = arith.mulf %768, %766 : vector<87x87xf32>
    %770 = arith.addf %764, %769 : vector<87x87xf32>
    %c3_639 = arith.constant 3 : index
    %c0_640 = arith.constant 0 : index
    %c0_641 = arith.constant 0 : index
    %771 = vector.load %arg6[%c3_639, %c0_640, %c0_641] : memref<4x88x87xf32, #tpu.memory_space<vmem>>, vector<1x87x87xf32>
    %772 = vector.shape_cast %771 : vector<1x87x87xf32> to vector<87x87xf32>
    %c3_642 = arith.constant 3 : index
    %c5_643 = arith.constant 5 : index
    %773 = memref.load %arg1[%c3_642, %c5_643] : memref<4x9xf32, #tpu.memory_space<smem>>
    %774 = vector.broadcast %773 : f32 to vector<87x87xf32>
    %775 = arith.mulf %774, %772 : vector<87x87xf32>
    %776 = arith.addf %770, %775 : vector<87x87xf32>
    %c1_644 = arith.constant 1 : index
    %c1_645 = arith.constant 1 : index
    %c0_646 = arith.constant 0 : index
    %777 = vector.load %arg0[%c1_644, %c1_645, %c0_646] : memref<4x88x88xf32, #tpu.memory_space<vmem>>, vector<1x87x87xf32>
    %778 = vector.shape_cast %777 : vector<1x87x87xf32> to vector<87x87xf32>
    %c3_647 = arith.constant 3 : index
    %c6_648 = arith.constant 6 : index
    %779 = memref.load %arg1[%c3_647, %c6_648] : memref<4x9xf32, #tpu.memory_space<smem>>
    %780 = vector.broadcast %779 : f32 to vector<87x87xf32>
    %781 = arith.mulf %780, %778 : vector<87x87xf32>
    %782 = arith.addf %776, %781 : vector<87x87xf32>
    %c0_649 = arith.constant 0 : index
    %c1_650 = arith.constant 1 : index
    %c0_651 = arith.constant 0 : index
    %783 = vector.load %arg6[%c0_649, %c1_650, %c0_651] : memref<4x88x87xf32, #tpu.memory_space<vmem>>, vector<1x87x87xf32>
    %784 = vector.shape_cast %783 : vector<1x87x87xf32> to vector<87x87xf32>
    %c3_652 = arith.constant 3 : index
    %c7_653 = arith.constant 7 : index
    %785 = memref.load %arg1[%c3_652, %c7_653] : memref<4x9xf32, #tpu.memory_space<smem>>
    %786 = vector.broadcast %785 : f32 to vector<87x87xf32>
    %787 = arith.mulf %786, %784 : vector<87x87xf32>
    %788 = arith.addf %782, %787 : vector<87x87xf32>
    %c1_654 = arith.constant 1 : index
    %c1_655 = arith.constant 1 : index
    %c0_656 = arith.constant 0 : index
    %789 = vector.load %arg6[%c1_654, %c1_655, %c0_656] : memref<4x88x87xf32, #tpu.memory_space<vmem>>, vector<1x87x87xf32>
    %790 = vector.shape_cast %789 : vector<1x87x87xf32> to vector<87x87xf32>
    %c3_657 = arith.constant 3 : index
    %c8_658 = arith.constant 8 : index
    %791 = memref.load %arg1[%c3_657, %c8_658] : memref<4x9xf32, #tpu.memory_space<smem>>
    %792 = vector.broadcast %791 : f32 to vector<87x87xf32>
    %793 = arith.mulf %792, %790 : vector<87x87xf32>
    %794 = arith.addf %788, %793 : vector<87x87xf32>
    %795 = arith.maximumf %741, %794 : vector<87x87xf32>
    %c2_659 = arith.constant 2 : index
    %c0_660 = arith.constant 0 : index
    %c0_661 = arith.constant 0 : index
    %796 = vector.load %arg0[%c2_659, %c0_660, %c0_661] : memref<4x88x88xf32, #tpu.memory_space<vmem>>, vector<1x87x87xf32>
    %797 = vector.shape_cast %796 : vector<1x87x87xf32> to vector<87x87xf32>
    %c3_662 = arith.constant 3 : index
    %c0_663 = arith.constant 0 : index
    %798 = memref.load %arg1[%c3_662, %c0_663] : memref<4x9xf32, #tpu.memory_space<smem>>
    %799 = vector.broadcast %798 : f32 to vector<87x87xf32>
    %800 = arith.mulf %799, %797 : vector<87x87xf32>
    %c3_664 = arith.constant 3 : index
    %c0_665 = arith.constant 0 : index
    %c0_666 = arith.constant 0 : index
    %801 = vector.load %arg0[%c3_664, %c0_665, %c0_666] : memref<4x88x88xf32, #tpu.memory_space<vmem>>, vector<1x87x87xf32>
    %802 = vector.shape_cast %801 : vector<1x87x87xf32> to vector<87x87xf32>
    %c3_667 = arith.constant 3 : index
    %c1_668 = arith.constant 1 : index
    %803 = memref.load %arg1[%c3_667, %c1_668] : memref<4x9xf32, #tpu.memory_space<smem>>
    %804 = vector.broadcast %803 : f32 to vector<87x87xf32>
    %805 = arith.mulf %804, %802 : vector<87x87xf32>
    %806 = arith.addf %800, %805 : vector<87x87xf32>
    %c2_669 = arith.constant 2 : index
    %c0_670 = arith.constant 0 : index
    %c0_671 = arith.constant 0 : index
    %807 = vector.load %arg6[%c2_669, %c0_670, %c0_671] : memref<4x88x87xf32, #tpu.memory_space<vmem>>, vector<1x87x87xf32>
    %808 = vector.shape_cast %807 : vector<1x87x87xf32> to vector<87x87xf32>
    %c3_672 = arith.constant 3 : index
    %c2_673 = arith.constant 2 : index
    %809 = memref.load %arg1[%c3_672, %c2_673] : memref<4x9xf32, #tpu.memory_space<smem>>
    %810 = vector.broadcast %809 : f32 to vector<87x87xf32>
    %811 = arith.mulf %810, %808 : vector<87x87xf32>
    %812 = arith.addf %806, %811 : vector<87x87xf32>
    %c0_674 = arith.constant 0 : index
    %c1_675 = arith.constant 1 : index
    %c0_676 = arith.constant 0 : index
    %813 = vector.load %arg0[%c0_674, %c1_675, %c0_676] : memref<4x88x88xf32, #tpu.memory_space<vmem>>, vector<1x87x87xf32>
    %814 = vector.shape_cast %813 : vector<1x87x87xf32> to vector<87x87xf32>
    %c3_677 = arith.constant 3 : index
    %c3_678 = arith.constant 3 : index
    %815 = memref.load %arg1[%c3_677, %c3_678] : memref<4x9xf32, #tpu.memory_space<smem>>
    %816 = vector.broadcast %815 : f32 to vector<87x87xf32>
    %817 = arith.mulf %816, %814 : vector<87x87xf32>
    %818 = arith.addf %812, %817 : vector<87x87xf32>
    %c1_679 = arith.constant 1 : index
    %c1_680 = arith.constant 1 : index
    %c0_681 = arith.constant 0 : index
    %819 = vector.load %arg0[%c1_679, %c1_680, %c0_681] : memref<4x88x88xf32, #tpu.memory_space<vmem>>, vector<1x87x87xf32>
    %820 = vector.shape_cast %819 : vector<1x87x87xf32> to vector<87x87xf32>
    %c3_682 = arith.constant 3 : index
    %c4_683 = arith.constant 4 : index
    %821 = memref.load %arg1[%c3_682, %c4_683] : memref<4x9xf32, #tpu.memory_space<smem>>
    %822 = vector.broadcast %821 : f32 to vector<87x87xf32>
    %823 = arith.mulf %822, %820 : vector<87x87xf32>
    %824 = arith.addf %818, %823 : vector<87x87xf32>
    %c0_684 = arith.constant 0 : index
    %c1_685 = arith.constant 1 : index
    %c0_686 = arith.constant 0 : index
    %825 = vector.load %arg6[%c0_684, %c1_685, %c0_686] : memref<4x88x87xf32, #tpu.memory_space<vmem>>, vector<1x87x87xf32>
    %826 = vector.shape_cast %825 : vector<1x87x87xf32> to vector<87x87xf32>
    %c3_687 = arith.constant 3 : index
    %c5_688 = arith.constant 5 : index
    %827 = memref.load %arg1[%c3_687, %c5_688] : memref<4x9xf32, #tpu.memory_space<smem>>
    %828 = vector.broadcast %827 : f32 to vector<87x87xf32>
    %829 = arith.mulf %828, %826 : vector<87x87xf32>
    %830 = arith.addf %824, %829 : vector<87x87xf32>
    %c2_689 = arith.constant 2 : index
    %c1_690 = arith.constant 1 : index
    %c0_691 = arith.constant 0 : index
    %831 = vector.load %arg0[%c2_689, %c1_690, %c0_691] : memref<4x88x88xf32, #tpu.memory_space<vmem>>, vector<1x87x87xf32>
    %832 = vector.shape_cast %831 : vector<1x87x87xf32> to vector<87x87xf32>
    %c3_692 = arith.constant 3 : index
    %c6_693 = arith.constant 6 : index
    %833 = memref.load %arg1[%c3_692, %c6_693] : memref<4x9xf32, #tpu.memory_space<smem>>
    %834 = vector.broadcast %833 : f32 to vector<87x87xf32>
    %835 = arith.mulf %834, %832 : vector<87x87xf32>
    %836 = arith.addf %830, %835 : vector<87x87xf32>
    %c3_694 = arith.constant 3 : index
    %c1_695 = arith.constant 1 : index
    %c0_696 = arith.constant 0 : index
    %837 = vector.load %arg0[%c3_694, %c1_695, %c0_696] : memref<4x88x88xf32, #tpu.memory_space<vmem>>, vector<1x87x87xf32>
    %838 = vector.shape_cast %837 : vector<1x87x87xf32> to vector<87x87xf32>
    %c3_697 = arith.constant 3 : index
    %c7_698 = arith.constant 7 : index
    %839 = memref.load %arg1[%c3_697, %c7_698] : memref<4x9xf32, #tpu.memory_space<smem>>
    %840 = vector.broadcast %839 : f32 to vector<87x87xf32>
    %841 = arith.mulf %840, %838 : vector<87x87xf32>
    %842 = arith.addf %836, %841 : vector<87x87xf32>
    %c2_699 = arith.constant 2 : index
    %c1_700 = arith.constant 1 : index
    %c0_701 = arith.constant 0 : index
    %843 = vector.load %arg6[%c2_699, %c1_700, %c0_701] : memref<4x88x87xf32, #tpu.memory_space<vmem>>, vector<1x87x87xf32>
    %844 = vector.shape_cast %843 : vector<1x87x87xf32> to vector<87x87xf32>
    %c3_702 = arith.constant 3 : index
    %c8_703 = arith.constant 8 : index
    %845 = memref.load %arg1[%c3_702, %c8_703] : memref<4x9xf32, #tpu.memory_space<smem>>
    %846 = vector.broadcast %845 : f32 to vector<87x87xf32>
    %847 = arith.mulf %846, %844 : vector<87x87xf32>
    %848 = arith.addf %842, %847 : vector<87x87xf32>
    %849 = arith.maximumf %795, %848 : vector<87x87xf32>
    %c3_704 = arith.constant 3 : index
    %c0_705 = arith.constant 0 : index
    %c0_706 = arith.constant 0 : index
    %850 = vector.load %arg0[%c3_704, %c0_705, %c0_706] : memref<4x88x88xf32, #tpu.memory_space<vmem>>, vector<1x87x87xf32>
    %851 = vector.shape_cast %850 : vector<1x87x87xf32> to vector<87x87xf32>
    %c3_707 = arith.constant 3 : index
    %c0_708 = arith.constant 0 : index
    %852 = memref.load %arg1[%c3_707, %c0_708] : memref<4x9xf32, #tpu.memory_space<smem>>
    %853 = vector.broadcast %852 : f32 to vector<87x87xf32>
    %854 = arith.mulf %853, %851 : vector<87x87xf32>
    %c2_709 = arith.constant 2 : index
    %c0_710 = arith.constant 0 : index
    %c0_711 = arith.constant 0 : index
    %855 = vector.load %arg6[%c2_709, %c0_710, %c0_711] : memref<4x88x87xf32, #tpu.memory_space<vmem>>, vector<1x87x87xf32>
    %856 = vector.shape_cast %855 : vector<1x87x87xf32> to vector<87x87xf32>
    %c3_712 = arith.constant 3 : index
    %c1_713 = arith.constant 1 : index
    %857 = memref.load %arg1[%c3_712, %c1_713] : memref<4x9xf32, #tpu.memory_space<smem>>
    %858 = vector.broadcast %857 : f32 to vector<87x87xf32>
    %859 = arith.mulf %858, %856 : vector<87x87xf32>
    %860 = arith.addf %854, %859 : vector<87x87xf32>
    %c3_714 = arith.constant 3 : index
    %c0_715 = arith.constant 0 : index
    %c0_716 = arith.constant 0 : index
    %861 = vector.load %arg6[%c3_714, %c0_715, %c0_716] : memref<4x88x87xf32, #tpu.memory_space<vmem>>, vector<1x87x87xf32>
    %862 = vector.shape_cast %861 : vector<1x87x87xf32> to vector<87x87xf32>
    %c3_717 = arith.constant 3 : index
    %c2_718 = arith.constant 2 : index
    %863 = memref.load %arg1[%c3_717, %c2_718] : memref<4x9xf32, #tpu.memory_space<smem>>
    %864 = vector.broadcast %863 : f32 to vector<87x87xf32>
    %865 = arith.mulf %864, %862 : vector<87x87xf32>
    %866 = arith.addf %860, %865 : vector<87x87xf32>
    %c1_719 = arith.constant 1 : index
    %c1_720 = arith.constant 1 : index
    %c0_721 = arith.constant 0 : index
    %867 = vector.load %arg0[%c1_719, %c1_720, %c0_721] : memref<4x88x88xf32, #tpu.memory_space<vmem>>, vector<1x87x87xf32>
    %868 = vector.shape_cast %867 : vector<1x87x87xf32> to vector<87x87xf32>
    %c3_722 = arith.constant 3 : index
    %c3_723 = arith.constant 3 : index
    %869 = memref.load %arg1[%c3_722, %c3_723] : memref<4x9xf32, #tpu.memory_space<smem>>
    %870 = vector.broadcast %869 : f32 to vector<87x87xf32>
    %871 = arith.mulf %870, %868 : vector<87x87xf32>
    %872 = arith.addf %866, %871 : vector<87x87xf32>
    %c0_724 = arith.constant 0 : index
    %c1_725 = arith.constant 1 : index
    %c0_726 = arith.constant 0 : index
    %873 = vector.load %arg6[%c0_724, %c1_725, %c0_726] : memref<4x88x87xf32, #tpu.memory_space<vmem>>, vector<1x87x87xf32>
    %874 = vector.shape_cast %873 : vector<1x87x87xf32> to vector<87x87xf32>
    %c3_727 = arith.constant 3 : index
    %c4_728 = arith.constant 4 : index
    %875 = memref.load %arg1[%c3_727, %c4_728] : memref<4x9xf32, #tpu.memory_space<smem>>
    %876 = vector.broadcast %875 : f32 to vector<87x87xf32>
    %877 = arith.mulf %876, %874 : vector<87x87xf32>
    %878 = arith.addf %872, %877 : vector<87x87xf32>
    %c1_729 = arith.constant 1 : index
    %c1_730 = arith.constant 1 : index
    %c0_731 = arith.constant 0 : index
    %879 = vector.load %arg6[%c1_729, %c1_730, %c0_731] : memref<4x88x87xf32, #tpu.memory_space<vmem>>, vector<1x87x87xf32>
    %880 = vector.shape_cast %879 : vector<1x87x87xf32> to vector<87x87xf32>
    %c3_732 = arith.constant 3 : index
    %c5_733 = arith.constant 5 : index
    %881 = memref.load %arg1[%c3_732, %c5_733] : memref<4x9xf32, #tpu.memory_space<smem>>
    %882 = vector.broadcast %881 : f32 to vector<87x87xf32>
    %883 = arith.mulf %882, %880 : vector<87x87xf32>
    %884 = arith.addf %878, %883 : vector<87x87xf32>
    %c3_734 = arith.constant 3 : index
    %c1_735 = arith.constant 1 : index
    %c0_736 = arith.constant 0 : index
    %885 = vector.load %arg0[%c3_734, %c1_735, %c0_736] : memref<4x88x88xf32, #tpu.memory_space<vmem>>, vector<1x87x87xf32>
    %886 = vector.shape_cast %885 : vector<1x87x87xf32> to vector<87x87xf32>
    %c3_737 = arith.constant 3 : index
    %c6_738 = arith.constant 6 : index
    %887 = memref.load %arg1[%c3_737, %c6_738] : memref<4x9xf32, #tpu.memory_space<smem>>
    %888 = vector.broadcast %887 : f32 to vector<87x87xf32>
    %889 = arith.mulf %888, %886 : vector<87x87xf32>
    %890 = arith.addf %884, %889 : vector<87x87xf32>
    %c2_739 = arith.constant 2 : index
    %c1_740 = arith.constant 1 : index
    %c0_741 = arith.constant 0 : index
    %891 = vector.load %arg6[%c2_739, %c1_740, %c0_741] : memref<4x88x87xf32, #tpu.memory_space<vmem>>, vector<1x87x87xf32>
    %892 = vector.shape_cast %891 : vector<1x87x87xf32> to vector<87x87xf32>
    %c3_742 = arith.constant 3 : index
    %c7_743 = arith.constant 7 : index
    %893 = memref.load %arg1[%c3_742, %c7_743] : memref<4x9xf32, #tpu.memory_space<smem>>
    %894 = vector.broadcast %893 : f32 to vector<87x87xf32>
    %895 = arith.mulf %894, %892 : vector<87x87xf32>
    %896 = arith.addf %890, %895 : vector<87x87xf32>
    %c3_744 = arith.constant 3 : index
    %c1_745 = arith.constant 1 : index
    %c0_746 = arith.constant 0 : index
    %897 = vector.load %arg6[%c3_744, %c1_745, %c0_746] : memref<4x88x87xf32, #tpu.memory_space<vmem>>, vector<1x87x87xf32>
    %898 = vector.shape_cast %897 : vector<1x87x87xf32> to vector<87x87xf32>
    %c3_747 = arith.constant 3 : index
    %c8_748 = arith.constant 8 : index
    %899 = memref.load %arg1[%c3_747, %c8_748] : memref<4x9xf32, #tpu.memory_space<smem>>
    %900 = vector.broadcast %899 : f32 to vector<87x87xf32>
    %901 = arith.mulf %900, %898 : vector<87x87xf32>
    %902 = arith.addf %896, %901 : vector<87x87xf32>
    %903 = arith.maximumf %849, %902 : vector<87x87xf32>
    %c3_749 = arith.constant 3 : index
    %904 = memref.load %arg2[%c3_749] : memref<4xf32, #tpu.memory_space<smem>>
    %905 = vector.broadcast %904 : f32 to vector<87x87xf32>
    %906 = arith.addf %903, %905 : vector<87x87xf32>
    %cst_750 = arith.constant 0.000000e+00 : f32
    %907 = vector.broadcast %cst_750 : f32 to vector<87x87xf32>
    %908 = arith.maximumf %906, %907 : vector<87x87xf32>
    %c3_751 = arith.constant 3 : index
    %c0_752 = arith.constant 0 : index
    %c0_753 = arith.constant 0 : index
    %909 = vector.load %arg7[%c3_751, %c0_752, %c0_753] : memref<4x87x87xf32, #tpu.memory_space<vmem>>, vector<1x87x87xf32>
    %910 = vector.shape_cast %909 : vector<1x87x87xf32> to vector<87x87xf32>
    %911 = vector.shape_cast %908 : vector<87x87xf32> to vector<1x87x87xf32>
    tpu.vector_store %arg7[%c3_751, %c0_752, %c0_753], %911 {strides = array<i32>} : memref<4x87x87xf32, #tpu.memory_space<vmem>>, vector<1x87x87xf32>,
    tpu.wait_dma2 semaphore(%arg9 : memref<!tpu.dma_semaphore, #tpu.memory_space<semaphore_mem>>) src(%arg3 : memref<2x4x87x87xf32, #tpu.memory_space<any>>) dst(%arg8 : memref<2x4x87x87xf32, #tpu.memory_space<vmem>>)
    %c0_754 = arith.constant 0 : index
    %c0_755 = arith.constant 0 : index
    %c0_756 = arith.constant 0 : index
    %c0_757 = arith.constant 0 : index
    %912 = vector.load %arg8[%c0_754, %c0_755, %c0_756, %c0_757] : memref<2x4x87x87xf32, #tpu.memory_space<vmem>>, vector<1x1x87x87xf32>
    %913 = vector.shape_cast %912 : vector<1x1x87x87xf32> to vector<87x87xf32>
    %c0_758 = arith.constant 0 : index
    %c0_759 = arith.constant 0 : index
    %c0_760 = arith.constant 0 : index
    %914 = vector.load %arg7[%c0_758, %c0_759, %c0_760] : memref<4x87x87xf32, #tpu.memory_space<vmem>>, vector<1x87x87xf32>
    %915 = vector.shape_cast %914 : vector<1x87x87xf32> to vector<87x87xf32>
    %916 = arith.mulf %913, %915 : vector<87x87xf32>
    %c0_761 = arith.constant 0 : index
    %c1_762 = arith.constant 1 : index
    %c0_763 = arith.constant 0 : index
    %c0_764 = arith.constant 0 : index
    %917 = vector.load %arg8[%c0_761, %c1_762, %c0_763, %c0_764] : memref<2x4x87x87xf32, #tpu.memory_space<vmem>>, vector<1x1x87x87xf32>
    %918 = vector.shape_cast %917 : vector<1x1x87x87xf32> to vector<87x87xf32>
    %c1_765 = arith.constant 1 : index
    %c0_766 = arith.constant 0 : index
    %c0_767 = arith.constant 0 : index
    %919 = vector.load %arg7[%c1_765, %c0_766, %c0_767] : memref<4x87x87xf32, #tpu.memory_space<vmem>>, vector<1x87x87xf32>
    %920 = vector.shape_cast %919 : vector<1x87x87xf32> to vector<87x87xf32>
    %921 = arith.mulf %918, %920 : vector<87x87xf32>
    %922 = arith.addf %916, %921 : vector<87x87xf32>
    %c0_768 = arith.constant 0 : index
    %c2_769 = arith.constant 2 : index
    %c0_770 = arith.constant 0 : index
    %c0_771 = arith.constant 0 : index
    %923 = vector.load %arg8[%c0_768, %c2_769, %c0_770, %c0_771] : memref<2x4x87x87xf32, #tpu.memory_space<vmem>>, vector<1x1x87x87xf32>
    %924 = vector.shape_cast %923 : vector<1x1x87x87xf32> to vector<87x87xf32>
    %c2_772 = arith.constant 2 : index
    %c0_773 = arith.constant 0 : index
    %c0_774 = arith.constant 0 : index
    %925 = vector.load %arg7[%c2_772, %c0_773, %c0_774] : memref<4x87x87xf32, #tpu.memory_space<vmem>>, vector<1x87x87xf32>
    %926 = vector.shape_cast %925 : vector<1x87x87xf32> to vector<87x87xf32>
    %927 = arith.mulf %924, %926 : vector<87x87xf32>
    %928 = arith.addf %922, %927 : vector<87x87xf32>
    %c0_775 = arith.constant 0 : index
    %c3_776 = arith.constant 3 : index
    %c0_777 = arith.constant 0 : index
    %c0_778 = arith.constant 0 : index
    %929 = vector.load %arg8[%c0_775, %c3_776, %c0_777, %c0_778] : memref<2x4x87x87xf32, #tpu.memory_space<vmem>>, vector<1x1x87x87xf32>
    %930 = vector.shape_cast %929 : vector<1x1x87x87xf32> to vector<87x87xf32>
    %c3_779 = arith.constant 3 : index
    %c0_780 = arith.constant 0 : index
    %c0_781 = arith.constant 0 : index
    %931 = vector.load %arg7[%c3_779, %c0_780, %c0_781] : memref<4x87x87xf32, #tpu.memory_space<vmem>>, vector<1x87x87xf32>
    %932 = vector.shape_cast %931 : vector<1x87x87xf32> to vector<87x87xf32>
    %933 = arith.mulf %930, %932 : vector<87x87xf32>
    %934 = arith.addf %928, %933 : vector<87x87xf32>
    %cst_782 = arith.constant dense<0.000000e+00> : vector<87xf32>
    %935 = vector.multi_reduction <add>, %934, %cst_782 [1] : vector<87x87xf32> to vector<87xf32>
    %936 = vector.shape_cast %935 : vector<87xf32> to vector<87x1xf32>
    %cst_783 = arith.constant dense<0.000000e+00> : vector<1xf32>
    %937 = vector.multi_reduction <add>, %936, %cst_783 [0] : vector<87x1xf32> to vector<1xf32>
    %938 = vector.shape_cast %937 : vector<1xf32> to vector<1x1xf32>
    %c0_784 = arith.constant 0 : index
    %939 = memref.load %arg4[%c0_784] : memref<2xf32, #tpu.memory_space<smem>>
    %940 = vector.broadcast %939 : f32 to vector<1x1xf32>
    %941 = arith.addf %938, %940 : vector<1x1xf32>
    %c1_785 = arith.constant 1 : index
    %c0_786 = arith.constant 0 : index
    %c0_787 = arith.constant 0 : index
    %c0_788 = arith.constant 0 : index
    %942 = vector.load %arg8[%c1_785, %c0_786, %c0_787, %c0_788] : memref<2x4x87x87xf32, #tpu.memory_space<vmem>>, vector<1x1x87x87xf32>
    %943 = vector.shape_cast %942 : vector<1x1x87x87xf32> to vector<87x87xf32>
    %c0_789 = arith.constant 0 : index
    %c0_790 = arith.constant 0 : index
    %c0_791 = arith.constant 0 : index
    %944 = vector.load %arg7[%c0_789, %c0_790, %c0_791] : memref<4x87x87xf32, #tpu.memory_space<vmem>>, vector<1x87x87xf32>
    %945 = vector.shape_cast %944 : vector<1x87x87xf32> to vector<87x87xf32>
    %946 = arith.mulf %943, %945 : vector<87x87xf32>
    %c1_792 = arith.constant 1 : index
    %c1_793 = arith.constant 1 : index
    %c0_794 = arith.constant 0 : index
    %c0_795 = arith.constant 0 : index
    %947 = vector.load %arg8[%c1_792, %c1_793, %c0_794, %c0_795] : memref<2x4x87x87xf32, #tpu.memory_space<vmem>>, vector<1x1x87x87xf32>
    %948 = vector.shape_cast %947 : vector<1x1x87x87xf32> to vector<87x87xf32>
    %c1_796 = arith.constant 1 : index
    %c0_797 = arith.constant 0 : index
    %c0_798 = arith.constant 0 : index
    %949 = vector.load %arg7[%c1_796, %c0_797, %c0_798] : memref<4x87x87xf32, #tpu.memory_space<vmem>>, vector<1x87x87xf32>
    %950 = vector.shape_cast %949 : vector<1x87x87xf32> to vector<87x87xf32>
    %951 = arith.mulf %948, %950 : vector<87x87xf32>
    %952 = arith.addf %946, %951 : vector<87x87xf32>
    %c1_799 = arith.constant 1 : index
    %c2_800 = arith.constant 2 : index
    %c0_801 = arith.constant 0 : index
    %c0_802 = arith.constant 0 : index
    %953 = vector.load %arg8[%c1_799, %c2_800, %c0_801, %c0_802] : memref<2x4x87x87xf32, #tpu.memory_space<vmem>>, vector<1x1x87x87xf32>
    %954 = vector.shape_cast %953 : vector<1x1x87x87xf32> to vector<87x87xf32>
    %c2_803 = arith.constant 2 : index
    %c0_804 = arith.constant 0 : index
    %c0_805 = arith.constant 0 : index
    %955 = vector.load %arg7[%c2_803, %c0_804, %c0_805] : memref<4x87x87xf32, #tpu.memory_space<vmem>>, vector<1x87x87xf32>
    %956 = vector.shape_cast %955 : vector<1x87x87xf32> to vector<87x87xf32>
    %957 = arith.mulf %954, %956 : vector<87x87xf32>
    %958 = arith.addf %952, %957 : vector<87x87xf32>
    %c1_806 = arith.constant 1 : index
    %c3_807 = arith.constant 3 : index
    %c0_808 = arith.constant 0 : index
    %c0_809 = arith.constant 0 : index
    %959 = vector.load %arg8[%c1_806, %c3_807, %c0_808, %c0_809] : memref<2x4x87x87xf32, #tpu.memory_space<vmem>>, vector<1x1x87x87xf32>
    %960 = vector.shape_cast %959 : vector<1x1x87x87xf32> to vector<87x87xf32>
    %c3_810 = arith.constant 3 : index
    %c0_811 = arith.constant 0 : index
    %c0_812 = arith.constant 0 : index
    %961 = vector.load %arg7[%c3_810, %c0_811, %c0_812] : memref<4x87x87xf32, #tpu.memory_space<vmem>>, vector<1x87x87xf32>
    %962 = vector.shape_cast %961 : vector<1x87x87xf32> to vector<87x87xf32>
    %963 = arith.mulf %960, %962 : vector<87x87xf32>
    %964 = arith.addf %958, %963 : vector<87x87xf32>
    %cst_813 = arith.constant dense<0.000000e+00> : vector<87xf32>
    %965 = vector.multi_reduction <add>, %964, %cst_813 [1] : vector<87x87xf32> to vector<87xf32>
    %966 = vector.shape_cast %965 : vector<87xf32> to vector<87x1xf32>
    %cst_814 = arith.constant dense<0.000000e+00> : vector<1xf32>
    %967 = vector.multi_reduction <add>, %966, %cst_814 [0] : vector<87x1xf32> to vector<1xf32>
    %968 = vector.shape_cast %967 : vector<1xf32> to vector<1x1xf32>
    %c1_815 = arith.constant 1 : index
    %969 = memref.load %arg4[%c1_815] : memref<2xf32, #tpu.memory_space<smem>>
    %970 = vector.broadcast %969 : f32 to vector<1x1xf32>
    %971 = arith.addf %968, %970 : vector<1x1xf32>
    %972 = arith.maximumf %941, %971 : vector<1x1xf32>
    %973 = arith.subf %941, %972 : vector<1x1xf32>
    %974 = math.exp %973 : vector<1x1xf32>
    %975 = arith.subf %971, %972 : vector<1x1xf32>
    %976 = math.exp %975 : vector<1x1xf32>
    %977 = arith.addf %974, %976 : vector<1x1xf32>
    %978 = tpu.reciprocal %977 : vector<1x1xf32> -> vector<1x1xf32>
    %979 = arith.mulf %974, %978 : vector<1x1xf32>
    %c0_816 = arith.constant 0 : index
    %c0_817 = arith.constant 0 : index
    %980 = vector.load %arg5[%c0_816, %c0_817] : memref<1x2xf32, #tpu.memory_space<vmem>>, vector<1x1xf32>
    tpu.vector_store %arg5[%c0_816, %c0_817], %979 {strides = array<i32>} : memref<1x2xf32, #tpu.memory_space<vmem>>, vector<1x1xf32>,
    %981 = arith.mulf %976, %978 : vector<1x1xf32>
    %c0_818 = arith.constant 0 : index
    %c1_819 = arith.constant 1 : index
    %982 = vector.load %arg5[%c0_818, %c1_819] : memref<1x2xf32, #tpu.memory_space<vmem>>, vector<1x1xf32>
    tpu.vector_store %arg5[%c0_818, %c1_819], %981 {strides = array<i32>} : memref<1x2xf32, #tpu.memory_space<vmem>>, vector<1x1xf32>,
    return
  }
}

</mosaic_0001>

<llo_original>
// kernel: classifn_forward.2
$region0: #{classifn_forward.2}
  #allocation0 [shape = 'u32[]', space=smem, size = 0x4, offset = 0x4, fixed_abs, tag = 'smem constant byte address 0x4 - core index']
  #allocation1 [shape = 'u32[144,128]{1,0:T(1,128)}', space=vmem, size = 0x12000, scoped, tag = 'internal scratch']
  #allocation2 [shape = 'f32[4,88,87]{2,1,0:T(8,128)}', space=vmem, size = 0x2c000, scoped, tag = 'scratch operand']
  #allocation3 [shape = 'f32[4,87,87]{2,1,0:T(8,128)}', space=vmem, size = 0x2c000, scoped, tag = 'scratch operand']
  #allocation4 [shape = 'f32[2,4,87,87]{3,2,1,0:T(8,128)}', space=vmem, size = 0x58000, scoped, tag = 'scratch operand']
  #allocation5 [shape = 's32[1]{0}', space=sflag, size = 0x4, scoped, tag = 'scratch operand']
  #allocation6 [shape = 'u32[2048]{0}', space=vmem, size = 0x2000, scoped, tag = 'scoped memory for classifn_forward.2']
  #allocation7 [shape = 'u32[2048]{0}', space=vmem, size = 0x2000, scoped, tag = 'scoped memory for classifn_forward.2']
  #allocation8 [shape = 'u32[2048]{0}', space=vmem, size = 0x2000, scoped, tag = 'scoped memory for classifn_forward.2']
  #allocation9 [shape = 'u32[2048]{0}', space=vmem, size = 0x2000, scoped, tag = 'scoped memory for classifn_forward.2']
  #allocation10 [shape = 'u32[2048]{0}', space=vmem, size = 0x2000, scoped, tag = 'scoped memory for classifn_forward.2']
  #allocation11 [shape = 'u32[2048]{0}', space=vmem, size = 0x2000, scoped, tag = 'scoped memory for classifn_forward.2']
  #allocation12 [shape = 'u32[2048]{0}', space=vmem, size = 0x2000, scoped, tag = 'scoped memory for classifn_forward.2']
  #allocation13 [shape = 'u32[2048]{0}', space=vmem, size = 0x2000, scoped, tag = 'scoped memory for classifn_forward.2']
  #allocation14 [shape = 'u32[2048]{0}', space=vmem, size = 0x2000, scoped, tag = 'scoped memory for classifn_forward.2']
  #allocation15 [shape = 'u32[2048]{0}', space=vmem, size = 0x2000, scoped, tag = 'scoped memory for classifn_forward.2']
  #allocation16 [shape = 'u32[2048]{0}', space=vmem, size = 0x2000, scoped, tag = 'scoped memory for classifn_forward.2']
  #allocation17 [shape = 'u32[2048]{0}', space=vmem, size = 0x2000, scoped, tag = 'scoped memory for classifn_forward.2']
  #allocation18 [shape = 'u32[2048]{0}', space=vmem, size = 0x2000, scoped, tag = 'scoped memory for classifn_forward.2']
  #allocation19 [shape = 'u32[2048]{0}', space=vmem, size = 0x2000, scoped, tag = 'scoped memory for classifn_forward.2']
  #allocation20 [shape = 'u32[2048]{0}', space=vmem, size = 0x2000, scoped, tag = 'scoped memory for classifn_forward.2']
  #allocation21 [shape = 'u32[2048]{0}', space=vmem, size = 0x2000, scoped, tag = 'scoped memory for classifn_forward.2']
  #allocation22 [shape = 'u32[2048]{0}', space=vmem, size = 0x2000, scoped, tag = 'scoped memory for classifn_forward.2']
  #allocation23 [shape = 'u32[2048]{0}', space=vmem, size = 0x2000, scoped, tag = 'scoped memory for classifn_forward.2']
  #allocation24 [shape = 'u32[2048]{0}', space=vmem, size = 0x2000, scoped, tag = 'scoped memory for classifn_forward.2']
  #allocation25 [shape = 'u32[2048]{0}', space=vmem, size = 0x2000, scoped, tag = 'scoped memory for classifn_forward.2']
  #allocation34 [shape = 's32[]', space=sflag, size = 0x4, offset = 0, fixed_abs, tag = 'sflag constant byte address 0x0 - dummy sync flag']
  %s0 = inlined_call_operand.vmem [shape: f32[4,9], index: 0, kind: input, shape index: {}]
  %s1 = inlined_call_operand.vmem [shape: f32[4], index: 1, kind: input, shape index: {}]
  %s2 = inlined_call_operand.vmem [shape: f32[2,4,87,87], index: 2, kind: input, shape index: {}]
  %s3 = inlined_call_operand.vmem [shape: f32[2], index: 3, kind: input, shape index: {}]
  %s4 = inlined_call_operand.vmem [shape: f32[1,88,88], index: 4, kind: input, shape index: {}]
  %s5 = inlined_call_operand.<no memory space> [shape: f32[], index: 5, kind: input, shape index: {}]
  %s6 = inlined_call_operand.vmem [shape: f32[1,88,88], index: 6, kind: input, shape index: {}]
  %s7 = inlined_call_operand.vmem [shape: f32[1,88,88], index: 7, kind: input, shape index: {}]
  %s8 = inlined_call_operand.vmem [shape: f32[1,88,88], index: 8, kind: input, shape index: {}]
  %s9 = inlined_call_operand.hbm [shape: f32[1,2], index: 9, kind: output, shape index: {}]
  %s10 = sld [smem:[#allocation0]]
  $region87: #{classifn_forward.2} parent=0
    _
  %s12 = ssub.s32 1, %s10
  %s13 = scalar_select 0, %s12, %s10
  %v14 = vstv %s5
  %v15 = vstv %s5
  %v16 = vstv %s5
  %v17 = vstv %s5
  $region1: #{classifn_forward.2} parent=0
    #allocation26 [shape = 'u8[2048]{0}', space=smem, size = 0x800, scoped, tag = 'input window, operand 1, single buffered']
    #allocation27 [shape = 's32[1]{0}', space=sflag, size = 0x4, scoped, tag = 'scoped memory for classifn_forward.2']
    #allocation28 [shape = 's32[1]{0}', space=sflag, size = 0x4, scoped, tag = 'scoped memory for classifn_forward.2']
    #allocation29 [shape = 'u8[512]{0}', space=smem, size = 0x200, scoped, tag = 'input window, operand 2, single buffered']
    #allocation30 [shape = 's32[1]{0}', space=sflag, size = 0x4, scoped, tag = 'scoped memory for classifn_forward.2']
    #allocation31 [shape = 'u8[512]{0}', space=smem, size = 0x200, scoped, tag = 'input window, operand 4, single buffered']
    #allocation32 [shape = 'u8[512]{0}', space=vmem, size = 0x400, scoped, tag = 'output window, operand 0, single buffered']
    #allocation33 [shape = 'u8[180224]{0}', space=vmem, size = 0x2c000, dematerialized = true, scoped, tag = 'FusionAdapter Buffer %fusion.1 = f32[4,88,88]{2,1,0:T(8,128)} fusion(%param_4.2, %param_5.2, %param_6.2, %param_7.3, %param_8.2), kind=kLoop, calls=%fused_computation.1.clone, metadata={op_name="jit(classifn_forward)/concatenate" stack_frame_id=12}']
    %18 = vsyncpa [#allocation28], 0
    %19 = vsyncpa [#allocation30], 0
    %20 = vsyncpa [#allocation27], 0
    // Predicated region
    $region2: #{classifn_forward.2} parent=1 // pred_check
      _
    $region3: #{classifn_forward.2} parent=1 // pred_check_branch
      %22 = sbr.rel (0) target = $region5
    $region4: #{classifn_forward.2} parent=1 // pred_region
      %s24 = ssub.s32 1, 0
      %s25 = smul.u32 128, %s24
      %s26 = smul.u32 %s25, 11
      %p27 = scmp.lt.s32.totalorder 0, 0
      %s28 = scalar_select %p27, 0, 0
      %s29 = smul.addr %s28, 11
      %s30 = smul.addr %s29, 8
      %s31 = scalar_lea.vmem %s4, %s30
      %s33 = ssub.s32 1, 0
      %s34 = smul.u32 128, %s33
      %s35 = smul.u32 %s34, 11
    $region5: #{classifn_forward.2} parent=1 // pred_fallthru
      _
    // Predicated region
    $region6: #{classifn_forward.2} parent=1 // pred_check
      _
    $region7: #{classifn_forward.2} parent=1 // pred_check_branch
      %37 = sbr.rel (0) target = $region9
    $region8: #{classifn_forward.2} parent=1 // pred_region
      %s39 = ssub.s32 1, 0
      %s40 = smul.u32 128, %s39
      %s41 = smul.u32 %s40, 11
      %p42 = scmp.lt.s32.totalorder 0, 0
      %s43 = scalar_select %p42, 0, 0
      %s44 = smul.addr %s43, 11
      %s45 = smul.addr %s44, 8
      %s46 = scalar_lea.vmem %s6, %s45
      %s48 = ssub.s32 1, 0
      %s49 = smul.u32 128, %s48
      %s50 = smul.u32 %s49, 11
    $region9: #{classifn_forward.2} parent=1 // pred_fallthru
      _
    // Predicated region
    $region10: #{classifn_forward.2} parent=1 // pred_check
      _
    $region11: #{classifn_forward.2} parent=1 // pred_check_branch
      %52 = sbr.rel (0) target = $region13
    $region12: #{classifn_forward.2} parent=1 // pred_region
      %s54 = ssub.s32 1, 0
      %s55 = smul.u32 128, %s54
      %s56 = smul.u32 %s55, 11
      %p57 = scmp.lt.s32.totalorder 0, 0
      %s58 = scalar_select %p57, 0, 0
      %s59 = smul.addr %s58, 11
      %s60 = smul.addr %s59, 8
      %s61 = scalar_lea.vmem %s7, %s60
      %s63 = ssub.s32 1, 0
      %s64 = smul.u32 128, %s63
      %s65 = smul.u32 %s64, 11
    $region13: #{classifn_forward.2} parent=1 // pred_fallthru
      _
    // Predicated region
    $region14: #{classifn_forward.2} parent=1 // pred_check
      _
    $region15: #{classifn_forward.2} parent=1 // pred_check_branch
      %67 = sbr.rel (0) target = $region17
    $region16: #{classifn_forward.2} parent=1 // pred_region
      _
    $region17: #{classifn_forward.2} parent=1 // pred_fallthru
      _
    // Predicated region
    $region18: #{classifn_forward.2} parent=1 // pred_check
      _
    $region19: #{classifn_forward.2} parent=1 // pred_check_branch
      %69 = sbr.rel (0) target = $region21
    $region20: #{classifn_forward.2} parent=1 // pred_region
      %s71 = ssub.s32 64, 64
      %72 = vsyncadd [#allocation28], %s71
      %s74 = sshll.u32 %s0, 4
      %s75 = int_to_ptr.vmem [resolvable:$true] %s74
      %77 = dma.vmem_to_smem %s75, 64, [#allocation26], [#allocation28]
    $region21: #{classifn_forward.2} parent=1 // pred_fallthru
      _
    // Predicated region
    $region22: #{classifn_forward.2} parent=1 // pred_check
      _
    $region23: #{classifn_forward.2} parent=1 // pred_check_branch
      %79 = sbr.rel (0) target = $region25
    $region24: #{classifn_forward.2} parent=1 // pred_region
      %s81 = ssub.s32 16, 16
      %82 = vsyncadd [#allocation30], %s81
      %s84 = sshll.u32 %s1, 4
      %s85 = int_to_ptr.vmem [resolvable:$true] %s84
      %87 = dma.vmem_to_smem %s85, 16, [#allocation29], [#allocation30]
    $region25: #{classifn_forward.2} parent=1 // pred_fallthru
      _
    // Predicated region
    $region26: #{classifn_forward.2} parent=1 // pred_check
      _
    $region27: #{classifn_forward.2} parent=1 // pred_check_branch
      %89 = sbr.rel (0) target = $region29
    $region28: #{classifn_forward.2} parent=1 // pred_region
      %s91 = ssub.s32 16, 16
      %92 = vsyncadd [#allocation30], %s91
      %s94 = sshll.u32 %s3, 4
      %s95 = int_to_ptr.vmem [resolvable:$true] %s94
      %97 = dma.vmem_to_smem %s95, 16, [#allocation31], [#allocation30]
    $region29: #{classifn_forward.2} parent=1 // pred_fallthru
      _
    // Predicated region
    $region30: #{classifn_forward.2} parent=1 // pred_check
      _
    $region31: #{classifn_forward.2} parent=1 // pred_check_branch
      %99 = sbr.rel (0) target = $region33
    $region32: #{classifn_forward.2} parent=1 // pred_region
      %100 = dma.done [#allocation28], 64
    $region33: #{classifn_forward.2} parent=1 // pred_fallthru
      _
    // Predicated region
    $region34: #{classifn_forward.2} parent=1 // pred_check
      _
    $region35: #{classifn_forward.2} parent=1 // pred_check_branch
      %102 = sbr.rel (0) target = $region37
    $region36: #{classifn_forward.2} parent=1 // pred_region
      %103 = dma.done [#allocation30], 16
    $region37: #{classifn_forward.2} parent=1 // pred_fallthru
      _
    // Predicated region
    $region38: #{classifn_forward.2} parent=1 // pred_check
      _
    $region39: #{classifn_forward.2} parent=1 // pred_check_branch
      %105 = sbr.rel (0) target = $region41
    $region40: #{classifn_forward.2} parent=1 // pred_region
      %106 = dma.done [#allocation30], 16
    $region41: #{classifn_forward.2} parent=1 // pred_fallthru
      _
    %107 = sfence
    %s109 = ssub.s32 1, 0
    %s110 = smul.u32 128, %s109
    %s111 = smul.u32 %s110, 11
    %p112 = scmp.lt.s32.totalorder 0, 0
    %s113 = scalar_select %p112, 0, 0
    %s114 = smul.addr %s113, 11
    %s115 = smul.addr %s114, 8
    %s116 = scalar_lea.vmem %s4, %s115
    %s118 = ssub.s32 1, 0
    %s119 = smul.u32 128, %s118
    %s120 = smul.u32 %s119, 11
    %p121 = scmp.lt.s32.totalorder 0, 0
    %s122 = scalar_select %p121, 0, 0
    %s123 = smul.addr %s122, 11
    %s124 = smul.addr %s123, 8
    %s125 = scalar_lea.vmem %s6, %s124
    %s127 = ssub.s32 1, 0
    %s128 = smul.u32 128, %s127
    %s129 = smul.u32 %s128, 11
    %p130 = scmp.lt.s32.totalorder 0, 0
    %s131 = scalar_select %p130, 0, 0
    %s132 = smul.addr %s131, 11
    %s133 = smul.addr %s132, 8
    %s134 = scalar_lea.vmem %s7, %s133
    %s136 = ssub.s32 1, 0
    %s137 = smul.u32 128, %s136
    %s138 = smul.u32 %s137, 11
    %p139 = scmp.lt.s32.totalorder 0, 0
    %s140 = scalar_select %p139, 0, 0
    %s141 = smul.addr %s140, 11
    %s142 = smul.addr %s141, 8
    %s143 = scalar_lea.vmem %s4, %s142
    %s145 = ssub.s32 1, 0
    %s146 = smul.u32 128, %s145
    %s147 = smul.u32 %s146, 11
    %s149 = ssub.s32 1, 0
    %s150 = smul.u32 128, %s149
    %s151 = smul.u32 %s150, 11
    %p152 = scmp.lt.s32.totalorder 0, 0
    %s153 = scalar_select %p152, 0, 0
    %s154 = smul.addr %s153, 11
    %s155 = smul.addr %s154, 8
    %s156 = scalar_lea.vmem %s6, %s155
    %s158 = ssub.s32 1, 0
    %s159 = smul.u32 128, %s158
    %s160 = smul.u32 %s159, 11
    %s162 = ssub.s32 1, 0
    %s163 = smul.u32 128, %s162
    %s164 = smul.u32 %s163, 11
    %p165 = scmp.lt.s32.totalorder 0, 0
    %s166 = scalar_select %p165, 0, 0
    %s167 = smul.addr %s166, 11
    %s168 = smul.addr %s167, 8
    %s169 = scalar_lea.vmem %s7, %s168
    %s171 = ssub.s32 1, 0
    %s172 = smul.u32 128, %s171
    %s173 = smul.u32 %s172, 11
    %s174 = ssub.s32 0, 0
    %p175 = scmp.lt.s32.totalorder %s174, 0
    %s176 = scalar_select %p175, 0, 255
    %v177 = vld [vmem:[%s143] sm:%s176]
    %s178 = ssub.s32 0, 0
    %p179 = scmp.lt.s32.totalorder %s178, 0
    %s180 = scalar_select %p179, 0, 255
    %v181 = vld [vmem:[%s156] sm:%s180]
    %s182 = ssub.s32 0, 0
    %p183 = scmp.lt.s32.totalorder %s182, 0
    %s184 = scalar_select %p183, 0, 255
    %v185 = vld [vmem:[%s169] sm:%s184]
    %v186 = vld [vmem:[%s8] sm:$0xff]
    %v187 = vlaneseq
    %v188 = vand.u32 %v187, 127
    %vm190 = vcmp.lt.s32.totalorder %v188, 88
    %v191 = vsel %vm190, %v186, %v17
    %192 = xla_tuple %v191, %v16
    %193 = xla_tuple %192
    %v194 = vmax.f32 %v191, %v16
    %195 = xla_tuple %v194
    %196 = xla_tuple %v194, %v15
    %197 = xla_tuple %196
    %v198 = vmax.f32 %v194, %v15
    %199 = xla_tuple %v198
    %200 = xla_tuple %v198, %v14
    %201 = xla_tuple %200
    %v202 = vmax.f32 %v198, %v14
    %203 = xla_tuple %v202
    %205 = vst [vmem:[#allocation33] sm:$0xff] %v202
    %s206 = scalar_lea.vmem %s143, 8
    %s207 = ssub.s32 0, 0
    %p208 = scmp.lt.s32.totalorder %s207, 0
    %s209 = scalar_select %p208, 0, 255
    %v210 = vld [vmem:[%s206] sm:%s209]
    %s211 = scalar_lea.vmem %s156, 8
    %s212 = ssub.s32 0, 0
    %p213 = scmp.lt.s32.totalorder %s212, 0
    %s214 = scalar_select %p213, 0, 255
    %v215 = vld [vmem:[%s211] sm:%s214]
    %s216 = scalar_lea.vmem %s169, 8
    %s217 = ssub.s32 0, 0
    %p218 = scmp.lt.s32.totalorder %s217, 0
    %s219 = scalar_select %p218, 0, 255
    %v220 = vld [vmem:[%s216] sm:%s219]
    %s221 = scalar_lea.vmem %s8, 8
    %v222 = vld [vmem:[%s221] sm:$0xff]
    %v223 = vlaneseq
    %v224 = vand.u32 %v223, 127
    %vm226 = vcmp.lt.s32.totalorder %v224, 88
    %v227 = vsel %vm226, %v222, %v17
    %228 = xla_tuple %v227, %v16
    %229 = xla_tuple %228
    %v230 = vmax.f32 %v227, %v16
    %231 = xla_tuple %v230
    %232 = xla_tuple %v230, %v15
    %233 = xla_tuple %232
    %v234 = vmax.f32 %v230, %v15
    %235 = xla_tuple %v234
    %236 = xla_tuple %v234, %v14
    %237 = xla_tuple %236
    %v238 = vmax.f32 %v234, %v14
    %239 = xla_tuple %v238
    %s240 = scalar_lea.vmem [#allocation33], 8
    %242 = vst [vmem:[%s240] sm:$0xff] %v238
    %s243 = scalar_lea.vmem %s143, 16
    %s244 = ssub.s32 0, 0
    %p245 = scmp.lt.s32.totalorder %s244, 0
    %s246 = scalar_select %p245, 0, 255
    %v247 = vld [vmem:[%s243] sm:%s246]
    %s248 = scalar_lea.vmem %s156, 16
    %s249 = ssub.s32 0, 0
    %p250 = scmp.lt.s32.totalorder %s249, 0
    %s251 = scalar_select %p250, 0, 255
    %v252 = vld [vmem:[%s248] sm:%s251]
    %s253 = scalar_lea.vmem %s169, 16
    %s254 = ssub.s32 0, 0
    %p255 = scmp.lt.s32.totalorder %s254, 0
    %s256 = scalar_select %p255, 0, 255
    %v257 = vld [vmem:[%s253] sm:%s256]
    %s258 = scalar_lea.vmem %s8, 16
    %v259 = vld [vmem:[%s258] sm:$0xff]
    %v260 = vlaneseq
    %v261 = vand.u32 %v260, 127
    %vm263 = vcmp.lt.s32.totalorder %v261, 88
    %v264 = vsel %vm263, %v259, %v17
    %265 = xla_tuple %v264, %v16
    %266 = xla_tuple %265
    %v267 = vmax.f32 %v264, %v16
    %268 = xla_tuple %v267
    %269 = xla_tuple %v267, %v15
    %270 = xla_tuple %269
    %v271 = vmax.f32 %v267, %v15
    %272 = xla_tuple %v271
    %273 = xla_tuple %v271, %v14
    %274 = xla_tuple %273
    %v275 = vmax.f32 %v271, %v14
    %276 = xla_tuple %v275
    %s277 = scalar_lea.vmem [#allocation33], 16
    %279 = vst [vmem:[%s277] sm:$0xff] %v275
    %s280 = scalar_lea.vmem %s143, 24
    %s281 = ssub.s32 0, 0
    %p282 = scmp.lt.s32.totalorder %s281, 0
    %s283 = scalar_select %p282, 0, 255
    %v284 = vld [vmem:[%s280] sm:%s283]
    %s285 = scalar_lea.vmem %s156, 24
    %s286 = ssub.s32 0, 0
    %p287 = scmp.lt.s32.totalorder %s286, 0
    %s288 = scalar_select %p287, 0, 255
    %v289 = vld [vmem:[%s285] sm:%s288]
    %s290 = scalar_lea.vmem %s169, 24
    %s291 = ssub.s32 0, 0
    %p292 = scmp.lt.s32.totalorder %s291, 0
    %s293 = scalar_select %p292, 0, 255
    %v294 = vld [vmem:[%s290] sm:%s293]
    %s295 = scalar_lea.vmem %s8, 24
    %v296 = vld [vmem:[%s295] sm:$0xff]
    %v297 = vlaneseq
    %v298 = vand.u32 %v297, 127
    %vm300 = vcmp.lt.s32.totalorder %v298, 88
    %v301 = vsel %vm300, %v296, %v17
    %302 = xla_tuple %v301, %v16
    %303 = xla_tuple %302
    %v304 = vmax.f32 %v301, %v16
    %305 = xla_tuple %v304
    %306 = xla_tuple %v304, %v15
    %307 = xla_tuple %306
    %v308 = vmax.f32 %v304, %v15
    %309 = xla_tuple %v308
    %310 = xla_tuple %v308, %v14
    %311 = xla_tuple %310
    %v312 = vmax.f32 %v308, %v14
    %313 = xla_tuple %v312
    %s314 = scalar_lea.vmem [#allocation33], 24
    %316 = vst [vmem:[%s314] sm:$0xff] %v312
    %s317 = scalar_lea.vmem %s143, 32
    %s318 = ssub.s32 0, 0
    %p319 = scmp.lt.s32.totalorder %s318, 0
    %s320 = scalar_select %p319, 0, 255
    %v321 = vld [vmem:[%s317] sm:%s320]
    %s322 = scalar_lea.vmem %s156, 32
    %s323 = ssub.s32 0, 0
    %p324 = scmp.lt.s32.totalorder %s323, 0
    %s325 = scalar_select %p324, 0, 255
    %v326 = vld [vmem:[%s322] sm:%s325]
    %s327 = scalar_lea.vmem %s169, 32
    %s328 = ssub.s32 0, 0
    %p329 = scmp.lt.s32.totalorder %s328, 0
    %s330 = scalar_select %p329, 0, 255
    %v331 = vld [vmem:[%s327] sm:%s330]
    %s332 = scalar_lea.vmem %s8, 32
    %v333 = vld [vmem:[%s332] sm:$0xff]
    %v334 = vlaneseq
    %v335 = vand.u32 %v334, 127
    %vm337 = vcmp.lt.s32.totalorder %v335, 88
    %v338 = vsel %vm337, %v333, %v17
    %339 = xla_tuple %v338, %v16
    %340 = xla_tuple %339
    %v341 = vmax.f32 %v338, %v16
    %342 = xla_tuple %v341
    %343 = xla_tuple %v341, %v15
    %344 = xla_tuple %343
    %v345 = vmax.f32 %v341, %v15
    %346 = xla_tuple %v345
    %347 = xla_tuple %v345, %v14
    %348 = xla_tuple %347
    %v349 = vmax.f32 %v345, %v14
    %350 = xla_tuple %v349
    %s351 = scalar_lea.vmem [#allocation33], 32
    %353 = vst [vmem:[%s351] sm:$0xff] %v349
    %s354 = scalar_lea.vmem %s143, 40
    %s355 = ssub.s32 0, 0
    %p356 = scmp.lt.s32.totalorder %s355, 0
    %s357 = scalar_select %p356, 0, 255
    %v358 = vld [vmem:[%s354] sm:%s357]
    %s359 = scalar_lea.vmem %s156, 40
    %s360 = ssub.s32 0, 0
    %p361 = scmp.lt.s32.totalorder %s360, 0
    %s362 = scalar_select %p361, 0, 255
    %v363 = vld [vmem:[%s359] sm:%s362]
    %s364 = scalar_lea.vmem %s169, 40
    %s365 = ssub.s32 0, 0
    %p366 = scmp.lt.s32.totalorder %s365, 0
    %s367 = scalar_select %p366, 0, 255
    %v368 = vld [vmem:[%s364] sm:%s367]
    %s369 = scalar_lea.vmem %s8, 40
    %v370 = vld [vmem:[%s369] sm:$0xff]
    %v371 = vlaneseq
    %v372 = vand.u32 %v371, 127
    %vm374 = vcmp.lt.s32.totalorder %v372, 88
    %v375 = vsel %vm374, %v370, %v17
    %376 = xla_tuple %v375, %v16
    %377 = xla_tuple %376
    %v378 = vmax.f32 %v375, %v16
    %379 = xla_tuple %v378
    %380 = xla_tuple %v378, %v15
    %381 = xla_tuple %380
    %v382 = vmax.f32 %v378, %v15
    %383 = xla_tuple %v382
    %384 = xla_tuple %v382, %v14
    %385 = xla_tuple %384
    %v386 = vmax.f32 %v382, %v14
    %387 = xla_tuple %v386
    %s388 = scalar_lea.vmem [#allocation33], 40
    %390 = vst [vmem:[%s388] sm:$0xff] %v386
    %s391 = scalar_lea.vmem %s143, 48
    %s392 = ssub.s32 0, 0
    %p393 = scmp.lt.s32.totalorder %s392, 0
    %s394 = scalar_select %p393, 0, 255
    %v395 = vld [vmem:[%s391] sm:%s394]
    %s396 = scalar_lea.vmem %s156, 48
    %s397 = ssub.s32 0, 0
    %p398 = scmp.lt.s32.totalorder %s397, 0
    %s399 = scalar_select %p398, 0, 255
    %v400 = vld [vmem:[%s396] sm:%s399]
    %s401 = scalar_lea.vmem %s169, 48
    %s402 = ssub.s32 0, 0
    %p403 = scmp.lt.s32.totalorder %s402, 0
    %s404 = scalar_select %p403, 0, 255
    %v405 = vld [vmem:[%s401] sm:%s404]
    %s406 = scalar_lea.vmem %s8, 48
    %v407 = vld [vmem:[%s406] sm:$0xff]
    %v408 = vlaneseq
    %v409 = vand.u32 %v408, 127
    %vm411 = vcmp.lt.s32.totalorder %v409, 88
    %v412 = vsel %vm411, %v407, %v17
    %413 = xla_tuple %v412, %v16
    %414 = xla_tuple %413
    %v415 = vmax.f32 %v412, %v16
    %416 = xla_tuple %v415
    %417 = xla_tuple %v415, %v15
    %418 = xla_tuple %417
    %v419 = vmax.f32 %v415, %v15
    %420 = xla_tuple %v419
    %421 = xla_tuple %v419, %v14
    %422 = xla_tuple %421
    %v423 = vmax.f32 %v419, %v14
    %424 = xla_tuple %v423
    %s425 = scalar_lea.vmem [#allocation33], 48
    %427 = vst [vmem:[%s425] sm:$0xff] %v423
    %s428 = scalar_lea.vmem %s143, 56
    %s429 = ssub.s32 0, 0
    %p430 = scmp.lt.s32.totalorder %s429, 0
    %s431 = scalar_select %p430, 0, 255
    %v432 = vld [vmem:[%s428] sm:%s431]
    %s433 = scalar_lea.vmem %s156, 56
    %s434 = ssub.s32 0, 0
    %p435 = scmp.lt.s32.totalorder %s434, 0
    %s436 = scalar_select %p435, 0, 255
    %v437 = vld [vmem:[%s433] sm:%s436]
    %s438 = scalar_lea.vmem %s169, 56
    %s439 = ssub.s32 0, 0
    %p440 = scmp.lt.s32.totalorder %s439, 0
    %s441 = scalar_select %p440, 0, 255
    %v442 = vld [vmem:[%s438] sm:%s441]
    %s443 = scalar_lea.vmem %s8, 56
    %v444 = vld [vmem:[%s443] sm:$0xff]
    %v445 = vlaneseq
    %v446 = vand.u32 %v445, 127
    %vm448 = vcmp.lt.s32.totalorder %v446, 88
    %v449 = vsel %vm448, %v444, %v17
    %450 = xla_tuple %v449, %v16
    %451 = xla_tuple %450
    %v452 = vmax.f32 %v449, %v16
    %453 = xla_tuple %v452
    %454 = xla_tuple %v452, %v15
    %455 = xla_tuple %454
    %v456 = vmax.f32 %v452, %v15
    %457 = xla_tuple %v456
    %458 = xla_tuple %v456, %v14
    %459 = xla_tuple %458
    %v460 = vmax.f32 %v456, %v14
    %461 = xla_tuple %v460
    %s462 = scalar_lea.vmem [#allocation33], 56
    %464 = vst [vmem:[%s462] sm:$0xff] %v460
    %s465 = scalar_lea.vmem %s143, 64
    %s466 = ssub.s32 0, 0
    %p467 = scmp.lt.s32.totalorder %s466, 0
    %s468 = scalar_select %p467, 0, 255
    %v469 = vld [vmem:[%s465] sm:%s468]
    %s470 = scalar_lea.vmem %s156, 64
    %s471 = ssub.s32 0, 0
    %p472 = scmp.lt.s32.totalorder %s471, 0
    %s473 = scalar_select %p472, 0, 255
    %v474 = vld [vmem:[%s470] sm:%s473]
    %s475 = scalar_lea.vmem %s169, 64
    %s476 = ssub.s32 0, 0
    %p477 = scmp.lt.s32.totalorder %s476, 0
    %s478 = scalar_select %p477, 0, 255
    %v479 = vld [vmem:[%s475] sm:%s478]
    %s480 = scalar_lea.vmem %s8, 64
    %v481 = vld [vmem:[%s480] sm:$0xff]
    %v482 = vlaneseq
    %v483 = vand.u32 %v482, 127
    %vm485 = vcmp.lt.s32.totalorder %v483, 88
    %v486 = vsel %vm485, %v481, %v17
    %487 = xla_tuple %v486, %v16
    %488 = xla_tuple %487
    %v489 = vmax.f32 %v486, %v16
    %490 = xla_tuple %v489
    %491 = xla_tuple %v489, %v15
    %492 = xla_tuple %491
    %v493 = vmax.f32 %v489, %v15
    %494 = xla_tuple %v493
    %495 = xla_tuple %v493, %v14
    %496 = xla_tuple %495
    %v497 = vmax.f32 %v493, %v14
    %498 = xla_tuple %v497
    %s499 = scalar_lea.vmem [#allocation33], 64
    %501 = vst [vmem:[%s499] sm:$0xff] %v497
    %s502 = scalar_lea.vmem %s143, 72
    %s503 = ssub.s32 0, 0
    %p504 = scmp.lt.s32.totalorder %s503, 0
    %s505 = scalar_select %p504, 0, 255
    %v506 = vld [vmem:[%s502] sm:%s505]
    %s507 = scalar_lea.vmem %s156, 72
    %s508 = ssub.s32 0, 0
    %p509 = scmp.lt.s32.totalorder %s508, 0
    %s510 = scalar_select %p509, 0, 255
    %v511 = vld [vmem:[%s507] sm:%s510]
    %s512 = scalar_lea.vmem %s169, 72
    %s513 = ssub.s32 0, 0
    %p514 = scmp.lt.s32.totalorder %s513, 0
    %s515 = scalar_select %p514, 0, 255
    %v516 = vld [vmem:[%s512] sm:%s515]
    %s517 = scalar_lea.vmem %s8, 72
    %v518 = vld [vmem:[%s517] sm:$0xff]
    %v519 = vlaneseq
    %v520 = vand.u32 %v519, 127
    %vm522 = vcmp.lt.s32.totalorder %v520, 88
    %v523 = vsel %vm522, %v518, %v17
    %524 = xla_tuple %v523, %v16
    %525 = xla_tuple %524
    %v526 = vmax.f32 %v523, %v16
    %527 = xla_tuple %v526
    %528 = xla_tuple %v526, %v15
    %529 = xla_tuple %528
    %v530 = vmax.f32 %v526, %v15
    %531 = xla_tuple %v530
    %532 = xla_tuple %v530, %v14
    %533 = xla_tuple %532
    %v534 = vmax.f32 %v530, %v14
    %535 = xla_tuple %v534
    %s536 = scalar_lea.vmem [#allocation33], 72
    %538 = vst [vmem:[%s536] sm:$0xff] %v534
    %s539 = scalar_lea.vmem %s143, 80
    %s540 = ssub.s32 0, 0
    %p541 = scmp.lt.s32.totalorder %s540, 0
    %s542 = scalar_select %p541, 0, 255
    %v543 = vld [vmem:[%s539] sm:%s542]
    %s544 = scalar_lea.vmem %s156, 80
    %s545 = ssub.s32 0, 0
    %p546 = scmp.lt.s32.totalorder %s545, 0
    %s547 = scalar_select %p546, 0, 255
    %v548 = vld [vmem:[%s544] sm:%s547]
    %s549 = scalar_lea.vmem %s169, 80
    %s550 = ssub.s32 0, 0
    %p551 = scmp.lt.s32.totalorder %s550, 0
    %s552 = scalar_select %p551, 0, 255
    %v553 = vld [vmem:[%s549] sm:%s552]
    %s554 = scalar_lea.vmem %s8, 80
    %v555 = vld [vmem:[%s554] sm:$0xff]
    %v556 = vlaneseq
    %v557 = vand.u32 %v556, 127
    %vm559 = vcmp.lt.s32.totalorder %v557, 88
    %v560 = vsel %vm559, %v555, %v17
    %561 = xla_tuple %v560, %v16
    %562 = xla_tuple %561
    %v563 = vmax.f32 %v560, %v16
    %564 = xla_tuple %v563
    %565 = xla_tuple %v563, %v15
    %566 = xla_tuple %565
    %v567 = vmax.f32 %v563, %v15
    %568 = xla_tuple %v567
    %569 = xla_tuple %v567, %v14
    %570 = xla_tuple %569
    %v571 = vmax.f32 %v567, %v14
    %572 = xla_tuple %v571
    %s573 = scalar_lea.vmem [#allocation33], 80
    %575 = vst [vmem:[%s573] sm:$0xff] %v571
    %v576 = vlaneseq
    %v577 = vand.u32 %v576, 127
    %vm579 = vcmp.lt.s32.totalorder %v577, 88
    %v580 = vsel %vm579, %v185, %v16
    %581 = xla_tuple %v17, %v580
    %582 = xla_tuple %581
    %v583 = vmax.f32 %v17, %v580
    %584 = xla_tuple %v583
    %585 = xla_tuple %v583, %v15
    %586 = xla_tuple %585
    %v587 = vmax.f32 %v583, %v15
    %588 = xla_tuple %v587
    %589 = xla_tuple %v587, %v14
    %590 = xla_tuple %589
    %v591 = vmax.f32 %v587, %v14
    %592 = xla_tuple %v591
    %s593 = scalar_lea.vmem [#allocation33], 88
    %595 = vst [vmem:[%s593] sm:$0xff] %v591
    %s596 = scalar_lea.vmem %s143, 8
    %s597 = scalar_lea.vmem %s156, 8
    %s598 = scalar_lea.vmem %s169, 8
    %v599 = vlaneseq
    %v600 = vand.u32 %v599, 127
    %vm602 = vcmp.lt.s32.totalorder %v600, 88
    %v603 = vsel %vm602, %v220, %v16
    %604 = xla_tuple %v17, %v603
    %605 = xla_tuple %604
    %v606 = vmax.f32 %v17, %v603
    %607 = xla_tuple %v606
    %608 = xla_tuple %v606, %v15
    %609 = xla_tuple %608
    %v610 = vmax.f32 %v606, %v15
    %611 = xla_tuple %v610
    %612 = xla_tuple %v610, %v14
    %613 = xla_tuple %612
    %v614 = vmax.f32 %v610, %v14
    %615 = xla_tuple %v614
    %s616 = scalar_lea.vmem [#allocation33], 96
    %618 = vst [vmem:[%s616] sm:$0xff] %v614
    %s619 = scalar_lea.vmem %s143, 16
    %s620 = scalar_lea.vmem %s156, 16
    %s621 = scalar_lea.vmem %s169, 16
    %v622 = vlaneseq
    %v623 = vand.u32 %v622, 127
    %vm625 = vcmp.lt.s32.totalorder %v623, 88
    %v626 = vsel %vm625, %v257, %v16
    %627 = xla_tuple %v17, %v626
    %628 = xla_tuple %627
    %v629 = vmax.f32 %v17, %v626
    %630 = xla_tuple %v629
    %631 = xla_tuple %v629, %v15
    %632 = xla_tuple %631
    %v633 = vmax.f32 %v629, %v15
    %634 = xla_tuple %v633
    %635 = xla_tuple %v633, %v14
    %636 = xla_tuple %635
    %v637 = vmax.f32 %v633, %v14
    %638 = xla_tuple %v637
    %s639 = scalar_lea.vmem [#allocation33], 104
    %641 = vst [vmem:[%s639] sm:$0xff] %v637
    %s642 = scalar_lea.vmem %s143, 24
    %s643 = scalar_lea.vmem %s156, 24
    %s644 = scalar_lea.vmem %s169, 24
    %v645 = vlaneseq
    %v646 = vand.u32 %v645, 127
    %vm648 = vcmp.lt.s32.totalorder %v646, 88
    %v649 = vsel %vm648, %v294, %v16
    %650 = xla_tuple %v17, %v649
    %651 = xla_tuple %650
    %v652 = vmax.f32 %v17, %v649
    %653 = xla_tuple %v652
    %654 = xla_tuple %v652, %v15
    %655 = xla_tuple %654
    %v656 = vmax.f32 %v652, %v15
    %657 = xla_tuple %v656
    %658 = xla_tuple %v656, %v14
    %659 = xla_tuple %658
    %v660 = vmax.f32 %v656, %v14
    %661 = xla_tuple %v660
    %s662 = scalar_lea.vmem [#allocation33], 112
    %664 = vst [vmem:[%s662] sm:$0xff] %v660
    %s665 = scalar_lea.vmem %s143, 32
    %s666 = scalar_lea.vmem %s156, 32
    %s667 = scalar_lea.vmem %s169, 32
    %v668 = vlaneseq
    %v669 = vand.u32 %v668, 127
    %vm671 = vcmp.lt.s32.totalorder %v669, 88
    %v672 = vsel %vm671, %v331, %v16
    %673 = xla_tuple %v17, %v672
    %674 = xla_tuple %673
    %v675 = vmax.f32 %v17, %v672
    %676 = xla_tuple %v675
    %677 = xla_tuple %v675, %v15
    %678 = xla_tuple %677
    %v679 = vmax.f32 %v675, %v15
    %680 = xla_tuple %v679
    %681 = xla_tuple %v679, %v14
    %682 = xla_tuple %681
    %v683 = vmax.f32 %v679, %v14
    %684 = xla_tuple %v683
    %s685 = scalar_lea.vmem [#allocation33], 120
    %687 = vst [vmem:[%s685] sm:$0xff] %v683
    %s688 = scalar_lea.vmem %s143, 40
    %s689 = scalar_lea.vmem %s156, 40
    %s690 = scalar_lea.vmem %s169, 40
    %v691 = vlaneseq
    %v692 = vand.u32 %v691, 127
    %vm694 = vcmp.lt.s32.totalorder %v692, 88
    %v695 = vsel %vm694, %v368, %v16
    %696 = xla_tuple %v17, %v695
    %697 = xla_tuple %696
    %v698 = vmax.f32 %v17, %v695
    %699 = xla_tuple %v698
    %700 = xla_tuple %v698, %v15
    %701 = xla_tuple %700
    %v702 = vmax.f32 %v698, %v15
    %703 = xla_tuple %v702
    %704 = xla_tuple %v702, %v14
    %705 = xla_tuple %704
    %v706 = vmax.f32 %v702, %v14
    %707 = xla_tuple %v706
    %s708 = scalar_lea.vmem [#allocation33], 128
    %710 = vst [vmem:[%s708] sm:$0xff] %v706
    %s711 = scalar_lea.vmem %s143, 48
    %s712 = scalar_lea.vmem %s156, 48
    %s713 = scalar_lea.vmem %s169, 48
    %v714 = vlaneseq
    %v715 = vand.u32 %v714, 127
    %vm717 = vcmp.lt.s32.totalorder %v715, 88
    %v718 = vsel %vm717, %v405, %v16
    %719 = xla_tuple %v17, %v718
    %720 = xla_tuple %719
    %v721 = vmax.f32 %v17, %v718
    %722 = xla_tuple %v721
    %723 = xla_tuple %v721, %v15
    %724 = xla_tuple %723
    %v725 = vmax.f32 %v721, %v15
    %726 = xla_tuple %v725
    %727 = xla_tuple %v725, %v14
    %728 = xla_tuple %727
    %v729 = vmax.f32 %v725, %v14
    %730 = xla_tuple %v729
    %s731 = scalar_lea.vmem [#allocation33], 136
    %733 = vst [vmem:[%s731] sm:$0xff] %v729
    %s734 = scalar_lea.vmem %s143, 56
    %s735 = scalar_lea.vmem %s156, 56
    %s736 = scalar_lea.vmem %s169, 56
    %v737 = vlaneseq
    %v738 = vand.u32 %v737, 127
    %vm740 = vcmp.lt.s32.totalorder %v738, 88
    %v741 = vsel %vm740, %v442, %v16
    %742 = xla_tuple %v17, %v741
    %743 = xla_tuple %742
    %v744 = vmax.f32 %v17, %v741
    %745 = xla_tuple %v744
    %746 = xla_tuple %v744, %v15
    %747 = xla_tuple %746
    %v748 = vmax.f32 %v744, %v15
    %749 = xla_tuple %v748
    %750 = xla_tuple %v748, %v14
    %751 = xla_tuple %750
    %v752 = vmax.f32 %v748, %v14
    %753 = xla_tuple %v752
    %s754 = scalar_lea.vmem [#allocation33], 144
    %756 = vst [vmem:[%s754] sm:$0xff] %v752
    %s757 = scalar_lea.vmem %s143, 64
    %s758 = scalar_lea.vmem %s156, 64
    %s759 = scalar_lea.vmem %s169, 64
    %v760 = vlaneseq
    %v761 = vand.u32 %v760, 127
    %vm763 = vcmp.lt.s32.totalorder %v761, 88
    %v764 = vsel %vm763, %v479, %v16
    %765 = xla_tuple %v17, %v764
    %766 = xla_tuple %765
    %v767 = vmax.f32 %v17, %v764
    %768 = xla_tuple %v767
    %769 = xla_tuple %v767, %v15
    %770 = xla_tuple %769
    %v771 = vmax.f32 %v767, %v15
    %772 = xla_tuple %v771
    %773 = xla_tuple %v771, %v14
    %774 = xla_tuple %773
    %v775 = vmax.f32 %v771, %v14
    %776 = xla_tuple %v775
    %s777 = scalar_lea.vmem [#allocation33], 152
    %779 = vst [vmem:[%s777] sm:$0xff] %v775
    %s780 = scalar_lea.vmem %s143, 72
    %s781 = scalar_lea.vmem %s156, 72
    %s782 = scalar_lea.vmem %s169, 72
    %v783 = vlaneseq
    %v784 = vand.u32 %v783, 127
    %vm786 = vcmp.lt.s32.totalorder %v784, 88
    %v787 = vsel %vm786, %v516, %v16
    %788 = xla_tuple %v17, %v787
    %789 = xla_tuple %788
    %v790 = vmax.f32 %v17, %v787
    %791 = xla_tuple %v790
    %792 = xla_tuple %v790, %v15
    %793 = xla_tuple %792
    %v794 = vmax.f32 %v790, %v15
    %795 = xla_tuple %v794
    %796 = xla_tuple %v794, %v14
    %797 = xla_tuple %796
    %v798 = vmax.f32 %v794, %v14
    %799 = xla_tuple %v798
    %s800 = scalar_lea.vmem [#allocation33], 160
    %802 = vst [vmem:[%s800] sm:$0xff] %v798
    %s803 = scalar_lea.vmem %s143, 80
    %s804 = scalar_lea.vmem %s156, 80
    %s805 = scalar_lea.vmem %s169, 80
    %v806 = vlaneseq
    %v807 = vand.u32 %v806, 127
    %vm809 = vcmp.lt.s32.totalorder %v807, 88
    %v810 = vsel %vm809, %v553, %v16
    %811 = xla_tuple %v17, %v810
    %812 = xla_tuple %811
    %v813 = vmax.f32 %v17, %v810
    %814 = xla_tuple %v813
    %815 = xla_tuple %v813, %v15
    %816 = xla_tuple %815
    %v817 = vmax.f32 %v813, %v15
    %818 = xla_tuple %v817
    %819 = xla_tuple %v817, %v14
    %820 = xla_tuple %819
    %v821 = vmax.f32 %v817, %v14
    %822 = xla_tuple %v821
    %s823 = scalar_lea.vmem [#allocation33], 168
    %825 = vst [vmem:[%s823] sm:$0xff] %v821
    %v826 = vlaneseq
    %v827 = vand.u32 %v826, 127
    %vm829 = vcmp.lt.s32.totalorder %v827, 88
    %v830 = vsel %vm829, %v181, %v15
    %831 = xla_tuple %v17, %v16
    %832 = xla_tuple %831
    %v833 = vmax.f32 %v17, %v16
    %834 = xla_tuple %v833
    %835 = xla_tuple %v833, %v830
    %836 = xla_tuple %835
    %v837 = vmax.f32 %v833, %v830
    %838 = xla_tuple %v837
    %839 = xla_tuple %v837, %v14
    %840 = xla_tuple %839
    %v841 = vmax.f32 %v837, %v14
    %842 = xla_tuple %v841
    %s843 = scalar_lea.vmem [#allocation33], 176
    %845 = vst [vmem:[%s843] sm:$0xff] %v841
    %s846 = scalar_lea.vmem %s143, 8
    %s847 = scalar_lea.vmem %s156, 8
    %v848 = vlaneseq
    %v849 = vand.u32 %v848, 127
    %vm851 = vcmp.lt.s32.totalorder %v849, 88
    %v852 = vsel %vm851, %v215, %v15
    %s853 = scalar_lea.vmem %s169, 8
    %854 = xla_tuple %v17, %v16
    %855 = xla_tuple %854
    %v856 = vmax.f32 %v17, %v16
    %857 = xla_tuple %v856
    %858 = xla_tuple %v856, %v852
    %859 = xla_tuple %858
    %v860 = vmax.f32 %v856, %v852
    %861 = xla_tuple %v860
    %862 = xla_tuple %v860, %v14
    %863 = xla_tuple %862
    %v864 = vmax.f32 %v860, %v14
    %865 = xla_tuple %v864
    %s866 = scalar_lea.vmem [#allocation33], 184
    %868 = vst [vmem:[%s866] sm:$0xff] %v864
    %s869 = scalar_lea.vmem %s143, 16
    %s870 = scalar_lea.vmem %s156, 16
    %v871 = vlaneseq
    %v872 = vand.u32 %v871, 127
    %vm874 = vcmp.lt.s32.totalorder %v872, 88
    %v875 = vsel %vm874, %v252, %v15
    %s876 = scalar_lea.vmem %s169, 16
    %877 = xla_tuple %v17, %v16
    %878 = xla_tuple %877
    %v879 = vmax.f32 %v17, %v16
    %880 = xla_tuple %v879
    %881 = xla_tuple %v879, %v875
    %882 = xla_tuple %881
    %v883 = vmax.f32 %v879, %v875
    %884 = xla_tuple %v883
    %885 = xla_tuple %v883, %v14
    %886 = xla_tuple %885
    %v887 = vmax.f32 %v883, %v14
    %888 = xla_tuple %v887
    %s889 = scalar_lea.vmem [#allocation33], 192
    %891 = vst [vmem:[%s889] sm:$0xff] %v887
    %s892 = scalar_lea.vmem %s143, 24
    %s893 = scalar_lea.vmem %s156, 24
    %v894 = vlaneseq
    %v895 = vand.u32 %v894, 127
    %vm897 = vcmp.lt.s32.totalorder %v895, 88
    %v898 = vsel %vm897, %v289, %v15
    %s899 = scalar_lea.vmem %s169, 24
    %900 = xla_tuple %v17, %v16
    %901 = xla_tuple %900
    %v902 = vmax.f32 %v17, %v16
    %903 = xla_tuple %v902
    %904 = xla_tuple %v902, %v898
    %905 = xla_tuple %904
    %v906 = vmax.f32 %v902, %v898
    %907 = xla_tuple %v906
    %908 = xla_tuple %v906, %v14
    %909 = xla_tuple %908
    %v910 = vmax.f32 %v906, %v14
    %911 = xla_tuple %v910
    %s912 = scalar_lea.vmem [#allocation33], 200
    %914 = vst [vmem:[%s912] sm:$0xff] %v910
    %s915 = scalar_lea.vmem %s143, 32
    %s916 = scalar_lea.vmem %s156, 32
    %v917 = vlaneseq
    %v918 = vand.u32 %v917, 127
    %vm920 = vcmp.lt.s32.totalorder %v918, 88
    %v921 = vsel %vm920, %v326, %v15
    %s922 = scalar_lea.vmem %s169, 32
    %923 = xla_tuple %v17, %v16
    %924 = xla_tuple %923
    %v925 = vmax.f32 %v17, %v16
    %926 = xla_tuple %v925
    %927 = xla_tuple %v925, %v921
    %928 = xla_tuple %927
    %v929 = vmax.f32 %v925, %v921
    %930 = xla_tuple %v929
    %931 = xla_tuple %v929, %v14
    %932 = xla_tuple %931
    %v933 = vmax.f32 %v929, %v14
    %934 = xla_tuple %v933
    %s935 = scalar_lea.vmem [#allocation33], 208
    %937 = vst [vmem:[%s935] sm:$0xff] %v933
    %s938 = scalar_lea.vmem %s143, 40
    %s939 = scalar_lea.vmem %s156, 40
    %v940 = vlaneseq
    %v941 = vand.u32 %v940, 127
    %vm943 = vcmp.lt.s32.totalorder %v941, 88
    %v944 = vsel %vm943, %v363, %v15
    %s945 = scalar_lea.vmem %s169, 40
    %946 = xla_tuple %v17, %v16
    %947 = xla_tuple %946
    %v948 = vmax.f32 %v17, %v16
    %949 = xla_tuple %v948
    %950 = xla_tuple %v948, %v944
    %951 = xla_tuple %950
    %v952 = vmax.f32 %v948, %v944
    %953 = xla_tuple %v952
    %954 = xla_tuple %v952, %v14
    %955 = xla_tuple %954
    %v956 = vmax.f32 %v952, %v14
    %957 = xla_tuple %v956
    %s958 = scalar_lea.vmem [#allocation33], 216
    %960 = vst [vmem:[%s958] sm:$0xff] %v956
    %s961 = scalar_lea.vmem %s143, 48
    %s962 = scalar_lea.vmem %s156, 48
    %v963 = vlaneseq
    %v964 = vand.u32 %v963, 127
    %vm966 = vcmp.lt.s32.totalorder %v964, 88
    %v967 = vsel %vm966, %v400, %v15
    %s968 = scalar_lea.vmem %s169, 48
    %969 = xla_tuple %v17, %v16
    %970 = xla_tuple %969
    %v971 = vmax.f32 %v17, %v16
    %972 = xla_tuple %v971
    %973 = xla_tuple %v971, %v967
    %974 = xla_tuple %973
    %v975 = vmax.f32 %v971, %v967
    %976 = xla_tuple %v975
    %977 = xla_tuple %v975, %v14
    %978 = xla_tuple %977
    %v979 = vmax.f32 %v975, %v14
    %980 = xla_tuple %v979
    %s981 = scalar_lea.vmem [#allocation33], 224
    %983 = vst [vmem:[%s981] sm:$0xff] %v979
    %s984 = scalar_lea.vmem %s143, 56
    %s985 = scalar_lea.vmem %s156, 56
    %v986 = vlaneseq
    %v987 = vand.u32 %v986, 127
    %vm989 = vcmp.lt.s32.totalorder %v987, 88
    %v990 = vsel %vm989, %v437, %v15
    %s991 = scalar_lea.vmem %s169, 56
    %992 = xla_tuple %v17, %v16
    %993 = xla_tuple %992
    %v994 = vmax.f32 %v17, %v16
    %995 = xla_tuple %v994
    %996 = xla_tuple %v994, %v990
    %997 = xla_tuple %996
    %v998 = vmax.f32 %v994, %v990
    %999 = xla_tuple %v998
    %1000 = xla_tuple %v998, %v14
    %1001 = xla_tuple %1000
    %v1002 = vmax.f32 %v998, %v14
    %1003 = xla_tuple %v1002
    %s1004 = scalar_lea.vmem [#allocation33], 232
    %1006 = vst [vmem:[%s1004] sm:$0xff] %v1002
    %s1007 = scalar_lea.vmem %s143, 64
    %s1008 = scalar_lea.vmem %s156, 64
    %v1009 = vlaneseq
    %v1010 = vand.u32 %v1009, 127
    %vm1012 = vcmp.lt.s32.totalorder %v1010, 88
    %v1013 = vsel %vm1012, %v474, %v15
    %s1014 = scalar_lea.vmem %s169, 64
    %1015 = xla_tuple %v17, %v16
    %1016 = xla_tuple %1015
    %v1017 = vmax.f32 %v17, %v16
    %1018 = xla_tuple %v1017
    %1019 = xla_tuple %v1017, %v1013
    %1020 = xla_tuple %1019
    %v1021 = vmax.f32 %v1017, %v1013
    %1022 = xla_tuple %v1021
    %1023 = xla_tuple %v1021, %v14
    %1024 = xla_tuple %1023
    %v1025 = vmax.f32 %v1021, %v14
    %1026 = xla_tuple %v1025
    %s1027 = scalar_lea.vmem [#allocation33], 240
    %1029 = vst [vmem:[%s1027] sm:$0xff] %v1025
    %s1030 = scalar_lea.vmem %s143, 72
    %s1031 = scalar_lea.vmem %s156, 72
    %v1032 = vlaneseq
    %v1033 = vand.u32 %v1032, 127
    %vm1035 = vcmp.lt.s32.totalorder %v1033, 88
    %v1036 = vsel %vm1035, %v511, %v15
    %s1037 = scalar_lea.vmem %s169, 72
    %1038 = xla_tuple %v17, %v16
    %1039 = xla_tuple %1038
    %v1040 = vmax.f32 %v17, %v16
    %1041 = xla_tuple %v1040
    %1042 = xla_tuple %v1040, %v1036
    %1043 = xla_tuple %1042
    %v1044 = vmax.f32 %v1040, %v1036
    %1045 = xla_tuple %v1044
    %1046 = xla_tuple %v1044, %v14
    %1047 = xla_tuple %1046
    %v1048 = vmax.f32 %v1044, %v14
    %1049 = xla_tuple %v1048
    %s1050 = scalar_lea.vmem [#allocation33], 248
    %1052 = vst [vmem:[%s1050] sm:$0xff] %v1048
    %s1053 = scalar_lea.vmem %s143, 80
    %s1054 = scalar_lea.vmem %s156, 80
    %v1055 = vlaneseq
    %v1056 = vand.u32 %v1055, 127
    %vm1058 = vcmp.lt.s32.totalorder %v1056, 88
    %v1059 = vsel %vm1058, %v548, %v15
    %s1060 = scalar_lea.vmem %s169, 80
    %1061 = xla_tuple %v17, %v16
    %1062 = xla_tuple %1061
    %v1063 = vmax.f32 %v17, %v16
    %1064 = xla_tuple %v1063
    %1065 = xla_tuple %v1063, %v1059
    %1066 = xla_tuple %1065
    %v1067 = vmax.f32 %v1063, %v1059
    %1068 = xla_tuple %v1067
    %1069 = xla_tuple %v1067, %v14
    %1070 = xla_tuple %1069
    %v1071 = vmax.f32 %v1067, %v14
    %1072 = xla_tuple %v1071
    %s1073 = scalar_lea.vmem [#allocation33], 256
    %1075 = vst [vmem:[%s1073] sm:$0xff] %v1071
    %v1076 = vlaneseq
    %v1077 = vand.u32 %v1076, 127
    %vm1079 = vcmp.lt.s32.totalorder %v1077, 88
    %v1080 = vsel %vm1079, %v177, %v14
    %1081 = xla_tuple %v17, %v16
    %1082 = xla_tuple %1081
    %v1083 = vmax.f32 %v17, %v16
    %1084 = xla_tuple %v1083
    %1085 = xla_tuple %v1083, %v15
    %1086 = xla_tuple %1085
    %v1087 = vmax.f32 %v1083, %v15
    %1088 = xla_tuple %v1087
    %1089 = xla_tuple %v1087, %v1080
    %1090 = xla_tuple %1089
    %v1091 = vmax.f32 %v1087, %v1080
    %1092 = xla_tuple %v1091
    %s1093 = scalar_lea.vmem [#allocation33], 264
    %1095 = vst [vmem:[%s1093] sm:$0xff] %v1091
    %s1096 = scalar_lea.vmem %s143, 8
    %v1097 = vlaneseq
    %v1098 = vand.u32 %v1097, 127
    %vm1100 = vcmp.lt.s32.totalorder %v1098, 88
    %v1101 = vsel %vm1100, %v210, %v14
    %s1102 = scalar_lea.vmem %s156, 8
    %s1103 = scalar_lea.vmem %s169, 8
    %1104 = xla_tuple %v17, %v16
    %1105 = xla_tuple %1104
    %v1106 = vmax.f32 %v17, %v16
    %1107 = xla_tuple %v1106
    %1108 = xla_tuple %v1106, %v15
    %1109 = xla_tuple %1108
    %v1110 = vmax.f32 %v1106, %v15
    %1111 = xla_tuple %v1110
    %1112 = xla_tuple %v1110, %v1101
    %1113 = xla_tuple %1112
    %v1114 = vmax.f32 %v1110, %v1101
    %1115 = xla_tuple %v1114
    %s1116 = scalar_lea.vmem [#allocation33], 272
    %1118 = vst [vmem:[%s1116] sm:$0xff] %v1114
    %s1119 = scalar_lea.vmem %s143, 16
    %v1120 = vlaneseq
    %v1121 = vand.u32 %v1120, 127
    %vm1123 = vcmp.lt.s32.totalorder %v1121, 88
    %v1124 = vsel %vm1123, %v247, %v14
    %s1125 = scalar_lea.vmem %s156, 16
    %s1126 = scalar_lea.vmem %s169, 16
    %1127 = xla_tuple %v17, %v16
    %1128 = xla_tuple %1127
    %v1129 = vmax.f32 %v17, %v16
    %1130 = xla_tuple %v1129
    %1131 = xla_tuple %v1129, %v15
    %1132 = xla_tuple %1131
    %v1133 = vmax.f32 %v1129, %v15
    %1134 = xla_tuple %v1133
    %1135 = xla_tuple %v1133, %v1124
    %1136 = xla_tuple %1135
    %v1137 = vmax.f32 %v1133, %v1124
    %1138 = xla_tuple %v1137
    %s1139 = scalar_lea.vmem [#allocation33], 280
    %1141 = vst [vmem:[%s1139] sm:$0xff] %v1137
    %s1142 = scalar_lea.vmem %s143, 24
    %v1143 = vlaneseq
    %v1144 = vand.u32 %v1143, 127
    %vm1146 = vcmp.lt.s32.totalorder %v1144, 88
    %v1147 = vsel %vm1146, %v284, %v14
    %s1148 = scalar_lea.vmem %s156, 24
    %s1149 = scalar_lea.vmem %s169, 24
    %1150 = xla_tuple %v17, %v16
    %1151 = xla_tuple %1150
    %v1152 = vmax.f32 %v17, %v16
    %1153 = xla_tuple %v1152
    %1154 = xla_tuple %v1152, %v15
    %1155 = xla_tuple %1154
    %v1156 = vmax.f32 %v1152, %v15
    %1157 = xla_tuple %v1156
    %1158 = xla_tuple %v1156, %v1147
    %1159 = xla_tuple %1158
    %v1160 = vmax.f32 %v1156, %v1147
    %1161 = xla_tuple %v1160
    %s1162 = scalar_lea.vmem [#allocation33], 288
    %1164 = vst [vmem:[%s1162] sm:$0xff] %v1160
    %s1165 = scalar_lea.vmem %s143, 32
    %v1166 = vlaneseq
    %v1167 = vand.u32 %v1166, 127
    %vm1169 = vcmp.lt.s32.totalorder %v1167, 88
    %v1170 = vsel %vm1169, %v321, %v14
    %s1171 = scalar_lea.vmem %s156, 32
    %s1172 = scalar_lea.vmem %s169, 32
    %1173 = xla_tuple %v17, %v16
    %1174 = xla_tuple %1173
    %v1175 = vmax.f32 %v17, %v16
    %1176 = xla_tuple %v1175
    %1177 = xla_tuple %v1175, %v15
    %1178 = xla_tuple %1177
    %v1179 = vmax.f32 %v1175, %v15
    %1180 = xla_tuple %v1179
    %1181 = xla_tuple %v1179, %v1170
    %1182 = xla_tuple %1181
    %v1183 = vmax.f32 %v1179, %v1170
    %1184 = xla_tuple %v1183
    %s1185 = scalar_lea.vmem [#allocation33], 296
    %1187 = vst [vmem:[%s1185] sm:$0xff] %v1183
    %s1188 = scalar_lea.vmem %s143, 40
    %v1189 = vlaneseq
    %v1190 = vand.u32 %v1189, 127
    %vm1192 = vcmp.lt.s32.totalorder %v1190, 88
    %v1193 = vsel %vm1192, %v358, %v14
    %s1194 = scalar_lea.vmem %s156, 40
    %s1195 = scalar_lea.vmem %s169, 40
    %1196 = xla_tuple %v17, %v16
    %1197 = xla_tuple %1196
    %v1198 = vmax.f32 %v17, %v16
    %1199 = xla_tuple %v1198
    %1200 = xla_tuple %v1198, %v15
    %1201 = xla_tuple %1200
    %v1202 = vmax.f32 %v1198, %v15
    %1203 = xla_tuple %v1202
    %1204 = xla_tuple %v1202, %v1193
    %1205 = xla_tuple %1204
    %v1206 = vmax.f32 %v1202, %v1193
    %1207 = xla_tuple %v1206
    %s1208 = scalar_lea.vmem [#allocation33], 304
    %1210 = vst [vmem:[%s1208] sm:$0xff] %v1206
    %s1211 = scalar_lea.vmem %s143, 48
    %v1212 = vlaneseq
    %v1213 = vand.u32 %v1212, 127
    %vm1215 = vcmp.lt.s32.totalorder %v1213, 88
    %v1216 = vsel %vm1215, %v395, %v14
    %s1217 = scalar_lea.vmem %s156, 48
    %s1218 = scalar_lea.vmem %s169, 48
    %1219 = xla_tuple %v17, %v16
    %1220 = xla_tuple %1219
    %v1221 = vmax.f32 %v17, %v16
    %1222 = xla_tuple %v1221
    %1223 = xla_tuple %v1221, %v15
    %1224 = xla_tuple %1223
    %v1225 = vmax.f32 %v1221, %v15
    %1226 = xla_tuple %v1225
    %1227 = xla_tuple %v1225, %v1216
    %1228 = xla_tuple %1227
    %v1229 = vmax.f32 %v1225, %v1216
    %1230 = xla_tuple %v1229
    %s1231 = scalar_lea.vmem [#allocation33], 312
    %1233 = vst [vmem:[%s1231] sm:$0xff] %v1229
    %s1234 = scalar_lea.vmem %s143, 56
    %v1235 = vlaneseq
    %v1236 = vand.u32 %v1235, 127
    %vm1238 = vcmp.lt.s32.totalorder %v1236, 88
    %v1239 = vsel %vm1238, %v432, %v14
    %s1240 = scalar_lea.vmem %s156, 56
    %s1241 = scalar_lea.vmem %s169, 56
    %1242 = xla_tuple %v17, %v16
    %1243 = xla_tuple %1242
    %v1244 = vmax.f32 %v17, %v16
    %1245 = xla_tuple %v1244
    %1246 = xla_tuple %v1244, %v15
    %1247 = xla_tuple %1246
    %v1248 = vmax.f32 %v1244, %v15
    %1249 = xla_tuple %v1248
    %1250 = xla_tuple %v1248, %v1239
    %1251 = xla_tuple %1250
    %v1252 = vmax.f32 %v1248, %v1239
    %1253 = xla_tuple %v1252
    %s1254 = scalar_lea.vmem [#allocation33], 320
    %1256 = vst [vmem:[%s1254] sm:$0xff] %v1252
    %s1257 = scalar_lea.vmem %s143, 64
    %v1258 = vlaneseq
    %v1259 = vand.u32 %v1258, 127
    %vm1261 = vcmp.lt.s32.totalorder %v1259, 88
    %v1262 = vsel %vm1261, %v469, %v14
    %s1263 = scalar_lea.vmem %s156, 64
    %s1264 = scalar_lea.vmem %s169, 64
    %1265 = xla_tuple %v17, %v16
    %1266 = xla_tuple %1265
    %v1267 = vmax.f32 %v17, %v16
    %1268 = xla_tuple %v1267
    %1269 = xla_tuple %v1267, %v15
    %1270 = xla_tuple %1269
    %v1271 = vmax.f32 %v1267, %v15
    %1272 = xla_tuple %v1271
    %1273 = xla_tuple %v1271, %v1262
    %1274 = xla_tuple %1273
    %v1275 = vmax.f32 %v1271, %v1262
    %1276 = xla_tuple %v1275
    %s1277 = scalar_lea.vmem [#allocation33], 328
    %1279 = vst [vmem:[%s1277] sm:$0xff] %v1275
    %s1280 = scalar_lea.vmem %s143, 72
    %v1281 = vlaneseq
    %v1282 = vand.u32 %v1281, 127
    %vm1284 = vcmp.lt.s32.totalorder %v1282, 88
    %v1285 = vsel %vm1284, %v506, %v14
    %s1286 = scalar_lea.vmem %s156, 72
    %s1287 = scalar_lea.vmem %s169, 72
    %1288 = xla_tuple %v17, %v16
    %1289 = xla_tuple %1288
    %v1290 = vmax.f32 %v17, %v16
    %1291 = xla_tuple %v1290
    %1292 = xla_tuple %v1290, %v15
    %1293 = xla_tuple %1292
    %v1294 = vmax.f32 %v1290, %v15
    %1295 = xla_tuple %v1294
    %1296 = xla_tuple %v1294, %v1285
    %1297 = xla_tuple %1296
    %v1298 = vmax.f32 %v1294, %v1285
    %1299 = xla_tuple %v1298
    %s1300 = scalar_lea.vmem [#allocation33], 336
    %1302 = vst [vmem:[%s1300] sm:$0xff] %v1298
    %s1303 = scalar_lea.vmem %s143, 80
    %v1304 = vlaneseq
    %v1305 = vand.u32 %v1304, 127
    %vm1307 = vcmp.lt.s32.totalorder %v1305, 88
    %v1308 = vsel %vm1307, %v543, %v14
    %s1309 = scalar_lea.vmem %s156, 80
    %s1310 = scalar_lea.vmem %s169, 80
    %1311 = xla_tuple %v17, %v16
    %1312 = xla_tuple %1311
    %v1313 = vmax.f32 %v17, %v16
    %1314 = xla_tuple %v1313
    %1315 = xla_tuple %v1313, %v15
    %1316 = xla_tuple %1315
    %v1317 = vmax.f32 %v1313, %v15
    %1318 = xla_tuple %v1317
    %1319 = xla_tuple %v1317, %v1308
    %1320 = xla_tuple %1319
    %v1321 = vmax.f32 %v1317, %v1308
    %1322 = xla_tuple %v1321
    %s1323 = scalar_lea.vmem [#allocation33], 344
    %1325 = vst [vmem:[%s1323] sm:$0xff] %v1321
    %p1327 = scmp.lt.u32.totalorder 87, 8
    %p1328 = pneg %p1327
    // Predicated region
    $region42: #{classifn_forward.2} parent=1 // pred_check
      _
    $region43: #{classifn_forward.2} parent=1 // pred_check_branch
      %1330 = sbr.rel (%p1327) target = $region45
    $region44: #{classifn_forward.2} parent=1 // pred_region
      %s1359 = sand.u32 87, 7
      %p1360 = scmp.eq.s32.totalorder %s1359, 0
      %p1361 = pneg %p1360
      // Predicated region
      $region57: #{classifn_forward.2} parent=44 // pred_check
        _
      $region58: #{classifn_forward.2} parent=44 // pred_check_branch
        %1363 = sbr.rel (%p1360) target = $region60
      $region59: #{classifn_forward.2} parent=44 // pred_region
        %s1364 = sand.u32 87, 7
        %s1365 = ssub.s32 87, %s1364
        %s1366 = scalar_lea.vmem %s2, %s1365
        %s1367 = ssub.s32 87, %s1364
        %s1368 = scalar_lea.vmem [#allocation4], %s1367
        loop: start=0, step=1, limit=1
        $region61: #{classifn_forward.2} parent=59 // loop_pre_header
          _
        $region62: #{classifn_forward.2} parent=59 // loop_header
          %s1370 = sphi 0, %s1374
          %p1371 = scmp.ge.s32.totalorder %s1370, 1
          %s1375 = sphi %s2, %s2
          %s1376 = sphi [#allocation4], [#allocation4]
        $region63: #{classifn_forward.2} parent=59 // loop_header_branch
          %1373 = sbr.rel (%p1371) target = $region67
        $region64: #{classifn_forward.2} parent=59 // loop_body
          %v1377 = vld [vmem:[%s1375] sm:$0xff]
          %1378 = vst [vmem:[%s1376] sm:$0xff] %v1377
          %v1379 = vld [vmem:[%s1375 + $0x8] sm:$0xff]
          %1380 = vst [vmem:[%s1376 + $0x8] sm:$0xff] %v1379
          %v1381 = vld [vmem:[%s1375 + $0x10] sm:$0xff]
          %1382 = vst [vmem:[%s1376 + $0x10] sm:$0xff] %v1381
          %v1383 = vld [vmem:[%s1375 + $0x18] sm:$0xff]
          %1384 = vst [vmem:[%s1376 + $0x18] sm:$0xff] %v1383
          %v1385 = vld [vmem:[%s1375 + $0x20] sm:$0xff]
          %1386 = vst [vmem:[%s1376 + $0x20] sm:$0xff] %v1385
          %v1387 = vld [vmem:[%s1375 + $0x28] sm:$0xff]
          %1388 = vst [vmem:[%s1376 + $0x28] sm:$0xff] %v1387
          %v1389 = vld [vmem:[%s1375 + $0x30] sm:$0xff]
          %1390 = vst [vmem:[%s1376 + $0x30] sm:$0xff] %v1389
          %v1391 = vld [vmem:[%s1375 + $0x38] sm:$0xff]
          %1392 = vst [vmem:[%s1376 + $0x38] sm:$0xff] %v1391
          %v1393 = vld [vmem:[%s1375 + $0x40] sm:$0xff]
          %1394 = vst [vmem:[%s1376 + $0x40] sm:$0xff] %v1393
          %v1395 = vld [vmem:[%s1375 + $0x48] sm:$0xff]
          %1396 = vst [vmem:[%s1376 + $0x48] sm:$0xff] %v1395
          %v1397 = vld [vmem:[%s1375 + $0x58] sm:$0xff]
          %1398 = vst [vmem:[%s1376 + $0x58] sm:$0xff] %v1397
          %v1399 = vld [vmem:[%s1375 + $0x60] sm:$0xff]
          %1400 = vst [vmem:[%s1376 + $0x60] sm:$0xff] %v1399
          %v1401 = vld [vmem:[%s1375 + $0x68] sm:$0xff]
          %1402 = vst [vmem:[%s1376 + $0x68] sm:$0xff] %v1401
          %v1403 = vld [vmem:[%s1375 + $0x70] sm:$0xff]
          %1404 = vst [vmem:[%s1376 + $0x70] sm:$0xff] %v1403
          %v1405 = vld [vmem:[%s1375 + $0x78] sm:$0xff]
          %1406 = vst [vmem:[%s1376 + $0x78] sm:$0xff] %v1405
          %v1407 = vld [vmem:[%s1375 + $0x80] sm:$0xff]
          %1408 = vst [vmem:[%s1376 + $0x80] sm:$0xff] %v1407
          %v1409 = vld [vmem:[%s1375 + $0x88] sm:$0xff]
          %1410 = vst [vmem:[%s1376 + $0x88] sm:$0xff] %v1409
          %v1411 = vld [vmem:[%s1375 + $0x90] sm:$0xff]
          %1412 = vst [vmem:[%s1376 + $0x90] sm:$0xff] %v1411
          %v1413 = vld [vmem:[%s1375 + $0x98] sm:$0xff]
          %1414 = vst [vmem:[%s1376 + $0x98] sm:$0xff] %v1413
          %v1415 = vld [vmem:[%s1375 + $0xa0] sm:$0xff]
          %1416 = vst [vmem:[%s1376 + $0xa0] sm:$0xff] %v1415
          %v1417 = vld [vmem:[%s1375 + $0xb0] sm:$0xff]
          %1418 = vst [vmem:[%s1376 + $0xb0] sm:$0xff] %v1417
          %v1419 = vld [vmem:[%s1375 + $0xb8] sm:$0xff]
          %1420 = vst [vmem:[%s1376 + $0xb8] sm:$0xff] %v1419
          %v1421 = vld [vmem:[%s1375 + $0xc0] sm:$0xff]
          %1422 = vst [vmem:[%s1376 + $0xc0] sm:$0xff] %v1421
          %v1423 = vld [vmem:[%s1375 + $0xc8] sm:$0xff]
          %1424 = vst [vmem:[%s1376 + $0xc8] sm:$0xff] %v1423
          %v1425 = vld [vmem:[%s1375 + $0xd0] sm:$0xff]
          %1426 = vst [vmem:[%s1376 + $0xd0] sm:$0xff] %v1425
          %v1427 = vld [vmem:[%s1375 + $0xd8] sm:$0xff]
          %1428 = vst [vmem:[%s1376 + $0xd8] sm:$0xff] %v1427
          %v1429 = vld [vmem:[%s1375 + $0xe0] sm:$0xff]
          %1430 = vst [vmem:[%s1376 + $0xe0] sm:$0xff] %v1429
          %v1431 = vld [vmem:[%s1375 + $0xe8] sm:$0xff]
          %1432 = vst [vmem:[%s1376 + $0xe8] sm:$0xff] %v1431
          %v1433 = vld [vmem:[%s1375 + $0xf0] sm:$0xff]
          %1434 = vst [vmem:[%s1376 + $0xf0] sm:$0xff] %v1433
          %v1435 = vld [vmem:[%s1375 + $0xf8] sm:$0xff]
          %1436 = vst [vmem:[%s1376 + $0xf8] sm:$0xff] %v1435
          %v1437 = vld [vmem:[%s1375 + $0x108] sm:$0xff]
          %1438 = vst [vmem:[%s1376 + $0x108] sm:$0xff] %v1437
          %v1439 = vld [vmem:[%s1375 + $0x110] sm:$0xff]
          %1440 = vst [vmem:[%s1376 + $0x110] sm:$0xff] %v1439
          %v1441 = vld [vmem:[%s1375 + $0x118] sm:$0xff]
          %1442 = vst [vmem:[%s1376 + $0x118] sm:$0xff] %v1441
          %v1443 = vld [vmem:[%s1375 + $0x120] sm:$0xff]
          %1444 = vst [vmem:[%s1376 + $0x120] sm:$0xff] %v1443
          %v1445 = vld [vmem:[%s1375 + $0x128] sm:$0xff]
          %1446 = vst [vmem:[%s1376 + $0x128] sm:$0xff] %v1445
          %v1447 = vld [vmem:[%s1375 + $0x130] sm:$0xff]
          %1448 = vst [vmem:[%s1376 + $0x130] sm:$0xff] %v1447
          %v1449 = vld [vmem:[%s1375 + $0x138] sm:$0xff]
          %1450 = vst [vmem:[%s1376 + $0x138] sm:$0xff] %v1449
          %v1451 = vld [vmem:[%s1375 + $0x140] sm:$0xff]
          %1452 = vst [vmem:[%s1376 + $0x140] sm:$0xff] %v1451
          %v1453 = vld [vmem:[%s1375 + $0x148] sm:$0xff]
          %1454 = vst [vmem:[%s1376 + $0x148] sm:$0xff] %v1453
          %v1455 = vld [vmem:[%s1375 + $0x150] sm:$0xff]
          %1456 = vst [vmem:[%s1376 + $0x150] sm:$0xff] %v1455
          %v1457 = vld [vmem:[%s1375 + $0x160] sm:$0xff]
          %1458 = vst [vmem:[%s1376 + $0x160] sm:$0xff] %v1457
          %v1459 = vld [vmem:[%s1375 + $0x168] sm:$0xff]
          %1460 = vst [vmem:[%s1376 + $0x168] sm:$0xff] %v1459
          %v1461 = vld [vmem:[%s1375 + $0x170] sm:$0xff]
          %1462 = vst [vmem:[%s1376 + $0x170] sm:$0xff] %v1461
          %v1463 = vld [vmem:[%s1375 + $0x178] sm:$0xff]
          %1464 = vst [vmem:[%s1376 + $0x178] sm:$0xff] %v1463
          %v1465 = vld [vmem:[%s1375 + $0x180] sm:$0xff]
          %1466 = vst [vmem:[%s1376 + $0x180] sm:$0xff] %v1465
          %v1467 = vld [vmem:[%s1375 + $0x188] sm:$0xff]
          %1468 = vst [vmem:[%s1376 + $0x188] sm:$0xff] %v1467
          %v1469 = vld [vmem:[%s1375 + $0x190] sm:$0xff]
          %1470 = vst [vmem:[%s1376 + $0x190] sm:$0xff] %v1469
          %v1471 = vld [vmem:[%s1375 + $0x198] sm:$0xff]
          %1472 = vst [vmem:[%s1376 + $0x198] sm:$0xff] %v1471
          %v1473 = vld [vmem:[%s1375 + $0x1a0] sm:$0xff]
          %1474 = vst [vmem:[%s1376 + $0x1a0] sm:$0xff] %v1473
          %v1475 = vld [vmem:[%s1375 + $0x1a8] sm:$0xff]
          %1476 = vst [vmem:[%s1376 + $0x1a8] sm:$0xff] %v1475
          %v1477 = vld [vmem:[%s1375 + $0x1b8] sm:$0xff]
          %1478 = vst [vmem:[%s1376 + $0x1b8] sm:$0xff] %v1477
          %v1479 = vld [vmem:[%s1375 + $0x1c0] sm:$0xff]
          %1480 = vst [vmem:[%s1376 + $0x1c0] sm:$0xff] %v1479
          %v1481 = vld [vmem:[%s1375 + $0x1c8] sm:$0xff]
          %1482 = vst [vmem:[%s1376 + $0x1c8] sm:$0xff] %v1481
          %v1483 = vld [vmem:[%s1375 + $0x1d0] sm:$0xff]
          %1484 = vst [vmem:[%s1376 + $0x1d0] sm:$0xff] %v1483
          %v1485 = vld [vmem:[%s1375 + $0x1d8] sm:$0xff]
          %1486 = vst [vmem:[%s1376 + $0x1d8] sm:$0xff] %v1485
          %v1487 = vld [vmem:[%s1375 + $0x1e0] sm:$0xff]
          %1488 = vst [vmem:[%s1376 + $0x1e0] sm:$0xff] %v1487
          %v1489 = vld [vmem:[%s1375 + $0x1e8] sm:$0xff]
          %1490 = vst [vmem:[%s1376 + $0x1e8] sm:$0xff] %v1489
          %v1491 = vld [vmem:[%s1375 + $0x1f0] sm:$0xff]
          %1492 = vst [vmem:[%s1376 + $0x1f0] sm:$0xff] %v1491
          %v1493 = vld [vmem:[%s1375 + $0x1f8] sm:$0xff]
          %1494 = vst [vmem:[%s1376 + $0x1f8] sm:$0xff] %v1493
          %v1495 = vld [vmem:[%s1375 + $0x200] sm:$0xff]
          %1496 = vst [vmem:[%s1376 + $0x200] sm:$0xff] %v1495
          %v1497 = vld [vmem:[%s1375 + $0x210] sm:$0xff]
          %1498 = vst [vmem:[%s1376 + $0x210] sm:$0xff] %v1497
          %v1499 = vld [vmem:[%s1375 + $0x218] sm:$0xff]
          %1500 = vst [vmem:[%s1376 + $0x218] sm:$0xff] %v1499
          %v1501 = vld [vmem:[%s1375 + $0x220] sm:$0xff]
          %1502 = vst [vmem:[%s1376 + $0x220] sm:$0xff] %v1501
          %v1503 = vld [vmem:[%s1375 + $0x228] sm:$0xff]
          %1504 = vst [vmem:[%s1376 + $0x228] sm:$0xff] %v1503
          %v1505 = vld [vmem:[%s1375 + $0x230] sm:$0xff]
          %1506 = vst [vmem:[%s1376 + $0x230] sm:$0xff] %v1505
          %v1507 = vld [vmem:[%s1375 + $0x238] sm:$0xff]
          %1508 = vst [vmem:[%s1376 + $0x238] sm:$0xff] %v1507
          %v1509 = vld [vmem:[%s1375 + $0x240] sm:$0xff]
          %1510 = vst [vmem:[%s1376 + $0x240] sm:$0xff] %v1509
          %v1511 = vld [vmem:[%s1375 + $0x248] sm:$0xff]
          %1512 = vst [vmem:[%s1376 + $0x248] sm:$0xff] %v1511
          %v1513 = vld [vmem:[%s1375 + $0x250] sm:$0xff]
          %1514 = vst [vmem:[%s1376 + $0x250] sm:$0xff] %v1513
          %v1515 = vld [vmem:[%s1375 + $0x258] sm:$0xff]
          %1516 = vst [vmem:[%s1376 + $0x258] sm:$0xff] %v1515
          %v1517 = vld [vmem:[%s1375 + $0x268] sm:$0xff]
          %1518 = vst [vmem:[%s1376 + $0x268] sm:$0xff] %v1517
          %v1519 = vld [vmem:[%s1375 + $0x270] sm:$0xff]
          %1520 = vst [vmem:[%s1376 + $0x270] sm:$0xff] %v1519
          %v1521 = vld [vmem:[%s1375 + $0x278] sm:$0xff]
          %1522 = vst [vmem:[%s1376 + $0x278] sm:$0xff] %v1521
          %v1523 = vld [vmem:[%s1375 + $0x280] sm:$0xff]
          %1524 = vst [vmem:[%s1376 + $0x280] sm:$0xff] %v1523
          %v1525 = vld [vmem:[%s1375 + $0x288] sm:$0xff]
          %1526 = vst [vmem:[%s1376 + $0x288] sm:$0xff] %v1525
          %v1527 = vld [vmem:[%s1375 + $0x290] sm:$0xff]
          %1528 = vst [vmem:[%s1376 + $0x290] sm:$0xff] %v1527
          %v1529 = vld [vmem:[%s1375 + $0x298] sm:$0xff]
          %1530 = vst [vmem:[%s1376 + $0x298] sm:$0xff] %v1529
          %v1531 = vld [vmem:[%s1375 + $0x2a0] sm:$0xff]
          %1532 = vst [vmem:[%s1376 + $0x2a0] sm:$0xff] %v1531
          %v1533 = vld [vmem:[%s1375 + $0x2a8] sm:$0xff]
          %1534 = vst [vmem:[%s1376 + $0x2a8] sm:$0xff] %v1533
          %v1535 = vld [vmem:[%s1375 + $0x2b0] sm:$0xff]
          %1536 = vst [vmem:[%s1376 + $0x2b0] sm:$0xff] %v1535
        $region65: #{classifn_forward.2} parent=59 // loop_footer
          %s1374 = sadd.s32 1, %s1370
        $region66: #{classifn_forward.2} parent=59 // loop_footer_branch
          %1369 = sbr.rel target = $region62
        $region67: #{classifn_forward.2} parent=59 // loop_exit
          _
        %s1537 = sshllo.u32 0, %s1364
        loop: start=0, step=1, limit=1
        $region68: #{classifn_forward.2} parent=59 // loop_pre_header
          _
        $region69: #{classifn_forward.2} parent=59 // loop_header
          %s1539 = sphi 0, %s1543
          %p1540 = scmp.ge.s32.totalorder %s1539, 1
          %s1544 = sphi %s1366, %s1366
          %s1545 = sphi %s1368, %s1368
        $region70: #{classifn_forward.2} parent=59 // loop_header_branch
          %1542 = sbr.rel (%p1540) target = $region74
        $region71: #{classifn_forward.2} parent=59 // loop_body
          %v1546 = vld [vmem:[%s1544] sm:%s1537]
          %1547 = vst [vmem:[%s1545] sm:%s1537] %v1546
          %v1548 = vld [vmem:[%s1544 + $0x58] sm:%s1537]
          %1549 = vst [vmem:[%s1545 + $0x58] sm:%s1537] %v1548
          %v1550 = vld [vmem:[%s1544 + $0xb0] sm:%s1537]
          %1551 = vst [vmem:[%s1545 + $0xb0] sm:%s1537] %v1550
          %v1552 = vld [vmem:[%s1544 + $0x108] sm:%s1537]
          %1553 = vst [vmem:[%s1545 + $0x108] sm:%s1537] %v1552
          %v1554 = vld [vmem:[%s1544 + $0x160] sm:%s1537]
          %1555 = vst [vmem:[%s1545 + $0x160] sm:%s1537] %v1554
          %v1556 = vld [vmem:[%s1544 + $0x1b8] sm:%s1537]
          %1557 = vst [vmem:[%s1545 + $0x1b8] sm:%s1537] %v1556
          %v1558 = vld [vmem:[%s1544 + $0x210] sm:%s1537]
          %1559 = vst [vmem:[%s1545 + $0x210] sm:%s1537] %v1558
          %v1560 = vld [vmem:[%s1544 + $0x268] sm:%s1537]
          %1561 = vst [vmem:[%s1545 + $0x268] sm:%s1537] %v1560
        $region72: #{classifn_forward.2} parent=59 // loop_footer
          %s1543 = sadd.s32 1, %s1539
        $region73: #{classifn_forward.2} parent=59 // loop_footer_branch
          %1538 = sbr.rel target = $region69
        $region74: #{classifn_forward.2} parent=59 // loop_exit
          _
      $region60: #{classifn_forward.2} parent=44 // pred_fallthru
        _
    $region45: #{classifn_forward.2} parent=1 // pred_fallthru
      _
    // Predicated region
    $region46: #{classifn_forward.2} parent=1 // pred_check
      %p1331 = pneg %p1327
    $region47: #{classifn_forward.2} parent=1 // pred_check_branch
      %1333 = sbr.rel (%p1331) target = $region49
    $region48: #{classifn_forward.2} parent=1 // pred_region
      %s1334 = sshllo.u32 0, 87
      loop: start=0, step=1, limit=1
      $region50: #{classifn_forward.2} parent=48 // loop_pre_header
        _
      $region51: #{classifn_forward.2} parent=48 // loop_header
        %s1336 = sphi 0, %s1340
        %p1337 = scmp.ge.s32.totalorder %s1336, 1
        %s1341 = sphi %s2, %s2
        %s1342 = sphi [#allocation4], [#allocation4]
      $region52: #{classifn_forward.2} parent=48 // loop_header_branch
        %1339 = sbr.rel (%p1337) target = $region56
      $region53: #{classifn_forward.2} parent=48 // loop_body
        %v1343 = vld [vmem:[%s1341] sm:%s1334]
        %1344 = vst [vmem:[%s1342] sm:%s1334] %v1343
        %v1345 = vld [vmem:[%s1341 + $0x58] sm:%s1334]
        %1346 = vst [vmem:[%s1342 + $0x58] sm:%s1334] %v1345
        %v1347 = vld [vmem:[%s1341 + $0xb0] sm:%s1334]
        %1348 = vst [vmem:[%s1342 + $0xb0] sm:%s1334] %v1347
        %v1349 = vld [vmem:[%s1341 + $0x108] sm:%s1334]
        %1350 = vst [vmem:[%s1342 + $0x108] sm:%s1334] %v1349
        %v1351 = vld [vmem:[%s1341 + $0x160] sm:%s1334]
        %1352 = vst [vmem:[%s1342 + $0x160] sm:%s1334] %v1351
        %v1353 = vld [vmem:[%s1341 + $0x1b8] sm:%s1334]
        %1354 = vst [vmem:[%s1342 + $0x1b8] sm:%s1334] %v1353
        %v1355 = vld [vmem:[%s1341 + $0x210] sm:%s1334]
        %1356 = vst [vmem:[%s1342 + $0x210] sm:%s1334] %v1355
        %v1357 = vld [vmem:[%s1341 + $0x268] sm:%s1334]
        %1358 = vst [vmem:[%s1342 + $0x268] sm:%s1334] %v1357
      $region54: #{classifn_forward.2} parent=48 // loop_footer
        %s1340 = sadd.s32 1, %s1336
      $region55: #{classifn_forward.2} parent=48 // loop_footer_branch
        %1335 = sbr.rel target = $region51
      $region56: #{classifn_forward.2} parent=48 // loop_exit
        _
    $region49: #{classifn_forward.2} parent=1 // pred_fallthru
      _
    // Predicated region
    $region75: #{classifn_forward.2} parent=1 // pred_check
      _
    $region76: #{classifn_forward.2} parent=1 // pred_check_branch
      %1564 = sbr.rel (0) target = $region78
    $region77: #{classifn_forward.2} parent=1 // pred_region
      %1565 = vsyncadd [#allocation5], 11136
    $region78: #{classifn_forward.2} parent=1 // pred_fallthru
      _
    %v1566 = vld [vmem:[#allocation33] sm:$0xff]
    %v1567 = vld [vmem:[#allocation33 + $0x8] sm:$0xff]
    %v1568 = vld [vmem:[#allocation33 + $0x10] sm:$0xff]
    %v1569 = vld [vmem:[#allocation33 + $0x18] sm:$0xff]
    %v1570 = vld [vmem:[#allocation33 + $0x20] sm:$0xff]
    %v1571 = vld [vmem:[#allocation33 + $0x28] sm:$0xff]
    %v1572 = vld [vmem:[#allocation33 + $0x30] sm:$0xff]
    %v1573 = vld [vmem:[#allocation33 + $0x38] sm:$0xff]
    %v1574 = vld [vmem:[#allocation33 + $0x40] sm:$0xff]
    %v1575 = vld [vmem:[#allocation33 + $0x48] sm:$0xff]
    %v1576 = vld [vmem:[#allocation33 + $0x50] sm:$0xff]
    %1588 = vrot.lane.b32.xlu0 %v1566, 127
    %v1589 = vpop.permute.xlu0 %1588
    %1590 = vrot.lane.b32.xlu0 %v1567, 127
    %v1591 = vpop.permute.xlu0 %1590
    %1592 = vrot.lane.b32.xlu0 %v1568, 127
    %v1593 = vpop.permute.xlu0 %1592
    %1594 = vrot.lane.b32.xlu0 %v1569, 127
    %v1595 = vpop.permute.xlu0 %1594
    %1596 = vrot.lane.b32.xlu0 %v1570, 127
    %v1597 = vpop.permute.xlu0 %1596
    %1598 = vrot.lane.b32.xlu0 %v1571, 127
    %v1599 = vpop.permute.xlu0 %1598
    %1600 = vrot.lane.b32.xlu0 %v1572, 127
    %v1601 = vpop.permute.xlu0 %1600
    %1602 = vrot.lane.b32.xlu0 %v1573, 127
    %v1603 = vpop.permute.xlu0 %1602
    %1604 = vrot.lane.b32.xlu0 %v1574, 127
    %v1605 = vpop.permute.xlu0 %1604
    %1606 = vrot.lane.b32.xlu0 %v1575, 127
    %v1607 = vpop.permute.xlu0 %1606
    %1608 = vrot.lane.b32.xlu0 %v1576, 127
    %v1609 = vpop.permute.xlu0 %1608
    %vm1621 = vcmask 711680
    %1622 = vst.msk [vmem:[#allocation2] sm:$0xff] %vm1621, %v1589
    %1623 = vst.msk [vmem:[#allocation2 + $0x8] sm:$0xff] %vm1621, %v1591
    %1624 = vst.msk [vmem:[#allocation2 + $0x10] sm:$0xff] %vm1621, %v1593
    %1625 = vst.msk [vmem:[#allocation2 + $0x18] sm:$0xff] %vm1621, %v1595
    %1626 = vst.msk [vmem:[#allocation2 + $0x20] sm:$0xff] %vm1621, %v1597
    %1627 = vst.msk [vmem:[#allocation2 + $0x28] sm:$0xff] %vm1621, %v1599
    %1628 = vst.msk [vmem:[#allocation2 + $0x30] sm:$0xff] %vm1621, %v1601
    %1629 = vst.msk [vmem:[#allocation2 + $0x38] sm:$0xff] %vm1621, %v1603
    %1630 = vst.msk [vmem:[#allocation2 + $0x40] sm:$0xff] %vm1621, %v1605
    %1631 = vst.msk [vmem:[#allocation2 + $0x48] sm:$0xff] %vm1621, %v1607
    %1632 = vst.msk [vmem:[#allocation2 + $0x50] sm:$0xff] %vm1621, %v1609
    %s1633 = scalar_lea.vmem [#allocation33], 88
    %v1634 = vld [vmem:[%s1633] sm:$0xff]
    %v1635 = vld [vmem:[%s1633 + $0x8] sm:$0xff]
    %v1636 = vld [vmem:[%s1633 + $0x10] sm:$0xff]
    %v1637 = vld [vmem:[%s1633 + $0x18] sm:$0xff]
    %v1638 = vld [vmem:[%s1633 + $0x20] sm:$0xff]
    %v1639 = vld [vmem:[%s1633 + $0x28] sm:$0xff]
    %v1640 = vld [vmem:[%s1633 + $0x30] sm:$0xff]
    %v1641 = vld [vmem:[%s1633 + $0x38] sm:$0xff]
    %v1642 = vld [vmem:[%s1633 + $0x40] sm:$0xff]
    %v1643 = vld [vmem:[%s1633 + $0x48] sm:$0xff]
    %v1644 = vld [vmem:[%s1633 + $0x50] sm:$0xff]
    %1656 = vrot.lane.b32.xlu0 %v1634, 127
    %v1657 = vpop.permute.xlu0 %1656
    %1658 = vrot.lane.b32.xlu0 %v1635, 127
    %v1659 = vpop.permute.xlu0 %1658
    %1660 = vrot.lane.b32.xlu0 %v1636, 127
    %v1661 = vpop.permute.xlu0 %1660
    %1662 = vrot.lane.b32.xlu0 %v1637, 127
    %v1663 = vpop.permute.xlu0 %1662
    %1664 = vrot.lane.b32.xlu0 %v1638, 127
    %v1665 = vpop.permute.xlu0 %1664
    %1666 = vrot.lane.b32.xlu0 %v1639, 127
    %v1667 = vpop.permute.xlu0 %1666
    %1668 = vrot.lane.b32.xlu0 %v1640, 127
    %v1669 = vpop.permute.xlu0 %1668
    %1670 = vrot.lane.b32.xlu0 %v1641, 127
    %v1671 = vpop.permute.xlu0 %1670
    %1672 = vrot.lane.b32.xlu0 %v1642, 127
    %v1673 = vpop.permute.xlu0 %1672
    %1674 = vrot.lane.b32.xlu0 %v1643, 127
    %v1675 = vpop.permute.xlu0 %1674
    %1676 = vrot.lane.b32.xlu0 %v1644, 127
    %v1677 = vpop.permute.xlu0 %1676
    %s1689 = scalar_lea.vmem [#allocation2], 88
    %1690 = vst.msk [vmem:[%s1689] sm:$0xff] %vm1621, %v1657
    %1691 = vst.msk [vmem:[%s1689 + $0x8] sm:$0xff] %vm1621, %v1659
    %1692 = vst.msk [vmem:[%s1689 + $0x10] sm:$0xff] %vm1621, %v1661
    %1693 = vst.msk [vmem:[%s1689 + $0x18] sm:$0xff] %vm1621, %v1663
    %1694 = vst.msk [vmem:[%s1689 + $0x20] sm:$0xff] %vm1621, %v1665
    %1695 = vst.msk [vmem:[%s1689 + $0x28] sm:$0xff] %vm1621, %v1667
    %1696 = vst.msk [vmem:[%s1689 + $0x30] sm:$0xff] %vm1621, %v1669
    %1697 = vst.msk [vmem:[%s1689 + $0x38] sm:$0xff] %vm1621, %v1671
    %1698 = vst.msk [vmem:[%s1689 + $0x40] sm:$0xff] %vm1621, %v1673
    %1699 = vst.msk [vmem:[%s1689 + $0x48] sm:$0xff] %vm1621, %v1675
    %1700 = vst.msk [vmem:[%s1689 + $0x50] sm:$0xff] %vm1621, %v1677
    %s1701 = scalar_lea.vmem [#allocation33], 176
    %v1702 = vld [vmem:[%s1701] sm:$0xff]
    %v1703 = vld [vmem:[%s1701 + $0x8] sm:$0xff]
    %v1704 = vld [vmem:[%s1701 + $0x10] sm:$0xff]
    %v1705 = vld [vmem:[%s1701 + $0x18] sm:$0xff]
    %v1706 = vld [vmem:[%s1701 + $0x20] sm:$0xff]
    %v1707 = vld [vmem:[%s1701 + $0x28] sm:$0xff]
    %v1708 = vld [vmem:[%s1701 + $0x30] sm:$0xff]
    %v1709 = vld [vmem:[%s1701 + $0x38] sm:$0xff]
    %v1710 = vld [vmem:[%s1701 + $0x40] sm:$0xff]
    %v1711 = vld [vmem:[%s1701 + $0x48] sm:$0xff]
    %v1712 = vld [vmem:[%s1701 + $0x50] sm:$0xff]
    %1724 = vrot.lane.b32.xlu0 %v1702, 127
    %v1725 = vpop.permute.xlu0 %1724
    %1726 = vrot.lane.b32.xlu0 %v1703, 127
    %v1727 = vpop.permute.xlu0 %1726
    %1728 = vrot.lane.b32.xlu0 %v1704, 127
    %v1729 = vpop.permute.xlu0 %1728
    %1730 = vrot.lane.b32.xlu0 %v1705, 127
    %v1731 = vpop.permute.xlu0 %1730
    %1732 = vrot.lane.b32.xlu0 %v1706, 127
    %v1733 = vpop.permute.xlu0 %1732
    %1734 = vrot.lane.b32.xlu0 %v1707, 127
    %v1735 = vpop.permute.xlu0 %1734
    %1736 = vrot.lane.b32.xlu0 %v1708, 127
    %v1737 = vpop.permute.xlu0 %1736
    %1738 = vrot.lane.b32.xlu0 %v1709, 127
    %v1739 = vpop.permute.xlu0 %1738
    %1740 = vrot.lane.b32.xlu0 %v1710, 127
    %v1741 = vpop.permute.xlu0 %1740
    %1742 = vrot.lane.b32.xlu0 %v1711, 127
    %v1743 = vpop.permute.xlu0 %1742
    %1744 = vrot.lane.b32.xlu0 %v1712, 127
    %v1745 = vpop.permute.xlu0 %1744
    %s1757 = scalar_lea.vmem [#allocation2], 176
    %1758 = vst.msk [vmem:[%s1757] sm:$0xff] %vm1621, %v1725
    %1759 = vst.msk [vmem:[%s1757 + $0x8] sm:$0xff] %vm1621, %v1727
    %1760 = vst.msk [vmem:[%s1757 + $0x10] sm:$0xff] %vm1621, %v1729
    %1761 = vst.msk [vmem:[%s1757 + $0x18] sm:$0xff] %vm1621, %v1731
    %1762 = vst.msk [vmem:[%s1757 + $0x20] sm:$0xff] %vm1621, %v1733
    %1763 = vst.msk [vmem:[%s1757 + $0x28] sm:$0xff] %vm1621, %v1735
    %1764 = vst.msk [vmem:[%s1757 + $0x30] sm:$0xff] %vm1621, %v1737
    %1765 = vst.msk [vmem:[%s1757 + $0x38] sm:$0xff] %vm1621, %v1739
    %1766 = vst.msk [vmem:[%s1757 + $0x40] sm:$0xff] %vm1621, %v1741
    %1767 = vst.msk [vmem:[%s1757 + $0x48] sm:$0xff] %vm1621, %v1743
    %1768 = vst.msk [vmem:[%s1757 + $0x50] sm:$0xff] %vm1621, %v1745
    %s1769 = scalar_lea.vmem [#allocation33], 264
    %v1770 = vld [vmem:[%s1769] sm:$0xff]
    %v1771 = vld [vmem:[%s1769 + $0x8] sm:$0xff]
    %v1772 = vld [vmem:[%s1769 + $0x10] sm:$0xff]
    %v1773 = vld [vmem:[%s1769 + $0x18] sm:$0xff]
    %v1774 = vld [vmem:[%s1769 + $0x20] sm:$0xff]
    %v1775 = vld [vmem:[%s1769 + $0x28] sm:$0xff]
    %v1776 = vld [vmem:[%s1769 + $0x30] sm:$0xff]
    %v1777 = vld [vmem:[%s1769 + $0x38] sm:$0xff]
    %v1778 = vld [vmem:[%s1769 + $0x40] sm:$0xff]
    %v1779 = vld [vmem:[%s1769 + $0x48] sm:$0xff]
    %v1780 = vld [vmem:[%s1769 + $0x50] sm:$0xff]
    %1792 = vrot.lane.b32.xlu0 %v1770, 127
    %v1793 = vpop.permute.xlu0 %1792
    %1794 = vrot.lane.b32.xlu0 %v1771, 127
    %v1795 = vpop.permute.xlu0 %1794
    %1796 = vrot.lane.b32.xlu0 %v1772, 127
    %v1797 = vpop.permute.xlu0 %1796
    %1798 = vrot.lane.b32.xlu0 %v1773, 127
    %v1799 = vpop.permute.xlu0 %1798
    %1800 = vrot.lane.b32.xlu0 %v1774, 127
    %v1801 = vpop.permute.xlu0 %1800
    %1802 = vrot.lane.b32.xlu0 %v1775, 127
    %v1803 = vpop.permute.xlu0 %1802
    %1804 = vrot.lane.b32.xlu0 %v1776, 127
    %v1805 = vpop.permute.xlu0 %1804
    %1806 = vrot.lane.b32.xlu0 %v1777, 127
    %v1807 = vpop.permute.xlu0 %1806
    %1808 = vrot.lane.b32.xlu0 %v1778, 127
    %v1809 = vpop.permute.xlu0 %1808
    %1810 = vrot.lane.b32.xlu0 %v1779, 127
    %v1811 = vpop.permute.xlu0 %1810
    %1812 = vrot.lane.b32.xlu0 %v1780, 127
    %v1813 = vpop.permute.xlu0 %1812
    %s1825 = scalar_lea.vmem [#allocation2], 264
    %1826 = vst.msk [vmem:[%s1825] sm:$0xff] %vm1621, %v1793
    %1827 = vst.msk [vmem:[%s1825 + $0x8] sm:$0xff] %vm1621, %v1795
    %1828 = vst.msk [vmem:[%s1825 + $0x10] sm:$0xff] %vm1621, %v1797
    %1829 = vst.msk [vmem:[%s1825 + $0x18] sm:$0xff] %vm1621, %v1799
    %1830 = vst.msk [vmem:[%s1825 + $0x20] sm:$0xff] %vm1621, %v1801
    %1831 = vst.msk [vmem:[%s1825 + $0x28] sm:$0xff] %vm1621, %v1803
    %1832 = vst.msk [vmem:[%s1825 + $0x30] sm:$0xff] %vm1621, %v1805
    %1833 = vst.msk [vmem:[%s1825 + $0x38] sm:$0xff] %vm1621, %v1807
    %1834 = vst.msk [vmem:[%s1825 + $0x40] sm:$0xff] %vm1621, %v1809
    %1835 = vst.msk [vmem:[%s1825 + $0x48] sm:$0xff] %vm1621, %v1811
    %1836 = vst.msk [vmem:[%s1825 + $0x50] sm:$0xff] %vm1621, %v1813
    %v1837 = vld [vmem:[#allocation33] sm:$0xff]
    %v1838 = vld [vmem:[#allocation33 + $0x8] sm:$0xff]
    %v1839 = vld [vmem:[#allocation33 + $0x10] sm:$0xff]
    %v1840 = vld [vmem:[#allocation33 + $0x18] sm:$0xff]
    %v1841 = vld [vmem:[#allocation33 + $0x20] sm:$0xff]
    %v1842 = vld [vmem:[#allocation33 + $0x28] sm:$0xff]
    %v1843 = vld [vmem:[#allocation33 + $0x30] sm:$0xff]
    %v1844 = vld [vmem:[#allocation33 + $0x38] sm:$0xff]
    %v1845 = vld [vmem:[#allocation33 + $0x40] sm:$0xff]
    %v1846 = vld [vmem:[#allocation33 + $0x48] sm:$0xff]
    %v1847 = vld [vmem:[#allocation33 + $0x50] sm:$0x7f]
    %s1848 = sld [smem:[#allocation26]]
    %v1849 = vstv %s1848
    %v1850 = vmul.f32 %v1849, %v1837
    %v1851 = vmul.f32 %v1849, %v1838
    %v1852 = vmul.f32 %v1849, %v1839
    %v1853 = vmul.f32 %v1849, %v1840
    %v1854 = vmul.f32 %v1849, %v1841
    %v1855 = vmul.f32 %v1849, %v1842
    %v1856 = vmul.f32 %v1849, %v1843
    %v1857 = vmul.f32 %v1849, %v1844
    %v1858 = vmul.f32 %v1849, %v1845
    %v1859 = vmul.f32 %v1849, %v1846
    %v1860 = vmul.f32 %v1849, %v1847
    %v1861 = vld [vmem:[%s1633] sm:$0xff]
    %v1862 = vld [vmem:[%s1633 + $0x8] sm:$0xff]
    %v1863 = vld [vmem:[%s1633 + $0x10] sm:$0xff]
    %v1864 = vld [vmem:[%s1633 + $0x18] sm:$0xff]
    %v1865 = vld [vmem:[%s1633 + $0x20] sm:$0xff]
    %v1866 = vld [vmem:[%s1633 + $0x28] sm:$0xff]
    %v1867 = vld [vmem:[%s1633 + $0x30] sm:$0xff]
    %v1868 = vld [vmem:[%s1633 + $0x38] sm:$0xff]
    %v1869 = vld [vmem:[%s1633 + $0x40] sm:$0xff]
    %v1870 = vld [vmem:[%s1633 + $0x48] sm:$0xff]
    %v1871 = vld [vmem:[%s1633 + $0x50] sm:$0x7f]
    %s1872 = sld [smem:[#allocation26 + $0x1]]
    %v1873 = vstv %s1872
    %v1874 = vmul.f32 %v1873, %v1861
    %v1875 = vmul.f32 %v1873, %v1862
    %v1876 = vmul.f32 %v1873, %v1863
    %v1877 = vmul.f32 %v1873, %v1864
    %v1878 = vmul.f32 %v1873, %v1865
    %v1879 = vmul.f32 %v1873, %v1866
    %v1880 = vmul.f32 %v1873, %v1867
    %v1881 = vmul.f32 %v1873, %v1868
    %v1882 = vmul.f32 %v1873, %v1869
    %v1883 = vmul.f32 %v1873, %v1870
    %v1884 = vmul.f32 %v1873, %v1871
    %v1885 = vadd.f32 %v1850, %v1874
    %v1886 = vadd.f32 %v1851, %v1875
    %v1887 = vadd.f32 %v1852, %v1876
    %v1888 = vadd.f32 %v1853, %v1877
    %v1889 = vadd.f32 %v1854, %v1878
    %v1890 = vadd.f32 %v1855, %v1879
    %v1891 = vadd.f32 %v1856, %v1880
    %v1892 = vadd.f32 %v1857, %v1881
    %v1893 = vadd.f32 %v1858, %v1882
    %v1894 = vadd.f32 %v1859, %v1883
    %v1895 = vadd.f32 %v1860, %v1884
    %v1896 = vld [vmem:[#allocation2] sm:$0xff]
    %v1897 = vld [vmem:[#allocation2 + $0x8] sm:$0xff]
    %v1898 = vld [vmem:[#allocation2 + $0x10] sm:$0xff]
    %v1899 = vld [vmem:[#allocation2 + $0x18] sm:$0xff]
    %v1900 = vld [vmem:[#allocation2 + $0x20] sm:$0xff]
    %v1901 = vld [vmem:[#allocation2 + $0x28] sm:$0xff]
    %v1902 = vld [vmem:[#allocation2 + $0x30] sm:$0xff]
    %v1903 = vld [vmem:[#allocation2 + $0x38] sm:$0xff]
    %v1904 = vld [vmem:[#allocation2 + $0x40] sm:$0xff]
    %v1905 = vld [vmem:[#allocation2 + $0x48] sm:$0xff]
    %v1906 = vld [vmem:[#allocation2 + $0x50] sm:$0x7f]
    %s1907 = sld [smem:[#allocation26 + $0x2]]
    %v1908 = vstv %s1907
    %v1909 = vmul.f32 %v1908, %v1896
    %v1910 = vmul.f32 %v1908, %v1897
    %v1911 = vmul.f32 %v1908, %v1898
    %v1912 = vmul.f32 %v1908, %v1899
    %v1913 = vmul.f32 %v1908, %v1900
    %v1914 = vmul.f32 %v1908, %v1901
    %v1915 = vmul.f32 %v1908, %v1902
    %v1916 = vmul.f32 %v1908, %v1903
    %v1917 = vmul.f32 %v1908, %v1904
    %v1918 = vmul.f32 %v1908, %v1905
    %v1919 = vmul.f32 %v1908, %v1906
    %v1920 = vadd.f32 %v1885, %v1909
    %v1921 = vadd.f32 %v1886, %v1910
    %v1922 = vadd.f32 %v1887, %v1911
    %v1923 = vadd.f32 %v1888, %v1912
    %v1924 = vadd.f32 %v1889, %v1913
    %v1925 = vadd.f32 %v1890, %v1914
    %v1926 = vadd.f32 %v1891, %v1915
    %v1927 = vadd.f32 %v1892, %v1916
    %v1928 = vadd.f32 %v1893, %v1917
    %v1929 = vadd.f32 %v1894, %v1918
    %v1930 = vadd.f32 %v1895, %v1919
    %v1931 = vld [vmem:[%s1701] sm:$0xff]
    %v1932 = vld [vmem:[%s1701 + $0x8] sm:$0xff]
    %v1933 = vld [vmem:[%s1701 + $0x10] sm:$0xff]
    %v1934 = vld [vmem:[%s1701 + $0x18] sm:$0xff]
    %v1935 = vld [vmem:[%s1701 + $0x20] sm:$0xff]
    %v1936 = vld [vmem:[%s1701 + $0x28] sm:$0xff]
    %v1937 = vld [vmem:[%s1701 + $0x30] sm:$0xff]
    %v1938 = vld [vmem:[%s1701 + $0x38] sm:$0xff]
    %v1939 = vld [vmem:[%s1701 + $0x40] sm:$0xff]
    %v1940 = vld [vmem:[%s1701 + $0x48] sm:$0xff]
    %v1941 = vld [vmem:[%s1701 + $0x50] sm:$0x7f]
    %s1942 = sld [smem:[#allocation26 + $0x3]]
    %v1943 = vstv %s1942
    %v1944 = vmul.f32 %v1943, %v1931
    %v1945 = vmul.f32 %v1943, %v1932
    %v1946 = vmul.f32 %v1943, %v1933
    %v1947 = vmul.f32 %v1943, %v1934
    %v1948 = vmul.f32 %v1943, %v1935
    %v1949 = vmul.f32 %v1943, %v1936
    %v1950 = vmul.f32 %v1943, %v1937
    %v1951 = vmul.f32 %v1943, %v1938
    %v1952 = vmul.f32 %v1943, %v1939
    %v1953 = vmul.f32 %v1943, %v1940
    %v1954 = vmul.f32 %v1943, %v1941
    %v1955 = vadd.f32 %v1920, %v1944
    %v1956 = vadd.f32 %v1921, %v1945
    %v1957 = vadd.f32 %v1922, %v1946
    %v1958 = vadd.f32 %v1923, %v1947
    %v1959 = vadd.f32 %v1924, %v1948
    %v1960 = vadd.f32 %v1925, %v1949
    %v1961 = vadd.f32 %v1926, %v1950
    %v1962 = vadd.f32 %v1927, %v1951
    %v1963 = vadd.f32 %v1928, %v1952
    %v1964 = vadd.f32 %v1929, %v1953
    %v1965 = vadd.f32 %v1930, %v1954
    %v1966 = vld [vmem:[%s1769] sm:$0xff]
    %v1967 = vld [vmem:[%s1769 + $0x8] sm:$0xff]
    %v1968 = vld [vmem:[%s1769 + $0x10] sm:$0xff]
    %v1969 = vld [vmem:[%s1769 + $0x18] sm:$0xff]
    %v1970 = vld [vmem:[%s1769 + $0x20] sm:$0xff]
    %v1971 = vld [vmem:[%s1769 + $0x28] sm:$0xff]
    %v1972 = vld [vmem:[%s1769 + $0x30] sm:$0xff]
    %v1973 = vld [vmem:[%s1769 + $0x38] sm:$0xff]
    %v1974 = vld [vmem:[%s1769 + $0x40] sm:$0xff]
    %v1975 = vld [vmem:[%s1769 + $0x48] sm:$0xff]
    %v1976 = vld [vmem:[%s1769 + $0x50] sm:$0x7f]
    %s1977 = sld [smem:[#allocation26 + $0x4]]
    %v1978 = vstv %s1977
    %v1979 = vmul.f32 %v1978, %v1966
    %v1980 = vmul.f32 %v1978, %v1967
    %v1981 = vmul.f32 %v1978, %v1968
    %v1982 = vmul.f32 %v1978, %v1969
    %v1983 = vmul.f32 %v1978, %v1970
    %v1984 = vmul.f32 %v1978, %v1971
    %v1985 = vmul.f32 %v1978, %v1972
    %v1986 = vmul.f32 %v1978, %v1973
    %v1987 = vmul.f32 %v1978, %v1974
    %v1988 = vmul.f32 %v1978, %v1975
    %v1989 = vmul.f32 %v1978, %v1976
    %v1990 = vadd.f32 %v1955, %v1979
    %v1991 = vadd.f32 %v1956, %v1980
    %v1992 = vadd.f32 %v1957, %v1981
    %v1993 = vadd.f32 %v1958, %v1982
    %v1994 = vadd.f32 %v1959, %v1983
    %v1995 = vadd.f32 %v1960, %v1984
    %v1996 = vadd.f32 %v1961, %v1985
    %v1997 = vadd.f32 %v1962, %v1986
    %v1998 = vadd.f32 %v1963, %v1987
    %v1999 = vadd.f32 %v1964, %v1988
    %v2000 = vadd.f32 %v1965, %v1989
    %v2001 = vld [vmem:[%s1757] sm:$0xff]
    %v2002 = vld [vmem:[%s1757 + $0x8] sm:$0xff]
    %v2003 = vld [vmem:[%s1757 + $0x10] sm:$0xff]
    %v2004 = vld [vmem:[%s1757 + $0x18] sm:$0xff]
    %v2005 = vld [vmem:[%s1757 + $0x20] sm:$0xff]
    %v2006 = vld [vmem:[%s1757 + $0x28] sm:$0xff]
    %v2007 = vld [vmem:[%s1757 + $0x30] sm:$0xff]
    %v2008 = vld [vmem:[%s1757 + $0x38] sm:$0xff]
    %v2009 = vld [vmem:[%s1757 + $0x40] sm:$0xff]
    %v2010 = vld [vmem:[%s1757 + $0x48] sm:$0xff]
    %v2011 = vld [vmem:[%s1757 + $0x50] sm:$0x7f]
    %s2012 = sld [smem:[#allocation26 + $0x5]]
    %v2013 = vstv %s2012
    %v2014 = vmul.f32 %v2013, %v2001
    %v2015 = vmul.f32 %v2013, %v2002
    %v2016 = vmul.f32 %v2013, %v2003
    %v2017 = vmul.f32 %v2013, %v2004
    %v2018 = vmul.f32 %v2013, %v2005
    %v2019 = vmul.f32 %v2013, %v2006
    %v2020 = vmul.f32 %v2013, %v2007
    %v2021 = vmul.f32 %v2013, %v2008
    %v2022 = vmul.f32 %v2013, %v2009
    %v2023 = vmul.f32 %v2013, %v2010
    %v2024 = vmul.f32 %v2013, %v2011
    %v2025 = vadd.f32 %v1990, %v2014
    %v2026 = vadd.f32 %v1991, %v2015
    %v2027 = vadd.f32 %v1992, %v2016
    %v2028 = vadd.f32 %v1993, %v2017
    %v2029 = vadd.f32 %v1994, %v2018
    %v2030 = vadd.f32 %v1995, %v2019
    %v2031 = vadd.f32 %v1996, %v2020
    %v2032 = vadd.f32 %v1997, %v2021
    %v2033 = vadd.f32 %v1998, %v2022
    %v2034 = vadd.f32 %v1999, %v2023
    %v2035 = vadd.f32 %v2000, %v2024
    %v2036 = vld [vmem:[#allocation33 + $0x1] sm:$0xff]
    %v2037 = vld [vmem:[#allocation33 + $0x9] sm:$0xff]
    %v2038 = vld [vmem:[#allocation33 + $0x11] sm:$0xff]
    %v2039 = vld [vmem:[#allocation33 + $0x19] sm:$0xff]
    %v2040 = vld [vmem:[#allocation33 + $0x21] sm:$0xff]
    %v2041 = vld [vmem:[#allocation33 + $0x29] sm:$0xff]
    %v2042 = vld [vmem:[#allocation33 + $0x31] sm:$0xff]
    %v2043 = vld [vmem:[#allocation33 + $0x39] sm:$0xff]
    %v2044 = vld [vmem:[#allocation33 + $0x41] sm:$0xff]
    %v2045 = vld [vmem:[#allocation33 + $0x49] sm:$0xff]
    %v2046 = vld [vmem:[#allocation33 + $0x51] sm:$0x7f]
    %s2047 = sld [smem:[#allocation26 + $0x6]]
    %v2048 = vstv %s2047
    %v2049 = vmul.f32 %v2048, %v2036
    %v2050 = vmul.f32 %v2048, %v2037
    %v2051 = vmul.f32 %v2048, %v2038
    %v2052 = vmul.f32 %v2048, %v2039
    %v2053 = vmul.f32 %v2048, %v2040
    %v2054 = vmul.f32 %v2048, %v2041
    %v2055 = vmul.f32 %v2048, %v2042
    %v2056 = vmul.f32 %v2048, %v2043
    %v2057 = vmul.f32 %v2048, %v2044
    %v2058 = vmul.f32 %v2048, %v2045
    %v2059 = vmul.f32 %v2048, %v2046
    %v2060 = vadd.f32 %v2025, %v2049
    %v2061 = vadd.f32 %v2026, %v2050
    %v2062 = vadd.f32 %v2027, %v2051
    %v2063 = vadd.f32 %v2028, %v2052
    %v2064 = vadd.f32 %v2029, %v2053
    %v2065 = vadd.f32 %v2030, %v2054
    %v2066 = vadd.f32 %v2031, %v2055
    %v2067 = vadd.f32 %v2032, %v2056
    %v2068 = vadd.f32 %v2033, %v2057
    %v2069 = vadd.f32 %v2034, %v2058
    %v2070 = vadd.f32 %v2035, %v2059
    %v2071 = vld [vmem:[%s1633 + $0x1] sm:$0xff]
    %v2072 = vld [vmem:[%s1633 + $0x9] sm:$0xff]
    %v2073 = vld [vmem:[%s1633 + $0x11] sm:$0xff]
    %v2074 = vld [vmem:[%s1633 + $0x19] sm:$0xff]
    %v2075 = vld [vmem:[%s1633 + $0x21] sm:$0xff]
    %v2076 = vld [vmem:[%s1633 + $0x29] sm:$0xff]
    %v2077 = vld [vmem:[%s1633 + $0x31] sm:$0xff]
    %v2078 = vld [vmem:[%s1633 + $0x39] sm:$0xff]
    %v2079 = vld [vmem:[%s1633 + $0x41] sm:$0xff]
    %v2080 = vld [vmem:[%s1633 + $0x49] sm:$0xff]
    %v2081 = vld [vmem:[%s1633 + $0x51] sm:$0x7f]
    %s2082 = sld [smem:[#allocation26 + $0x7]]
    %v2083 = vstv %s2082
    %v2084 = vmul.f32 %v2083, %v2071
    %v2085 = vmul.f32 %v2083, %v2072
    %v2086 = vmul.f32 %v2083, %v2073
    %v2087 = vmul.f32 %v2083, %v2074
    %v2088 = vmul.f32 %v2083, %v2075
    %v2089 = vmul.f32 %v2083, %v2076
    %v2090 = vmul.f32 %v2083, %v2077
    %v2091 = vmul.f32 %v2083, %v2078
    %v2092 = vmul.f32 %v2083, %v2079
    %v2093 = vmul.f32 %v2083, %v2080
    %v2094 = vmul.f32 %v2083, %v2081
    %v2095 = vadd.f32 %v2060, %v2084
    %v2096 = vadd.f32 %v2061, %v2085
    %v2097 = vadd.f32 %v2062, %v2086
    %v2098 = vadd.f32 %v2063, %v2087
    %v2099 = vadd.f32 %v2064, %v2088
    %v2100 = vadd.f32 %v2065, %v2089
    %v2101 = vadd.f32 %v2066, %v2090
    %v2102 = vadd.f32 %v2067, %v2091
    %v2103 = vadd.f32 %v2068, %v2092
    %v2104 = vadd.f32 %v2069, %v2093
    %v2105 = vadd.f32 %v2070, %v2094
    %v2106 = vld [vmem:[#allocation2 + $0x1] sm:$0xff]
    %v2107 = vld [vmem:[#allocation2 + $0x9] sm:$0xff]
    %v2108 = vld [vmem:[#allocation2 + $0x11] sm:$0xff]
    %v2109 = vld [vmem:[#allocation2 + $0x19] sm:$0xff]
    %v2110 = vld [vmem:[#allocation2 + $0x21] sm:$0xff]
    %v2111 = vld [vmem:[#allocation2 + $0x29] sm:$0xff]
    %v2112 = vld [vmem:[#allocation2 + $0x31] sm:$0xff]
    %v2113 = vld [vmem:[#allocation2 + $0x39] sm:$0xff]
    %v2114 = vld [vmem:[#allocation2 + $0x41] sm:$0xff]
    %v2115 = vld [vmem:[#allocation2 + $0x49] sm:$0xff]
    %v2116 = vld [vmem:[#allocation2 + $0x51] sm:$0x7f]
    %s2117 = sld [smem:[#allocation26 + $0x8]]
    %v2118 = vstv %s2117
    %v2119 = vmul.f32 %v2118, %v2106
    %v2120 = vmul.f32 %v2118, %v2107
    %v2121 = vmul.f32 %v2118, %v2108
    %v2122 = vmul.f32 %v2118, %v2109
    %v2123 = vmul.f32 %v2118, %v2110
    %v2124 = vmul.f32 %v2118, %v2111
    %v2125 = vmul.f32 %v2118, %v2112
    %v2126 = vmul.f32 %v2118, %v2113
    %v2127 = vmul.f32 %v2118, %v2114
    %v2128 = vmul.f32 %v2118, %v2115
    %v2129 = vmul.f32 %v2118, %v2116
    %v2130 = vadd.f32 %v2095, %v2119
    %v2131 = vadd.f32 %v2096, %v2120
    %v2132 = vadd.f32 %v2097, %v2121
    %v2133 = vadd.f32 %v2098, %v2122
    %v2134 = vadd.f32 %v2099, %v2123
    %v2135 = vadd.f32 %v2100, %v2124
    %v2136 = vadd.f32 %v2101, %v2125
    %v2137 = vadd.f32 %v2102, %v2126
    %v2138 = vadd.f32 %v2103, %v2127
    %v2139 = vadd.f32 %v2104, %v2128
    %v2140 = vadd.f32 %v2105, %v2129
    %v2141 = vmul.f32 %v1849, %v1861
    %v2142 = vmul.f32 %v1849, %v1862
    %v2143 = vmul.f32 %v1849, %v1863
    %v2144 = vmul.f32 %v1849, %v1864
    %v2145 = vmul.f32 %v1849, %v1865
    %v2146 = vmul.f32 %v1849, %v1866
    %v2147 = vmul.f32 %v1849, %v1867
    %v2148 = vmul.f32 %v1849, %v1868
    %v2149 = vmul.f32 %v1849, %v1869
    %v2150 = vmul.f32 %v1849, %v1870
    %v2151 = vmul.f32 %v1849, %v1871
    %v2152 = vmul.f32 %v1873, %v1896
    %v2153 = vmul.f32 %v1873, %v1897
    %v2154 = vmul.f32 %v1873, %v1898
    %v2155 = vmul.f32 %v1873, %v1899
    %v2156 = vmul.f32 %v1873, %v1900
    %v2157 = vmul.f32 %v1873, %v1901
    %v2158 = vmul.f32 %v1873, %v1902
    %v2159 = vmul.f32 %v1873, %v1903
    %v2160 = vmul.f32 %v1873, %v1904
    %v2161 = vmul.f32 %v1873, %v1905
    %v2162 = vmul.f32 %v1873, %v1906
    %v2163 = vadd.f32 %v2141, %v2152
    %v2164 = vadd.f32 %v2142, %v2153
    %v2165 = vadd.f32 %v2143, %v2154
    %v2166 = vadd.f32 %v2144, %v2155
    %v2167 = vadd.f32 %v2145, %v2156
    %v2168 = vadd.f32 %v2146, %v2157
    %v2169 = vadd.f32 %v2147, %v2158
    %v2170 = vadd.f32 %v2148, %v2159
    %v2171 = vadd.f32 %v2149, %v2160
    %v2172 = vadd.f32 %v2150, %v2161
    %v2173 = vadd.f32 %v2151, %v2162
    %v2174 = vld [vmem:[%s1689] sm:$0xff]
    %v2175 = vld [vmem:[%s1689 + $0x8] sm:$0xff]
    %v2176 = vld [vmem:[%s1689 + $0x10] sm:$0xff]
    %v2177 = vld [vmem:[%s1689 + $0x18] sm:$0xff]
    %v2178 = vld [vmem:[%s1689 + $0x20] sm:$0xff]
    %v2179 = vld [vmem:[%s1689 + $0x28] sm:$0xff]
    %v2180 = vld [vmem:[%s1689 + $0x30] sm:$0xff]
    %v2181 = vld [vmem:[%s1689 + $0x38] sm:$0xff]
    %v2182 = vld [vmem:[%s1689 + $0x40] sm:$0xff]
    %v2183 = vld [vmem:[%s1689 + $0x48] sm:$0xff]
    %v2184 = vld [vmem:[%s1689 + $0x50] sm:$0x7f]
    %v2185 = vmul.f32 %v1908, %v2174
    %v2186 = vmul.f32 %v1908, %v2175
    %v2187 = vmul.f32 %v1908, %v2176
    %v2188 = vmul.f32 %v1908, %v2177
    %v2189 = vmul.f32 %v1908, %v2178
    %v2190 = vmul.f32 %v1908, %v2179
    %v2191 = vmul.f32 %v1908, %v2180
    %v2192 = vmul.f32 %v1908, %v2181
    %v2193 = vmul.f32 %v1908, %v2182
    %v2194 = vmul.f32 %v1908, %v2183
    %v2195 = vmul.f32 %v1908, %v2184
    %v2196 = vadd.f32 %v2163, %v2185
    %v2197 = vadd.f32 %v2164, %v2186
    %v2198 = vadd.f32 %v2165, %v2187
    %v2199 = vadd.f32 %v2166, %v2188
    %v2200 = vadd.f32 %v2167, %v2189
    %v2201 = vadd.f32 %v2168, %v2190
    %v2202 = vadd.f32 %v2169, %v2191
    %v2203 = vadd.f32 %v2170, %v2192
    %v2204 = vadd.f32 %v2171, %v2193
    %v2205 = vadd.f32 %v2172, %v2194
    %v2206 = vadd.f32 %v2173, %v2195
    %v2207 = vmul.f32 %v1943, %v1966
    %v2208 = vmul.f32 %v1943, %v1967
    %v2209 = vmul.f32 %v1943, %v1968
    %v2210 = vmul.f32 %v1943, %v1969
    %v2211 = vmul.f32 %v1943, %v1970
    %v2212 = vmul.f32 %v1943, %v1971
    %v2213 = vmul.f32 %v1943, %v1972
    %v2214 = vmul.f32 %v1943, %v1973
    %v2215 = vmul.f32 %v1943, %v1974
    %v2216 = vmul.f32 %v1943, %v1975
    %v2217 = vmul.f32 %v1943, %v1976
    %v2218 = vadd.f32 %v2196, %v2207
    %v2219 = vadd.f32 %v2197, %v2208
    %v2220 = vadd.f32 %v2198, %v2209
    %v2221 = vadd.f32 %v2199, %v2210
    %v2222 = vadd.f32 %v2200, %v2211
    %v2223 = vadd.f32 %v2201, %v2212
    %v2224 = vadd.f32 %v2202, %v2213
    %v2225 = vadd.f32 %v2203, %v2214
    %v2226 = vadd.f32 %v2204, %v2215
    %v2227 = vadd.f32 %v2205, %v2216
    %v2228 = vadd.f32 %v2206, %v2217
    %v2229 = vmul.f32 %v1978, %v2001
    %v2230 = vmul.f32 %v1978, %v2002
    %v2231 = vmul.f32 %v1978, %v2003
    %v2232 = vmul.f32 %v1978, %v2004
    %v2233 = vmul.f32 %v1978, %v2005
    %v2234 = vmul.f32 %v1978, %v2006
    %v2235 = vmul.f32 %v1978, %v2007
    %v2236 = vmul.f32 %v1978, %v2008
    %v2237 = vmul.f32 %v1978, %v2009
    %v2238 = vmul.f32 %v1978, %v2010
    %v2239 = vmul.f32 %v1978, %v2011
    %v2240 = vadd.f32 %v2218, %v2229
    %v2241 = vadd.f32 %v2219, %v2230
    %v2242 = vadd.f32 %v2220, %v2231
    %v2243 = vadd.f32 %v2221, %v2232
    %v2244 = vadd.f32 %v2222, %v2233
    %v2245 = vadd.f32 %v2223, %v2234
    %v2246 = vadd.f32 %v2224, %v2235
    %v2247 = vadd.f32 %v2225, %v2236
    %v2248 = vadd.f32 %v2226, %v2237
    %v2249 = vadd.f32 %v2227, %v2238
    %v2250 = vadd.f32 %v2228, %v2239
    %v2251 = vld [vmem:[%s1825] sm:$0xff]
    %v2252 = vld [vmem:[%s1825 + $0x8] sm:$0xff]
    %v2253 = vld [vmem:[%s1825 + $0x10] sm:$0xff]
    %v2254 = vld [vmem:[%s1825 + $0x18] sm:$0xff]
    %v2255 = vld [vmem:[%s1825 + $0x20] sm:$0xff]
    %v2256 = vld [vmem:[%s1825 + $0x28] sm:$0xff]
    %v2257 = vld [vmem:[%s1825 + $0x30] sm:$0xff]
    %v2258 = vld [vmem:[%s1825 + $0x38] sm:$0xff]
    %v2259 = vld [vmem:[%s1825 + $0x40] sm:$0xff]
    %v2260 = vld [vmem:[%s1825 + $0x48] sm:$0xff]
    %v2261 = vld [vmem:[%s1825 + $0x50] sm:$0x7f]
    %v2262 = vmul.f32 %v2013, %v2251
    %v2263 = vmul.f32 %v2013, %v2252
    %v2264 = vmul.f32 %v2013, %v2253
    %v2265 = vmul.f32 %v2013, %v2254
    %v2266 = vmul.f32 %v2013, %v2255
    %v2267 = vmul.f32 %v2013, %v2256
    %v2268 = vmul.f32 %v2013, %v2257
    %v2269 = vmul.f32 %v2013, %v2258
    %v2270 = vmul.f32 %v2013, %v2259
    %v2271 = vmul.f32 %v2013, %v2260
    %v2272 = vmul.f32 %v2013, %v2261
    %v2273 = vadd.f32 %v2240, %v2262
    %v2274 = vadd.f32 %v2241, %v2263
    %v2275 = vadd.f32 %v2242, %v2264
    %v2276 = vadd.f32 %v2243, %v2265
    %v2277 = vadd.f32 %v2244, %v2266
    %v2278 = vadd.f32 %v2245, %v2267
    %v2279 = vadd.f32 %v2246, %v2268
    %v2280 = vadd.f32 %v2247, %v2269
    %v2281 = vadd.f32 %v2248, %v2270
    %v2282 = vadd.f32 %v2249, %v2271
    %v2283 = vadd.f32 %v2250, %v2272
    %v2284 = vmul.f32 %v2048, %v2071
    %v2285 = vmul.f32 %v2048, %v2072
    %v2286 = vmul.f32 %v2048, %v2073
    %v2287 = vmul.f32 %v2048, %v2074
    %v2288 = vmul.f32 %v2048, %v2075
    %v2289 = vmul.f32 %v2048, %v2076
    %v2290 = vmul.f32 %v2048, %v2077
    %v2291 = vmul.f32 %v2048, %v2078
    %v2292 = vmul.f32 %v2048, %v2079
    %v2293 = vmul.f32 %v2048, %v2080
    %v2294 = vmul.f32 %v2048, %v2081
    %v2295 = vadd.f32 %v2273, %v2284
    %v2296 = vadd.f32 %v2274, %v2285
    %v2297 = vadd.f32 %v2275, %v2286
    %v2298 = vadd.f32 %v2276, %v2287
    %v2299 = vadd.f32 %v2277, %v2288
    %v2300 = vadd.f32 %v2278, %v2289
    %v2301 = vadd.f32 %v2279, %v2290
    %v2302 = vadd.f32 %v2280, %v2291
    %v2303 = vadd.f32 %v2281, %v2292
    %v2304 = vadd.f32 %v2282, %v2293
    %v2305 = vadd.f32 %v2283, %v2294
    %v2306 = vmul.f32 %v2083, %v2106
    %v2307 = vmul.f32 %v2083, %v2107
    %v2308 = vmul.f32 %v2083, %v2108
    %v2309 = vmul.f32 %v2083, %v2109
    %v2310 = vmul.f32 %v2083, %v2110
    %v2311 = vmul.f32 %v2083, %v2111
    %v2312 = vmul.f32 %v2083, %v2112
    %v2313 = vmul.f32 %v2083, %v2113
    %v2314 = vmul.f32 %v2083, %v2114
    %v2315 = vmul.f32 %v2083, %v2115
    %v2316 = vmul.f32 %v2083, %v2116
    %v2317 = vadd.f32 %v2295, %v2306
    %v2318 = vadd.f32 %v2296, %v2307
    %v2319 = vadd.f32 %v2297, %v2308
    %v2320 = vadd.f32 %v2298, %v2309
    %v2321 = vadd.f32 %v2299, %v2310
    %v2322 = vadd.f32 %v2300, %v2311
    %v2323 = vadd.f32 %v2301, %v2312
    %v2324 = vadd.f32 %v2302, %v2313
    %v2325 = vadd.f32 %v2303, %v2314
    %v2326 = vadd.f32 %v2304, %v2315
    %v2327 = vadd.f32 %v2305, %v2316
    %v2328 = vld [vmem:[%s1689 + $0x1] sm:$0xff]
    %v2329 = vld [vmem:[%s1689 + $0x9] sm:$0xff]
    %v2330 = vld [vmem:[%s1689 + $0x11] sm:$0xff]
    %v2331 = vld [vmem:[%s1689 + $0x19] sm:$0xff]
    %v2332 = vld [vmem:[%s1689 + $0x21] sm:$0xff]
    %v2333 = vld [vmem:[%s1689 + $0x29] sm:$0xff]
    %v2334 = vld [vmem:[%s1689 + $0x31] sm:$0xff]
    %v2335 = vld [vmem:[%s1689 + $0x39] sm:$0xff]
    %v2336 = vld [vmem:[%s1689 + $0x41] sm:$0xff]
    %v2337 = vld [vmem:[%s1689 + $0x49] sm:$0xff]
    %v2338 = vld [vmem:[%s1689 + $0x51] sm:$0x7f]
    %v2339 = vmul.f32 %v2118, %v2328
    %v2340 = vmul.f32 %v2118, %v2329
    %v2341 = vmul.f32 %v2118, %v2330
    %v2342 = vmul.f32 %v2118, %v2331
    %v2343 = vmul.f32 %v2118, %v2332
    %v2344 = vmul.f32 %v2118, %v2333
    %v2345 = vmul.f32 %v2118, %v2334
    %v2346 = vmul.f32 %v2118, %v2335
    %v2347 = vmul.f32 %v2118, %v2336
    %v2348 = vmul.f32 %v2118, %v2337
    %v2349 = vmul.f32 %v2118, %v2338
    %v2350 = vadd.f32 %v2317, %v2339
    %v2351 = vadd.f32 %v2318, %v2340
    %v2352 = vadd.f32 %v2319, %v2341
    %v2353 = vadd.f32 %v2320, %v2342
    %v2354 = vadd.f32 %v2321, %v2343
    %v2355 = vadd.f32 %v2322, %v2344
    %v2356 = vadd.f32 %v2323, %v2345
    %v2357 = vadd.f32 %v2324, %v2346
    %v2358 = vadd.f32 %v2325, %v2347
    %v2359 = vadd.f32 %v2326, %v2348
    %v2360 = vadd.f32 %v2327, %v2349
    %v2361 = vmax.f32 %v2130, %v2350
    %v2362 = vmax.f32 %v2131, %v2351
    %v2363 = vmax.f32 %v2132, %v2352
    %v2364 = vmax.f32 %v2133, %v2353
    %v2365 = vmax.f32 %v2134, %v2354
    %v2366 = vmax.f32 %v2135, %v2355
    %v2367 = vmax.f32 %v2136, %v2356
    %v2368 = vmax.f32 %v2137, %v2357
    %v2369 = vmax.f32 %v2138, %v2358
    %v2370 = vmax.f32 %v2139, %v2359
    %v2371 = vmax.f32 %v2140, %v2360
    %v2372 = vmul.f32 %v1849, %v1931
    %v2373 = vmul.f32 %v1849, %v1932
    %v2374 = vmul.f32 %v1849, %v1933
    %v2375 = vmul.f32 %v1849, %v1934
    %v2376 = vmul.f32 %v1849, %v1935
    %v2377 = vmul.f32 %v1849, %v1936
    %v2378 = vmul.f32 %v1849, %v1937
    %v2379 = vmul.f32 %v1849, %v1938
    %v2380 = vmul.f32 %v1849, %v1939
    %v2381 = vmul.f32 %v1849, %v1940
    %v2382 = vmul.f32 %v1849, %v1941
    %v2383 = vmul.f32 %v1873, %v1966
    %v2384 = vmul.f32 %v1873, %v1967
    %v2385 = vmul.f32 %v1873, %v1968
    %v2386 = vmul.f32 %v1873, %v1969
    %v2387 = vmul.f32 %v1873, %v1970
    %v2388 = vmul.f32 %v1873, %v1971
    %v2389 = vmul.f32 %v1873, %v1972
    %v2390 = vmul.f32 %v1873, %v1973
    %v2391 = vmul.f32 %v1873, %v1974
    %v2392 = vmul.f32 %v1873, %v1975
    %v2393 = vmul.f32 %v1873, %v1976
    %v2394 = vadd.f32 %v2372, %v2383
    %v2395 = vadd.f32 %v2373, %v2384
    %v2396 = vadd.f32 %v2374, %v2385
    %v2397 = vadd.f32 %v2375, %v2386
    %v2398 = vadd.f32 %v2376, %v2387
    %v2399 = vadd.f32 %v2377, %v2388
    %v2400 = vadd.f32 %v2378, %v2389
    %v2401 = vadd.f32 %v2379, %v2390
    %v2402 = vadd.f32 %v2380, %v2391
    %v2403 = vadd.f32 %v2381, %v2392
    %v2404 = vadd.f32 %v2382, %v2393
    %v2405 = vmul.f32 %v1908, %v2001
    %v2406 = vmul.f32 %v1908, %v2002
    %v2407 = vmul.f32 %v1908, %v2003
    %v2408 = vmul.f32 %v1908, %v2004
    %v2409 = vmul.f32 %v1908, %v2005
    %v2410 = vmul.f32 %v1908, %v2006
    %v2411 = vmul.f32 %v1908, %v2007
    %v2412 = vmul.f32 %v1908, %v2008
    %v2413 = vmul.f32 %v1908, %v2009
    %v2414 = vmul.f32 %v1908, %v2010
    %v2415 = vmul.f32 %v1908, %v2011
    %v2416 = vadd.f32 %v2394, %v2405
    %v2417 = vadd.f32 %v2395, %v2406
    %v2418 = vadd.f32 %v2396, %v2407
    %v2419 = vadd.f32 %v2397, %v2408
    %v2420 = vadd.f32 %v2398, %v2409
    %v2421 = vadd.f32 %v2399, %v2410
    %v2422 = vadd.f32 %v2400, %v2411
    %v2423 = vadd.f32 %v2401, %v2412
    %v2424 = vadd.f32 %v2402, %v2413
    %v2425 = vadd.f32 %v2403, %v2414
    %v2426 = vadd.f32 %v2404, %v2415
    %v2427 = vmul.f32 %v1943, %v2036
    %v2428 = vmul.f32 %v1943, %v2037
    %v2429 = vmul.f32 %v1943, %v2038
    %v2430 = vmul.f32 %v1943, %v2039
    %v2431 = vmul.f32 %v1943, %v2040
    %v2432 = vmul.f32 %v1943, %v2041
    %v2433 = vmul.f32 %v1943, %v2042
    %v2434 = vmul.f32 %v1943, %v2043
    %v2435 = vmul.f32 %v1943, %v2044
    %v2436 = vmul.f32 %v1943, %v2045
    %v2437 = vmul.f32 %v1943, %v2046
    %v2438 = vadd.f32 %v2416, %v2427
    %v2439 = vadd.f32 %v2417, %v2428
    %v2440 = vadd.f32 %v2418, %v2429
    %v2441 = vadd.f32 %v2419, %v2430
    %v2442 = vadd.f32 %v2420, %v2431
    %v2443 = vadd.f32 %v2421, %v2432
    %v2444 = vadd.f32 %v2422, %v2433
    %v2445 = vadd.f32 %v2423, %v2434
    %v2446 = vadd.f32 %v2424, %v2435
    %v2447 = vadd.f32 %v2425, %v2436
    %v2448 = vadd.f32 %v2426, %v2437
    %v2449 = vmul.f32 %v1978, %v2071
    %v2450 = vmul.f32 %v1978, %v2072
    %v2451 = vmul.f32 %v1978, %v2073
    %v2452 = vmul.f32 %v1978, %v2074
    %v2453 = vmul.f32 %v1978, %v2075
    %v2454 = vmul.f32 %v1978, %v2076
    %v2455 = vmul.f32 %v1978, %v2077
    %v2456 = vmul.f32 %v1978, %v2078
    %v2457 = vmul.f32 %v1978, %v2079
    %v2458 = vmul.f32 %v1978, %v2080
    %v2459 = vmul.f32 %v1978, %v2081
    %v2460 = vadd.f32 %v2438, %v2449
    %v2461 = vadd.f32 %v2439, %v2450
    %v2462 = vadd.f32 %v2440, %v2451
    %v2463 = vadd.f32 %v2441, %v2452
    %v2464 = vadd.f32 %v2442, %v2453
    %v2465 = vadd.f32 %v2443, %v2454
    %v2466 = vadd.f32 %v2444, %v2455
    %v2467 = vadd.f32 %v2445, %v2456
    %v2468 = vadd.f32 %v2446, %v2457
    %v2469 = vadd.f32 %v2447, %v2458
    %v2470 = vadd.f32 %v2448, %v2459
    %v2471 = vmul.f32 %v2013, %v2106
    %v2472 = vmul.f32 %v2013, %v2107
    %v2473 = vmul.f32 %v2013, %v2108
    %v2474 = vmul.f32 %v2013, %v2109
    %v2475 = vmul.f32 %v2013, %v2110
    %v2476 = vmul.f32 %v2013, %v2111
    %v2477 = vmul.f32 %v2013, %v2112
    %v2478 = vmul.f32 %v2013, %v2113
    %v2479 = vmul.f32 %v2013, %v2114
    %v2480 = vmul.f32 %v2013, %v2115
    %v2481 = vmul.f32 %v2013, %v2116
    %v2482 = vadd.f32 %v2460, %v2471
    %v2483 = vadd.f32 %v2461, %v2472
    %v2484 = vadd.f32 %v2462, %v2473
    %v2485 = vadd.f32 %v2463, %v2474
    %v2486 = vadd.f32 %v2464, %v2475
    %v2487 = vadd.f32 %v2465, %v2476
    %v2488 = vadd.f32 %v2466, %v2477
    %v2489 = vadd.f32 %v2467, %v2478
    %v2490 = vadd.f32 %v2468, %v2479
    %v2491 = vadd.f32 %v2469, %v2480
    %v2492 = vadd.f32 %v2470, %v2481
    %v2493 = vld [vmem:[%s1701 + $0x1] sm:$0xff]
    %v2494 = vld [vmem:[%s1701 + $0x9] sm:$0xff]
    %v2495 = vld [vmem:[%s1701 + $0x11] sm:$0xff]
    %v2496 = vld [vmem:[%s1701 + $0x19] sm:$0xff]
    %v2497 = vld [vmem:[%s1701 + $0x21] sm:$0xff]
    %v2498 = vld [vmem:[%s1701 + $0x29] sm:$0xff]
    %v2499 = vld [vmem:[%s1701 + $0x31] sm:$0xff]
    %v2500 = vld [vmem:[%s1701 + $0x39] sm:$0xff]
    %v2501 = vld [vmem:[%s1701 + $0x41] sm:$0xff]
    %v2502 = vld [vmem:[%s1701 + $0x49] sm:$0xff]
    %v2503 = vld [vmem:[%s1701 + $0x51] sm:$0x7f]
    %v2504 = vmul.f32 %v2048, %v2493
    %v2505 = vmul.f32 %v2048, %v2494
    %v2506 = vmul.f32 %v2048, %v2495
    %v2507 = vmul.f32 %v2048, %v2496
    %v2508 = vmul.f32 %v2048, %v2497
    %v2509 = vmul.f32 %v2048, %v2498
    %v2510 = vmul.f32 %v2048, %v2499
    %v2511 = vmul.f32 %v2048, %v2500
    %v2512 = vmul.f32 %v2048, %v2501
    %v2513 = vmul.f32 %v2048, %v2502
    %v2514 = vmul.f32 %v2048, %v2503
    %v2515 = vadd.f32 %v2482, %v2504
    %v2516 = vadd.f32 %v2483, %v2505
    %v2517 = vadd.f32 %v2484, %v2506
    %v2518 = vadd.f32 %v2485, %v2507
    %v2519 = vadd.f32 %v2486, %v2508
    %v2520 = vadd.f32 %v2487, %v2509
    %v2521 = vadd.f32 %v2488, %v2510
    %v2522 = vadd.f32 %v2489, %v2511
    %v2523 = vadd.f32 %v2490, %v2512
    %v2524 = vadd.f32 %v2491, %v2513
    %v2525 = vadd.f32 %v2492, %v2514
    %v2526 = vld [vmem:[%s1769 + $0x1] sm:$0xff]
    %v2527 = vld [vmem:[%s1769 + $0x9] sm:$0xff]
    %v2528 = vld [vmem:[%s1769 + $0x11] sm:$0xff]
    %v2529 = vld [vmem:[%s1769 + $0x19] sm:$0xff]
    %v2530 = vld [vmem:[%s1769 + $0x21] sm:$0xff]
    %v2531 = vld [vmem:[%s1769 + $0x29] sm:$0xff]
    %v2532 = vld [vmem:[%s1769 + $0x31] sm:$0xff]
    %v2533 = vld [vmem:[%s1769 + $0x39] sm:$0xff]
    %v2534 = vld [vmem:[%s1769 + $0x41] sm:$0xff]
    %v2535 = vld [vmem:[%s1769 + $0x49] sm:$0xff]
    %v2536 = vld [vmem:[%s1769 + $0x51] sm:$0x7f]
    %v2537 = vmul.f32 %v2083, %v2526
    %v2538 = vmul.f32 %v2083, %v2527
    %v2539 = vmul.f32 %v2083, %v2528
    %v2540 = vmul.f32 %v2083, %v2529
    %v2541 = vmul.f32 %v2083, %v2530
    %v2542 = vmul.f32 %v2083, %v2531
    %v2543 = vmul.f32 %v2083, %v2532
    %v2544 = vmul.f32 %v2083, %v2533
    %v2545 = vmul.f32 %v2083, %v2534
    %v2546 = vmul.f32 %v2083, %v2535
    %v2547 = vmul.f32 %v2083, %v2536
    %v2548 = vadd.f32 %v2515, %v2537
    %v2549 = vadd.f32 %v2516, %v2538
    %v2550 = vadd.f32 %v2517, %v2539
    %v2551 = vadd.f32 %v2518, %v2540
    %v2552 = vadd.f32 %v2519, %v2541
    %v2553 = vadd.f32 %v2520, %v2542
    %v2554 = vadd.f32 %v2521, %v2543
    %v2555 = vadd.f32 %v2522, %v2544
    %v2556 = vadd.f32 %v2523, %v2545
    %v2557 = vadd.f32 %v2524, %v2546
    %v2558 = vadd.f32 %v2525, %v2547
    %v2559 = vld [vmem:[%s1757 + $0x1] sm:$0xff]
    %v2560 = vld [vmem:[%s1757 + $0x9] sm:$0xff]
    %v2561 = vld [vmem:[%s1757 + $0x11] sm:$0xff]
    %v2562 = vld [vmem:[%s1757 + $0x19] sm:$0xff]
    %v2563 = vld [vmem:[%s1757 + $0x21] sm:$0xff]
    %v2564 = vld [vmem:[%s1757 + $0x29] sm:$0xff]
    %v2565 = vld [vmem:[%s1757 + $0x31] sm:$0xff]
    %v2566 = vld [vmem:[%s1757 + $0x39] sm:$0xff]
    %v2567 = vld [vmem:[%s1757 + $0x41] sm:$0xff]
    %v2568 = vld [vmem:[%s1757 + $0x49] sm:$0xff]
    %v2569 = vld [vmem:[%s1757 + $0x51] sm:$0x7f]
    %v2570 = vmul.f32 %v2118, %v2559
    %v2571 = vmul.f32 %v2118, %v2560
    %v2572 = vmul.f32 %v2118, %v2561
    %v2573 = vmul.f32 %v2118, %v2562
    %v2574 = vmul.f32 %v2118, %v2563
    %v2575 = vmul.f32 %v2118, %v2564
    %v2576 = vmul.f32 %v2118, %v2565
    %v2577 = vmul.f32 %v2118, %v2566
    %v2578 = vmul.f32 %v2118, %v2567
    %v2579 = vmul.f32 %v2118, %v2568
    %v2580 = vmul.f32 %v2118, %v2569
    %v2581 = vadd.f32 %v2548, %v2570
    %v2582 = vadd.f32 %v2549, %v2571
    %v2583 = vadd.f32 %v2550, %v2572
    %v2584 = vadd.f32 %v2551, %v2573
    %v2585 = vadd.f32 %v2552, %v2574
    %v2586 = vadd.f32 %v2553, %v2575
    %v2587 = vadd.f32 %v2554, %v2576
    %v2588 = vadd.f32 %v2555, %v2577
    %v2589 = vadd.f32 %v2556, %v2578
    %v2590 = vadd.f32 %v2557, %v2579
    %v2591 = vadd.f32 %v2558, %v2580
    %v2592 = vmax.f32 %v2361, %v2581
    %v2593 = vmax.f32 %v2362, %v2582
    %v2594 = vmax.f32 %v2363, %v2583
    %v2595 = vmax.f32 %v2364, %v2584
    %v2596 = vmax.f32 %v2365, %v2585
    %v2597 = vmax.f32 %v2366, %v2586
    %v2598 = vmax.f32 %v2367, %v2587
    %v2599 = vmax.f32 %v2368, %v2588
    %v2600 = vmax.f32 %v2369, %v2589
    %v2601 = vmax.f32 %v2370, %v2590
    %v2602 = vmax.f32 %v2371, %v2591
    %v2603 = vmul.f32 %v1849, %v1966
    %v2604 = vmul.f32 %v1849, %v1967
    %v2605 = vmul.f32 %v1849, %v1968
    %v2606 = vmul.f32 %v1849, %v1969
    %v2607 = vmul.f32 %v1849, %v1970
    %v2608 = vmul.f32 %v1849, %v1971
    %v2609 = vmul.f32 %v1849, %v1972
    %v2610 = vmul.f32 %v1849, %v1973
    %v2611 = vmul.f32 %v1849, %v1974
    %v2612 = vmul.f32 %v1849, %v1975
    %v2613 = vmul.f32 %v1849, %v1976
    %v2614 = vmul.f32 %v1873, %v2001
    %v2615 = vmul.f32 %v1873, %v2002
    %v2616 = vmul.f32 %v1873, %v2003
    %v2617 = vmul.f32 %v1873, %v2004
    %v2618 = vmul.f32 %v1873, %v2005
    %v2619 = vmul.f32 %v1873, %v2006
    %v2620 = vmul.f32 %v1873, %v2007
    %v2621 = vmul.f32 %v1873, %v2008
    %v2622 = vmul.f32 %v1873, %v2009
    %v2623 = vmul.f32 %v1873, %v2010
    %v2624 = vmul.f32 %v1873, %v2011
    %v2625 = vadd.f32 %v2603, %v2614
    %v2626 = vadd.f32 %v2604, %v2615
    %v2627 = vadd.f32 %v2605, %v2616
    %v2628 = vadd.f32 %v2606, %v2617
    %v2629 = vadd.f32 %v2607, %v2618
    %v2630 = vadd.f32 %v2608, %v2619
    %v2631 = vadd.f32 %v2609, %v2620
    %v2632 = vadd.f32 %v2610, %v2621
    %v2633 = vadd.f32 %v2611, %v2622
    %v2634 = vadd.f32 %v2612, %v2623
    %v2635 = vadd.f32 %v2613, %v2624
    %v2636 = vmul.f32 %v1908, %v2251
    %v2637 = vmul.f32 %v1908, %v2252
    %v2638 = vmul.f32 %v1908, %v2253
    %v2639 = vmul.f32 %v1908, %v2254
    %v2640 = vmul.f32 %v1908, %v2255
    %v2641 = vmul.f32 %v1908, %v2256
    %v2642 = vmul.f32 %v1908, %v2257
    %v2643 = vmul.f32 %v1908, %v2258
    %v2644 = vmul.f32 %v1908, %v2259
    %v2645 = vmul.f32 %v1908, %v2260
    %v2646 = vmul.f32 %v1908, %v2261
    %v2647 = vadd.f32 %v2625, %v2636
    %v2648 = vadd.f32 %v2626, %v2637
    %v2649 = vadd.f32 %v2627, %v2638
    %v2650 = vadd.f32 %v2628, %v2639
    %v2651 = vadd.f32 %v2629, %v2640
    %v2652 = vadd.f32 %v2630, %v2641
    %v2653 = vadd.f32 %v2631, %v2642
    %v2654 = vadd.f32 %v2632, %v2643
    %v2655 = vadd.f32 %v2633, %v2644
    %v2656 = vadd.f32 %v2634, %v2645
    %v2657 = vadd.f32 %v2635, %v2646
    %v2658 = vmul.f32 %v1943, %v2071
    %v2659 = vmul.f32 %v1943, %v2072
    %v2660 = vmul.f32 %v1943, %v2073
    %v2661 = vmul.f32 %v1943, %v2074
    %v2662 = vmul.f32 %v1943, %v2075
    %v2663 = vmul.f32 %v1943, %v2076
    %v2664 = vmul.f32 %v1943, %v2077
    %v2665 = vmul.f32 %v1943, %v2078
    %v2666 = vmul.f32 %v1943, %v2079
    %v2667 = vmul.f32 %v1943, %v2080
    %v2668 = vmul.f32 %v1943, %v2081
    %v2669 = vadd.f32 %v2647, %v2658
    %v2670 = vadd.f32 %v2648, %v2659
    %v2671 = vadd.f32 %v2649, %v2660
    %v2672 = vadd.f32 %v2650, %v2661
    %v2673 = vadd.f32 %v2651, %v2662
    %v2674 = vadd.f32 %v2652, %v2663
    %v2675 = vadd.f32 %v2653, %v2664
    %v2676 = vadd.f32 %v2654, %v2665
    %v2677 = vadd.f32 %v2655, %v2666
    %v2678 = vadd.f32 %v2656, %v2667
    %v2679 = vadd.f32 %v2657, %v2668
    %v2680 = vmul.f32 %v1978, %v2106
    %v2681 = vmul.f32 %v1978, %v2107
    %v2682 = vmul.f32 %v1978, %v2108
    %v2683 = vmul.f32 %v1978, %v2109
    %v2684 = vmul.f32 %v1978, %v2110
    %v2685 = vmul.f32 %v1978, %v2111
    %v2686 = vmul.f32 %v1978, %v2112
    %v2687 = vmul.f32 %v1978, %v2113
    %v2688 = vmul.f32 %v1978, %v2114
    %v2689 = vmul.f32 %v1978, %v2115
    %v2690 = vmul.f32 %v1978, %v2116
    %v2691 = vadd.f32 %v2669, %v2680
    %v2692 = vadd.f32 %v2670, %v2681
    %v2693 = vadd.f32 %v2671, %v2682
    %v2694 = vadd.f32 %v2672, %v2683
    %v2695 = vadd.f32 %v2673, %v2684
    %v2696 = vadd.f32 %v2674, %v2685
    %v2697 = vadd.f32 %v2675, %v2686
    %v2698 = vadd.f32 %v2676, %v2687
    %v2699 = vadd.f32 %v2677, %v2688
    %v2700 = vadd.f32 %v2678, %v2689
    %v2701 = vadd.f32 %v2679, %v2690
    %v2702 = vmul.f32 %v2013, %v2328
    %v2703 = vmul.f32 %v2013, %v2329
    %v2704 = vmul.f32 %v2013, %v2330
    %v2705 = vmul.f32 %v2013, %v2331
    %v2706 = vmul.f32 %v2013, %v2332
    %v2707 = vmul.f32 %v2013, %v2333
    %v2708 = vmul.f32 %v2013, %v2334
    %v2709 = vmul.f32 %v2013, %v2335
    %v2710 = vmul.f32 %v2013, %v2336
    %v2711 = vmul.f32 %v2013, %v2337
    %v2712 = vmul.f32 %v2013, %v2338
    %v2713 = vadd.f32 %v2691, %v2702
    %v2714 = vadd.f32 %v2692, %v2703
    %v2715 = vadd.f32 %v2693, %v2704
    %v2716 = vadd.f32 %v2694, %v2705
    %v2717 = vadd.f32 %v2695, %v2706
    %v2718 = vadd.f32 %v2696, %v2707
    %v2719 = vadd.f32 %v2697, %v2708
    %v2720 = vadd.f32 %v2698, %v2709
    %v2721 = vadd.f32 %v2699, %v2710
    %v2722 = vadd.f32 %v2700, %v2711
    %v2723 = vadd.f32 %v2701, %v2712
    %v2724 = vmul.f32 %v2048, %v2526
    %v2725 = vmul.f32 %v2048, %v2527
    %v2726 = vmul.f32 %v2048, %v2528
    %v2727 = vmul.f32 %v2048, %v2529
    %v2728 = vmul.f32 %v2048, %v2530
    %v2729 = vmul.f32 %v2048, %v2531
    %v2730 = vmul.f32 %v2048, %v2532
    %v2731 = vmul.f32 %v2048, %v2533
    %v2732 = vmul.f32 %v2048, %v2534
    %v2733 = vmul.f32 %v2048, %v2535
    %v2734 = vmul.f32 %v2048, %v2536
    %v2735 = vadd.f32 %v2713, %v2724
    %v2736 = vadd.f32 %v2714, %v2725
    %v2737 = vadd.f32 %v2715, %v2726
    %v2738 = vadd.f32 %v2716, %v2727
    %v2739 = vadd.f32 %v2717, %v2728
    %v2740 = vadd.f32 %v2718, %v2729
    %v2741 = vadd.f32 %v2719, %v2730
    %v2742 = vadd.f32 %v2720, %v2731
    %v2743 = vadd.f32 %v2721, %v2732
    %v2744 = vadd.f32 %v2722, %v2733
    %v2745 = vadd.f32 %v2723, %v2734
    %v2746 = vmul.f32 %v2083, %v2559
    %v2747 = vmul.f32 %v2083, %v2560
    %v2748 = vmul.f32 %v2083, %v2561
    %v2749 = vmul.f32 %v2083, %v2562
    %v2750 = vmul.f32 %v2083, %v2563
    %v2751 = vmul.f32 %v2083, %v2564
    %v2752 = vmul.f32 %v2083, %v2565
    %v2753 = vmul.f32 %v2083, %v2566
    %v2754 = vmul.f32 %v2083, %v2567
    %v2755 = vmul.f32 %v2083, %v2568
    %v2756 = vmul.f32 %v2083, %v2569
    %v2757 = vadd.f32 %v2735, %v2746
    %v2758 = vadd.f32 %v2736, %v2747
    %v2759 = vadd.f32 %v2737, %v2748
    %v2760 = vadd.f32 %v2738, %v2749
    %v2761 = vadd.f32 %v2739, %v2750
    %v2762 = vadd.f32 %v2740, %v2751
    %v2763 = vadd.f32 %v2741, %v2752
    %v2764 = vadd.f32 %v2742, %v2753
    %v2765 = vadd.f32 %v2743, %v2754
    %v2766 = vadd.f32 %v2744, %v2755
    %v2767 = vadd.f32 %v2745, %v2756
    %v2768 = vld [vmem:[%s1825 + $0x1] sm:$0xff]
    %v2769 = vld [vmem:[%s1825 + $0x9] sm:$0xff]
    %v2770 = vld [vmem:[%s1825 + $0x11] sm:$0xff]
    %v2771 = vld [vmem:[%s1825 + $0x19] sm:$0xff]
    %v2772 = vld [vmem:[%s1825 + $0x21] sm:$0xff]
    %v2773 = vld [vmem:[%s1825 + $0x29] sm:$0xff]
    %v2774 = vld [vmem:[%s1825 + $0x31] sm:$0xff]
    %v2775 = vld [vmem:[%s1825 + $0x39] sm:$0xff]
    %v2776 = vld [vmem:[%s1825 + $0x41] sm:$0xff]
    %v2777 = vld [vmem:[%s1825 + $0x49] sm:$0xff]
    %v2778 = vld [vmem:[%s1825 + $0x51] sm:$0x7f]
    %v2779 = vmul.f32 %v2118, %v2768
    %v2780 = vmul.f32 %v2118, %v2769
    %v2781 = vmul.f32 %v2118, %v2770
    %v2782 = vmul.f32 %v2118, %v2771
    %v2783 = vmul.f32 %v2118, %v2772
    %v2784 = vmul.f32 %v2118, %v2773
    %v2785 = vmul.f32 %v2118, %v2774
    %v2786 = vmul.f32 %v2118, %v2775
    %v2787 = vmul.f32 %v2118, %v2776
    %v2788 = vmul.f32 %v2118, %v2777
    %v2789 = vmul.f32 %v2118, %v2778
    %v2790 = vadd.f32 %v2757, %v2779
    %v2791 = vadd.f32 %v2758, %v2780
    %v2792 = vadd.f32 %v2759, %v2781
    %v2793 = vadd.f32 %v2760, %v2782
    %v2794 = vadd.f32 %v2761, %v2783
    %v2795 = vadd.f32 %v2762, %v2784
    %v2796 = vadd.f32 %v2763, %v2785
    %v2797 = vadd.f32 %v2764, %v2786
    %v2798 = vadd.f32 %v2765, %v2787
    %v2799 = vadd.f32 %v2766, %v2788
    %v2800 = vadd.f32 %v2767, %v2789
    %v2801 = vmax.f32 %v2592, %v2790
    %v2802 = vmax.f32 %v2593, %v2791
    %v2803 = vmax.f32 %v2594, %v2792
    %v2804 = vmax.f32 %v2595, %v2793
    %v2805 = vmax.f32 %v2596, %v2794
    %v2806 = vmax.f32 %v2597, %v2795
    %v2807 = vmax.f32 %v2598, %v2796
    %v2808 = vmax.f32 %v2599, %v2797
    %v2809 = vmax.f32 %v2600, %v2798
    %v2810 = vmax.f32 %v2601, %v2799
    %v2811 = vmax.f32 %v2602, %v2800
    %s2812 = sld [smem:[#allocation29]]
    %v2813 = vstv %s2812
    %v2814 = vadd.f32 %v2801, %v2813
    %v2815 = vadd.f32 %v2802, %v2813
    %v2816 = vadd.f32 %v2803, %v2813
    %v2817 = vadd.f32 %v2804, %v2813
    %v2818 = vadd.f32 %v2805, %v2813
    %v2819 = vadd.f32 %v2806, %v2813
    %v2820 = vadd.f32 %v2807, %v2813
    %v2821 = vadd.f32 %v2808, %v2813
    %v2822 = vadd.f32 %v2809, %v2813
    %v2823 = vadd.f32 %v2810, %v2813
    %v2824 = vadd.f32 %v2811, %v2813
    %v2825 = vmax.f32 %v2814, 0.0
    %v2826 = vmax.f32 %v2815, 0.0
    %v2827 = vmax.f32 %v2816, 0.0
    %v2828 = vmax.f32 %v2817, 0.0
    %v2829 = vmax.f32 %v2818, 0.0
    %v2830 = vmax.f32 %v2819, 0.0
    %v2831 = vmax.f32 %v2820, 0.0
    %v2832 = vmax.f32 %v2821, 0.0
    %v2833 = vmax.f32 %v2822, 0.0
    %v2834 = vmax.f32 %v2823, 0.0
    %v2835 = vmax.f32 %v2824, 0.0
    %2836 = vst.msk [vmem:[#allocation3] sm:$0xff] %vm1621, %v2825
    %2837 = vst.msk [vmem:[#allocation3 + $0x8] sm:$0xff] %vm1621, %v2826
    %2838 = vst.msk [vmem:[#allocation3 + $0x10] sm:$0xff] %vm1621, %v2827
    %2839 = vst.msk [vmem:[#allocation3 + $0x18] sm:$0xff] %vm1621, %v2828
    %2840 = vst.msk [vmem:[#allocation3 + $0x20] sm:$0xff] %vm1621, %v2829
    %2841 = vst.msk [vmem:[#allocation3 + $0x28] sm:$0xff] %vm1621, %v2830
    %2842 = vst.msk [vmem:[#allocation3 + $0x30] sm:$0xff] %vm1621, %v2831
    %2843 = vst.msk [vmem:[#allocation3 + $0x38] sm:$0xff] %vm1621, %v2832
    %2844 = vst.msk [vmem:[#allocation3 + $0x40] sm:$0xff] %vm1621, %v2833
    %2845 = vst.msk [vmem:[#allocation3 + $0x48] sm:$0xff] %vm1621, %v2834
    %vm2846 = vcmask 710656
    %2847 = vst.msk [vmem:[#allocation3 + $0x50] sm:$0x7f] %vm2846, %v2835
    %v2848 = vld [vmem:[#allocation33] sm:$0xff]
    %v2849 = vld [vmem:[#allocation33 + $0x8] sm:$0xff]
    %v2850 = vld [vmem:[#allocation33 + $0x10] sm:$0xff]
    %v2851 = vld [vmem:[#allocation33 + $0x18] sm:$0xff]
    %v2852 = vld [vmem:[#allocation33 + $0x20] sm:$0xff]
    %v2853 = vld [vmem:[#allocation33 + $0x28] sm:$0xff]
    %v2854 = vld [vmem:[#allocation33 + $0x30] sm:$0xff]
    %v2855 = vld [vmem:[#allocation33 + $0x38] sm:$0xff]
    %v2856 = vld [vmem:[#allocation33 + $0x40] sm:$0xff]
    %v2857 = vld [vmem:[#allocation33 + $0x48] sm:$0xff]
    %v2858 = vld [vmem:[#allocation33 + $0x50] sm:$0x7f]
    %s2859 = sld [smem:[#allocation26 + $0x80]]
    %v2860 = vstv %s2859
    %v2861 = vmul.f32 %v2860, %v2848
    %v2862 = vmul.f32 %v2860, %v2849
    %v2863 = vmul.f32 %v2860, %v2850
    %v2864 = vmul.f32 %v2860, %v2851
    %v2865 = vmul.f32 %v2860, %v2852
    %v2866 = vmul.f32 %v2860, %v2853
    %v2867 = vmul.f32 %v2860, %v2854
    %v2868 = vmul.f32 %v2860, %v2855
    %v2869 = vmul.f32 %v2860, %v2856
    %v2870 = vmul.f32 %v2860, %v2857
    %v2871 = vmul.f32 %v2860, %v2858
    %v2872 = vld [vmem:[%s1633] sm:$0xff]
    %v2873 = vld [vmem:[%s1633 + $0x8] sm:$0xff]
    %v2874 = vld [vmem:[%s1633 + $0x10] sm:$0xff]
    %v2875 = vld [vmem:[%s1633 + $0x18] sm:$0xff]
    %v2876 = vld [vmem:[%s1633 + $0x20] sm:$0xff]
    %v2877 = vld [vmem:[%s1633 + $0x28] sm:$0xff]
    %v2878 = vld [vmem:[%s1633 + $0x30] sm:$0xff]
    %v2879 = vld [vmem:[%s1633 + $0x38] sm:$0xff]
    %v2880 = vld [vmem:[%s1633 + $0x40] sm:$0xff]
    %v2881 = vld [vmem:[%s1633 + $0x48] sm:$0xff]
    %v2882 = vld [vmem:[%s1633 + $0x50] sm:$0x7f]
    %s2883 = sld [smem:[#allocation26 + $0x81]]
    %v2884 = vstv %s2883
    %v2885 = vmul.f32 %v2884, %v2872
    %v2886 = vmul.f32 %v2884, %v2873
    %v2887 = vmul.f32 %v2884, %v2874
    %v2888 = vmul.f32 %v2884, %v2875
    %v2889 = vmul.f32 %v2884, %v2876
    %v2890 = vmul.f32 %v2884, %v2877
    %v2891 = vmul.f32 %v2884, %v2878
    %v2892 = vmul.f32 %v2884, %v2879
    %v2893 = vmul.f32 %v2884, %v2880
    %v2894 = vmul.f32 %v2884, %v2881
    %v2895 = vmul.f32 %v2884, %v2882
    %v2896 = vadd.f32 %v2861, %v2885
    %v2897 = vadd.f32 %v2862, %v2886
    %v2898 = vadd.f32 %v2863, %v2887
    %v2899 = vadd.f32 %v2864, %v2888
    %v2900 = vadd.f32 %v2865, %v2889
    %v2901 = vadd.f32 %v2866, %v2890
    %v2902 = vadd.f32 %v2867, %v2891
    %v2903 = vadd.f32 %v2868, %v2892
    %v2904 = vadd.f32 %v2869, %v2893
    %v2905 = vadd.f32 %v2870, %v2894
    %v2906 = vadd.f32 %v2871, %v2895
    %v2907 = vld [vmem:[#allocation2] sm:$0xff]
    %v2908 = vld [vmem:[#allocation2 + $0x8] sm:$0xff]
    %v2909 = vld [vmem:[#allocation2 + $0x10] sm:$0xff]
    %v2910 = vld [vmem:[#allocation2 + $0x18] sm:$0xff]
    %v2911 = vld [vmem:[#allocation2 + $0x20] sm:$0xff]
    %v2912 = vld [vmem:[#allocation2 + $0x28] sm:$0xff]
    %v2913 = vld [vmem:[#allocation2 + $0x30] sm:$0xff]
    %v2914 = vld [vmem:[#allocation2 + $0x38] sm:$0xff]
    %v2915 = vld [vmem:[#allocation2 + $0x40] sm:$0xff]
    %v2916 = vld [vmem:[#allocation2 + $0x48] sm:$0xff]
    %v2917 = vld [vmem:[#allocation2 + $0x50] sm:$0x7f]
    %s2918 = sld [smem:[#allocation26 + $0x82]]
    %v2919 = vstv %s2918
    %v2920 = vmul.f32 %v2919, %v2907
    %v2921 = vmul.f32 %v2919, %v2908
    %v2922 = vmul.f32 %v2919, %v2909
    %v2923 = vmul.f32 %v2919, %v2910
    %v2924 = vmul.f32 %v2919, %v2911
    %v2925 = vmul.f32 %v2919, %v2912
    %v2926 = vmul.f32 %v2919, %v2913
    %v2927 = vmul.f32 %v2919, %v2914
    %v2928 = vmul.f32 %v2919, %v2915
    %v2929 = vmul.f32 %v2919, %v2916
    %v2930 = vmul.f32 %v2919, %v2917
    %v2931 = vadd.f32 %v2896, %v2920
    %v2932 = vadd.f32 %v2897, %v2921
    %v2933 = vadd.f32 %v2898, %v2922
    %v2934 = vadd.f32 %v2899, %v2923
    %v2935 = vadd.f32 %v2900, %v2924
    %v2936 = vadd.f32 %v2901, %v2925
    %v2937 = vadd.f32 %v2902, %v2926
    %v2938 = vadd.f32 %v2903, %v2927
    %v2939 = vadd.f32 %v2904, %v2928
    %v2940 = vadd.f32 %v2905, %v2929
    %v2941 = vadd.f32 %v2906, %v2930
    %v2942 = vld [vmem:[%s1701] sm:$0xff]
    %v2943 = vld [vmem:[%s1701 + $0x8] sm:$0xff]
    %v2944 = vld [vmem:[%s1701 + $0x10] sm:$0xff]
    %v2945 = vld [vmem:[%s1701 + $0x18] sm:$0xff]
    %v2946 = vld [vmem:[%s1701 + $0x20] sm:$0xff]
    %v2947 = vld [vmem:[%s1701 + $0x28] sm:$0xff]
    %v2948 = vld [vmem:[%s1701 + $0x30] sm:$0xff]
    %v2949 = vld [vmem:[%s1701 + $0x38] sm:$0xff]
    %v2950 = vld [vmem:[%s1701 + $0x40] sm:$0xff]
    %v2951 = vld [vmem:[%s1701 + $0x48] sm:$0xff]
    %v2952 = vld [vmem:[%s1701 + $0x50] sm:$0x7f]
    %s2953 = sld [smem:[#allocation26 + $0x83]]
    %v2954 = vstv %s2953
    %v2955 = vmul.f32 %v2954, %v2942
    %v2956 = vmul.f32 %v2954, %v2943
    %v2957 = vmul.f32 %v2954, %v2944
    %v2958 = vmul.f32 %v2954, %v2945
    %v2959 = vmul.f32 %v2954, %v2946
    %v2960 = vmul.f32 %v2954, %v2947
    %v2961 = vmul.f32 %v2954, %v2948
    %v2962 = vmul.f32 %v2954, %v2949
    %v2963 = vmul.f32 %v2954, %v2950
    %v2964 = vmul.f32 %v2954, %v2951
    %v2965 = vmul.f32 %v2954, %v2952
    %v2966 = vadd.f32 %v2931, %v2955
    %v2967 = vadd.f32 %v2932, %v2956
    %v2968 = vadd.f32 %v2933, %v2957
    %v2969 = vadd.f32 %v2934, %v2958
    %v2970 = vadd.f32 %v2935, %v2959
    %v2971 = vadd.f32 %v2936, %v2960
    %v2972 = vadd.f32 %v2937, %v2961
    %v2973 = vadd.f32 %v2938, %v2962
    %v2974 = vadd.f32 %v2939, %v2963
    %v2975 = vadd.f32 %v2940, %v2964
    %v2976 = vadd.f32 %v2941, %v2965
    %v2977 = vld [vmem:[%s1769] sm:$0xff]
    %v2978 = vld [vmem:[%s1769 + $0x8] sm:$0xff]
    %v2979 = vld [vmem:[%s1769 + $0x10] sm:$0xff]
    %v2980 = vld [vmem:[%s1769 + $0x18] sm:$0xff]
    %v2981 = vld [vmem:[%s1769 + $0x20] sm:$0xff]
    %v2982 = vld [vmem:[%s1769 + $0x28] sm:$0xff]
    %v2983 = vld [vmem:[%s1769 + $0x30] sm:$0xff]
    %v2984 = vld [vmem:[%s1769 + $0x38] sm:$0xff]
    %v2985 = vld [vmem:[%s1769 + $0x40] sm:$0xff]
    %v2986 = vld [vmem:[%s1769 + $0x48] sm:$0xff]
    %v2987 = vld [vmem:[%s1769 + $0x50] sm:$0x7f]
    %s2988 = sld [smem:[#allocation26 + $0x84]]
    %v2989 = vstv %s2988
    %v2990 = vmul.f32 %v2989, %v2977
    %v2991 = vmul.f32 %v2989, %v2978
    %v2992 = vmul.f32 %v2989, %v2979
    %v2993 = vmul.f32 %v2989, %v2980
    %v2994 = vmul.f32 %v2989, %v2981
    %v2995 = vmul.f32 %v2989, %v2982
    %v2996 = vmul.f32 %v2989, %v2983
    %v2997 = vmul.f32 %v2989, %v2984
    %v2998 = vmul.f32 %v2989, %v2985
    %v2999 = vmul.f32 %v2989, %v2986
    %v3000 = vmul.f32 %v2989, %v2987
    %v3001 = vadd.f32 %v2966, %v2990
    %v3002 = vadd.f32 %v2967, %v2991
    %v3003 = vadd.f32 %v2968, %v2992
    %v3004 = vadd.f32 %v2969, %v2993
    %v3005 = vadd.f32 %v2970, %v2994
    %v3006 = vadd.f32 %v2971, %v2995
    %v3007 = vadd.f32 %v2972, %v2996
    %v3008 = vadd.f32 %v2973, %v2997
    %v3009 = vadd.f32 %v2974, %v2998
    %v3010 = vadd.f32 %v2975, %v2999
    %v3011 = vadd.f32 %v2976, %v3000
    %v3012 = vld [vmem:[%s1757] sm:$0xff]
    %v3013 = vld [vmem:[%s1757 + $0x8] sm:$0xff]
    %v3014 = vld [vmem:[%s1757 + $0x10] sm:$0xff]
    %v3015 = vld [vmem:[%s1757 + $0x18] sm:$0xff]
    %v3016 = vld [vmem:[%s1757 + $0x20] sm:$0xff]
    %v3017 = vld [vmem:[%s1757 + $0x28] sm:$0xff]
    %v3018 = vld [vmem:[%s1757 + $0x30] sm:$0xff]
    %v3019 = vld [vmem:[%s1757 + $0x38] sm:$0xff]
    %v3020 = vld [vmem:[%s1757 + $0x40] sm:$0xff]
    %v3021 = vld [vmem:[%s1757 + $0x48] sm:$0xff]
    %v3022 = vld [vmem:[%s1757 + $0x50] sm:$0x7f]
    %s3023 = sld [smem:[#allocation26 + $0x85]]
    %v3024 = vstv %s3023
    %v3025 = vmul.f32 %v3024, %v3012
    %v3026 = vmul.f32 %v3024, %v3013
    %v3027 = vmul.f32 %v3024, %v3014
    %v3028 = vmul.f32 %v3024, %v3015
    %v3029 = vmul.f32 %v3024, %v3016
    %v3030 = vmul.f32 %v3024, %v3017
    %v3031 = vmul.f32 %v3024, %v3018
    %v3032 = vmul.f32 %v3024, %v3019
    %v3033 = vmul.f32 %v3024, %v3020
    %v3034 = vmul.f32 %v3024, %v3021
    %v3035 = vmul.f32 %v3024, %v3022
    %v3036 = vadd.f32 %v3001, %v3025
    %v3037 = vadd.f32 %v3002, %v3026
    %v3038 = vadd.f32 %v3003, %v3027
    %v3039 = vadd.f32 %v3004, %v3028
    %v3040 = vadd.f32 %v3005, %v3029
    %v3041 = vadd.f32 %v3006, %v3030
    %v3042 = vadd.f32 %v3007, %v3031
    %v3043 = vadd.f32 %v3008, %v3032
    %v3044 = vadd.f32 %v3009, %v3033
    %v3045 = vadd.f32 %v3010, %v3034
    %v3046 = vadd.f32 %v3011, %v3035
    %v3047 = vld [vmem:[#allocation33 + $0x1] sm:$0xff]
    %v3048 = vld [vmem:[#allocation33 + $0x9] sm:$0xff]
    %v3049 = vld [vmem:[#allocation33 + $0x11] sm:$0xff]
    %v3050 = vld [vmem:[#allocation33 + $0x19] sm:$0xff]
    %v3051 = vld [vmem:[#allocation33 + $0x21] sm:$0xff]
    %v3052 = vld [vmem:[#allocation33 + $0x29] sm:$0xff]
    %v3053 = vld [vmem:[#allocation33 + $0x31] sm:$0xff]
    %v3054 = vld [vmem:[#allocation33 + $0x39] sm:$0xff]
    %v3055 = vld [vmem:[#allocation33 + $0x41] sm:$0xff]
    %v3056 = vld [vmem:[#allocation33 + $0x49] sm:$0xff]
    %v3057 = vld [vmem:[#allocation33 + $0x51] sm:$0x7f]
    %s3058 = sld [smem:[#allocation26 + $0x86]]
    %v3059 = vstv %s3058
    %v3060 = vmul.f32 %v3059, %v3047
    %v3061 = vmul.f32 %v3059, %v3048
    %v3062 = vmul.f32 %v3059, %v3049
    %v3063 = vmul.f32 %v3059, %v3050
    %v3064 = vmul.f32 %v3059, %v3051
    %v3065 = vmul.f32 %v3059, %v3052
    %v3066 = vmul.f32 %v3059, %v3053
    %v3067 = vmul.f32 %v3059, %v3054
    %v3068 = vmul.f32 %v3059, %v3055
    %v3069 = vmul.f32 %v3059, %v3056
    %v3070 = vmul.f32 %v3059, %v3057
    %v3071 = vadd.f32 %v3036, %v3060
    %v3072 = vadd.f32 %v3037, %v3061
    %v3073 = vadd.f32 %v3038, %v3062
    %v3074 = vadd.f32 %v3039, %v3063
    %v3075 = vadd.f32 %v3040, %v3064
    %v3076 = vadd.f32 %v3041, %v3065
    %v3077 = vadd.f32 %v3042, %v3066
    %v3078 = vadd.f32 %v3043, %v3067
    %v3079 = vadd.f32 %v3044, %v3068
    %v3080 = vadd.f32 %v3045, %v3069
    %v3081 = vadd.f32 %v3046, %v3070
    %v3082 = vld [vmem:[%s1633 + $0x1] sm:$0xff]
    %v3083 = vld [vmem:[%s1633 + $0x9] sm:$0xff]
    %v3084 = vld [vmem:[%s1633 + $0x11] sm:$0xff]
    %v3085 = vld [vmem:[%s1633 + $0x19] sm:$0xff]
    %v3086 = vld [vmem:[%s1633 + $0x21] sm:$0xff]
    %v3087 = vld [vmem:[%s1633 + $0x29] sm:$0xff]
    %v3088 = vld [vmem:[%s1633 + $0x31] sm:$0xff]
    %v3089 = vld [vmem:[%s1633 + $0x39] sm:$0xff]
    %v3090 = vld [vmem:[%s1633 + $0x41] sm:$0xff]
    %v3091 = vld [vmem:[%s1633 + $0x49] sm:$0xff]
    %v3092 = vld [vmem:[%s1633 + $0x51] sm:$0x7f]
    %s3093 = sld [smem:[#allocation26 + $0x87]]
    %v3094 = vstv %s3093
    %v3095 = vmul.f32 %v3094, %v3082
    %v3096 = vmul.f32 %v3094, %v3083
    %v3097 = vmul.f32 %v3094, %v3084
    %v3098 = vmul.f32 %v3094, %v3085
    %v3099 = vmul.f32 %v3094, %v3086
    %v3100 = vmul.f32 %v3094, %v3087
    %v3101 = vmul.f32 %v3094, %v3088
    %v3102 = vmul.f32 %v3094, %v3089
    %v3103 = vmul.f32 %v3094, %v3090
    %v3104 = vmul.f32 %v3094, %v3091
    %v3105 = vmul.f32 %v3094, %v3092
    %v3106 = vadd.f32 %v3071, %v3095
    %v3107 = vadd.f32 %v3072, %v3096
    %v3108 = vadd.f32 %v3073, %v3097
    %v3109 = vadd.f32 %v3074, %v3098
    %v3110 = vadd.f32 %v3075, %v3099
    %v3111 = vadd.f32 %v3076, %v3100
    %v3112 = vadd.f32 %v3077, %v3101
    %v3113 = vadd.f32 %v3078, %v3102
    %v3114 = vadd.f32 %v3079, %v3103
    %v3115 = vadd.f32 %v3080, %v3104
    %v3116 = vadd.f32 %v3081, %v3105
    %v3117 = vld [vmem:[#allocation2 + $0x1] sm:$0xff]
    %v3118 = vld [vmem:[#allocation2 + $0x9] sm:$0xff]
    %v3119 = vld [vmem:[#allocation2 + $0x11] sm:$0xff]
    %v3120 = vld [vmem:[#allocation2 + $0x19] sm:$0xff]
    %v3121 = vld [vmem:[#allocation2 + $0x21] sm:$0xff]
    %v3122 = vld [vmem:[#allocation2 + $0x29] sm:$0xff]
    %v3123 = vld [vmem:[#allocation2 + $0x31] sm:$0xff]
    %v3124 = vld [vmem:[#allocation2 + $0x39] sm:$0xff]
    %v3125 = vld [vmem:[#allocation2 + $0x41] sm:$0xff]
    %v3126 = vld [vmem:[#allocation2 + $0x49] sm:$0xff]
    %v3127 = vld [vmem:[#allocation2 + $0x51] sm:$0x7f]
    %s3128 = sld [smem:[#allocation26 + $0x88]]
    %v3129 = vstv %s3128
    %v3130 = vmul.f32 %v3129, %v3117
    %v3131 = vmul.f32 %v3129, %v3118
    %v3132 = vmul.f32 %v3129, %v3119
    %v3133 = vmul.f32 %v3129, %v3120
    %v3134 = vmul.f32 %v3129, %v3121
    %v3135 = vmul.f32 %v3129, %v3122
    %v3136 = vmul.f32 %v3129, %v3123
    %v3137 = vmul.f32 %v3129, %v3124
    %v3138 = vmul.f32 %v3129, %v3125
    %v3139 = vmul.f32 %v3129, %v3126
    %v3140 = vmul.f32 %v3129, %v3127
    %v3141 = vadd.f32 %v3106, %v3130
    %v3142 = vadd.f32 %v3107, %v3131
    %v3143 = vadd.f32 %v3108, %v3132
    %v3144 = vadd.f32 %v3109, %v3133
    %v3145 = vadd.f32 %v3110, %v3134
    %v3146 = vadd.f32 %v3111, %v3135
    %v3147 = vadd.f32 %v3112, %v3136
    %v3148 = vadd.f32 %v3113, %v3137
    %v3149 = vadd.f32 %v3114, %v3138
    %v3150 = vadd.f32 %v3115, %v3139
    %v3151 = vadd.f32 %v3116, %v3140
    %v3152 = vmul.f32 %v2860, %v2872
    %v3153 = vmul.f32 %v2860, %v2873
    %v3154 = vmul.f32 %v2860, %v2874
    %v3155 = vmul.f32 %v2860, %v2875
    %v3156 = vmul.f32 %v2860, %v2876
    %v3157 = vmul.f32 %v2860, %v2877
    %v3158 = vmul.f32 %v2860, %v2878
    %v3159 = vmul.f32 %v2860, %v2879
    %v3160 = vmul.f32 %v2860, %v2880
    %v3161 = vmul.f32 %v2860, %v2881
    %v3162 = vmul.f32 %v2860, %v2882
    %v3163 = vmul.f32 %v2884, %v2907
    %v3164 = vmul.f32 %v2884, %v2908
    %v3165 = vmul.f32 %v2884, %v2909
    %v3166 = vmul.f32 %v2884, %v2910
    %v3167 = vmul.f32 %v2884, %v2911
    %v3168 = vmul.f32 %v2884, %v2912
    %v3169 = vmul.f32 %v2884, %v2913
    %v3170 = vmul.f32 %v2884, %v2914
    %v3171 = vmul.f32 %v2884, %v2915
    %v3172 = vmul.f32 %v2884, %v2916
    %v3173 = vmul.f32 %v2884, %v2917
    %v3174 = vadd.f32 %v3152, %v3163
    %v3175 = vadd.f32 %v3153, %v3164
    %v3176 = vadd.f32 %v3154, %v3165
    %v3177 = vadd.f32 %v3155, %v3166
    %v3178 = vadd.f32 %v3156, %v3167
    %v3179 = vadd.f32 %v3157, %v3168
    %v3180 = vadd.f32 %v3158, %v3169
    %v3181 = vadd.f32 %v3159, %v3170
    %v3182 = vadd.f32 %v3160, %v3171
    %v3183 = vadd.f32 %v3161, %v3172
    %v3184 = vadd.f32 %v3162, %v3173
    %v3185 = vld [vmem:[%s1689] sm:$0xff]
    %v3186 = vld [vmem:[%s1689 + $0x8] sm:$0xff]
    %v3187 = vld [vmem:[%s1689 + $0x10] sm:$0xff]
    %v3188 = vld [vmem:[%s1689 + $0x18] sm:$0xff]
    %v3189 = vld [vmem:[%s1689 + $0x20] sm:$0xff]
    %v3190 = vld [vmem:[%s1689 + $0x28] sm:$0xff]
    %v3191 = vld [vmem:[%s1689 + $0x30] sm:$0xff]
    %v3192 = vld [vmem:[%s1689 + $0x38] sm:$0xff]
    %v3193 = vld [vmem:[%s1689 + $0x40] sm:$0xff]
    %v3194 = vld [vmem:[%s1689 + $0x48] sm:$0xff]
    %v3195 = vld [vmem:[%s1689 + $0x50] sm:$0x7f]
    %v3196 = vmul.f32 %v2919, %v3185
    %v3197 = vmul.f32 %v2919, %v3186
    %v3198 = vmul.f32 %v2919, %v3187
    %v3199 = vmul.f32 %v2919, %v3188
    %v3200 = vmul.f32 %v2919, %v3189
    %v3201 = vmul.f32 %v2919, %v3190
    %v3202 = vmul.f32 %v2919, %v3191
    %v3203 = vmul.f32 %v2919, %v3192
    %v3204 = vmul.f32 %v2919, %v3193
    %v3205 = vmul.f32 %v2919, %v3194
    %v3206 = vmul.f32 %v2919, %v3195
    %v3207 = vadd.f32 %v3174, %v3196
    %v3208 = vadd.f32 %v3175, %v3197
    %v3209 = vadd.f32 %v3176, %v3198
    %v3210 = vadd.f32 %v3177, %v3199
    %v3211 = vadd.f32 %v3178, %v3200
    %v3212 = vadd.f32 %v3179, %v3201
    %v3213 = vadd.f32 %v3180, %v3202
    %v3214 = vadd.f32 %v3181, %v3203
    %v3215 = vadd.f32 %v3182, %v3204
    %v3216 = vadd.f32 %v3183, %v3205
    %v3217 = vadd.f32 %v3184, %v3206
    %v3218 = vmul.f32 %v2954, %v2977
    %v3219 = vmul.f32 %v2954, %v2978
    %v3220 = vmul.f32 %v2954, %v2979
    %v3221 = vmul.f32 %v2954, %v2980
    %v3222 = vmul.f32 %v2954, %v2981
    %v3223 = vmul.f32 %v2954, %v2982
    %v3224 = vmul.f32 %v2954, %v2983
    %v3225 = vmul.f32 %v2954, %v2984
    %v3226 = vmul.f32 %v2954, %v2985
    %v3227 = vmul.f32 %v2954, %v2986
    %v3228 = vmul.f32 %v2954, %v2987
    %v3229 = vadd.f32 %v3207, %v3218
    %v3230 = vadd.f32 %v3208, %v3219
    %v3231 = vadd.f32 %v3209, %v3220
    %v3232 = vadd.f32 %v3210, %v3221
    %v3233 = vadd.f32 %v3211, %v3222
    %v3234 = vadd.f32 %v3212, %v3223
    %v3235 = vadd.f32 %v3213, %v3224
    %v3236 = vadd.f32 %v3214, %v3225
    %v3237 = vadd.f32 %v3215, %v3226
    %v3238 = vadd.f32 %v3216, %v3227
    %v3239 = vadd.f32 %v3217, %v3228
    %v3240 = vmul.f32 %v2989, %v3012
    %v3241 = vmul.f32 %v2989, %v3013
    %v3242 = vmul.f32 %v2989, %v3014
    %v3243 = vmul.f32 %v2989, %v3015
    %v3244 = vmul.f32 %v2989, %v3016
    %v3245 = vmul.f32 %v2989, %v3017
    %v3246 = vmul.f32 %v2989, %v3018
    %v3247 = vmul.f32 %v2989, %v3019
    %v3248 = vmul.f32 %v2989, %v3020
    %v3249 = vmul.f32 %v2989, %v3021
    %v3250 = vmul.f32 %v2989, %v3022
    %v3251 = vadd.f32 %v3229, %v3240
    %v3252 = vadd.f32 %v3230, %v3241
    %v3253 = vadd.f32 %v3231, %v3242
    %v3254 = vadd.f32 %v3232, %v3243
    %v3255 = vadd.f32 %v3233, %v3244
    %v3256 = vadd.f32 %v3234, %v3245
    %v3257 = vadd.f32 %v3235, %v3246
    %v3258 = vadd.f32 %v3236, %v3247
    %v3259 = vadd.f32 %v3237, %v3248
    %v3260 = vadd.f32 %v3238, %v3249
    %v3261 = vadd.f32 %v3239, %v3250
    %v3262 = vld [vmem:[%s1825] sm:$0xff]
    %v3263 = vld [vmem:[%s1825 + $0x8] sm:$0xff]
    %v3264 = vld [vmem:[%s1825 + $0x10] sm:$0xff]
    %v3265 = vld [vmem:[%s1825 + $0x18] sm:$0xff]
    %v3266 = vld [vmem:[%s1825 + $0x20] sm:$0xff]
    %v3267 = vld [vmem:[%s1825 + $0x28] sm:$0xff]
    %v3268 = vld [vmem:[%s1825 + $0x30] sm:$0xff]
    %v3269 = vld [vmem:[%s1825 + $0x38] sm:$0xff]
    %v3270 = vld [vmem:[%s1825 + $0x40] sm:$0xff]
    %v3271 = vld [vmem:[%s1825 + $0x48] sm:$0xff]
    %v3272 = vld [vmem:[%s1825 + $0x50] sm:$0x7f]
    %v3273 = vmul.f32 %v3024, %v3262
    %v3274 = vmul.f32 %v3024, %v3263
    %v3275 = vmul.f32 %v3024, %v3264
    %v3276 = vmul.f32 %v3024, %v3265
    %v3277 = vmul.f32 %v3024, %v3266
    %v3278 = vmul.f32 %v3024, %v3267
    %v3279 = vmul.f32 %v3024, %v3268
    %v3280 = vmul.f32 %v3024, %v3269
    %v3281 = vmul.f32 %v3024, %v3270
    %v3282 = vmul.f32 %v3024, %v3271
    %v3283 = vmul.f32 %v3024, %v3272
    %v3284 = vadd.f32 %v3251, %v3273
    %v3285 = vadd.f32 %v3252, %v3274
    %v3286 = vadd.f32 %v3253, %v3275
    %v3287 = vadd.f32 %v3254, %v3276
    %v3288 = vadd.f32 %v3255, %v3277
    %v3289 = vadd.f32 %v3256, %v3278
    %v3290 = vadd.f32 %v3257, %v3279
    %v3291 = vadd.f32 %v3258, %v3280
    %v3292 = vadd.f32 %v3259, %v3281
    %v3293 = vadd.f32 %v3260, %v3282
    %v3294 = vadd.f32 %v3261, %v3283
    %v3295 = vmul.f32 %v3059, %v3082
    %v3296 = vmul.f32 %v3059, %v3083
    %v3297 = vmul.f32 %v3059, %v3084
    %v3298 = vmul.f32 %v3059, %v3085
    %v3299 = vmul.f32 %v3059, %v3086
    %v3300 = vmul.f32 %v3059, %v3087
    %v3301 = vmul.f32 %v3059, %v3088
    %v3302 = vmul.f32 %v3059, %v3089
    %v3303 = vmul.f32 %v3059, %v3090
    %v3304 = vmul.f32 %v3059, %v3091
    %v3305 = vmul.f32 %v3059, %v3092
    %v3306 = vadd.f32 %v3284, %v3295
    %v3307 = vadd.f32 %v3285, %v3296
    %v3308 = vadd.f32 %v3286, %v3297
    %v3309 = vadd.f32 %v3287, %v3298
    %v3310 = vadd.f32 %v3288, %v3299
    %v3311 = vadd.f32 %v3289, %v3300
    %v3312 = vadd.f32 %v3290, %v3301
    %v3313 = vadd.f32 %v3291, %v3302
    %v3314 = vadd.f32 %v3292, %v3303
    %v3315 = vadd.f32 %v3293, %v3304
    %v3316 = vadd.f32 %v3294, %v3305
    %v3317 = vmul.f32 %v3094, %v3117
    %v3318 = vmul.f32 %v3094, %v3118
    %v3319 = vmul.f32 %v3094, %v3119
    %v3320 = vmul.f32 %v3094, %v3120
    %v3321 = vmul.f32 %v3094, %v3121
    %v3322 = vmul.f32 %v3094, %v3122
    %v3323 = vmul.f32 %v3094, %v3123
    %v3324 = vmul.f32 %v3094, %v3124
    %v3325 = vmul.f32 %v3094, %v3125
    %v3326 = vmul.f32 %v3094, %v3126
    %v3327 = vmul.f32 %v3094, %v3127
    %v3328 = vadd.f32 %v3306, %v3317
    %v3329 = vadd.f32 %v3307, %v3318
    %v3330 = vadd.f32 %v3308, %v3319
    %v3331 = vadd.f32 %v3309, %v3320
    %v3332 = vadd.f32 %v3310, %v3321
    %v3333 = vadd.f32 %v3311, %v3322
    %v3334 = vadd.f32 %v3312, %v3323
    %v3335 = vadd.f32 %v3313, %v3324
    %v3336 = vadd.f32 %v3314, %v3325
    %v3337 = vadd.f32 %v3315, %v3326
    %v3338 = vadd.f32 %v3316, %v3327
    %v3339 = vld [vmem:[%s1689 + $0x1] sm:$0xff]
    %v3340 = vld [vmem:[%s1689 + $0x9] sm:$0xff]
    %v3341 = vld [vmem:[%s1689 + $0x11] sm:$0xff]
    %v3342 = vld [vmem:[%s1689 + $0x19] sm:$0xff]
    %v3343 = vld [vmem:[%s1689 + $0x21] sm:$0xff]
    %v3344 = vld [vmem:[%s1689 + $0x29] sm:$0xff]
    %v3345 = vld [vmem:[%s1689 + $0x31] sm:$0xff]
    %v3346 = vld [vmem:[%s1689 + $0x39] sm:$0xff]
    %v3347 = vld [vmem:[%s1689 + $0x41] sm:$0xff]
    %v3348 = vld [vmem:[%s1689 + $0x49] sm:$0xff]
    %v3349 = vld [vmem:[%s1689 + $0x51] sm:$0x7f]
    %v3350 = vmul.f32 %v3129, %v3339
    %v3351 = vmul.f32 %v3129, %v3340
    %v3352 = vmul.f32 %v3129, %v3341
    %v3353 = vmul.f32 %v3129, %v3342
    %v3354 = vmul.f32 %v3129, %v3343
    %v3355 = vmul.f32 %v3129, %v3344
    %v3356 = vmul.f32 %v3129, %v3345
    %v3357 = vmul.f32 %v3129, %v3346
    %v3358 = vmul.f32 %v3129, %v3347
    %v3359 = vmul.f32 %v3129, %v3348
    %v3360 = vmul.f32 %v3129, %v3349
    %v3361 = vadd.f32 %v3328, %v3350
    %v3362 = vadd.f32 %v3329, %v3351
    %v3363 = vadd.f32 %v3330, %v3352
    %v3364 = vadd.f32 %v3331, %v3353
    %v3365 = vadd.f32 %v3332, %v3354
    %v3366 = vadd.f32 %v3333, %v3355
    %v3367 = vadd.f32 %v3334, %v3356
    %v3368 = vadd.f32 %v3335, %v3357
    %v3369 = vadd.f32 %v3336, %v3358
    %v3370 = vadd.f32 %v3337, %v3359
    %v3371 = vadd.f32 %v3338, %v3360
    %v3372 = vmax.f32 %v3141, %v3361
    %v3373 = vmax.f32 %v3142, %v3362
    %v3374 = vmax.f32 %v3143, %v3363
    %v3375 = vmax.f32 %v3144, %v3364
    %v3376 = vmax.f32 %v3145, %v3365
    %v3377 = vmax.f32 %v3146, %v3366
    %v3378 = vmax.f32 %v3147, %v3367
    %v3379 = vmax.f32 %v3148, %v3368
    %v3380 = vmax.f32 %v3149, %v3369
    %v3381 = vmax.f32 %v3150, %v3370
    %v3382 = vmax.f32 %v3151, %v3371
    %v3383 = vmul.f32 %v2860, %v2942
    %v3384 = vmul.f32 %v2860, %v2943
    %v3385 = vmul.f32 %v2860, %v2944
    %v3386 = vmul.f32 %v2860, %v2945
    %v3387 = vmul.f32 %v2860, %v2946
    %v3388 = vmul.f32 %v2860, %v2947
    %v3389 = vmul.f32 %v2860, %v2948
    %v3390 = vmul.f32 %v2860, %v2949
    %v3391 = vmul.f32 %v2860, %v2950
    %v3392 = vmul.f32 %v2860, %v2951
    %v3393 = vmul.f32 %v2860, %v2952
    %v3394 = vmul.f32 %v2884, %v2977
    %v3395 = vmul.f32 %v2884, %v2978
    %v3396 = vmul.f32 %v2884, %v2979
    %v3397 = vmul.f32 %v2884, %v2980
    %v3398 = vmul.f32 %v2884, %v2981
    %v3399 = vmul.f32 %v2884, %v2982
    %v3400 = vmul.f32 %v2884, %v2983
    %v3401 = vmul.f32 %v2884, %v2984
    %v3402 = vmul.f32 %v2884, %v2985
    %v3403 = vmul.f32 %v2884, %v2986
    %v3404 = vmul.f32 %v2884, %v2987
    %v3405 = vadd.f32 %v3383, %v3394
    %v3406 = vadd.f32 %v3384, %v3395
    %v3407 = vadd.f32 %v3385, %v3396
    %v3408 = vadd.f32 %v3386, %v3397
    %v3409 = vadd.f32 %v3387, %v3398
    %v3410 = vadd.f32 %v3388, %v3399
    %v3411 = vadd.f32 %v3389, %v3400
    %v3412 = vadd.f32 %v3390, %v3401
    %v3413 = vadd.f32 %v3391, %v3402
    %v3414 = vadd.f32 %v3392, %v3403
    %v3415 = vadd.f32 %v3393, %v3404
    %v3416 = vmul.f32 %v2919, %v3012
    %v3417 = vmul.f32 %v2919, %v3013
    %v3418 = vmul.f32 %v2919, %v3014
    %v3419 = vmul.f32 %v2919, %v3015
    %v3420 = vmul.f32 %v2919, %v3016
    %v3421 = vmul.f32 %v2919, %v3017
    %v3422 = vmul.f32 %v2919, %v3018
    %v3423 = vmul.f32 %v2919, %v3019
    %v3424 = vmul.f32 %v2919, %v3020
    %v3425 = vmul.f32 %v2919, %v3021
    %v3426 = vmul.f32 %v2919, %v3022
    %v3427 = vadd.f32 %v3405, %v3416
    %v3428 = vadd.f32 %v3406, %v3417
    %v3429 = vadd.f32 %v3407, %v3418
    %v3430 = vadd.f32 %v3408, %v3419
    %v3431 = vadd.f32 %v3409, %v3420
    %v3432 = vadd.f32 %v3410, %v3421
    %v3433 = vadd.f32 %v3411, %v3422
    %v3434 = vadd.f32 %v3412, %v3423
    %v3435 = vadd.f32 %v3413, %v3424
    %v3436 = vadd.f32 %v3414, %v3425
    %v3437 = vadd.f32 %v3415, %v3426
    %v3438 = vmul.f32 %v2954, %v3047
    %v3439 = vmul.f32 %v2954, %v3048
    %v3440 = vmul.f32 %v2954, %v3049
    %v3441 = vmul.f32 %v2954, %v3050
    %v3442 = vmul.f32 %v2954, %v3051
    %v3443 = vmul.f32 %v2954, %v3052
    %v3444 = vmul.f32 %v2954, %v3053
    %v3445 = vmul.f32 %v2954, %v3054
    %v3446 = vmul.f32 %v2954, %v3055
    %v3447 = vmul.f32 %v2954, %v3056
    %v3448 = vmul.f32 %v2954, %v3057
    %v3449 = vadd.f32 %v3427, %v3438
    %v3450 = vadd.f32 %v3428, %v3439
    %v3451 = vadd.f32 %v3429, %v3440
    %v3452 = vadd.f32 %v3430, %v3441
    %v3453 = vadd.f32 %v3431, %v3442
    %v3454 = vadd.f32 %v3432, %v3443
    %v3455 = vadd.f32 %v3433, %v3444
    %v3456 = vadd.f32 %v3434, %v3445
    %v3457 = vadd.f32 %v3435, %v3446
    %v3458 = vadd.f32 %v3436, %v3447
    %v3459 = vadd.f32 %v3437, %v3448
    %v3460 = vmul.f32 %v2989, %v3082
    %v3461 = vmul.f32 %v2989, %v3083
    %v3462 = vmul.f32 %v2989, %v3084
    %v3463 = vmul.f32 %v2989, %v3085
    %v3464 = vmul.f32 %v2989, %v3086
    %v3465 = vmul.f32 %v2989, %v3087
    %v3466 = vmul.f32 %v2989, %v3088
    %v3467 = vmul.f32 %v2989, %v3089
    %v3468 = vmul.f32 %v2989, %v3090
    %v3469 = vmul.f32 %v2989, %v3091
    %v3470 = vmul.f32 %v2989, %v3092
    %v3471 = vadd.f32 %v3449, %v3460
    %v3472 = vadd.f32 %v3450, %v3461
    %v3473 = vadd.f32 %v3451, %v3462
    %v3474 = vadd.f32 %v3452, %v3463
    %v3475 = vadd.f32 %v3453, %v3464
    %v3476 = vadd.f32 %v3454, %v3465
    %v3477 = vadd.f32 %v3455, %v3466
    %v3478 = vadd.f32 %v3456, %v3467
    %v3479 = vadd.f32 %v3457, %v3468
    %v3480 = vadd.f32 %v3458, %v3469
    %v3481 = vadd.f32 %v3459, %v3470
    %v3482 = vmul.f32 %v3024, %v3117
    %v3483 = vmul.f32 %v3024, %v3118
    %v3484 = vmul.f32 %v3024, %v3119
    %v3485 = vmul.f32 %v3024, %v3120
    %v3486 = vmul.f32 %v3024, %v3121
    %v3487 = vmul.f32 %v3024, %v3122
    %v3488 = vmul.f32 %v3024, %v3123
    %v3489 = vmul.f32 %v3024, %v3124
    %v3490 = vmul.f32 %v3024, %v3125
    %v3491 = vmul.f32 %v3024, %v3126
    %v3492 = vmul.f32 %v3024, %v3127
    %v3493 = vadd.f32 %v3471, %v3482
    %v3494 = vadd.f32 %v3472, %v3483
    %v3495 = vadd.f32 %v3473, %v3484
    %v3496 = vadd.f32 %v3474, %v3485
    %v3497 = vadd.f32 %v3475, %v3486
    %v3498 = vadd.f32 %v3476, %v3487
    %v3499 = vadd.f32 %v3477, %v3488
    %v3500 = vadd.f32 %v3478, %v3489
    %v3501 = vadd.f32 %v3479, %v3490
    %v3502 = vadd.f32 %v3480, %v3491
    %v3503 = vadd.f32 %v3481, %v3492
    %v3504 = vld [vmem:[%s1701 + $0x1] sm:$0xff]
    %v3505 = vld [vmem:[%s1701 + $0x9] sm:$0xff]
    %v3506 = vld [vmem:[%s1701 + $0x11] sm:$0xff]
    %v3507 = vld [vmem:[%s1701 + $0x19] sm:$0xff]
    %v3508 = vld [vmem:[%s1701 + $0x21] sm:$0xff]
    %v3509 = vld [vmem:[%s1701 + $0x29] sm:$0xff]
    %v3510 = vld [vmem:[%s1701 + $0x31] sm:$0xff]
    %v3511 = vld [vmem:[%s1701 + $0x39] sm:$0xff]
    %v3512 = vld [vmem:[%s1701 + $0x41] sm:$0xff]
    %v3513 = vld [vmem:[%s1701 + $0x49] sm:$0xff]
    %v3514 = vld [vmem:[%s1701 + $0x51] sm:$0x7f]
    %v3515 = vmul.f32 %v3059, %v3504
    %v3516 = vmul.f32 %v3059, %v3505
    %v3517 = vmul.f32 %v3059, %v3506
    %v3518 = vmul.f32 %v3059, %v3507
    %v3519 = vmul.f32 %v3059, %v3508
    %v3520 = vmul.f32 %v3059, %v3509
    %v3521 = vmul.f32 %v3059, %v3510
    %v3522 = vmul.f32 %v3059, %v3511
    %v3523 = vmul.f32 %v3059, %v3512
    %v3524 = vmul.f32 %v3059, %v3513
    %v3525 = vmul.f32 %v3059, %v3514
    %v3526 = vadd.f32 %v3493, %v3515
    %v3527 = vadd.f32 %v3494, %v3516
    %v3528 = vadd.f32 %v3495, %v3517
    %v3529 = vadd.f32 %v3496, %v3518
    %v3530 = vadd.f32 %v3497, %v3519
    %v3531 = vadd.f32 %v3498, %v3520
    %v3532 = vadd.f32 %v3499, %v3521
    %v3533 = vadd.f32 %v3500, %v3522
    %v3534 = vadd.f32 %v3501, %v3523
    %v3535 = vadd.f32 %v3502, %v3524
    %v3536 = vadd.f32 %v3503, %v3525
    %v3537 = vld [vmem:[%s1769 + $0x1] sm:$0xff]
    %v3538 = vld [vmem:[%s1769 + $0x9] sm:$0xff]
    %v3539 = vld [vmem:[%s1769 + $0x11] sm:$0xff]
    %v3540 = vld [vmem:[%s1769 + $0x19] sm:$0xff]
    %v3541 = vld [vmem:[%s1769 + $0x21] sm:$0xff]
    %v3542 = vld [vmem:[%s1769 + $0x29] sm:$0xff]
    %v3543 = vld [vmem:[%s1769 + $0x31] sm:$0xff]
    %v3544 = vld [vmem:[%s1769 + $0x39] sm:$0xff]
    %v3545 = vld [vmem:[%s1769 + $0x41] sm:$0xff]
    %v3546 = vld [vmem:[%s1769 + $0x49] sm:$0xff]
    %v3547 = vld [vmem:[%s1769 + $0x51] sm:$0x7f]
    %v3548 = vmul.f32 %v3094, %v3537
    %v3549 = vmul.f32 %v3094, %v3538
    %v3550 = vmul.f32 %v3094, %v3539
    %v3551 = vmul.f32 %v3094, %v3540
    %v3552 = vmul.f32 %v3094, %v3541
    %v3553 = vmul.f32 %v3094, %v3542
    %v3554 = vmul.f32 %v3094, %v3543
    %v3555 = vmul.f32 %v3094, %v3544
    %v3556 = vmul.f32 %v3094, %v3545
    %v3557 = vmul.f32 %v3094, %v3546
    %v3558 = vmul.f32 %v3094, %v3547
    %v3559 = vadd.f32 %v3526, %v3548
    %v3560 = vadd.f32 %v3527, %v3549
    %v3561 = vadd.f32 %v3528, %v3550
    %v3562 = vadd.f32 %v3529, %v3551
    %v3563 = vadd.f32 %v3530, %v3552
    %v3564 = vadd.f32 %v3531, %v3553
    %v3565 = vadd.f32 %v3532, %v3554
    %v3566 = vadd.f32 %v3533, %v3555
    %v3567 = vadd.f32 %v3534, %v3556
    %v3568 = vadd.f32 %v3535, %v3557
    %v3569 = vadd.f32 %v3536, %v3558
    %v3570 = vld [vmem:[%s1757 + $0x1] sm:$0xff]
    %v3571 = vld [vmem:[%s1757 + $0x9] sm:$0xff]
    %v3572 = vld [vmem:[%s1757 + $0x11] sm:$0xff]
    %v3573 = vld [vmem:[%s1757 + $0x19] sm:$0xff]
    %v3574 = vld [vmem:[%s1757 + $0x21] sm:$0xff]
    %v3575 = vld [vmem:[%s1757 + $0x29] sm:$0xff]
    %v3576 = vld [vmem:[%s1757 + $0x31] sm:$0xff]
    %v3577 = vld [vmem:[%s1757 + $0x39] sm:$0xff]
    %v3578 = vld [vmem:[%s1757 + $0x41] sm:$0xff]
    %v3579 = vld [vmem:[%s1757 + $0x49] sm:$0xff]
    %v3580 = vld [vmem:[%s1757 + $0x51] sm:$0x7f]
    %v3581 = vmul.f32 %v3129, %v3570
    %v3582 = vmul.f32 %v3129, %v3571
    %v3583 = vmul.f32 %v3129, %v3572
    %v3584 = vmul.f32 %v3129, %v3573
    %v3585 = vmul.f32 %v3129, %v3574
    %v3586 = vmul.f32 %v3129, %v3575
    %v3587 = vmul.f32 %v3129, %v3576
    %v3588 = vmul.f32 %v3129, %v3577
    %v3589 = vmul.f32 %v3129, %v3578
    %v3590 = vmul.f32 %v3129, %v3579
    %v3591 = vmul.f32 %v3129, %v3580
    %v3592 = vadd.f32 %v3559, %v3581
    %v3593 = vadd.f32 %v3560, %v3582
    %v3594 = vadd.f32 %v3561, %v3583
    %v3595 = vadd.f32 %v3562, %v3584
    %v3596 = vadd.f32 %v3563, %v3585
    %v3597 = vadd.f32 %v3564, %v3586
    %v3598 = vadd.f32 %v3565, %v3587
    %v3599 = vadd.f32 %v3566, %v3588
    %v3600 = vadd.f32 %v3567, %v3589
    %v3601 = vadd.f32 %v3568, %v3590
    %v3602 = vadd.f32 %v3569, %v3591
    %v3603 = vmax.f32 %v3372, %v3592
    %v3604 = vmax.f32 %v3373, %v3593
    %v3605 = vmax.f32 %v3374, %v3594
    %v3606 = vmax.f32 %v3375, %v3595
    %v3607 = vmax.f32 %v3376, %v3596
    %v3608 = vmax.f32 %v3377, %v3597
    %v3609 = vmax.f32 %v3378, %v3598
    %v3610 = vmax.f32 %v3379, %v3599
    %v3611 = vmax.f32 %v3380, %v3600
    %v3612 = vmax.f32 %v3381, %v3601
    %v3613 = vmax.f32 %v3382, %v3602
    %v3614 = vmul.f32 %v2860, %v2977
    %v3615 = vmul.f32 %v2860, %v2978
    %v3616 = vmul.f32 %v2860, %v2979
    %v3617 = vmul.f32 %v2860, %v2980
    %v3618 = vmul.f32 %v2860, %v2981
    %v3619 = vmul.f32 %v2860, %v2982
    %v3620 = vmul.f32 %v2860, %v2983
    %v3621 = vmul.f32 %v2860, %v2984
    %v3622 = vmul.f32 %v2860, %v2985
    %v3623 = vmul.f32 %v2860, %v2986
    %v3624 = vmul.f32 %v2860, %v2987
    %v3625 = vmul.f32 %v2884, %v3012
    %v3626 = vmul.f32 %v2884, %v3013
    %v3627 = vmul.f32 %v2884, %v3014
    %v3628 = vmul.f32 %v2884, %v3015
    %v3629 = vmul.f32 %v2884, %v3016
    %v3630 = vmul.f32 %v2884, %v3017
    %v3631 = vmul.f32 %v2884, %v3018
    %v3632 = vmul.f32 %v2884, %v3019
    %v3633 = vmul.f32 %v2884, %v3020
    %v3634 = vmul.f32 %v2884, %v3021
    %v3635 = vmul.f32 %v2884, %v3022
    %v3636 = vadd.f32 %v3614, %v3625
    %v3637 = vadd.f32 %v3615, %v3626
    %v3638 = vadd.f32 %v3616, %v3627
    %v3639 = vadd.f32 %v3617, %v3628
    %v3640 = vadd.f32 %v3618, %v3629
    %v3641 = vadd.f32 %v3619, %v3630
    %v3642 = vadd.f32 %v3620, %v3631
    %v3643 = vadd.f32 %v3621, %v3632
    %v3644 = vadd.f32 %v3622, %v3633
    %v3645 = vadd.f32 %v3623, %v3634
    %v3646 = vadd.f32 %v3624, %v3635
    %v3647 = vmul.f32 %v2919, %v3262
    %v3648 = vmul.f32 %v2919, %v3263
    %v3649 = vmul.f32 %v2919, %v3264
    %v3650 = vmul.f32 %v2919, %v3265
    %v3651 = vmul.f32 %v2919, %v3266
    %v3652 = vmul.f32 %v2919, %v3267
    %v3653 = vmul.f32 %v2919, %v3268
    %v3654 = vmul.f32 %v2919, %v3269
    %v3655 = vmul.f32 %v2919, %v3270
    %v3656 = vmul.f32 %v2919, %v3271
    %v3657 = vmul.f32 %v2919, %v3272
    %v3658 = vadd.f32 %v3636, %v3647
    %v3659 = vadd.f32 %v3637, %v3648
    %v3660 = vadd.f32 %v3638, %v3649
    %v3661 = vadd.f32 %v3639, %v3650
    %v3662 = vadd.f32 %v3640, %v3651
    %v3663 = vadd.f32 %v3641, %v3652
    %v3664 = vadd.f32 %v3642, %v3653
    %v3665 = vadd.f32 %v3643, %v3654
    %v3666 = vadd.f32 %v3644, %v3655
    %v3667 = vadd.f32 %v3645, %v3656
    %v3668 = vadd.f32 %v3646, %v3657
    %v3669 = vmul.f32 %v2954, %v3082
    %v3670 = vmul.f32 %v2954, %v3083
    %v3671 = vmul.f32 %v2954, %v3084
    %v3672 = vmul.f32 %v2954, %v3085
    %v3673 = vmul.f32 %v2954, %v3086
    %v3674 = vmul.f32 %v2954, %v3087
    %v3675 = vmul.f32 %v2954, %v3088
    %v3676 = vmul.f32 %v2954, %v3089
    %v3677 = vmul.f32 %v2954, %v3090
    %v3678 = vmul.f32 %v2954, %v3091
    %v3679 = vmul.f32 %v2954, %v3092
    %v3680 = vadd.f32 %v3658, %v3669
    %v3681 = vadd.f32 %v3659, %v3670
    %v3682 = vadd.f32 %v3660, %v3671
    %v3683 = vadd.f32 %v3661, %v3672
    %v3684 = vadd.f32 %v3662, %v3673
    %v3685 = vadd.f32 %v3663, %v3674
    %v3686 = vadd.f32 %v3664, %v3675
    %v3687 = vadd.f32 %v3665, %v3676
    %v3688 = vadd.f32 %v3666, %v3677
    %v3689 = vadd.f32 %v3667, %v3678
    %v3690 = vadd.f32 %v3668, %v3679
    %v3691 = vmul.f32 %v2989, %v3117
    %v3692 = vmul.f32 %v2989, %v3118
    %v3693 = vmul.f32 %v2989, %v3119
    %v3694 = vmul.f32 %v2989, %v3120
    %v3695 = vmul.f32 %v2989, %v3121
    %v3696 = vmul.f32 %v2989, %v3122
    %v3697 = vmul.f32 %v2989, %v3123
    %v3698 = vmul.f32 %v2989, %v3124
    %v3699 = vmul.f32 %v2989, %v3125
    %v3700 = vmul.f32 %v2989, %v3126
    %v3701 = vmul.f32 %v2989, %v3127
    %v3702 = vadd.f32 %v3680, %v3691
    %v3703 = vadd.f32 %v3681, %v3692
    %v3704 = vadd.f32 %v3682, %v3693
    %v3705 = vadd.f32 %v3683, %v3694
    %v3706 = vadd.f32 %v3684, %v3695
    %v3707 = vadd.f32 %v3685, %v3696
    %v3708 = vadd.f32 %v3686, %v3697
    %v3709 = vadd.f32 %v3687, %v3698
    %v3710 = vadd.f32 %v3688, %v3699
    %v3711 = vadd.f32 %v3689, %v3700
    %v3712 = vadd.f32 %v3690, %v3701
    %v3713 = vmul.f32 %v3024, %v3339
    %v3714 = vmul.f32 %v3024, %v3340
    %v3715 = vmul.f32 %v3024, %v3341
    %v3716 = vmul.f32 %v3024, %v3342
    %v3717 = vmul.f32 %v3024, %v3343
    %v3718 = vmul.f32 %v3024, %v3344
    %v3719 = vmul.f32 %v3024, %v3345
    %v3720 = vmul.f32 %v3024, %v3346
    %v3721 = vmul.f32 %v3024, %v3347
    %v3722 = vmul.f32 %v3024, %v3348
    %v3723 = vmul.f32 %v3024, %v3349
    %v3724 = vadd.f32 %v3702, %v3713
    %v3725 = vadd.f32 %v3703, %v3714
    %v3726 = vadd.f32 %v3704, %v3715
    %v3727 = vadd.f32 %v3705, %v3716
    %v3728 = vadd.f32 %v3706, %v3717
    %v3729 = vadd.f32 %v3707, %v3718
    %v3730 = vadd.f32 %v3708, %v3719
    %v3731 = vadd.f32 %v3709, %v3720
    %v3732 = vadd.f32 %v3710, %v3721
    %v3733 = vadd.f32 %v3711, %v3722
    %v3734 = vadd.f32 %v3712, %v3723
    %v3735 = vmul.f32 %v3059, %v3537
    %v3736 = vmul.f32 %v3059, %v3538
    %v3737 = vmul.f32 %v3059, %v3539
    %v3738 = vmul.f32 %v3059, %v3540
    %v3739 = vmul.f32 %v3059, %v3541
    %v3740 = vmul.f32 %v3059, %v3542
    %v3741 = vmul.f32 %v3059, %v3543
    %v3742 = vmul.f32 %v3059, %v3544
    %v3743 = vmul.f32 %v3059, %v3545
    %v3744 = vmul.f32 %v3059, %v3546
    %v3745 = vmul.f32 %v3059, %v3547
    %v3746 = vadd.f32 %v3724, %v3735
    %v3747 = vadd.f32 %v3725, %v3736
    %v3748 = vadd.f32 %v3726, %v3737
    %v3749 = vadd.f32 %v3727, %v3738
    %v3750 = vadd.f32 %v3728, %v3739
    %v3751 = vadd.f32 %v3729, %v3740
    %v3752 = vadd.f32 %v3730, %v3741
    %v3753 = vadd.f32 %v3731, %v3742
    %v3754 = vadd.f32 %v3732, %v3743
    %v3755 = vadd.f32 %v3733, %v3744
    %v3756 = vadd.f32 %v3734, %v3745
    %v3757 = vmul.f32 %v3094, %v3570
    %v3758 = vmul.f32 %v3094, %v3571
    %v3759 = vmul.f32 %v3094, %v3572
    %v3760 = vmul.f32 %v3094, %v3573
    %v3761 = vmul.f32 %v3094, %v3574
    %v3762 = vmul.f32 %v3094, %v3575
    %v3763 = vmul.f32 %v3094, %v3576
    %v3764 = vmul.f32 %v3094, %v3577
    %v3765 = vmul.f32 %v3094, %v3578
    %v3766 = vmul.f32 %v3094, %v3579
    %v3767 = vmul.f32 %v3094, %v3580
    %v3768 = vadd.f32 %v3746, %v3757
    %v3769 = vadd.f32 %v3747, %v3758
    %v3770 = vadd.f32 %v3748, %v3759
    %v3771 = vadd.f32 %v3749, %v3760
    %v3772 = vadd.f32 %v3750, %v3761
    %v3773 = vadd.f32 %v3751, %v3762
    %v3774 = vadd.f32 %v3752, %v3763
    %v3775 = vadd.f32 %v3753, %v3764
    %v3776 = vadd.f32 %v3754, %v3765
    %v3777 = vadd.f32 %v3755, %v3766
    %v3778 = vadd.f32 %v3756, %v3767
    %v3779 = vld [vmem:[%s1825 + $0x1] sm:$0xff]
    %v3780 = vld [vmem:[%s1825 + $0x9] sm:$0xff]
    %v3781 = vld [vmem:[%s1825 + $0x11] sm:$0xff]
    %v3782 = vld [vmem:[%s1825 + $0x19] sm:$0xff]
    %v3783 = vld [vmem:[%s1825 + $0x21] sm:$0xff]
    %v3784 = vld [vmem:[%s1825 + $0x29] sm:$0xff]
    %v3785 = vld [vmem:[%s1825 + $0x31] sm:$0xff]
    %v3786 = vld [vmem:[%s1825 + $0x39] sm:$0xff]
    %v3787 = vld [vmem:[%s1825 + $0x41] sm:$0xff]
    %v3788 = vld [vmem:[%s1825 + $0x49] sm:$0xff]
    %v3789 = vld [vmem:[%s1825 + $0x51] sm:$0x7f]
    %v3790 = vmul.f32 %v3129, %v3779
    %v3791 = vmul.f32 %v3129, %v3780
    %v3792 = vmul.f32 %v3129, %v3781
    %v3793 = vmul.f32 %v3129, %v3782
    %v3794 = vmul.f32 %v3129, %v3783
    %v3795 = vmul.f32 %v3129, %v3784
    %v3796 = vmul.f32 %v3129, %v3785
    %v3797 = vmul.f32 %v3129, %v3786
    %v3798 = vmul.f32 %v3129, %v3787
    %v3799 = vmul.f32 %v3129, %v3788
    %v3800 = vmul.f32 %v3129, %v3789
    %v3801 = vadd.f32 %v3768, %v3790
    %v3802 = vadd.f32 %v3769, %v3791
    %v3803 = vadd.f32 %v3770, %v3792
    %v3804 = vadd.f32 %v3771, %v3793
    %v3805 = vadd.f32 %v3772, %v3794
    %v3806 = vadd.f32 %v3773, %v3795
    %v3807 = vadd.f32 %v3774, %v3796
    %v3808 = vadd.f32 %v3775, %v3797
    %v3809 = vadd.f32 %v3776, %v3798
    %v3810 = vadd.f32 %v3777, %v3799
    %v3811 = vadd.f32 %v3778, %v3800
    %v3812 = vmax.f32 %v3603, %v3801
    %v3813 = vmax.f32 %v3604, %v3802
    %v3814 = vmax.f32 %v3605, %v3803
    %v3815 = vmax.f32 %v3606, %v3804
    %v3816 = vmax.f32 %v3607, %v3805
    %v3817 = vmax.f32 %v3608, %v3806
    %v3818 = vmax.f32 %v3609, %v3807
    %v3819 = vmax.f32 %v3610, %v3808
    %v3820 = vmax.f32 %v3611, %v3809
    %v3821 = vmax.f32 %v3612, %v3810
    %v3822 = vmax.f32 %v3613, %v3811
    %s3823 = sld [smem:[#allocation29 + $0x1]]
    %v3824 = vstv %s3823
    %v3825 = vadd.f32 %v3812, %v3824
    %v3826 = vadd.f32 %v3813, %v3824
    %v3827 = vadd.f32 %v3814, %v3824
    %v3828 = vadd.f32 %v3815, %v3824
    %v3829 = vadd.f32 %v3816, %v3824
    %v3830 = vadd.f32 %v3817, %v3824
    %v3831 = vadd.f32 %v3818, %v3824
    %v3832 = vadd.f32 %v3819, %v3824
    %v3833 = vadd.f32 %v3820, %v3824
    %v3834 = vadd.f32 %v3821, %v3824
    %v3835 = vadd.f32 %v3822, %v3824
    %v3836 = vmax.f32 %v3825, 0.0
    %v3837 = vmax.f32 %v3826, 0.0
    %v3838 = vmax.f32 %v3827, 0.0
    %v3839 = vmax.f32 %v3828, 0.0
    %v3840 = vmax.f32 %v3829, 0.0
    %v3841 = vmax.f32 %v3830, 0.0
    %v3842 = vmax.f32 %v3831, 0.0
    %v3843 = vmax.f32 %v3832, 0.0
    %v3844 = vmax.f32 %v3833, 0.0
    %v3845 = vmax.f32 %v3834, 0.0
    %v3846 = vmax.f32 %v3835, 0.0
    %s3847 = scalar_lea.vmem [#allocation3], 88
    %3848 = vst.msk [vmem:[%s3847] sm:$0xff] %vm1621, %v3836
    %3849 = vst.msk [vmem:[%s3847 + $0x8] sm:$0xff] %vm1621, %v3837
    %3850 = vst.msk [vmem:[%s3847 + $0x10] sm:$0xff] %vm1621, %v3838
    %3851 = vst.msk [vmem:[%s3847 + $0x18] sm:$0xff] %vm1621, %v3839
    %3852 = vst.msk [vmem:[%s3847 + $0x20] sm:$0xff] %vm1621, %v3840
    %3853 = vst.msk [vmem:[%s3847 + $0x28] sm:$0xff] %vm1621, %v3841
    %3854 = vst.msk [vmem:[%s3847 + $0x30] sm:$0xff] %vm1621, %v3842
    %3855 = vst.msk [vmem:[%s3847 + $0x38] sm:$0xff] %vm1621, %v3843
    %3856 = vst.msk [vmem:[%s3847 + $0x40] sm:$0xff] %vm1621, %v3844
    %3857 = vst.msk [vmem:[%s3847 + $0x48] sm:$0xff] %vm1621, %v3845
    %3858 = vst.msk [vmem:[%s3847 + $0x50] sm:$0x7f] %vm2846, %v3846
    %v3859 = vld [vmem:[#allocation33] sm:$0xff]
    %v3860 = vld [vmem:[#allocation33 + $0x8] sm:$0xff]
    %v3861 = vld [vmem:[#allocation33 + $0x10] sm:$0xff]
    %v3862 = vld [vmem:[#allocation33 + $0x18] sm:$0xff]
    %v3863 = vld [vmem:[#allocation33 + $0x20] sm:$0xff]
    %v3864 = vld [vmem:[#allocation33 + $0x28] sm:$0xff]
    %v3865 = vld [vmem:[#allocation33 + $0x30] sm:$0xff]
    %v3866 = vld [vmem:[#allocation33 + $0x38] sm:$0xff]
    %v3867 = vld [vmem:[#allocation33 + $0x40] sm:$0xff]
    %v3868 = vld [vmem:[#allocation33 + $0x48] sm:$0xff]
    %v3869 = vld [vmem:[#allocation33 + $0x50] sm:$0x7f]
    %s3870 = sld [smem:[#allocation26 + $0x100]]
    %v3871 = vstv %s3870
    %v3872 = vmul.f32 %v3871, %v3859
    %v3873 = vmul.f32 %v3871, %v3860
    %v3874 = vmul.f32 %v3871, %v3861
    %v3875 = vmul.f32 %v3871, %v3862
    %v3876 = vmul.f32 %v3871, %v3863
    %v3877 = vmul.f32 %v3871, %v3864
    %v3878 = vmul.f32 %v3871, %v3865
    %v3879 = vmul.f32 %v3871, %v3866
    %v3880 = vmul.f32 %v3871, %v3867
    %v3881 = vmul.f32 %v3871, %v3868
    %v3882 = vmul.f32 %v3871, %v3869
    %v3883 = vld [vmem:[%s1633] sm:$0xff]
    %v3884 = vld [vmem:[%s1633 + $0x8] sm:$0xff]
    %v3885 = vld [vmem:[%s1633 + $0x10] sm:$0xff]
    %v3886 = vld [vmem:[%s1633 + $0x18] sm:$0xff]
    %v3887 = vld [vmem:[%s1633 + $0x20] sm:$0xff]
    %v3888 = vld [vmem:[%s1633 + $0x28] sm:$0xff]
    %v3889 = vld [vmem:[%s1633 + $0x30] sm:$0xff]
    %v3890 = vld [vmem:[%s1633 + $0x38] sm:$0xff]
    %v3891 = vld [vmem:[%s1633 + $0x40] sm:$0xff]
    %v3892 = vld [vmem:[%s1633 + $0x48] sm:$0xff]
    %v3893 = vld [vmem:[%s1633 + $0x50] sm:$0x7f]
    %s3894 = sld [smem:[#allocation26 + $0x101]]
    %v3895 = vstv %s3894
    %v3896 = vmul.f32 %v3895, %v3883
    %v3897 = vmul.f32 %v3895, %v3884
    %v3898 = vmul.f32 %v3895, %v3885
    %v3899 = vmul.f32 %v3895, %v3886
    %v3900 = vmul.f32 %v3895, %v3887
    %v3901 = vmul.f32 %v3895, %v3888
    %v3902 = vmul.f32 %v3895, %v3889
    %v3903 = vmul.f32 %v3895, %v3890
    %v3904 = vmul.f32 %v3895, %v3891
    %v3905 = vmul.f32 %v3895, %v3892
    %v3906 = vmul.f32 %v3895, %v3893
    %v3907 = vadd.f32 %v3872, %v3896
    %v3908 = vadd.f32 %v3873, %v3897
    %v3909 = vadd.f32 %v3874, %v3898
    %v3910 = vadd.f32 %v3875, %v3899
    %v3911 = vadd.f32 %v3876, %v3900
    %v3912 = vadd.f32 %v3877, %v3901
    %v3913 = vadd.f32 %v3878, %v3902
    %v3914 = vadd.f32 %v3879, %v3903
    %v3915 = vadd.f32 %v3880, %v3904
    %v3916 = vadd.f32 %v3881, %v3905
    %v3917 = vadd.f32 %v3882, %v3906
    %v3918 = vld [vmem:[#allocation2] sm:$0xff]
    %v3919 = vld [vmem:[#allocation2 + $0x8] sm:$0xff]
    %v3920 = vld [vmem:[#allocation2 + $0x10] sm:$0xff]
    %v3921 = vld [vmem:[#allocation2 + $0x18] sm:$0xff]
    %v3922 = vld [vmem:[#allocation2 + $0x20] sm:$0xff]
    %v3923 = vld [vmem:[#allocation2 + $0x28] sm:$0xff]
    %v3924 = vld [vmem:[#allocation2 + $0x30] sm:$0xff]
    %v3925 = vld [vmem:[#allocation2 + $0x38] sm:$0xff]
    %v3926 = vld [vmem:[#allocation2 + $0x40] sm:$0xff]
    %v3927 = vld [vmem:[#allocation2 + $0x48] sm:$0xff]
    %v3928 = vld [vmem:[#allocation2 + $0x50] sm:$0x7f]
    %s3929 = sld [smem:[#allocation26 + $0x102]]
    %v3930 = vstv %s3929
    %v3931 = vmul.f32 %v3930, %v3918
    %v3932 = vmul.f32 %v3930, %v3919
    %v3933 = vmul.f32 %v3930, %v3920
    %v3934 = vmul.f32 %v3930, %v3921
    %v3935 = vmul.f32 %v3930, %v3922
    %v3936 = vmul.f32 %v3930, %v3923
    %v3937 = vmul.f32 %v3930, %v3924
    %v3938 = vmul.f32 %v3930, %v3925
    %v3939 = vmul.f32 %v3930, %v3926
    %v3940 = vmul.f32 %v3930, %v3927
    %v3941 = vmul.f32 %v3930, %v3928
    %v3942 = vadd.f32 %v3907, %v3931
    %v3943 = vadd.f32 %v3908, %v3932
    %v3944 = vadd.f32 %v3909, %v3933
    %v3945 = vadd.f32 %v3910, %v3934
    %v3946 = vadd.f32 %v3911, %v3935
    %v3947 = vadd.f32 %v3912, %v3936
    %v3948 = vadd.f32 %v3913, %v3937
    %v3949 = vadd.f32 %v3914, %v3938
    %v3950 = vadd.f32 %v3915, %v3939
    %v3951 = vadd.f32 %v3916, %v3940
    %v3952 = vadd.f32 %v3917, %v3941
    %v3953 = vld [vmem:[%s1701] sm:$0xff]
    %v3954 = vld [vmem:[%s1701 + $0x8] sm:$0xff]
    %v3955 = vld [vmem:[%s1701 + $0x10] sm:$0xff]
    %v3956 = vld [vmem:[%s1701 + $0x18] sm:$0xff]
    %v3957 = vld [vmem:[%s1701 + $0x20] sm:$0xff]
    %v3958 = vld [vmem:[%s1701 + $0x28] sm:$0xff]
    %v3959 = vld [vmem:[%s1701 + $0x30] sm:$0xff]
    %v3960 = vld [vmem:[%s1701 + $0x38] sm:$0xff]
    %v3961 = vld [vmem:[%s1701 + $0x40] sm:$0xff]
    %v3962 = vld [vmem:[%s1701 + $0x48] sm:$0xff]
    %v3963 = vld [vmem:[%s1701 + $0x50] sm:$0x7f]
    %s3964 = sld [smem:[#allocation26 + $0x103]]
    %v3965 = vstv %s3964
    %v3966 = vmul.f32 %v3965, %v3953
    %v3967 = vmul.f32 %v3965, %v3954
    %v3968 = vmul.f32 %v3965, %v3955
    %v3969 = vmul.f32 %v3965, %v3956
    %v3970 = vmul.f32 %v3965, %v3957
    %v3971 = vmul.f32 %v3965, %v3958
    %v3972 = vmul.f32 %v3965, %v3959
    %v3973 = vmul.f32 %v3965, %v3960
    %v3974 = vmul.f32 %v3965, %v3961
    %v3975 = vmul.f32 %v3965, %v3962
    %v3976 = vmul.f32 %v3965, %v3963
    %v3977 = vadd.f32 %v3942, %v3966
    %v3978 = vadd.f32 %v3943, %v3967
    %v3979 = vadd.f32 %v3944, %v3968
    %v3980 = vadd.f32 %v3945, %v3969
    %v3981 = vadd.f32 %v3946, %v3970
    %v3982 = vadd.f32 %v3947, %v3971
    %v3983 = vadd.f32 %v3948, %v3972
    %v3984 = vadd.f32 %v3949, %v3973
    %v3985 = vadd.f32 %v3950, %v3974
    %v3986 = vadd.f32 %v3951, %v3975
    %v3987 = vadd.f32 %v3952, %v3976
    %v3988 = vld [vmem:[%s1769] sm:$0xff]
    %v3989 = vld [vmem:[%s1769 + $0x8] sm:$0xff]
    %v3990 = vld [vmem:[%s1769 + $0x10] sm:$0xff]
    %v3991 = vld [vmem:[%s1769 + $0x18] sm:$0xff]
    %v3992 = vld [vmem:[%s1769 + $0x20] sm:$0xff]
    %v3993 = vld [vmem:[%s1769 + $0x28] sm:$0xff]
    %v3994 = vld [vmem:[%s1769 + $0x30] sm:$0xff]
    %v3995 = vld [vmem:[%s1769 + $0x38] sm:$0xff]
    %v3996 = vld [vmem:[%s1769 + $0x40] sm:$0xff]
    %v3997 = vld [vmem:[%s1769 + $0x48] sm:$0xff]
    %v3998 = vld [vmem:[%s1769 + $0x50] sm:$0x7f]
    %s3999 = sld [smem:[#allocation26 + $0x104]]
    %v4000 = vstv %s3999
    %v4001 = vmul.f32 %v4000, %v3988
    %v4002 = vmul.f32 %v4000, %v3989
    %v4003 = vmul.f32 %v4000, %v3990
    %v4004 = vmul.f32 %v4000, %v3991
    %v4005 = vmul.f32 %v4000, %v3992
    %v4006 = vmul.f32 %v4000, %v3993
    %v4007 = vmul.f32 %v4000, %v3994
    %v4008 = vmul.f32 %v4000, %v3995
    %v4009 = vmul.f32 %v4000, %v3996
    %v4010 = vmul.f32 %v4000, %v3997
    %v4011 = vmul.f32 %v4000, %v3998
    %v4012 = vadd.f32 %v3977, %v4001
    %v4013 = vadd.f32 %v3978, %v4002
    %v4014 = vadd.f32 %v3979, %v4003
    %v4015 = vadd.f32 %v3980, %v4004
    %v4016 = vadd.f32 %v3981, %v4005
    %v4017 = vadd.f32 %v3982, %v4006
    %v4018 = vadd.f32 %v3983, %v4007
    %v4019 = vadd.f32 %v3984, %v4008
    %v4020 = vadd.f32 %v3985, %v4009
    %v4021 = vadd.f32 %v3986, %v4010
    %v4022 = vadd.f32 %v3987, %v4011
    %v4023 = vld [vmem:[%s1757] sm:$0xff]
    %v4024 = vld [vmem:[%s1757 + $0x8] sm:$0xff]
    %v4025 = vld [vmem:[%s1757 + $0x10] sm:$0xff]
    %v4026 = vld [vmem:[%s1757 + $0x18] sm:$0xff]
    %v4027 = vld [vmem:[%s1757 + $0x20] sm:$0xff]
    %v4028 = vld [vmem:[%s1757 + $0x28] sm:$0xff]
    %v4029 = vld [vmem:[%s1757 + $0x30] sm:$0xff]
    %v4030 = vld [vmem:[%s1757 + $0x38] sm:$0xff]
    %v4031 = vld [vmem:[%s1757 + $0x40] sm:$0xff]
    %v4032 = vld [vmem:[%s1757 + $0x48] sm:$0xff]
    %v4033 = vld [vmem:[%s1757 + $0x50] sm:$0x7f]
    %s4034 = sld [smem:[#allocation26 + $0x105]]
    %v4035 = vstv %s4034
    %v4036 = vmul.f32 %v4035, %v4023
    %v4037 = vmul.f32 %v4035, %v4024
    %v4038 = vmul.f32 %v4035, %v4025
    %v4039 = vmul.f32 %v4035, %v4026
    %v4040 = vmul.f32 %v4035, %v4027
    %v4041 = vmul.f32 %v4035, %v4028
    %v4042 = vmul.f32 %v4035, %v4029
    %v4043 = vmul.f32 %v4035, %v4030
    %v4044 = vmul.f32 %v4035, %v4031
    %v4045 = vmul.f32 %v4035, %v4032
    %v4046 = vmul.f32 %v4035, %v4033
    %v4047 = vadd.f32 %v4012, %v4036
    %v4048 = vadd.f32 %v4013, %v4037
    %v4049 = vadd.f32 %v4014, %v4038
    %v4050 = vadd.f32 %v4015, %v4039
    %v4051 = vadd.f32 %v4016, %v4040
    %v4052 = vadd.f32 %v4017, %v4041
    %v4053 = vadd.f32 %v4018, %v4042
    %v4054 = vadd.f32 %v4019, %v4043
    %v4055 = vadd.f32 %v4020, %v4044
    %v4056 = vadd.f32 %v4021, %v4045
    %v4057 = vadd.f32 %v4022, %v4046
    %v4058 = vld [vmem:[#allocation33 + $0x1] sm:$0xff]
    %v4059 = vld [vmem:[#allocation33 + $0x9] sm:$0xff]
    %v4060 = vld [vmem:[#allocation33 + $0x11] sm:$0xff]
    %v4061 = vld [vmem:[#allocation33 + $0x19] sm:$0xff]
    %v4062 = vld [vmem:[#allocation33 + $0x21] sm:$0xff]
    %v4063 = vld [vmem:[#allocation33 + $0x29] sm:$0xff]
    %v4064 = vld [vmem:[#allocation33 + $0x31] sm:$0xff]
    %v4065 = vld [vmem:[#allocation33 + $0x39] sm:$0xff]
    %v4066 = vld [vmem:[#allocation33 + $0x41] sm:$0xff]
    %v4067 = vld [vmem:[#allocation33 + $0x49] sm:$0xff]
    %v4068 = vld [vmem:[#allocation33 + $0x51] sm:$0x7f]
    %s4069 = sld [smem:[#allocation26 + $0x106]]
    %v4070 = vstv %s4069
    %v4071 = vmul.f32 %v4070, %v4058
    %v4072 = vmul.f32 %v4070, %v4059
    %v4073 = vmul.f32 %v4070, %v4060
    %v4074 = vmul.f32 %v4070, %v4061
    %v4075 = vmul.f32 %v4070, %v4062
    %v4076 = vmul.f32 %v4070, %v4063
    %v4077 = vmul.f32 %v4070, %v4064
    %v4078 = vmul.f32 %v4070, %v4065
    %v4079 = vmul.f32 %v4070, %v4066
    %v4080 = vmul.f32 %v4070, %v4067
    %v4081 = vmul.f32 %v4070, %v4068
    %v4082 = vadd.f32 %v4047, %v4071
    %v4083 = vadd.f32 %v4048, %v4072
    %v4084 = vadd.f32 %v4049, %v4073
    %v4085 = vadd.f32 %v4050, %v4074
    %v4086 = vadd.f32 %v4051, %v4075
    %v4087 = vadd.f32 %v4052, %v4076
    %v4088 = vadd.f32 %v4053, %v4077
    %v4089 = vadd.f32 %v4054, %v4078
    %v4090 = vadd.f32 %v4055, %v4079
    %v4091 = vadd.f32 %v4056, %v4080
    %v4092 = vadd.f32 %v4057, %v4081
    %v4093 = vld [vmem:[%s1633 + $0x1] sm:$0xff]
    %v4094 = vld [vmem:[%s1633 + $0x9] sm:$0xff]
    %v4095 = vld [vmem:[%s1633 + $0x11] sm:$0xff]
    %v4096 = vld [vmem:[%s1633 + $0x19] sm:$0xff]
    %v4097 = vld [vmem:[%s1633 + $0x21] sm:$0xff]
    %v4098 = vld [vmem:[%s1633 + $0x29] sm:$0xff]
    %v4099 = vld [vmem:[%s1633 + $0x31] sm:$0xff]
    %v4100 = vld [vmem:[%s1633 + $0x39] sm:$0xff]
    %v4101 = vld [vmem:[%s1633 + $0x41] sm:$0xff]
    %v4102 = vld [vmem:[%s1633 + $0x49] sm:$0xff]
    %v4103 = vld [vmem:[%s1633 + $0x51] sm:$0x7f]
    %s4104 = sld [smem:[#allocation26 + $0x107]]
    %v4105 = vstv %s4104
    %v4106 = vmul.f32 %v4105, %v4093
    %v4107 = vmul.f32 %v4105, %v4094
    %v4108 = vmul.f32 %v4105, %v4095
    %v4109 = vmul.f32 %v4105, %v4096
    %v4110 = vmul.f32 %v4105, %v4097
    %v4111 = vmul.f32 %v4105, %v4098
    %v4112 = vmul.f32 %v4105, %v4099
    %v4113 = vmul.f32 %v4105, %v4100
    %v4114 = vmul.f32 %v4105, %v4101
    %v4115 = vmul.f32 %v4105, %v4102
    %v4116 = vmul.f32 %v4105, %v4103
    %v4117 = vadd.f32 %v4082, %v4106
    %v4118 = vadd.f32 %v4083, %v4107
    %v4119 = vadd.f32 %v4084, %v4108
    %v4120 = vadd.f32 %v4085, %v4109
    %v4121 = vadd.f32 %v4086, %v4110
    %v4122 = vadd.f32 %v4087, %v4111
    %v4123 = vadd.f32 %v4088, %v4112
    %v4124 = vadd.f32 %v4089, %v4113
    %v4125 = vadd.f32 %v4090, %v4114
    %v4126 = vadd.f32 %v4091, %v4115
    %v4127 = vadd.f32 %v4092, %v4116
    %v4128 = vld [vmem:[#allocation2 + $0x1] sm:$0xff]
    %v4129 = vld [vmem:[#allocation2 + $0x9] sm:$0xff]
    %v4130 = vld [vmem:[#allocation2 + $0x11] sm:$0xff]
    %v4131 = vld [vmem:[#allocation2 + $0x19] sm:$0xff]
    %v4132 = vld [vmem:[#allocation2 + $0x21] sm:$0xff]
    %v4133 = vld [vmem:[#allocation2 + $0x29] sm:$0xff]
    %v4134 = vld [vmem:[#allocation2 + $0x31] sm:$0xff]
    %v4135 = vld [vmem:[#allocation2 + $0x39] sm:$0xff]
    %v4136 = vld [vmem:[#allocation2 + $0x41] sm:$0xff]
    %v4137 = vld [vmem:[#allocation2 + $0x49] sm:$0xff]
    %v4138 = vld [vmem:[#allocation2 + $0x51] sm:$0x7f]
    %s4139 = sld [smem:[#allocation26 + $0x108]]
    %v4140 = vstv %s4139
    %v4141 = vmul.f32 %v4140, %v4128
    %v4142 = vmul.f32 %v4140, %v4129
    %v4143 = vmul.f32 %v4140, %v4130
    %v4144 = vmul.f32 %v4140, %v4131
    %v4145 = vmul.f32 %v4140, %v4132
    %v4146 = vmul.f32 %v4140, %v4133
    %v4147 = vmul.f32 %v4140, %v4134
    %v4148 = vmul.f32 %v4140, %v4135
    %v4149 = vmul.f32 %v4140, %v4136
    %v4150 = vmul.f32 %v4140, %v4137
    %v4151 = vmul.f32 %v4140, %v4138
    %v4152 = vadd.f32 %v4117, %v4141
    %v4153 = vadd.f32 %v4118, %v4142
    %v4154 = vadd.f32 %v4119, %v4143
    %v4155 = vadd.f32 %v4120, %v4144
    %v4156 = vadd.f32 %v4121, %v4145
    %v4157 = vadd.f32 %v4122, %v4146
    %v4158 = vadd.f32 %v4123, %v4147
    %v4159 = vadd.f32 %v4124, %v4148
    %v4160 = vadd.f32 %v4125, %v4149
    %v4161 = vadd.f32 %v4126, %v4150
    %v4162 = vadd.f32 %v4127, %v4151
    %v4163 = vmul.f32 %v3871, %v3883
    %v4164 = vmul.f32 %v3871, %v3884
    %v4165 = vmul.f32 %v3871, %v3885
    %v4166 = vmul.f32 %v3871, %v3886
    %v4167 = vmul.f32 %v3871, %v3887
    %v4168 = vmul.f32 %v3871, %v3888
    %v4169 = vmul.f32 %v3871, %v3889
    %v4170 = vmul.f32 %v3871, %v3890
    %v4171 = vmul.f32 %v3871, %v3891
    %v4172 = vmul.f32 %v3871, %v3892
    %v4173 = vmul.f32 %v3871, %v3893
    %v4174 = vmul.f32 %v3895, %v3918
    %v4175 = vmul.f32 %v3895, %v3919
    %v4176 = vmul.f32 %v3895, %v3920
    %v4177 = vmul.f32 %v3895, %v3921
    %v4178 = vmul.f32 %v3895, %v3922
    %v4179 = vmul.f32 %v3895, %v3923
    %v4180 = vmul.f32 %v3895, %v3924
    %v4181 = vmul.f32 %v3895, %v3925
    %v4182 = vmul.f32 %v3895, %v3926
    %v4183 = vmul.f32 %v3895, %v3927
    %v4184 = vmul.f32 %v3895, %v3928
    %v4185 = vadd.f32 %v4163, %v4174
    %v4186 = vadd.f32 %v4164, %v4175
    %v4187 = vadd.f32 %v4165, %v4176
    %v4188 = vadd.f32 %v4166, %v4177
    %v4189 = vadd.f32 %v4167, %v4178
    %v4190 = vadd.f32 %v4168, %v4179
    %v4191 = vadd.f32 %v4169, %v4180
    %v4192 = vadd.f32 %v4170, %v4181
    %v4193 = vadd.f32 %v4171, %v4182
    %v4194 = vadd.f32 %v4172, %v4183
    %v4195 = vadd.f32 %v4173, %v4184
    %v4196 = vld [vmem:[%s1689] sm:$0xff]
    %v4197 = vld [vmem:[%s1689 + $0x8] sm:$0xff]
    %v4198 = vld [vmem:[%s1689 + $0x10] sm:$0xff]
    %v4199 = vld [vmem:[%s1689 + $0x18] sm:$0xff]
    %v4200 = vld [vmem:[%s1689 + $0x20] sm:$0xff]
    %v4201 = vld [vmem:[%s1689 + $0x28] sm:$0xff]
    %v4202 = vld [vmem:[%s1689 + $0x30] sm:$0xff]
    %v4203 = vld [vmem:[%s1689 + $0x38] sm:$0xff]
    %v4204 = vld [vmem:[%s1689 + $0x40] sm:$0xff]
    %v4205 = vld [vmem:[%s1689 + $0x48] sm:$0xff]
    %v4206 = vld [vmem:[%s1689 + $0x50] sm:$0x7f]
    %v4207 = vmul.f32 %v3930, %v4196
    %v4208 = vmul.f32 %v3930, %v4197
    %v4209 = vmul.f32 %v3930, %v4198
    %v4210 = vmul.f32 %v3930, %v4199
    %v4211 = vmul.f32 %v3930, %v4200
    %v4212 = vmul.f32 %v3930, %v4201
    %v4213 = vmul.f32 %v3930, %v4202
    %v4214 = vmul.f32 %v3930, %v4203
    %v4215 = vmul.f32 %v3930, %v4204
    %v4216 = vmul.f32 %v3930, %v4205
    %v4217 = vmul.f32 %v3930, %v4206
    %v4218 = vadd.f32 %v4185, %v4207
    %v4219 = vadd.f32 %v4186, %v4208
    %v4220 = vadd.f32 %v4187, %v4209
    %v4221 = vadd.f32 %v4188, %v4210
    %v4222 = vadd.f32 %v4189, %v4211
    %v4223 = vadd.f32 %v4190, %v4212
    %v4224 = vadd.f32 %v4191, %v4213
    %v4225 = vadd.f32 %v4192, %v4214
    %v4226 = vadd.f32 %v4193, %v4215
    %v4227 = vadd.f32 %v4194, %v4216
    %v4228 = vadd.f32 %v4195, %v4217
    %v4229 = vmul.f32 %v3965, %v3988
    %v4230 = vmul.f32 %v3965, %v3989
    %v4231 = vmul.f32 %v3965, %v3990
    %v4232 = vmul.f32 %v3965, %v3991
    %v4233 = vmul.f32 %v3965, %v3992
    %v4234 = vmul.f32 %v3965, %v3993
    %v4235 = vmul.f32 %v3965, %v3994
    %v4236 = vmul.f32 %v3965, %v3995
    %v4237 = vmul.f32 %v3965, %v3996
    %v4238 = vmul.f32 %v3965, %v3997
    %v4239 = vmul.f32 %v3965, %v3998
    %v4240 = vadd.f32 %v4218, %v4229
    %v4241 = vadd.f32 %v4219, %v4230
    %v4242 = vadd.f32 %v4220, %v4231
    %v4243 = vadd.f32 %v4221, %v4232
    %v4244 = vadd.f32 %v4222, %v4233
    %v4245 = vadd.f32 %v4223, %v4234
    %v4246 = vadd.f32 %v4224, %v4235
    %v4247 = vadd.f32 %v4225, %v4236
    %v4248 = vadd.f32 %v4226, %v4237
    %v4249 = vadd.f32 %v4227, %v4238
    %v4250 = vadd.f32 %v4228, %v4239
    %v4251 = vmul.f32 %v4000, %v4023
    %v4252 = vmul.f32 %v4000, %v4024
    %v4253 = vmul.f32 %v4000, %v4025
    %v4254 = vmul.f32 %v4000, %v4026
    %v4255 = vmul.f32 %v4000, %v4027
    %v4256 = vmul.f32 %v4000, %v4028
    %v4257 = vmul.f32 %v4000, %v4029
    %v4258 = vmul.f32 %v4000, %v4030
    %v4259 = vmul.f32 %v4000, %v4031
    %v4260 = vmul.f32 %v4000, %v4032
    %v4261 = vmul.f32 %v4000, %v4033
    %v4262 = vadd.f32 %v4240, %v4251
    %v4263 = vadd.f32 %v4241, %v4252
    %v4264 = vadd.f32 %v4242, %v4253
    %v4265 = vadd.f32 %v4243, %v4254
    %v4266 = vadd.f32 %v4244, %v4255
    %v4267 = vadd.f32 %v4245, %v4256
    %v4268 = vadd.f32 %v4246, %v4257
    %v4269 = vadd.f32 %v4247, %v4258
    %v4270 = vadd.f32 %v4248, %v4259
    %v4271 = vadd.f32 %v4249, %v4260
    %v4272 = vadd.f32 %v4250, %v4261
    %v4273 = vld [vmem:[%s1825] sm:$0xff]
    %v4274 = vld [vmem:[%s1825 + $0x8] sm:$0xff]
    %v4275 = vld [vmem:[%s1825 + $0x10] sm:$0xff]
    %v4276 = vld [vmem:[%s1825 + $0x18] sm:$0xff]
    %v4277 = vld [vmem:[%s1825 + $0x20] sm:$0xff]
    %v4278 = vld [vmem:[%s1825 + $0x28] sm:$0xff]
    %v4279 = vld [vmem:[%s1825 + $0x30] sm:$0xff]
    %v4280 = vld [vmem:[%s1825 + $0x38] sm:$0xff]
    %v4281 = vld [vmem:[%s1825 + $0x40] sm:$0xff]
    %v4282 = vld [vmem:[%s1825 + $0x48] sm:$0xff]
    %v4283 = vld [vmem:[%s1825 + $0x50] sm:$0x7f]
    %v4284 = vmul.f32 %v4035, %v4273
    %v4285 = vmul.f32 %v4035, %v4274
    %v4286 = vmul.f32 %v4035, %v4275
    %v4287 = vmul.f32 %v4035, %v4276
    %v4288 = vmul.f32 %v4035, %v4277
    %v4289 = vmul.f32 %v4035, %v4278
    %v4290 = vmul.f32 %v4035, %v4279
    %v4291 = vmul.f32 %v4035, %v4280
    %v4292 = vmul.f32 %v4035, %v4281
    %v4293 = vmul.f32 %v4035, %v4282
    %v4294 = vmul.f32 %v4035, %v4283
    %v4295 = vadd.f32 %v4262, %v4284
    %v4296 = vadd.f32 %v4263, %v4285
    %v4297 = vadd.f32 %v4264, %v4286
    %v4298 = vadd.f32 %v4265, %v4287
    %v4299 = vadd.f32 %v4266, %v4288
    %v4300 = vadd.f32 %v4267, %v4289
    %v4301 = vadd.f32 %v4268, %v4290
    %v4302 = vadd.f32 %v4269, %v4291
    %v4303 = vadd.f32 %v4270, %v4292
    %v4304 = vadd.f32 %v4271, %v4293
    %v4305 = vadd.f32 %v4272, %v4294
    %v4306 = vmul.f32 %v4070, %v4093
    %v4307 = vmul.f32 %v4070, %v4094
    %v4308 = vmul.f32 %v4070, %v4095
    %v4309 = vmul.f32 %v4070, %v4096
    %v4310 = vmul.f32 %v4070, %v4097
    %v4311 = vmul.f32 %v4070, %v4098
    %v4312 = vmul.f32 %v4070, %v4099
    %v4313 = vmul.f32 %v4070, %v4100
    %v4314 = vmul.f32 %v4070, %v4101
    %v4315 = vmul.f32 %v4070, %v4102
    %v4316 = vmul.f32 %v4070, %v4103
    %v4317 = vadd.f32 %v4295, %v4306
    %v4318 = vadd.f32 %v4296, %v4307
    %v4319 = vadd.f32 %v4297, %v4308
    %v4320 = vadd.f32 %v4298, %v4309
    %v4321 = vadd.f32 %v4299, %v4310
    %v4322 = vadd.f32 %v4300, %v4311
    %v4323 = vadd.f32 %v4301, %v4312
    %v4324 = vadd.f32 %v4302, %v4313
    %v4325 = vadd.f32 %v4303, %v4314
    %v4326 = vadd.f32 %v4304, %v4315
    %v4327 = vadd.f32 %v4305, %v4316
    %v4328 = vmul.f32 %v4105, %v4128
    %v4329 = vmul.f32 %v4105, %v4129
    %v4330 = vmul.f32 %v4105, %v4130
    %v4331 = vmul.f32 %v4105, %v4131
    %v4332 = vmul.f32 %v4105, %v4132
    %v4333 = vmul.f32 %v4105, %v4133
    %v4334 = vmul.f32 %v4105, %v4134
    %v4335 = vmul.f32 %v4105, %v4135
    %v4336 = vmul.f32 %v4105, %v4136
    %v4337 = vmul.f32 %v4105, %v4137
    %v4338 = vmul.f32 %v4105, %v4138
    %v4339 = vadd.f32 %v4317, %v4328
    %v4340 = vadd.f32 %v4318, %v4329
    %v4341 = vadd.f32 %v4319, %v4330
    %v4342 = vadd.f32 %v4320, %v4331
    %v4343 = vadd.f32 %v4321, %v4332
    %v4344 = vadd.f32 %v4322, %v4333
    %v4345 = vadd.f32 %v4323, %v4334
    %v4346 = vadd.f32 %v4324, %v4335
    %v4347 = vadd.f32 %v4325, %v4336
    %v4348 = vadd.f32 %v4326, %v4337
    %v4349 = vadd.f32 %v4327, %v4338
    %v4350 = vld [vmem:[%s1689 + $0x1] sm:$0xff]
    %v4351 = vld [vmem:[%s1689 + $0x9] sm:$0xff]
    %v4352 = vld [vmem:[%s1689 + $0x11] sm:$0xff]
    %v4353 = vld [vmem:[%s1689 + $0x19] sm:$0xff]
    %v4354 = vld [vmem:[%s1689 + $0x21] sm:$0xff]
    %v4355 = vld [vmem:[%s1689 + $0x29] sm:$0xff]
    %v4356 = vld [vmem:[%s1689 + $0x31] sm:$0xff]
    %v4357 = vld [vmem:[%s1689 + $0x39] sm:$0xff]
    %v4358 = vld [vmem:[%s1689 + $0x41] sm:$0xff]
    %v4359 = vld [vmem:[%s1689 + $0x49] sm:$0xff]
    %v4360 = vld [vmem:[%s1689 + $0x51] sm:$0x7f]
    %v4361 = vmul.f32 %v4140, %v4350
    %v4362 = vmul.f32 %v4140, %v4351
    %v4363 = vmul.f32 %v4140, %v4352
    %v4364 = vmul.f32 %v4140, %v4353
    %v4365 = vmul.f32 %v4140, %v4354
    %v4366 = vmul.f32 %v4140, %v4355
    %v4367 = vmul.f32 %v4140, %v4356
    %v4368 = vmul.f32 %v4140, %v4357
    %v4369 = vmul.f32 %v4140, %v4358
    %v4370 = vmul.f32 %v4140, %v4359
    %v4371 = vmul.f32 %v4140, %v4360
    %v4372 = vadd.f32 %v4339, %v4361
    %v4373 = vadd.f32 %v4340, %v4362
    %v4374 = vadd.f32 %v4341, %v4363
    %v4375 = vadd.f32 %v4342, %v4364
    %v4376 = vadd.f32 %v4343, %v4365
    %v4377 = vadd.f32 %v4344, %v4366
    %v4378 = vadd.f32 %v4345, %v4367
    %v4379 = vadd.f32 %v4346, %v4368
    %v4380 = vadd.f32 %v4347, %v4369
    %v4381 = vadd.f32 %v4348, %v4370
    %v4382 = vadd.f32 %v4349, %v4371
    %v4383 = vmax.f32 %v4152, %v4372
    %v4384 = vmax.f32 %v4153, %v4373
    %v4385 = vmax.f32 %v4154, %v4374
    %v4386 = vmax.f32 %v4155, %v4375
    %v4387 = vmax.f32 %v4156, %v4376
    %v4388 = vmax.f32 %v4157, %v4377
    %v4389 = vmax.f32 %v4158, %v4378
    %v4390 = vmax.f32 %v4159, %v4379
    %v4391 = vmax.f32 %v4160, %v4380
    %v4392 = vmax.f32 %v4161, %v4381
    %v4393 = vmax.f32 %v4162, %v4382
    %v4394 = vmul.f32 %v3871, %v3953
    %v4395 = vmul.f32 %v3871, %v3954
    %v4396 = vmul.f32 %v3871, %v3955
    %v4397 = vmul.f32 %v3871, %v3956
    %v4398 = vmul.f32 %v3871, %v3957
    %v4399 = vmul.f32 %v3871, %v3958
    %v4400 = vmul.f32 %v3871, %v3959
    %v4401 = vmul.f32 %v3871, %v3960
    %v4402 = vmul.f32 %v3871, %v3961
    %v4403 = vmul.f32 %v3871, %v3962
    %v4404 = vmul.f32 %v3871, %v3963
    %v4405 = vmul.f32 %v3895, %v3988
    %v4406 = vmul.f32 %v3895, %v3989
    %v4407 = vmul.f32 %v3895, %v3990
    %v4408 = vmul.f32 %v3895, %v3991
    %v4409 = vmul.f32 %v3895, %v3992
    %v4410 = vmul.f32 %v3895, %v3993
    %v4411 = vmul.f32 %v3895, %v3994
    %v4412 = vmul.f32 %v3895, %v3995
    %v4413 = vmul.f32 %v3895, %v3996
    %v4414 = vmul.f32 %v3895, %v3997
    %v4415 = vmul.f32 %v3895, %v3998
    %v4416 = vadd.f32 %v4394, %v4405
    %v4417 = vadd.f32 %v4395, %v4406
    %v4418 = vadd.f32 %v4396, %v4407
    %v4419 = vadd.f32 %v4397, %v4408
    %v4420 = vadd.f32 %v4398, %v4409
    %v4421 = vadd.f32 %v4399, %v4410
    %v4422 = vadd.f32 %v4400, %v4411
    %v4423 = vadd.f32 %v4401, %v4412
    %v4424 = vadd.f32 %v4402, %v4413
    %v4425 = vadd.f32 %v4403, %v4414
    %v4426 = vadd.f32 %v4404, %v4415
    %v4427 = vmul.f32 %v3930, %v4023
    %v4428 = vmul.f32 %v3930, %v4024
    %v4429 = vmul.f32 %v3930, %v4025
    %v4430 = vmul.f32 %v3930, %v4026
    %v4431 = vmul.f32 %v3930, %v4027
    %v4432 = vmul.f32 %v3930, %v4028
    %v4433 = vmul.f32 %v3930, %v4029
    %v4434 = vmul.f32 %v3930, %v4030
    %v4435 = vmul.f32 %v3930, %v4031
    %v4436 = vmul.f32 %v3930, %v4032
    %v4437 = vmul.f32 %v3930, %v4033
    %v4438 = vadd.f32 %v4416, %v4427
    %v4439 = vadd.f32 %v4417, %v4428
    %v4440 = vadd.f32 %v4418, %v4429
    %v4441 = vadd.f32 %v4419, %v4430
    %v4442 = vadd.f32 %v4420, %v4431
    %v4443 = vadd.f32 %v4421, %v4432
    %v4444 = vadd.f32 %v4422, %v4433
    %v4445 = vadd.f32 %v4423, %v4434
    %v4446 = vadd.f32 %v4424, %v4435
    %v4447 = vadd.f32 %v4425, %v4436
    %v4448 = vadd.f32 %v4426, %v4437
    %v4449 = vmul.f32 %v3965, %v4058
    %v4450 = vmul.f32 %v3965, %v4059
    %v4451 = vmul.f32 %v3965, %v4060
    %v4452 = vmul.f32 %v3965, %v4061
    %v4453 = vmul.f32 %v3965, %v4062
    %v4454 = vmul.f32 %v3965, %v4063
    %v4455 = vmul.f32 %v3965, %v4064
    %v4456 = vmul.f32 %v3965, %v4065
    %v4457 = vmul.f32 %v3965, %v4066
    %v4458 = vmul.f32 %v3965, %v4067
    %v4459 = vmul.f32 %v3965, %v4068
    %v4460 = vadd.f32 %v4438, %v4449
    %v4461 = vadd.f32 %v4439, %v4450
    %v4462 = vadd.f32 %v4440, %v4451
    %v4463 = vadd.f32 %v4441, %v4452
    %v4464 = vadd.f32 %v4442, %v4453
    %v4465 = vadd.f32 %v4443, %v4454
    %v4466 = vadd.f32 %v4444, %v4455
    %v4467 = vadd.f32 %v4445, %v4456
    %v4468 = vadd.f32 %v4446, %v4457
    %v4469 = vadd.f32 %v4447, %v4458
    %v4470 = vadd.f32 %v4448, %v4459
    %v4471 = vmul.f32 %v4000, %v4093
    %v4472 = vmul.f32 %v4000, %v4094
    %v4473 = vmul.f32 %v4000, %v4095
    %v4474 = vmul.f32 %v4000, %v4096
    %v4475 = vmul.f32 %v4000, %v4097
    %v4476 = vmul.f32 %v4000, %v4098
    %v4477 = vmul.f32 %v4000, %v4099
    %v4478 = vmul.f32 %v4000, %v4100
    %v4479 = vmul.f32 %v4000, %v4101
    %v4480 = vmul.f32 %v4000, %v4102
    %v4481 = vmul.f32 %v4000, %v4103
    %v4482 = vadd.f32 %v4460, %v4471
    %v4483 = vadd.f32 %v4461, %v4472
    %v4484 = vadd.f32 %v4462, %v4473
    %v4485 = vadd.f32 %v4463, %v4474
    %v4486 = vadd.f32 %v4464, %v4475
    %v4487 = vadd.f32 %v4465, %v4476
    %v4488 = vadd.f32 %v4466, %v4477
    %v4489 = vadd.f32 %v4467, %v4478
    %v4490 = vadd.f32 %v4468, %v4479
    %v4491 = vadd.f32 %v4469, %v4480
    %v4492 = vadd.f32 %v4470, %v4481
    %v4493 = vmul.f32 %v4035, %v4128
    %v4494 = vmul.f32 %v4035, %v4129
    %v4495 = vmul.f32 %v4035, %v4130
    %v4496 = vmul.f32 %v4035, %v4131
    %v4497 = vmul.f32 %v4035, %v4132
    %v4498 = vmul.f32 %v4035, %v4133
    %v4499 = vmul.f32 %v4035, %v4134
    %v4500 = vmul.f32 %v4035, %v4135
    %v4501 = vmul.f32 %v4035, %v4136
    %v4502 = vmul.f32 %v4035, %v4137
    %v4503 = vmul.f32 %v4035, %v4138
    %v4504 = vadd.f32 %v4482, %v4493
    %v4505 = vadd.f32 %v4483, %v4494
    %v4506 = vadd.f32 %v4484, %v4495
    %v4507 = vadd.f32 %v4485, %v4496
    %v4508 = vadd.f32 %v4486, %v4497
    %v4509 = vadd.f32 %v4487, %v4498
    %v4510 = vadd.f32 %v4488, %v4499
    %v4511 = vadd.f32 %v4489, %v4500
    %v4512 = vadd.f32 %v4490, %v4501
    %v4513 = vadd.f32 %v4491, %v4502
    %v4514 = vadd.f32 %v4492, %v4503
    %v4515 = vld [vmem:[%s1701 + $0x1] sm:$0xff]
    %v4516 = vld [vmem:[%s1701 + $0x9] sm:$0xff]
    %v4517 = vld [vmem:[%s1701 + $0x11] sm:$0xff]
    %v4518 = vld [vmem:[%s1701 + $0x19] sm:$0xff]
    %v4519 = vld [vmem:[%s1701 + $0x21] sm:$0xff]
    %v4520 = vld [vmem:[%s1701 + $0x29] sm:$0xff]
    %v4521 = vld [vmem:[%s1701 + $0x31] sm:$0xff]
    %v4522 = vld [vmem:[%s1701 + $0x39] sm:$0xff]
    %v4523 = vld [vmem:[%s1701 + $0x41] sm:$0xff]
    %v4524 = vld [vmem:[%s1701 + $0x49] sm:$0xff]
    %v4525 = vld [vmem:[%s1701 + $0x51] sm:$0x7f]
    %v4526 = vmul.f32 %v4070, %v4515
    %v4527 = vmul.f32 %v4070, %v4516
    %v4528 = vmul.f32 %v4070, %v4517
    %v4529 = vmul.f32 %v4070, %v4518
    %v4530 = vmul.f32 %v4070, %v4519
    %v4531 = vmul.f32 %v4070, %v4520
    %v4532 = vmul.f32 %v4070, %v4521
    %v4533 = vmul.f32 %v4070, %v4522
    %v4534 = vmul.f32 %v4070, %v4523
    %v4535 = vmul.f32 %v4070, %v4524
    %v4536 = vmul.f32 %v4070, %v4525
    %v4537 = vadd.f32 %v4504, %v4526
    %v4538 = vadd.f32 %v4505, %v4527
    %v4539 = vadd.f32 %v4506, %v4528
    %v4540 = vadd.f32 %v4507, %v4529
    %v4541 = vadd.f32 %v4508, %v4530
    %v4542 = vadd.f32 %v4509, %v4531
    %v4543 = vadd.f32 %v4510, %v4532
    %v4544 = vadd.f32 %v4511, %v4533
    %v4545 = vadd.f32 %v4512, %v4534
    %v4546 = vadd.f32 %v4513, %v4535
    %v4547 = vadd.f32 %v4514, %v4536
    %v4548 = vld [vmem:[%s1769 + $0x1] sm:$0xff]
    %v4549 = vld [vmem:[%s1769 + $0x9] sm:$0xff]
    %v4550 = vld [vmem:[%s1769 + $0x11] sm:$0xff]
    %v4551 = vld [vmem:[%s1769 + $0x19] sm:$0xff]
    %v4552 = vld [vmem:[%s1769 + $0x21] sm:$0xff]
    %v4553 = vld [vmem:[%s1769 + $0x29] sm:$0xff]
    %v4554 = vld [vmem:[%s1769 + $0x31] sm:$0xff]
    %v4555 = vld [vmem:[%s1769 + $0x39] sm:$0xff]
    %v4556 = vld [vmem:[%s1769 + $0x41] sm:$0xff]
    %v4557 = vld [vmem:[%s1769 + $0x49] sm:$0xff]
    %v4558 = vld [vmem:[%s1769 + $0x51] sm:$0x7f]
    %v4559 = vmul.f32 %v4105, %v4548
    %v4560 = vmul.f32 %v4105, %v4549
    %v4561 = vmul.f32 %v4105, %v4550
    %v4562 = vmul.f32 %v4105, %v4551
    %v4563 = vmul.f32 %v4105, %v4552
    %v4564 = vmul.f32 %v4105, %v4553
    %v4565 = vmul.f32 %v4105, %v4554
    %v4566 = vmul.f32 %v4105, %v4555
    %v4567 = vmul.f32 %v4105, %v4556
    %v4568 = vmul.f32 %v4105, %v4557
    %v4569 = vmul.f32 %v4105, %v4558
    %v4570 = vadd.f32 %v4537, %v4559
    %v4571 = vadd.f32 %v4538, %v4560
    %v4572 = vadd.f32 %v4539, %v4561
    %v4573 = vadd.f32 %v4540, %v4562
    %v4574 = vadd.f32 %v4541, %v4563
    %v4575 = vadd.f32 %v4542, %v4564
    %v4576 = vadd.f32 %v4543, %v4565
    %v4577 = vadd.f32 %v4544, %v4566
    %v4578 = vadd.f32 %v4545, %v4567
    %v4579 = vadd.f32 %v4546, %v4568
    %v4580 = vadd.f32 %v4547, %v4569
    %v4581 = vld [vmem:[%s1757 + $0x1] sm:$0xff]
    %v4582 = vld [vmem:[%s1757 + $0x9] sm:$0xff]
    %v4583 = vld [vmem:[%s1757 + $0x11] sm:$0xff]
    %v4584 = vld [vmem:[%s1757 + $0x19] sm:$0xff]
    %v4585 = vld [vmem:[%s1757 + $0x21] sm:$0xff]
    %v4586 = vld [vmem:[%s1757 + $0x29] sm:$0xff]
    %v4587 = vld [vmem:[%s1757 + $0x31] sm:$0xff]
    %v4588 = vld [vmem:[%s1757 + $0x39] sm:$0xff]
    %v4589 = vld [vmem:[%s1757 + $0x41] sm:$0xff]
    %v4590 = vld [vmem:[%s1757 + $0x49] sm:$0xff]
    %v4591 = vld [vmem:[%s1757 + $0x51] sm:$0x7f]
    %v4592 = vmul.f32 %v4140, %v4581
    %v4593 = vmul.f32 %v4140, %v4582
    %v4594 = vmul.f32 %v4140, %v4583
    %v4595 = vmul.f32 %v4140, %v4584
    %v4596 = vmul.f32 %v4140, %v4585
    %v4597 = vmul.f32 %v4140, %v4586
    %v4598 = vmul.f32 %v4140, %v4587
    %v4599 = vmul.f32 %v4140, %v4588
    %v4600 = vmul.f32 %v4140, %v4589
    %v4601 = vmul.f32 %v4140, %v4590
    %v4602 = vmul.f32 %v4140, %v4591
    %v4603 = vadd.f32 %v4570, %v4592
    %v4604 = vadd.f32 %v4571, %v4593
    %v4605 = vadd.f32 %v4572, %v4594
    %v4606 = vadd.f32 %v4573, %v4595
    %v4607 = vadd.f32 %v4574, %v4596
    %v4608 = vadd.f32 %v4575, %v4597
    %v4609 = vadd.f32 %v4576, %v4598
    %v4610 = vadd.f32 %v4577, %v4599
    %v4611 = vadd.f32 %v4578, %v4600
    %v4612 = vadd.f32 %v4579, %v4601
    %v4613 = vadd.f32 %v4580, %v4602
    %v4614 = vmax.f32 %v4383, %v4603
    %v4615 = vmax.f32 %v4384, %v4604
    %v4616 = vmax.f32 %v4385, %v4605
    %v4617 = vmax.f32 %v4386, %v4606
    %v4618 = vmax.f32 %v4387, %v4607
    %v4619 = vmax.f32 %v4388, %v4608
    %v4620 = vmax.f32 %v4389, %v4609
    %v4621 = vmax.f32 %v4390, %v4610
    %v4622 = vmax.f32 %v4391, %v4611
    %v4623 = vmax.f32 %v4392, %v4612
    %v4624 = vmax.f32 %v4393, %v4613
    %v4625 = vmul.f32 %v3871, %v3988
    %v4626 = vmul.f32 %v3871, %v3989
    %v4627 = vmul.f32 %v3871, %v3990
    %v4628 = vmul.f32 %v3871, %v3991
    %v4629 = vmul.f32 %v3871, %v3992
    %v4630 = vmul.f32 %v3871, %v3993
    %v4631 = vmul.f32 %v3871, %v3994
    %v4632 = vmul.f32 %v3871, %v3995
    %v4633 = vmul.f32 %v3871, %v3996
    %v4634 = vmul.f32 %v3871, %v3997
    %v4635 = vmul.f32 %v3871, %v3998
    %v4636 = vmul.f32 %v3895, %v4023
    %v4637 = vmul.f32 %v3895, %v4024
    %v4638 = vmul.f32 %v3895, %v4025
    %v4639 = vmul.f32 %v3895, %v4026
    %v4640 = vmul.f32 %v3895, %v4027
    %v4641 = vmul.f32 %v3895, %v4028
    %v4642 = vmul.f32 %v3895, %v4029
    %v4643 = vmul.f32 %v3895, %v4030
    %v4644 = vmul.f32 %v3895, %v4031
    %v4645 = vmul.f32 %v3895, %v4032
    %v4646 = vmul.f32 %v3895, %v4033
    %v4647 = vadd.f32 %v4625, %v4636
    %v4648 = vadd.f32 %v4626, %v4637
    %v4649 = vadd.f32 %v4627, %v4638
    %v4650 = vadd.f32 %v4628, %v4639
    %v4651 = vadd.f32 %v4629, %v4640
    %v4652 = vadd.f32 %v4630, %v4641
    %v4653 = vadd.f32 %v4631, %v4642
    %v4654 = vadd.f32 %v4632, %v4643
    %v4655 = vadd.f32 %v4633, %v4644
    %v4656 = vadd.f32 %v4634, %v4645
    %v4657 = vadd.f32 %v4635, %v4646
    %v4658 = vmul.f32 %v3930, %v4273
    %v4659 = vmul.f32 %v3930, %v4274
    %v4660 = vmul.f32 %v3930, %v4275
    %v4661 = vmul.f32 %v3930, %v4276
    %v4662 = vmul.f32 %v3930, %v4277
    %v4663 = vmul.f32 %v3930, %v4278
    %v4664 = vmul.f32 %v3930, %v4279
    %v4665 = vmul.f32 %v3930, %v4280
    %v4666 = vmul.f32 %v3930, %v4281
    %v4667 = vmul.f32 %v3930, %v4282
    %v4668 = vmul.f32 %v3930, %v4283
    %v4669 = vadd.f32 %v4647, %v4658
    %v4670 = vadd.f32 %v4648, %v4659
    %v4671 = vadd.f32 %v4649, %v4660
    %v4672 = vadd.f32 %v4650, %v4661
    %v4673 = vadd.f32 %v4651, %v4662
    %v4674 = vadd.f32 %v4652, %v4663
    %v4675 = vadd.f32 %v4653, %v4664
    %v4676 = vadd.f32 %v4654, %v4665
    %v4677 = vadd.f32 %v4655, %v4666
    %v4678 = vadd.f32 %v4656, %v4667
    %v4679 = vadd.f32 %v4657, %v4668
    %v4680 = vmul.f32 %v3965, %v4093
    %v4681 = vmul.f32 %v3965, %v4094
    %v4682 = vmul.f32 %v3965, %v4095
    %v4683 = vmul.f32 %v3965, %v4096
    %v4684 = vmul.f32 %v3965, %v4097
    %v4685 = vmul.f32 %v3965, %v4098
    %v4686 = vmul.f32 %v3965, %v4099
    %v4687 = vmul.f32 %v3965, %v4100
    %v4688 = vmul.f32 %v3965, %v4101
    %v4689 = vmul.f32 %v3965, %v4102
    %v4690 = vmul.f32 %v3965, %v4103
    %v4691 = vadd.f32 %v4669, %v4680
    %v4692 = vadd.f32 %v4670, %v4681
    %v4693 = vadd.f32 %v4671, %v4682
    %v4694 = vadd.f32 %v4672, %v4683
    %v4695 = vadd.f32 %v4673, %v4684
    %v4696 = vadd.f32 %v4674, %v4685
    %v4697 = vadd.f32 %v4675, %v4686
    %v4698 = vadd.f32 %v4676, %v4687
    %v4699 = vadd.f32 %v4677, %v4688
    %v4700 = vadd.f32 %v4678, %v4689
    %v4701 = vadd.f32 %v4679, %v4690
    %v4702 = vmul.f32 %v4000, %v4128
    %v4703 = vmul.f32 %v4000, %v4129
    %v4704 = vmul.f32 %v4000, %v4130
    %v4705 = vmul.f32 %v4000, %v4131
    %v4706 = vmul.f32 %v4000, %v4132
    %v4707 = vmul.f32 %v4000, %v4133
    %v4708 = vmul.f32 %v4000, %v4134
    %v4709 = vmul.f32 %v4000, %v4135
    %v4710 = vmul.f32 %v4000, %v4136
    %v4711 = vmul.f32 %v4000, %v4137
    %v4712 = vmul.f32 %v4000, %v4138
    %v4713 = vadd.f32 %v4691, %v4702
    %v4714 = vadd.f32 %v4692, %v4703
    %v4715 = vadd.f32 %v4693, %v4704
    %v4716 = vadd.f32 %v4694, %v4705
    %v4717 = vadd.f32 %v4695, %v4706
    %v4718 = vadd.f32 %v4696, %v4707
    %v4719 = vadd.f32 %v4697, %v4708
    %v4720 = vadd.f32 %v4698, %v4709
    %v4721 = vadd.f32 %v4699, %v4710
    %v4722 = vadd.f32 %v4700, %v4711
    %v4723 = vadd.f32 %v4701, %v4712
    %v4724 = vmul.f32 %v4035, %v4350
    %v4725 = vmul.f32 %v4035, %v4351
    %v4726 = vmul.f32 %v4035, %v4352
    %v4727 = vmul.f32 %v4035, %v4353
    %v4728 = vmul.f32 %v4035, %v4354
    %v4729 = vmul.f32 %v4035, %v4355
    %v4730 = vmul.f32 %v4035, %v4356
    %v4731 = vmul.f32 %v4035, %v4357
    %v4732 = vmul.f32 %v4035, %v4358
    %v4733 = vmul.f32 %v4035, %v4359
    %v4734 = vmul.f32 %v4035, %v4360
    %v4735 = vadd.f32 %v4713, %v4724
    %v4736 = vadd.f32 %v4714, %v4725
    %v4737 = vadd.f32 %v4715, %v4726
    %v4738 = vadd.f32 %v4716, %v4727
    %v4739 = vadd.f32 %v4717, %v4728
    %v4740 = vadd.f32 %v4718, %v4729
    %v4741 = vadd.f32 %v4719, %v4730
    %v4742 = vadd.f32 %v4720, %v4731
    %v4743 = vadd.f32 %v4721, %v4732
    %v4744 = vadd.f32 %v4722, %v4733
    %v4745 = vadd.f32 %v4723, %v4734
    %v4746 = vmul.f32 %v4070, %v4548
    %v4747 = vmul.f32 %v4070, %v4549
    %v4748 = vmul.f32 %v4070, %v4550
    %v4749 = vmul.f32 %v4070, %v4551
    %v4750 = vmul.f32 %v4070, %v4552
    %v4751 = vmul.f32 %v4070, %v4553
    %v4752 = vmul.f32 %v4070, %v4554
    %v4753 = vmul.f32 %v4070, %v4555
    %v4754 = vmul.f32 %v4070, %v4556
    %v4755 = vmul.f32 %v4070, %v4557
    %v4756 = vmul.f32 %v4070, %v4558
    %v4757 = vadd.f32 %v4735, %v4746
    %v4758 = vadd.f32 %v4736, %v4747
    %v4759 = vadd.f32 %v4737, %v4748
    %v4760 = vadd.f32 %v4738, %v4749
    %v4761 = vadd.f32 %v4739, %v4750
    %v4762 = vadd.f32 %v4740, %v4751
    %v4763 = vadd.f32 %v4741, %v4752
    %v4764 = vadd.f32 %v4742, %v4753
    %v4765 = vadd.f32 %v4743, %v4754
    %v4766 = vadd.f32 %v4744, %v4755
    %v4767 = vadd.f32 %v4745, %v4756
    %v4768 = vmul.f32 %v4105, %v4581
    %v4769 = vmul.f32 %v4105, %v4582
    %v4770 = vmul.f32 %v4105, %v4583
    %v4771 = vmul.f32 %v4105, %v4584
    %v4772 = vmul.f32 %v4105, %v4585
    %v4773 = vmul.f32 %v4105, %v4586
    %v4774 = vmul.f32 %v4105, %v4587
    %v4775 = vmul.f32 %v4105, %v4588
    %v4776 = vmul.f32 %v4105, %v4589
    %v4777 = vmul.f32 %v4105, %v4590
    %v4778 = vmul.f32 %v4105, %v4591
    %v4779 = vadd.f32 %v4757, %v4768
    %v4780 = vadd.f32 %v4758, %v4769
    %v4781 = vadd.f32 %v4759, %v4770
    %v4782 = vadd.f32 %v4760, %v4771
    %v4783 = vadd.f32 %v4761, %v4772
    %v4784 = vadd.f32 %v4762, %v4773
    %v4785 = vadd.f32 %v4763, %v4774
    %v4786 = vadd.f32 %v4764, %v4775
    %v4787 = vadd.f32 %v4765, %v4776
    %v4788 = vadd.f32 %v4766, %v4777
    %v4789 = vadd.f32 %v4767, %v4778
    %v4790 = vld [vmem:[%s1825 + $0x1] sm:$0xff]
    %v4791 = vld [vmem:[%s1825 + $0x9] sm:$0xff]
    %v4792 = vld [vmem:[%s1825 + $0x11] sm:$0xff]
    %v4793 = vld [vmem:[%s1825 + $0x19] sm:$0xff]
    %v4794 = vld [vmem:[%s1825 + $0x21] sm:$0xff]
    %v4795 = vld [vmem:[%s1825 + $0x29] sm:$0xff]
    %v4796 = vld [vmem:[%s1825 + $0x31] sm:$0xff]
    %v4797 = vld [vmem:[%s1825 + $0x39] sm:$0xff]
    %v4798 = vld [vmem:[%s1825 + $0x41] sm:$0xff]
    %v4799 = vld [vmem:[%s1825 + $0x49] sm:$0xff]
    %v4800 = vld [vmem:[%s1825 + $0x51] sm:$0x7f]
    %v4801 = vmul.f32 %v4140, %v4790
    %v4802 = vmul.f32 %v4140, %v4791
    %v4803 = vmul.f32 %v4140, %v4792
    %v4804 = vmul.f32 %v4140, %v4793
    %v4805 = vmul.f32 %v4140, %v4794
    %v4806 = vmul.f32 %v4140, %v4795
    %v4807 = vmul.f32 %v4140, %v4796
    %v4808 = vmul.f32 %v4140, %v4797
    %v4809 = vmul.f32 %v4140, %v4798
    %v4810 = vmul.f32 %v4140, %v4799
    %v4811 = vmul.f32 %v4140, %v4800
    %v4812 = vadd.f32 %v4779, %v4801
    %v4813 = vadd.f32 %v4780, %v4802
    %v4814 = vadd.f32 %v4781, %v4803
    %v4815 = vadd.f32 %v4782, %v4804
    %v4816 = vadd.f32 %v4783, %v4805
    %v4817 = vadd.f32 %v4784, %v4806
    %v4818 = vadd.f32 %v4785, %v4807
    %v4819 = vadd.f32 %v4786, %v4808
    %v4820 = vadd.f32 %v4787, %v4809
    %v4821 = vadd.f32 %v4788, %v4810
    %v4822 = vadd.f32 %v4789, %v4811
    %v4823 = vmax.f32 %v4614, %v4812
    %v4824 = vmax.f32 %v4615, %v4813
    %v4825 = vmax.f32 %v4616, %v4814
    %v4826 = vmax.f32 %v4617, %v4815
    %v4827 = vmax.f32 %v4618, %v4816
    %v4828 = vmax.f32 %v4619, %v4817
    %v4829 = vmax.f32 %v4620, %v4818
    %v4830 = vmax.f32 %v4621, %v4819
    %v4831 = vmax.f32 %v4622, %v4820
    %v4832 = vmax.f32 %v4623, %v4821
    %v4833 = vmax.f32 %v4624, %v4822
    %s4834 = sld [smem:[#allocation29 + $0x2]]
    %v4835 = vstv %s4834
    %v4836 = vadd.f32 %v4823, %v4835
    %v4837 = vadd.f32 %v4824, %v4835
    %v4838 = vadd.f32 %v4825, %v4835
    %v4839 = vadd.f32 %v4826, %v4835
    %v4840 = vadd.f32 %v4827, %v4835
    %v4841 = vadd.f32 %v4828, %v4835
    %v4842 = vadd.f32 %v4829, %v4835
    %v4843 = vadd.f32 %v4830, %v4835
    %v4844 = vadd.f32 %v4831, %v4835
    %v4845 = vadd.f32 %v4832, %v4835
    %v4846 = vadd.f32 %v4833, %v4835
    %v4847 = vmax.f32 %v4836, 0.0
    %v4848 = vmax.f32 %v4837, 0.0
    %v4849 = vmax.f32 %v4838, 0.0
    %v4850 = vmax.f32 %v4839, 0.0
    %v4851 = vmax.f32 %v4840, 0.0
    %v4852 = vmax.f32 %v4841, 0.0
    %v4853 = vmax.f32 %v4842, 0.0
    %v4854 = vmax.f32 %v4843, 0.0
    %v4855 = vmax.f32 %v4844, 0.0
    %v4856 = vmax.f32 %v4845, 0.0
    %v4857 = vmax.f32 %v4846, 0.0
    %s4858 = scalar_lea.vmem [#allocation3], 176
    %4859 = vst.msk [vmem:[%s4858] sm:$0xff] %vm1621, %v4847
    %4860 = vst.msk [vmem:[%s4858 + $0x8] sm:$0xff] %vm1621, %v4848
    %4861 = vst.msk [vmem:[%s4858 + $0x10] sm:$0xff] %vm1621, %v4849
    %4862 = vst.msk [vmem:[%s4858 + $0x18] sm:$0xff] %vm1621, %v4850
    %4863 = vst.msk [vmem:[%s4858 + $0x20] sm:$0xff] %vm1621, %v4851
    %4864 = vst.msk [vmem:[%s4858 + $0x28] sm:$0xff] %vm1621, %v4852
    %4865 = vst.msk [vmem:[%s4858 + $0x30] sm:$0xff] %vm1621, %v4853
    %4866 = vst.msk [vmem:[%s4858 + $0x38] sm:$0xff] %vm1621, %v4854
    %4867 = vst.msk [vmem:[%s4858 + $0x40] sm:$0xff] %vm1621, %v4855
    %4868 = vst.msk [vmem:[%s4858 + $0x48] sm:$0xff] %vm1621, %v4856
    %4869 = vst.msk [vmem:[%s4858 + $0x50] sm:$0x7f] %vm2846, %v4857
    %v4870 = vld [vmem:[#allocation33] sm:$0xff]
    %v4871 = vld [vmem:[#allocation33 + $0x8] sm:$0xff]
    %v4872 = vld [vmem:[#allocation33 + $0x10] sm:$0xff]
    %v4873 = vld [vmem:[#allocation33 + $0x18] sm:$0xff]
    %v4874 = vld [vmem:[#allocation33 + $0x20] sm:$0xff]
    %v4875 = vld [vmem:[#allocation33 + $0x28] sm:$0xff]
    %v4876 = vld [vmem:[#allocation33 + $0x30] sm:$0xff]
    %v4877 = vld [vmem:[#allocation33 + $0x38] sm:$0xff]
    %v4878 = vld [vmem:[#allocation33 + $0x40] sm:$0xff]
    %v4879 = vld [vmem:[#allocation33 + $0x48] sm:$0xff]
    %v4880 = vld [vmem:[#allocation33 + $0x50] sm:$0x7f]
    %s4881 = sld [smem:[#allocation26 + $0x180]]
    %v4882 = vstv %s4881
    %v4883 = vmul.f32 %v4882, %v4870
    %v4884 = vmul.f32 %v4882, %v4871
    %v4885 = vmul.f32 %v4882, %v4872
    %v4886 = vmul.f32 %v4882, %v4873
    %v4887 = vmul.f32 %v4882, %v4874
    %v4888 = vmul.f32 %v4882, %v4875
    %v4889 = vmul.f32 %v4882, %v4876
    %v4890 = vmul.f32 %v4882, %v4877
    %v4891 = vmul.f32 %v4882, %v4878
    %v4892 = vmul.f32 %v4882, %v4879
    %v4893 = vmul.f32 %v4882, %v4880
    %v4894 = vld [vmem:[%s1633] sm:$0xff]
    %v4895 = vld [vmem:[%s1633 + $0x8] sm:$0xff]
    %v4896 = vld [vmem:[%s1633 + $0x10] sm:$0xff]
    %v4897 = vld [vmem:[%s1633 + $0x18] sm:$0xff]
    %v4898 = vld [vmem:[%s1633 + $0x20] sm:$0xff]
    %v4899 = vld [vmem:[%s1633 + $0x28] sm:$0xff]
    %v4900 = vld [vmem:[%s1633 + $0x30] sm:$0xff]
    %v4901 = vld [vmem:[%s1633 + $0x38] sm:$0xff]
    %v4902 = vld [vmem:[%s1633 + $0x40] sm:$0xff]
    %v4903 = vld [vmem:[%s1633 + $0x48] sm:$0xff]
    %v4904 = vld [vmem:[%s1633 + $0x50] sm:$0x7f]
    %s4905 = sld [smem:[#allocation26 + $0x181]]
    %v4906 = vstv %s4905
    %v4907 = vmul.f32 %v4906, %v4894
    %v4908 = vmul.f32 %v4906, %v4895
    %v4909 = vmul.f32 %v4906, %v4896
    %v4910 = vmul.f32 %v4906, %v4897
    %v4911 = vmul.f32 %v4906, %v4898
    %v4912 = vmul.f32 %v4906, %v4899
    %v4913 = vmul.f32 %v4906, %v4900
    %v4914 = vmul.f32 %v4906, %v4901
    %v4915 = vmul.f32 %v4906, %v4902
    %v4916 = vmul.f32 %v4906, %v4903
    %v4917 = vmul.f32 %v4906, %v4904
    %v4918 = vadd.f32 %v4883, %v4907
    %v4919 = vadd.f32 %v4884, %v4908
    %v4920 = vadd.f32 %v4885, %v4909
    %v4921 = vadd.f32 %v4886, %v4910
    %v4922 = vadd.f32 %v4887, %v4911
    %v4923 = vadd.f32 %v4888, %v4912
    %v4924 = vadd.f32 %v4889, %v4913
    %v4925 = vadd.f32 %v4890, %v4914
    %v4926 = vadd.f32 %v4891, %v4915
    %v4927 = vadd.f32 %v4892, %v4916
    %v4928 = vadd.f32 %v4893, %v4917
    %v4929 = vld [vmem:[#allocation2] sm:$0xff]
    %v4930 = vld [vmem:[#allocation2 + $0x8] sm:$0xff]
    %v4931 = vld [vmem:[#allocation2 + $0x10] sm:$0xff]
    %v4932 = vld [vmem:[#allocation2 + $0x18] sm:$0xff]
    %v4933 = vld [vmem:[#allocation2 + $0x20] sm:$0xff]
    %v4934 = vld [vmem:[#allocation2 + $0x28] sm:$0xff]
    %v4935 = vld [vmem:[#allocation2 + $0x30] sm:$0xff]
    %v4936 = vld [vmem:[#allocation2 + $0x38] sm:$0xff]
    %v4937 = vld [vmem:[#allocation2 + $0x40] sm:$0xff]
    %v4938 = vld [vmem:[#allocation2 + $0x48] sm:$0xff]
    %v4939 = vld [vmem:[#allocation2 + $0x50] sm:$0x7f]
    %s4940 = sld [smem:[#allocation26 + $0x182]]
    %v4941 = vstv %s4940
    %v4942 = vmul.f32 %v4941, %v4929
    %v4943 = vmul.f32 %v4941, %v4930
    %v4944 = vmul.f32 %v4941, %v4931
    %v4945 = vmul.f32 %v4941, %v4932
    %v4946 = vmul.f32 %v4941, %v4933
    %v4947 = vmul.f32 %v4941, %v4934
    %v4948 = vmul.f32 %v4941, %v4935
    %v4949 = vmul.f32 %v4941, %v4936
    %v4950 = vmul.f32 %v4941, %v4937
    %v4951 = vmul.f32 %v4941, %v4938
    %v4952 = vmul.f32 %v4941, %v4939
    %v4953 = vadd.f32 %v4918, %v4942
    %v4954 = vadd.f32 %v4919, %v4943
    %v4955 = vadd.f32 %v4920, %v4944
    %v4956 = vadd.f32 %v4921, %v4945
    %v4957 = vadd.f32 %v4922, %v4946
    %v4958 = vadd.f32 %v4923, %v4947
    %v4959 = vadd.f32 %v4924, %v4948
    %v4960 = vadd.f32 %v4925, %v4949
    %v4961 = vadd.f32 %v4926, %v4950
    %v4962 = vadd.f32 %v4927, %v4951
    %v4963 = vadd.f32 %v4928, %v4952
    %v4964 = vld [vmem:[%s1701] sm:$0xff]
    %v4965 = vld [vmem:[%s1701 + $0x8] sm:$0xff]
    %v4966 = vld [vmem:[%s1701 + $0x10] sm:$0xff]
    %v4967 = vld [vmem:[%s1701 + $0x18] sm:$0xff]
    %v4968 = vld [vmem:[%s1701 + $0x20] sm:$0xff]
    %v4969 = vld [vmem:[%s1701 + $0x28] sm:$0xff]
    %v4970 = vld [vmem:[%s1701 + $0x30] sm:$0xff]
    %v4971 = vld [vmem:[%s1701 + $0x38] sm:$0xff]
    %v4972 = vld [vmem:[%s1701 + $0x40] sm:$0xff]
    %v4973 = vld [vmem:[%s1701 + $0x48] sm:$0xff]
    %v4974 = vld [vmem:[%s1701 + $0x50] sm:$0x7f]
    %s4975 = sld [smem:[#allocation26 + $0x183]]
    %v4976 = vstv %s4975
    %v4977 = vmul.f32 %v4976, %v4964
    %v4978 = vmul.f32 %v4976, %v4965
    %v4979 = vmul.f32 %v4976, %v4966
    %v4980 = vmul.f32 %v4976, %v4967
    %v4981 = vmul.f32 %v4976, %v4968
    %v4982 = vmul.f32 %v4976, %v4969
    %v4983 = vmul.f32 %v4976, %v4970
    %v4984 = vmul.f32 %v4976, %v4971
    %v4985 = vmul.f32 %v4976, %v4972
    %v4986 = vmul.f32 %v4976, %v4973
    %v4987 = vmul.f32 %v4976, %v4974
    %v4988 = vadd.f32 %v4953, %v4977
    %v4989 = vadd.f32 %v4954, %v4978
    %v4990 = vadd.f32 %v4955, %v4979
    %v4991 = vadd.f32 %v4956, %v4980
    %v4992 = vadd.f32 %v4957, %v4981
    %v4993 = vadd.f32 %v4958, %v4982
    %v4994 = vadd.f32 %v4959, %v4983
    %v4995 = vadd.f32 %v4960, %v4984
    %v4996 = vadd.f32 %v4961, %v4985
    %v4997 = vadd.f32 %v4962, %v4986
    %v4998 = vadd.f32 %v4963, %v4987
    %v4999 = vld [vmem:[%s1769] sm:$0xff]
    %v5000 = vld [vmem:[%s1769 + $0x8] sm:$0xff]
    %v5001 = vld [vmem:[%s1769 + $0x10] sm:$0xff]
    %v5002 = vld [vmem:[%s1769 + $0x18] sm:$0xff]
    %v5003 = vld [vmem:[%s1769 + $0x20] sm:$0xff]
    %v5004 = vld [vmem:[%s1769 + $0x28] sm:$0xff]
    %v5005 = vld [vmem:[%s1769 + $0x30] sm:$0xff]
    %v5006 = vld [vmem:[%s1769 + $0x38] sm:$0xff]
    %v5007 = vld [vmem:[%s1769 + $0x40] sm:$0xff]
    %v5008 = vld [vmem:[%s1769 + $0x48] sm:$0xff]
    %v5009 = vld [vmem:[%s1769 + $0x50] sm:$0x7f]
    %s5010 = sld [smem:[#allocation26 + $0x184]]
    %v5011 = vstv %s5010
    %v5012 = vmul.f32 %v5011, %v4999
    %v5013 = vmul.f32 %v5011, %v5000
    %v5014 = vmul.f32 %v5011, %v5001
    %v5015 = vmul.f32 %v5011, %v5002
    %v5016 = vmul.f32 %v5011, %v5003
    %v5017 = vmul.f32 %v5011, %v5004
    %v5018 = vmul.f32 %v5011, %v5005
    %v5019 = vmul.f32 %v5011, %v5006
    %v5020 = vmul.f32 %v5011, %v5007
    %v5021 = vmul.f32 %v5011, %v5008
    %v5022 = vmul.f32 %v5011, %v5009
    %v5023 = vadd.f32 %v4988, %v5012
    %v5024 = vadd.f32 %v4989, %v5013
    %v5025 = vadd.f32 %v4990, %v5014
    %v5026 = vadd.f32 %v4991, %v5015
    %v5027 = vadd.f32 %v4992, %v5016
    %v5028 = vadd.f32 %v4993, %v5017
    %v5029 = vadd.f32 %v4994, %v5018
    %v5030 = vadd.f32 %v4995, %v5019
    %v5031 = vadd.f32 %v4996, %v5020
    %v5032 = vadd.f32 %v4997, %v5021
    %v5033 = vadd.f32 %v4998, %v5022
    %v5034 = vld [vmem:[%s1757] sm:$0xff]
    %v5035 = vld [vmem:[%s1757 + $0x8] sm:$0xff]
    %v5036 = vld [vmem:[%s1757 + $0x10] sm:$0xff]
    %v5037 = vld [vmem:[%s1757 + $0x18] sm:$0xff]
    %v5038 = vld [vmem:[%s1757 + $0x20] sm:$0xff]
    %v5039 = vld [vmem:[%s1757 + $0x28] sm:$0xff]
    %v5040 = vld [vmem:[%s1757 + $0x30] sm:$0xff]
    %v5041 = vld [vmem:[%s1757 + $0x38] sm:$0xff]
    %v5042 = vld [vmem:[%s1757 + $0x40] sm:$0xff]
    %v5043 = vld [vmem:[%s1757 + $0x48] sm:$0xff]
    %v5044 = vld [vmem:[%s1757 + $0x50] sm:$0x7f]
    %s5045 = sld [smem:[#allocation26 + $0x185]]
    %v5046 = vstv %s5045
    %v5047 = vmul.f32 %v5046, %v5034
    %v5048 = vmul.f32 %v5046, %v5035
    %v5049 = vmul.f32 %v5046, %v5036
    %v5050 = vmul.f32 %v5046, %v5037
    %v5051 = vmul.f32 %v5046, %v5038
    %v5052 = vmul.f32 %v5046, %v5039
    %v5053 = vmul.f32 %v5046, %v5040
    %v5054 = vmul.f32 %v5046, %v5041
    %v5055 = vmul.f32 %v5046, %v5042
    %v5056 = vmul.f32 %v5046, %v5043
    %v5057 = vmul.f32 %v5046, %v5044
    %v5058 = vadd.f32 %v5023, %v5047
    %v5059 = vadd.f32 %v5024, %v5048
    %v5060 = vadd.f32 %v5025, %v5049
    %v5061 = vadd.f32 %v5026, %v5050
    %v5062 = vadd.f32 %v5027, %v5051
    %v5063 = vadd.f32 %v5028, %v5052
    %v5064 = vadd.f32 %v5029, %v5053
    %v5065 = vadd.f32 %v5030, %v5054
    %v5066 = vadd.f32 %v5031, %v5055
    %v5067 = vadd.f32 %v5032, %v5056
    %v5068 = vadd.f32 %v5033, %v5057
    %v5069 = vld [vmem:[#allocation33 + $0x1] sm:$0xff]
    %v5070 = vld [vmem:[#allocation33 + $0x9] sm:$0xff]
    %v5071 = vld [vmem:[#allocation33 + $0x11] sm:$0xff]
    %v5072 = vld [vmem:[#allocation33 + $0x19] sm:$0xff]
    %v5073 = vld [vmem:[#allocation33 + $0x21] sm:$0xff]
    %v5074 = vld [vmem:[#allocation33 + $0x29] sm:$0xff]
    %v5075 = vld [vmem:[#allocation33 + $0x31] sm:$0xff]
    %v5076 = vld [vmem:[#allocation33 + $0x39] sm:$0xff]
    %v5077 = vld [vmem:[#allocation33 + $0x41] sm:$0xff]
    %v5078 = vld [vmem:[#allocation33 + $0x49] sm:$0xff]
    %v5079 = vld [vmem:[#allocation33 + $0x51] sm:$0x7f]
    %s5080 = sld [smem:[#allocation26 + $0x186]]
    %v5081 = vstv %s5080
    %v5082 = vmul.f32 %v5081, %v5069
    %v5083 = vmul.f32 %v5081, %v5070
    %v5084 = vmul.f32 %v5081, %v5071
    %v5085 = vmul.f32 %v5081, %v5072
    %v5086 = vmul.f32 %v5081, %v5073
    %v5087 = vmul.f32 %v5081, %v5074
    %v5088 = vmul.f32 %v5081, %v5075
    %v5089 = vmul.f32 %v5081, %v5076
    %v5090 = vmul.f32 %v5081, %v5077
    %v5091 = vmul.f32 %v5081, %v5078
    %v5092 = vmul.f32 %v5081, %v5079
    %v5093 = vadd.f32 %v5058, %v5082
    %v5094 = vadd.f32 %v5059, %v5083
    %v5095 = vadd.f32 %v5060, %v5084
    %v5096 = vadd.f32 %v5061, %v5085
    %v5097 = vadd.f32 %v5062, %v5086
    %v5098 = vadd.f32 %v5063, %v5087
    %v5099 = vadd.f32 %v5064, %v5088
    %v5100 = vadd.f32 %v5065, %v5089
    %v5101 = vadd.f32 %v5066, %v5090
    %v5102 = vadd.f32 %v5067, %v5091
    %v5103 = vadd.f32 %v5068, %v5092
    %v5104 = vld [vmem:[%s1633 + $0x1] sm:$0xff]
    %v5105 = vld [vmem:[%s1633 + $0x9] sm:$0xff]
    %v5106 = vld [vmem:[%s1633 + $0x11] sm:$0xff]
    %v5107 = vld [vmem:[%s1633 + $0x19] sm:$0xff]
    %v5108 = vld [vmem:[%s1633 + $0x21] sm:$0xff]
    %v5109 = vld [vmem:[%s1633 + $0x29] sm:$0xff]
    %v5110 = vld [vmem:[%s1633 + $0x31] sm:$0xff]
    %v5111 = vld [vmem:[%s1633 + $0x39] sm:$0xff]
    %v5112 = vld [vmem:[%s1633 + $0x41] sm:$0xff]
    %v5113 = vld [vmem:[%s1633 + $0x49] sm:$0xff]
    %v5114 = vld [vmem:[%s1633 + $0x51] sm:$0x7f]
    %s5115 = sld [smem:[#allocation26 + $0x187]]
    %v5116 = vstv %s5115
    %v5117 = vmul.f32 %v5116, %v5104
    %v5118 = vmul.f32 %v5116, %v5105
    %v5119 = vmul.f32 %v5116, %v5106
    %v5120 = vmul.f32 %v5116, %v5107
    %v5121 = vmul.f32 %v5116, %v5108
    %v5122 = vmul.f32 %v5116, %v5109
    %v5123 = vmul.f32 %v5116, %v5110
    %v5124 = vmul.f32 %v5116, %v5111
    %v5125 = vmul.f32 %v5116, %v5112
    %v5126 = vmul.f32 %v5116, %v5113
    %v5127 = vmul.f32 %v5116, %v5114
    %v5128 = vadd.f32 %v5093, %v5117
    %v5129 = vadd.f32 %v5094, %v5118
    %v5130 = vadd.f32 %v5095, %v5119
    %v5131 = vadd.f32 %v5096, %v5120
    %v5132 = vadd.f32 %v5097, %v5121
    %v5133 = vadd.f32 %v5098, %v5122
    %v5134 = vadd.f32 %v5099, %v5123
    %v5135 = vadd.f32 %v5100, %v5124
    %v5136 = vadd.f32 %v5101, %v5125
    %v5137 = vadd.f32 %v5102, %v5126
    %v5138 = vadd.f32 %v5103, %v5127
    %v5139 = vld [vmem:[#allocation2 + $0x1] sm:$0xff]
    %v5140 = vld [vmem:[#allocation2 + $0x9] sm:$0xff]
    %v5141 = vld [vmem:[#allocation2 + $0x11] sm:$0xff]
    %v5142 = vld [vmem:[#allocation2 + $0x19] sm:$0xff]
    %v5143 = vld [vmem:[#allocation2 + $0x21] sm:$0xff]
    %v5144 = vld [vmem:[#allocation2 + $0x29] sm:$0xff]
    %v5145 = vld [vmem:[#allocation2 + $0x31] sm:$0xff]
    %v5146 = vld [vmem:[#allocation2 + $0x39] sm:$0xff]
    %v5147 = vld [vmem:[#allocation2 + $0x41] sm:$0xff]
    %v5148 = vld [vmem:[#allocation2 + $0x49] sm:$0xff]
    %v5149 = vld [vmem:[#allocation2 + $0x51] sm:$0x7f]
    %s5150 = sld [smem:[#allocation26 + $0x188]]
    %v5151 = vstv %s5150
    %v5152 = vmul.f32 %v5151, %v5139
    %v5153 = vmul.f32 %v5151, %v5140
    %v5154 = vmul.f32 %v5151, %v5141
    %v5155 = vmul.f32 %v5151, %v5142
    %v5156 = vmul.f32 %v5151, %v5143
    %v5157 = vmul.f32 %v5151, %v5144
    %v5158 = vmul.f32 %v5151, %v5145
    %v5159 = vmul.f32 %v5151, %v5146
    %v5160 = vmul.f32 %v5151, %v5147
    %v5161 = vmul.f32 %v5151, %v5148
    %v5162 = vmul.f32 %v5151, %v5149
    %v5163 = vadd.f32 %v5128, %v5152
    %v5164 = vadd.f32 %v5129, %v5153
    %v5165 = vadd.f32 %v5130, %v5154
    %v5166 = vadd.f32 %v5131, %v5155
    %v5167 = vadd.f32 %v5132, %v5156
    %v5168 = vadd.f32 %v5133, %v5157
    %v5169 = vadd.f32 %v5134, %v5158
    %v5170 = vadd.f32 %v5135, %v5159
    %v5171 = vadd.f32 %v5136, %v5160
    %v5172 = vadd.f32 %v5137, %v5161
    %v5173 = vadd.f32 %v5138, %v5162
    %v5174 = vmul.f32 %v4882, %v4894
    %v5175 = vmul.f32 %v4882, %v4895
    %v5176 = vmul.f32 %v4882, %v4896
    %v5177 = vmul.f32 %v4882, %v4897
    %v5178 = vmul.f32 %v4882, %v4898
    %v5179 = vmul.f32 %v4882, %v4899
    %v5180 = vmul.f32 %v4882, %v4900
    %v5181 = vmul.f32 %v4882, %v4901
    %v5182 = vmul.f32 %v4882, %v4902
    %v5183 = vmul.f32 %v4882, %v4903
    %v5184 = vmul.f32 %v4882, %v4904
    %v5185 = vmul.f32 %v4906, %v4929
    %v5186 = vmul.f32 %v4906, %v4930
    %v5187 = vmul.f32 %v4906, %v4931
    %v5188 = vmul.f32 %v4906, %v4932
    %v5189 = vmul.f32 %v4906, %v4933
    %v5190 = vmul.f32 %v4906, %v4934
    %v5191 = vmul.f32 %v4906, %v4935
    %v5192 = vmul.f32 %v4906, %v4936
    %v5193 = vmul.f32 %v4906, %v4937
    %v5194 = vmul.f32 %v4906, %v4938
    %v5195 = vmul.f32 %v4906, %v4939
    %v5196 = vadd.f32 %v5174, %v5185
    %v5197 = vadd.f32 %v5175, %v5186
    %v5198 = vadd.f32 %v5176, %v5187
    %v5199 = vadd.f32 %v5177, %v5188
    %v5200 = vadd.f32 %v5178, %v5189
    %v5201 = vadd.f32 %v5179, %v5190
    %v5202 = vadd.f32 %v5180, %v5191
    %v5203 = vadd.f32 %v5181, %v5192
    %v5204 = vadd.f32 %v5182, %v5193
    %v5205 = vadd.f32 %v5183, %v5194
    %v5206 = vadd.f32 %v5184, %v5195
    %v5207 = vld [vmem:[%s1689] sm:$0xff]
    %v5208 = vld [vmem:[%s1689 + $0x8] sm:$0xff]
    %v5209 = vld [vmem:[%s1689 + $0x10] sm:$0xff]
    %v5210 = vld [vmem:[%s1689 + $0x18] sm:$0xff]
    %v5211 = vld [vmem:[%s1689 + $0x20] sm:$0xff]
    %v5212 = vld [vmem:[%s1689 + $0x28] sm:$0xff]
    %v5213 = vld [vmem:[%s1689 + $0x30] sm:$0xff]
    %v5214 = vld [vmem:[%s1689 + $0x38] sm:$0xff]
    %v5215 = vld [vmem:[%s1689 + $0x40] sm:$0xff]
    %v5216 = vld [vmem:[%s1689 + $0x48] sm:$0xff]
    %v5217 = vld [vmem:[%s1689 + $0x50] sm:$0x7f]
    %v5218 = vmul.f32 %v4941, %v5207
    %v5219 = vmul.f32 %v4941, %v5208
    %v5220 = vmul.f32 %v4941, %v5209
    %v5221 = vmul.f32 %v4941, %v5210
    %v5222 = vmul.f32 %v4941, %v5211
    %v5223 = vmul.f32 %v4941, %v5212
    %v5224 = vmul.f32 %v4941, %v5213
    %v5225 = vmul.f32 %v4941, %v5214
    %v5226 = vmul.f32 %v4941, %v5215
    %v5227 = vmul.f32 %v4941, %v5216
    %v5228 = vmul.f32 %v4941, %v5217
    %v5229 = vadd.f32 %v5196, %v5218
    %v5230 = vadd.f32 %v5197, %v5219
    %v5231 = vadd.f32 %v5198, %v5220
    %v5232 = vadd.f32 %v5199, %v5221
    %v5233 = vadd.f32 %v5200, %v5222
    %v5234 = vadd.f32 %v5201, %v5223
    %v5235 = vadd.f32 %v5202, %v5224
    %v5236 = vadd.f32 %v5203, %v5225
    %v5237 = vadd.f32 %v5204, %v5226
    %v5238 = vadd.f32 %v5205, %v5227
    %v5239 = vadd.f32 %v5206, %v5228
    %v5240 = vmul.f32 %v4976, %v4999
    %v5241 = vmul.f32 %v4976, %v5000
    %v5242 = vmul.f32 %v4976, %v5001
    %v5243 = vmul.f32 %v4976, %v5002
    %v5244 = vmul.f32 %v4976, %v5003
    %v5245 = vmul.f32 %v4976, %v5004
    %v5246 = vmul.f32 %v4976, %v5005
    %v5247 = vmul.f32 %v4976, %v5006
    %v5248 = vmul.f32 %v4976, %v5007
    %v5249 = vmul.f32 %v4976, %v5008
    %v5250 = vmul.f32 %v4976, %v5009
    %v5251 = vadd.f32 %v5229, %v5240
    %v5252 = vadd.f32 %v5230, %v5241
    %v5253 = vadd.f32 %v5231, %v5242
    %v5254 = vadd.f32 %v5232, %v5243
    %v5255 = vadd.f32 %v5233, %v5244
    %v5256 = vadd.f32 %v5234, %v5245
    %v5257 = vadd.f32 %v5235, %v5246
    %v5258 = vadd.f32 %v5236, %v5247
    %v5259 = vadd.f32 %v5237, %v5248
    %v5260 = vadd.f32 %v5238, %v5249
    %v5261 = vadd.f32 %v5239, %v5250
    %v5262 = vmul.f32 %v5011, %v5034
    %v5263 = vmul.f32 %v5011, %v5035
    %v5264 = vmul.f32 %v5011, %v5036
    %v5265 = vmul.f32 %v5011, %v5037
    %v5266 = vmul.f32 %v5011, %v5038
    %v5267 = vmul.f32 %v5011, %v5039
    %v5268 = vmul.f32 %v5011, %v5040
    %v5269 = vmul.f32 %v5011, %v5041
    %v5270 = vmul.f32 %v5011, %v5042
    %v5271 = vmul.f32 %v5011, %v5043
    %v5272 = vmul.f32 %v5011, %v5044
    %v5273 = vadd.f32 %v5251, %v5262
    %v5274 = vadd.f32 %v5252, %v5263
    %v5275 = vadd.f32 %v5253, %v5264
    %v5276 = vadd.f32 %v5254, %v5265
    %v5277 = vadd.f32 %v5255, %v5266
    %v5278 = vadd.f32 %v5256, %v5267
    %v5279 = vadd.f32 %v5257, %v5268
    %v5280 = vadd.f32 %v5258, %v5269
    %v5281 = vadd.f32 %v5259, %v5270
    %v5282 = vadd.f32 %v5260, %v5271
    %v5283 = vadd.f32 %v5261, %v5272
    %v5284 = vld [vmem:[%s1825] sm:$0xff]
    %v5285 = vld [vmem:[%s1825 + $0x8] sm:$0xff]
    %v5286 = vld [vmem:[%s1825 + $0x10] sm:$0xff]
    %v5287 = vld [vmem:[%s1825 + $0x18] sm:$0xff]
    %v5288 = vld [vmem:[%s1825 + $0x20] sm:$0xff]
    %v5289 = vld [vmem:[%s1825 + $0x28] sm:$0xff]
    %v5290 = vld [vmem:[%s1825 + $0x30] sm:$0xff]
    %v5291 = vld [vmem:[%s1825 + $0x38] sm:$0xff]
    %v5292 = vld [vmem:[%s1825 + $0x40] sm:$0xff]
    %v5293 = vld [vmem:[%s1825 + $0x48] sm:$0xff]
    %v5294 = vld [vmem:[%s1825 + $0x50] sm:$0x7f]
    %v5295 = vmul.f32 %v5046, %v5284
    %v5296 = vmul.f32 %v5046, %v5285
    %v5297 = vmul.f32 %v5046, %v5286
    %v5298 = vmul.f32 %v5046, %v5287
    %v5299 = vmul.f32 %v5046, %v5288
    %v5300 = vmul.f32 %v5046, %v5289
    %v5301 = vmul.f32 %v5046, %v5290
    %v5302 = vmul.f32 %v5046, %v5291
    %v5303 = vmul.f32 %v5046, %v5292
    %v5304 = vmul.f32 %v5046, %v5293
    %v5305 = vmul.f32 %v5046, %v5294
    %v5306 = vadd.f32 %v5273, %v5295
    %v5307 = vadd.f32 %v5274, %v5296
    %v5308 = vadd.f32 %v5275, %v5297
    %v5309 = vadd.f32 %v5276, %v5298
    %v5310 = vadd.f32 %v5277, %v5299
    %v5311 = vadd.f32 %v5278, %v5300
    %v5312 = vadd.f32 %v5279, %v5301
    %v5313 = vadd.f32 %v5280, %v5302
    %v5314 = vadd.f32 %v5281, %v5303
    %v5315 = vadd.f32 %v5282, %v5304
    %v5316 = vadd.f32 %v5283, %v5305
    %v5317 = vmul.f32 %v5081, %v5104
    %v5318 = vmul.f32 %v5081, %v5105
    %v5319 = vmul.f32 %v5081, %v5106
    %v5320 = vmul.f32 %v5081, %v5107
    %v5321 = vmul.f32 %v5081, %v5108
    %v5322 = vmul.f32 %v5081, %v5109
    %v5323 = vmul.f32 %v5081, %v5110
    %v5324 = vmul.f32 %v5081, %v5111
    %v5325 = vmul.f32 %v5081, %v5112
    %v5326 = vmul.f32 %v5081, %v5113
    %v5327 = vmul.f32 %v5081, %v5114
    %v5328 = vadd.f32 %v5306, %v5317
    %v5329 = vadd.f32 %v5307, %v5318
    %v5330 = vadd.f32 %v5308, %v5319
    %v5331 = vadd.f32 %v5309, %v5320
    %v5332 = vadd.f32 %v5310, %v5321
    %v5333 = vadd.f32 %v5311, %v5322
    %v5334 = vadd.f32 %v5312, %v5323
    %v5335 = vadd.f32 %v5313, %v5324
    %v5336 = vadd.f32 %v5314, %v5325
    %v5337 = vadd.f32 %v5315, %v5326
    %v5338 = vadd.f32 %v5316, %v5327
    %v5339 = vmul.f32 %v5116, %v5139
    %v5340 = vmul.f32 %v5116, %v5140
    %v5341 = vmul.f32 %v5116, %v5141
    %v5342 = vmul.f32 %v5116, %v5142
    %v5343 = vmul.f32 %v5116, %v5143
    %v5344 = vmul.f32 %v5116, %v5144
    %v5345 = vmul.f32 %v5116, %v5145
    %v5346 = vmul.f32 %v5116, %v5146
    %v5347 = vmul.f32 %v5116, %v5147
    %v5348 = vmul.f32 %v5116, %v5148
    %v5349 = vmul.f32 %v5116, %v5149
    %v5350 = vadd.f32 %v5328, %v5339
    %v5351 = vadd.f32 %v5329, %v5340
    %v5352 = vadd.f32 %v5330, %v5341
    %v5353 = vadd.f32 %v5331, %v5342
    %v5354 = vadd.f32 %v5332, %v5343
    %v5355 = vadd.f32 %v5333, %v5344
    %v5356 = vadd.f32 %v5334, %v5345
    %v5357 = vadd.f32 %v5335, %v5346
    %v5358 = vadd.f32 %v5336, %v5347
    %v5359 = vadd.f32 %v5337, %v5348
    %v5360 = vadd.f32 %v5338, %v5349
    %v5361 = vld [vmem:[%s1689 + $0x1] sm:$0xff]
    %v5362 = vld [vmem:[%s1689 + $0x9] sm:$0xff]
    %v5363 = vld [vmem:[%s1689 + $0x11] sm:$0xff]
    %v5364 = vld [vmem:[%s1689 + $0x19] sm:$0xff]
    %v5365 = vld [vmem:[%s1689 + $0x21] sm:$0xff]
    %v5366 = vld [vmem:[%s1689 + $0x29] sm:$0xff]
    %v5367 = vld [vmem:[%s1689 + $0x31] sm:$0xff]
    %v5368 = vld [vmem:[%s1689 + $0x39] sm:$0xff]
    %v5369 = vld [vmem:[%s1689 + $0x41] sm:$0xff]
    %v5370 = vld [vmem:[%s1689 + $0x49] sm:$0xff]
    %v5371 = vld [vmem:[%s1689 + $0x51] sm:$0x7f]
    %v5372 = vmul.f32 %v5151, %v5361
    %v5373 = vmul.f32 %v5151, %v5362
    %v5374 = vmul.f32 %v5151, %v5363
    %v5375 = vmul.f32 %v5151, %v5364
    %v5376 = vmul.f32 %v5151, %v5365
    %v5377 = vmul.f32 %v5151, %v5366
    %v5378 = vmul.f32 %v5151, %v5367
    %v5379 = vmul.f32 %v5151, %v5368
    %v5380 = vmul.f32 %v5151, %v5369
    %v5381 = vmul.f32 %v5151, %v5370
    %v5382 = vmul.f32 %v5151, %v5371
    %v5383 = vadd.f32 %v5350, %v5372
    %v5384 = vadd.f32 %v5351, %v5373
    %v5385 = vadd.f32 %v5352, %v5374
    %v5386 = vadd.f32 %v5353, %v5375
    %v5387 = vadd.f32 %v5354, %v5376
    %v5388 = vadd.f32 %v5355, %v5377
    %v5389 = vadd.f32 %v5356, %v5378
    %v5390 = vadd.f32 %v5357, %v5379
    %v5391 = vadd.f32 %v5358, %v5380
    %v5392 = vadd.f32 %v5359, %v5381
    %v5393 = vadd.f32 %v5360, %v5382
    %v5394 = vmax.f32 %v5163, %v5383
    %v5395 = vmax.f32 %v5164, %v5384
    %v5396 = vmax.f32 %v5165, %v5385
    %v5397 = vmax.f32 %v5166, %v5386
    %v5398 = vmax.f32 %v5167, %v5387
    %v5399 = vmax.f32 %v5168, %v5388
    %v5400 = vmax.f32 %v5169, %v5389
    %v5401 = vmax.f32 %v5170, %v5390
    %v5402 = vmax.f32 %v5171, %v5391
    %v5403 = vmax.f32 %v5172, %v5392
    %v5404 = vmax.f32 %v5173, %v5393
    %v5405 = vmul.f32 %v4882, %v4964
    %v5406 = vmul.f32 %v4882, %v4965
    %v5407 = vmul.f32 %v4882, %v4966
    %v5408 = vmul.f32 %v4882, %v4967
    %v5409 = vmul.f32 %v4882, %v4968
    %v5410 = vmul.f32 %v4882, %v4969
    %v5411 = vmul.f32 %v4882, %v4970
    %v5412 = vmul.f32 %v4882, %v4971
    %v5413 = vmul.f32 %v4882, %v4972
    %v5414 = vmul.f32 %v4882, %v4973
    %v5415 = vmul.f32 %v4882, %v4974
    %v5416 = vmul.f32 %v4906, %v4999
    %v5417 = vmul.f32 %v4906, %v5000
    %v5418 = vmul.f32 %v4906, %v5001
    %v5419 = vmul.f32 %v4906, %v5002
    %v5420 = vmul.f32 %v4906, %v5003
    %v5421 = vmul.f32 %v4906, %v5004
    %v5422 = vmul.f32 %v4906, %v5005
    %v5423 = vmul.f32 %v4906, %v5006
    %v5424 = vmul.f32 %v4906, %v5007
    %v5425 = vmul.f32 %v4906, %v5008
    %v5426 = vmul.f32 %v4906, %v5009
    %v5427 = vadd.f32 %v5405, %v5416
    %v5428 = vadd.f32 %v5406, %v5417
    %v5429 = vadd.f32 %v5407, %v5418
    %v5430 = vadd.f32 %v5408, %v5419
    %v5431 = vadd.f32 %v5409, %v5420
    %v5432 = vadd.f32 %v5410, %v5421
    %v5433 = vadd.f32 %v5411, %v5422
    %v5434 = vadd.f32 %v5412, %v5423
    %v5435 = vadd.f32 %v5413, %v5424
    %v5436 = vadd.f32 %v5414, %v5425
    %v5437 = vadd.f32 %v5415, %v5426
    %v5438 = vmul.f32 %v4941, %v5034
    %v5439 = vmul.f32 %v4941, %v5035
    %v5440 = vmul.f32 %v4941, %v5036
    %v5441 = vmul.f32 %v4941, %v5037
    %v5442 = vmul.f32 %v4941, %v5038
    %v5443 = vmul.f32 %v4941, %v5039
    %v5444 = vmul.f32 %v4941, %v5040
    %v5445 = vmul.f32 %v4941, %v5041
    %v5446 = vmul.f32 %v4941, %v5042
    %v5447 = vmul.f32 %v4941, %v5043
    %v5448 = vmul.f32 %v4941, %v5044
    %v5449 = vadd.f32 %v5427, %v5438
    %v5450 = vadd.f32 %v5428, %v5439
    %v5451 = vadd.f32 %v5429, %v5440
    %v5452 = vadd.f32 %v5430, %v5441
    %v5453 = vadd.f32 %v5431, %v5442
    %v5454 = vadd.f32 %v5432, %v5443
    %v5455 = vadd.f32 %v5433, %v5444
    %v5456 = vadd.f32 %v5434, %v5445
    %v5457 = vadd.f32 %v5435, %v5446
    %v5458 = vadd.f32 %v5436, %v5447
    %v5459 = vadd.f32 %v5437, %v5448
    %v5460 = vmul.f32 %v4976, %v5069
    %v5461 = vmul.f32 %v4976, %v5070
    %v5462 = vmul.f32 %v4976, %v5071
    %v5463 = vmul.f32 %v4976, %v5072
    %v5464 = vmul.f32 %v4976, %v5073
    %v5465 = vmul.f32 %v4976, %v5074
    %v5466 = vmul.f32 %v4976, %v5075
    %v5467 = vmul.f32 %v4976, %v5076
    %v5468 = vmul.f32 %v4976, %v5077
    %v5469 = vmul.f32 %v4976, %v5078
    %v5470 = vmul.f32 %v4976, %v5079
    %v5471 = vadd.f32 %v5449, %v5460
    %v5472 = vadd.f32 %v5450, %v5461
    %v5473 = vadd.f32 %v5451, %v5462
    %v5474 = vadd.f32 %v5452, %v5463
    %v5475 = vadd.f32 %v5453, %v5464
    %v5476 = vadd.f32 %v5454, %v5465
    %v5477 = vadd.f32 %v5455, %v5466
    %v5478 = vadd.f32 %v5456, %v5467
    %v5479 = vadd.f32 %v5457, %v5468
    %v5480 = vadd.f32 %v5458, %v5469
    %v5481 = vadd.f32 %v5459, %v5470
    %v5482 = vmul.f32 %v5011, %v5104
    %v5483 = vmul.f32 %v5011, %v5105
    %v5484 = vmul.f32 %v5011, %v5106
    %v5485 = vmul.f32 %v5011, %v5107
    %v5486 = vmul.f32 %v5011, %v5108
    %v5487 = vmul.f32 %v5011, %v5109
    %v5488 = vmul.f32 %v5011, %v5110
    %v5489 = vmul.f32 %v5011, %v5111
    %v5490 = vmul.f32 %v5011, %v5112
    %v5491 = vmul.f32 %v5011, %v5113
    %v5492 = vmul.f32 %v5011, %v5114
    %v5493 = vadd.f32 %v5471, %v5482
    %v5494 = vadd.f32 %v5472, %v5483
    %v5495 = vadd.f32 %v5473, %v5484
    %v5496 = vadd.f32 %v5474, %v5485
    %v5497 = vadd.f32 %v5475, %v5486
    %v5498 = vadd.f32 %v5476, %v5487
    %v5499 = vadd.f32 %v5477, %v5488
    %v5500 = vadd.f32 %v5478, %v5489
    %v5501 = vadd.f32 %v5479, %v5490
    %v5502 = vadd.f32 %v5480, %v5491
    %v5503 = vadd.f32 %v5481, %v5492
    %v5504 = vmul.f32 %v5046, %v5139
    %v5505 = vmul.f32 %v5046, %v5140
    %v5506 = vmul.f32 %v5046, %v5141
    %v5507 = vmul.f32 %v5046, %v5142
    %v5508 = vmul.f32 %v5046, %v5143
    %v5509 = vmul.f32 %v5046, %v5144
    %v5510 = vmul.f32 %v5046, %v5145
    %v5511 = vmul.f32 %v5046, %v5146
    %v5512 = vmul.f32 %v5046, %v5147
    %v5513 = vmul.f32 %v5046, %v5148
    %v5514 = vmul.f32 %v5046, %v5149
    %v5515 = vadd.f32 %v5493, %v5504
    %v5516 = vadd.f32 %v5494, %v5505
    %v5517 = vadd.f32 %v5495, %v5506
    %v5518 = vadd.f32 %v5496, %v5507
    %v5519 = vadd.f32 %v5497, %v5508
    %v5520 = vadd.f32 %v5498, %v5509
    %v5521 = vadd.f32 %v5499, %v5510
    %v5522 = vadd.f32 %v5500, %v5511
    %v5523 = vadd.f32 %v5501, %v5512
    %v5524 = vadd.f32 %v5502, %v5513
    %v5525 = vadd.f32 %v5503, %v5514
    %v5526 = vld [vmem:[%s1701 + $0x1] sm:$0xff]
    %v5527 = vld [vmem:[%s1701 + $0x9] sm:$0xff]
    %v5528 = vld [vmem:[%s1701 + $0x11] sm:$0xff]
    %v5529 = vld [vmem:[%s1701 + $0x19] sm:$0xff]
    %v5530 = vld [vmem:[%s1701 + $0x21] sm:$0xff]
    %v5531 = vld [vmem:[%s1701 + $0x29] sm:$0xff]
    %v5532 = vld [vmem:[%s1701 + $0x31] sm:$0xff]
    %v5533 = vld [vmem:[%s1701 + $0x39] sm:$0xff]
    %v5534 = vld [vmem:[%s1701 + $0x41] sm:$0xff]
    %v5535 = vld [vmem:[%s1701 + $0x49] sm:$0xff]
    %v5536 = vld [vmem:[%s1701 + $0x51] sm:$0x7f]
    %v5537 = vmul.f32 %v5081, %v5526
    %v5538 = vmul.f32 %v5081, %v5527
    %v5539 = vmul.f32 %v5081, %v5528
    %v5540 = vmul.f32 %v5081, %v5529
    %v5541 = vmul.f32 %v5081, %v5530
    %v5542 = vmul.f32 %v5081, %v5531
    %v5543 = vmul.f32 %v5081, %v5532
    %v5544 = vmul.f32 %v5081, %v5533
    %v5545 = vmul.f32 %v5081, %v5534
    %v5546 = vmul.f32 %v5081, %v5535
    %v5547 = vmul.f32 %v5081, %v5536
    %v5548 = vadd.f32 %v5515, %v5537
    %v5549 = vadd.f32 %v5516, %v5538
    %v5550 = vadd.f32 %v5517, %v5539
    %v5551 = vadd.f32 %v5518, %v5540
    %v5552 = vadd.f32 %v5519, %v5541
    %v5553 = vadd.f32 %v5520, %v5542
    %v5554 = vadd.f32 %v5521, %v5543
    %v5555 = vadd.f32 %v5522, %v5544
    %v5556 = vadd.f32 %v5523, %v5545
    %v5557 = vadd.f32 %v5524, %v5546
    %v5558 = vadd.f32 %v5525, %v5547
    %v5559 = vld [vmem:[%s1769 + $0x1] sm:$0xff]
    %v5560 = vld [vmem:[%s1769 + $0x9] sm:$0xff]
    %v5561 = vld [vmem:[%s1769 + $0x11] sm:$0xff]
    %v5562 = vld [vmem:[%s1769 + $0x19] sm:$0xff]
    %v5563 = vld [vmem:[%s1769 + $0x21] sm:$0xff]
    %v5564 = vld [vmem:[%s1769 + $0x29] sm:$0xff]
    %v5565 = vld [vmem:[%s1769 + $0x31] sm:$0xff]
    %v5566 = vld [vmem:[%s1769 + $0x39] sm:$0xff]
    %v5567 = vld [vmem:[%s1769 + $0x41] sm:$0xff]
    %v5568 = vld [vmem:[%s1769 + $0x49] sm:$0xff]
    %v5569 = vld [vmem:[%s1769 + $0x51] sm:$0x7f]
    %v5570 = vmul.f32 %v5116, %v5559
    %v5571 = vmul.f32 %v5116, %v5560
    %v5572 = vmul.f32 %v5116, %v5561
    %v5573 = vmul.f32 %v5116, %v5562
    %v5574 = vmul.f32 %v5116, %v5563
    %v5575 = vmul.f32 %v5116, %v5564
    %v5576 = vmul.f32 %v5116, %v5565
    %v5577 = vmul.f32 %v5116, %v5566
    %v5578 = vmul.f32 %v5116, %v5567
    %v5579 = vmul.f32 %v5116, %v5568
    %v5580 = vmul.f32 %v5116, %v5569
    %v5581 = vadd.f32 %v5548, %v5570
    %v5582 = vadd.f32 %v5549, %v5571
    %v5583 = vadd.f32 %v5550, %v5572
    %v5584 = vadd.f32 %v5551, %v5573
    %v5585 = vadd.f32 %v5552, %v5574
    %v5586 = vadd.f32 %v5553, %v5575
    %v5587 = vadd.f32 %v5554, %v5576
    %v5588 = vadd.f32 %v5555, %v5577
    %v5589 = vadd.f32 %v5556, %v5578
    %v5590 = vadd.f32 %v5557, %v5579
    %v5591 = vadd.f32 %v5558, %v5580
    %v5592 = vld [vmem:[%s1757 + $0x1] sm:$0xff]
    %v5593 = vld [vmem:[%s1757 + $0x9] sm:$0xff]
    %v5594 = vld [vmem:[%s1757 + $0x11] sm:$0xff]
    %v5595 = vld [vmem:[%s1757 + $0x19] sm:$0xff]
    %v5596 = vld [vmem:[%s1757 + $0x21] sm:$0xff]
    %v5597 = vld [vmem:[%s1757 + $0x29] sm:$0xff]
    %v5598 = vld [vmem:[%s1757 + $0x31] sm:$0xff]
    %v5599 = vld [vmem:[%s1757 + $0x39] sm:$0xff]
    %v5600 = vld [vmem:[%s1757 + $0x41] sm:$0xff]
    %v5601 = vld [vmem:[%s1757 + $0x49] sm:$0xff]
    %v5602 = vld [vmem:[%s1757 + $0x51] sm:$0x7f]
    %v5603 = vmul.f32 %v5151, %v5592
    %v5604 = vmul.f32 %v5151, %v5593
    %v5605 = vmul.f32 %v5151, %v5594
    %v5606 = vmul.f32 %v5151, %v5595
    %v5607 = vmul.f32 %v5151, %v5596
    %v5608 = vmul.f32 %v5151, %v5597
    %v5609 = vmul.f32 %v5151, %v5598
    %v5610 = vmul.f32 %v5151, %v5599
    %v5611 = vmul.f32 %v5151, %v5600
    %v5612 = vmul.f32 %v5151, %v5601
    %v5613 = vmul.f32 %v5151, %v5602
    %v5614 = vadd.f32 %v5581, %v5603
    %v5615 = vadd.f32 %v5582, %v5604
    %v5616 = vadd.f32 %v5583, %v5605
    %v5617 = vadd.f32 %v5584, %v5606
    %v5618 = vadd.f32 %v5585, %v5607
    %v5619 = vadd.f32 %v5586, %v5608
    %v5620 = vadd.f32 %v5587, %v5609
    %v5621 = vadd.f32 %v5588, %v5610
    %v5622 = vadd.f32 %v5589, %v5611
    %v5623 = vadd.f32 %v5590, %v5612
    %v5624 = vadd.f32 %v5591, %v5613
    %v5625 = vmax.f32 %v5394, %v5614
    %v5626 = vmax.f32 %v5395, %v5615
    %v5627 = vmax.f32 %v5396, %v5616
    %v5628 = vmax.f32 %v5397, %v5617
    %v5629 = vmax.f32 %v5398, %v5618
    %v5630 = vmax.f32 %v5399, %v5619
    %v5631 = vmax.f32 %v5400, %v5620
    %v5632 = vmax.f32 %v5401, %v5621
    %v5633 = vmax.f32 %v5402, %v5622
    %v5634 = vmax.f32 %v5403, %v5623
    %v5635 = vmax.f32 %v5404, %v5624
    %v5636 = vmul.f32 %v4882, %v4999
    %v5637 = vmul.f32 %v4882, %v5000
    %v5638 = vmul.f32 %v4882, %v5001
    %v5639 = vmul.f32 %v4882, %v5002
    %v5640 = vmul.f32 %v4882, %v5003
    %v5641 = vmul.f32 %v4882, %v5004
    %v5642 = vmul.f32 %v4882, %v5005
    %v5643 = vmul.f32 %v4882, %v5006
    %v5644 = vmul.f32 %v4882, %v5007
    %v5645 = vmul.f32 %v4882, %v5008
    %v5646 = vmul.f32 %v4882, %v5009
    %v5647 = vmul.f32 %v4906, %v5034
    %v5648 = vmul.f32 %v4906, %v5035
    %v5649 = vmul.f32 %v4906, %v5036
    %v5650 = vmul.f32 %v4906, %v5037
    %v5651 = vmul.f32 %v4906, %v5038
    %v5652 = vmul.f32 %v4906, %v5039
    %v5653 = vmul.f32 %v4906, %v5040
    %v5654 = vmul.f32 %v4906, %v5041
    %v5655 = vmul.f32 %v4906, %v5042
    %v5656 = vmul.f32 %v4906, %v5043
    %v5657 = vmul.f32 %v4906, %v5044
    %v5658 = vadd.f32 %v5636, %v5647
    %v5659 = vadd.f32 %v5637, %v5648
    %v5660 = vadd.f32 %v5638, %v5649
    %v5661 = vadd.f32 %v5639, %v5650
    %v5662 = vadd.f32 %v5640, %v5651
    %v5663 = vadd.f32 %v5641, %v5652
    %v5664 = vadd.f32 %v5642, %v5653
    %v5665 = vadd.f32 %v5643, %v5654
    %v5666 = vadd.f32 %v5644, %v5655
    %v5667 = vadd.f32 %v5645, %v5656
    %v5668 = vadd.f32 %v5646, %v5657
    %v5669 = vmul.f32 %v4941, %v5284
    %v5670 = vmul.f32 %v4941, %v5285
    %v5671 = vmul.f32 %v4941, %v5286
    %v5672 = vmul.f32 %v4941, %v5287
    %v5673 = vmul.f32 %v4941, %v5288
    %v5674 = vmul.f32 %v4941, %v5289
    %v5675 = vmul.f32 %v4941, %v5290
    %v5676 = vmul.f32 %v4941, %v5291
    %v5677 = vmul.f32 %v4941, %v5292
    %v5678 = vmul.f32 %v4941, %v5293
    %v5679 = vmul.f32 %v4941, %v5294
    %v5680 = vadd.f32 %v5658, %v5669
    %v5681 = vadd.f32 %v5659, %v5670
    %v5682 = vadd.f32 %v5660, %v5671
    %v5683 = vadd.f32 %v5661, %v5672
    %v5684 = vadd.f32 %v5662, %v5673
    %v5685 = vadd.f32 %v5663, %v5674
    %v5686 = vadd.f32 %v5664, %v5675
    %v5687 = vadd.f32 %v5665, %v5676
    %v5688 = vadd.f32 %v5666, %v5677
    %v5689 = vadd.f32 %v5667, %v5678
    %v5690 = vadd.f32 %v5668, %v5679
    %v5691 = vmul.f32 %v4976, %v5104
    %v5692 = vmul.f32 %v4976, %v5105
    %v5693 = vmul.f32 %v4976, %v5106
    %v5694 = vmul.f32 %v4976, %v5107
    %v5695 = vmul.f32 %v4976, %v5108
    %v5696 = vmul.f32 %v4976, %v5109
    %v5697 = vmul.f32 %v4976, %v5110
    %v5698 = vmul.f32 %v4976, %v5111
    %v5699 = vmul.f32 %v4976, %v5112
    %v5700 = vmul.f32 %v4976, %v5113
    %v5701 = vmul.f32 %v4976, %v5114
    %v5702 = vadd.f32 %v5680, %v5691
    %v5703 = vadd.f32 %v5681, %v5692
    %v5704 = vadd.f32 %v5682, %v5693
    %v5705 = vadd.f32 %v5683, %v5694
    %v5706 = vadd.f32 %v5684, %v5695
    %v5707 = vadd.f32 %v5685, %v5696
    %v5708 = vadd.f32 %v5686, %v5697
    %v5709 = vadd.f32 %v5687, %v5698
    %v5710 = vadd.f32 %v5688, %v5699
    %v5711 = vadd.f32 %v5689, %v5700
    %v5712 = vadd.f32 %v5690, %v5701
    %v5713 = vmul.f32 %v5011, %v5139
    %v5714 = vmul.f32 %v5011, %v5140
    %v5715 = vmul.f32 %v5011, %v5141
    %v5716 = vmul.f32 %v5011, %v5142
    %v5717 = vmul.f32 %v5011, %v5143
    %v5718 = vmul.f32 %v5011, %v5144
    %v5719 = vmul.f32 %v5011, %v5145
    %v5720 = vmul.f32 %v5011, %v5146
    %v5721 = vmul.f32 %v5011, %v5147
    %v5722 = vmul.f32 %v5011, %v5148
    %v5723 = vmul.f32 %v5011, %v5149
    %v5724 = vadd.f32 %v5702, %v5713
    %v5725 = vadd.f32 %v5703, %v5714
    %v5726 = vadd.f32 %v5704, %v5715
    %v5727 = vadd.f32 %v5705, %v5716
    %v5728 = vadd.f32 %v5706, %v5717
    %v5729 = vadd.f32 %v5707, %v5718
    %v5730 = vadd.f32 %v5708, %v5719
    %v5731 = vadd.f32 %v5709, %v5720
    %v5732 = vadd.f32 %v5710, %v5721
    %v5733 = vadd.f32 %v5711, %v5722
    %v5734 = vadd.f32 %v5712, %v5723
    %v5735 = vmul.f32 %v5046, %v5361
    %v5736 = vmul.f32 %v5046, %v5362
    %v5737 = vmul.f32 %v5046, %v5363
    %v5738 = vmul.f32 %v5046, %v5364
    %v5739 = vmul.f32 %v5046, %v5365
    %v5740 = vmul.f32 %v5046, %v5366
    %v5741 = vmul.f32 %v5046, %v5367
    %v5742 = vmul.f32 %v5046, %v5368
    %v5743 = vmul.f32 %v5046, %v5369
    %v5744 = vmul.f32 %v5046, %v5370
    %v5745 = vmul.f32 %v5046, %v5371
    %v5746 = vadd.f32 %v5724, %v5735
    %v5747 = vadd.f32 %v5725, %v5736
    %v5748 = vadd.f32 %v5726, %v5737
    %v5749 = vadd.f32 %v5727, %v5738
    %v5750 = vadd.f32 %v5728, %v5739
    %v5751 = vadd.f32 %v5729, %v5740
    %v5752 = vadd.f32 %v5730, %v5741
    %v5753 = vadd.f32 %v5731, %v5742
    %v5754 = vadd.f32 %v5732, %v5743
    %v5755 = vadd.f32 %v5733, %v5744
    %v5756 = vadd.f32 %v5734, %v5745
    %v5757 = vmul.f32 %v5081, %v5559
    %v5758 = vmul.f32 %v5081, %v5560
    %v5759 = vmul.f32 %v5081, %v5561
    %v5760 = vmul.f32 %v5081, %v5562
    %v5761 = vmul.f32 %v5081, %v5563
    %v5762 = vmul.f32 %v5081, %v5564
    %v5763 = vmul.f32 %v5081, %v5565
    %v5764 = vmul.f32 %v5081, %v5566
    %v5765 = vmul.f32 %v5081, %v5567
    %v5766 = vmul.f32 %v5081, %v5568
    %v5767 = vmul.f32 %v5081, %v5569
    %v5768 = vadd.f32 %v5746, %v5757
    %v5769 = vadd.f32 %v5747, %v5758
    %v5770 = vadd.f32 %v5748, %v5759
    %v5771 = vadd.f32 %v5749, %v5760
    %v5772 = vadd.f32 %v5750, %v5761
    %v5773 = vadd.f32 %v5751, %v5762
    %v5774 = vadd.f32 %v5752, %v5763
    %v5775 = vadd.f32 %v5753, %v5764
    %v5776 = vadd.f32 %v5754, %v5765
    %v5777 = vadd.f32 %v5755, %v5766
    %v5778 = vadd.f32 %v5756, %v5767
    %v5779 = vmul.f32 %v5116, %v5592
    %v5780 = vmul.f32 %v5116, %v5593
    %v5781 = vmul.f32 %v5116, %v5594
    %v5782 = vmul.f32 %v5116, %v5595
    %v5783 = vmul.f32 %v5116, %v5596
    %v5784 = vmul.f32 %v5116, %v5597
    %v5785 = vmul.f32 %v5116, %v5598
    %v5786 = vmul.f32 %v5116, %v5599
    %v5787 = vmul.f32 %v5116, %v5600
    %v5788 = vmul.f32 %v5116, %v5601
    %v5789 = vmul.f32 %v5116, %v5602
    %v5790 = vadd.f32 %v5768, %v5779
    %v5791 = vadd.f32 %v5769, %v5780
    %v5792 = vadd.f32 %v5770, %v5781
    %v5793 = vadd.f32 %v5771, %v5782
    %v5794 = vadd.f32 %v5772, %v5783
    %v5795 = vadd.f32 %v5773, %v5784
    %v5796 = vadd.f32 %v5774, %v5785
    %v5797 = vadd.f32 %v5775, %v5786
    %v5798 = vadd.f32 %v5776, %v5787
    %v5799 = vadd.f32 %v5777, %v5788
    %v5800 = vadd.f32 %v5778, %v5789
    %v5801 = vld [vmem:[%s1825 + $0x1] sm:$0xff]
    %v5802 = vld [vmem:[%s1825 + $0x9] sm:$0xff]
    %v5803 = vld [vmem:[%s1825 + $0x11] sm:$0xff]
    %v5804 = vld [vmem:[%s1825 + $0x19] sm:$0xff]
    %v5805 = vld [vmem:[%s1825 + $0x21] sm:$0xff]
    %v5806 = vld [vmem:[%s1825 + $0x29] sm:$0xff]
    %v5807 = vld [vmem:[%s1825 + $0x31] sm:$0xff]
    %v5808 = vld [vmem:[%s1825 + $0x39] sm:$0xff]
    %v5809 = vld [vmem:[%s1825 + $0x41] sm:$0xff]
    %v5810 = vld [vmem:[%s1825 + $0x49] sm:$0xff]
    %v5811 = vld [vmem:[%s1825 + $0x51] sm:$0x7f]
    %v5812 = vmul.f32 %v5151, %v5801
    %v5813 = vmul.f32 %v5151, %v5802
    %v5814 = vmul.f32 %v5151, %v5803
    %v5815 = vmul.f32 %v5151, %v5804
    %v5816 = vmul.f32 %v5151, %v5805
    %v5817 = vmul.f32 %v5151, %v5806
    %v5818 = vmul.f32 %v5151, %v5807
    %v5819 = vmul.f32 %v5151, %v5808
    %v5820 = vmul.f32 %v5151, %v5809
    %v5821 = vmul.f32 %v5151, %v5810
    %v5822 = vmul.f32 %v5151, %v5811
    %v5823 = vadd.f32 %v5790, %v5812
    %v5824 = vadd.f32 %v5791, %v5813
    %v5825 = vadd.f32 %v5792, %v5814
    %v5826 = vadd.f32 %v5793, %v5815
    %v5827 = vadd.f32 %v5794, %v5816
    %v5828 = vadd.f32 %v5795, %v5817
    %v5829 = vadd.f32 %v5796, %v5818
    %v5830 = vadd.f32 %v5797, %v5819
    %v5831 = vadd.f32 %v5798, %v5820
    %v5832 = vadd.f32 %v5799, %v5821
    %v5833 = vadd.f32 %v5800, %v5822
    %v5834 = vmax.f32 %v5625, %v5823
    %v5835 = vmax.f32 %v5626, %v5824
    %v5836 = vmax.f32 %v5627, %v5825
    %v5837 = vmax.f32 %v5628, %v5826
    %v5838 = vmax.f32 %v5629, %v5827
    %v5839 = vmax.f32 %v5630, %v5828
    %v5840 = vmax.f32 %v5631, %v5829
    %v5841 = vmax.f32 %v5632, %v5830
    %v5842 = vmax.f32 %v5633, %v5831
    %v5843 = vmax.f32 %v5634, %v5832
    %v5844 = vmax.f32 %v5635, %v5833
    %s5845 = sld [smem:[#allocation29 + $0x3]]
    %v5846 = vstv %s5845
    %v5847 = vadd.f32 %v5834, %v5846
    %v5848 = vadd.f32 %v5835, %v5846
    %v5849 = vadd.f32 %v5836, %v5846
    %v5850 = vadd.f32 %v5837, %v5846
    %v5851 = vadd.f32 %v5838, %v5846
    %v5852 = vadd.f32 %v5839, %v5846
    %v5853 = vadd.f32 %v5840, %v5846
    %v5854 = vadd.f32 %v5841, %v5846
    %v5855 = vadd.f32 %v5842, %v5846
    %v5856 = vadd.f32 %v5843, %v5846
    %v5857 = vadd.f32 %v5844, %v5846
    %v5858 = vmax.f32 %v5847, 0.0
    %v5859 = vmax.f32 %v5848, 0.0
    %v5860 = vmax.f32 %v5849, 0.0
    %v5861 = vmax.f32 %v5850, 0.0
    %v5862 = vmax.f32 %v5851, 0.0
    %v5863 = vmax.f32 %v5852, 0.0
    %v5864 = vmax.f32 %v5853, 0.0
    %v5865 = vmax.f32 %v5854, 0.0
    %v5866 = vmax.f32 %v5855, 0.0
    %v5867 = vmax.f32 %v5856, 0.0
    %v5868 = vmax.f32 %v5857, 0.0
    %s5869 = scalar_lea.vmem [#allocation3], 264
    %5870 = vst.msk [vmem:[%s5869] sm:$0xff] %vm1621, %v5858
    %5871 = vst.msk [vmem:[%s5869 + $0x8] sm:$0xff] %vm1621, %v5859
    %5872 = vst.msk [vmem:[%s5869 + $0x10] sm:$0xff] %vm1621, %v5860
    %5873 = vst.msk [vmem:[%s5869 + $0x18] sm:$0xff] %vm1621, %v5861
    %5874 = vst.msk [vmem:[%s5869 + $0x20] sm:$0xff] %vm1621, %v5862
    %5875 = vst.msk [vmem:[%s5869 + $0x28] sm:$0xff] %vm1621, %v5863
    %5876 = vst.msk [vmem:[%s5869 + $0x30] sm:$0xff] %vm1621, %v5864
    %5877 = vst.msk [vmem:[%s5869 + $0x38] sm:$0xff] %vm1621, %v5865
    %5878 = vst.msk [vmem:[%s5869 + $0x40] sm:$0xff] %vm1621, %v5866
    %5879 = vst.msk [vmem:[%s5869 + $0x48] sm:$0xff] %vm1621, %v5867
    %5880 = vst.msk [vmem:[%s5869 + $0x50] sm:$0x7f] %vm2846, %v5868
    %s5881 = smul.u32 2, 4
    %s5882 = smul.u32 %s5881, 87
    %s5883 = smul.u32 %s5882, 1
    %s5884 = sshll.u32 %s5883, 4
    %5885 = dma.done [#allocation5], %s5884
    %v5886 = vld [vmem:[#allocation4] sm:$0xff]
    %v5887 = vld [vmem:[#allocation4 + $0x8] sm:$0xff]
    %v5888 = vld [vmem:[#allocation4 + $0x10] sm:$0xff]
    %v5889 = vld [vmem:[#allocation4 + $0x18] sm:$0xff]
    %v5890 = vld [vmem:[#allocation4 + $0x20] sm:$0xff]
    %v5891 = vld [vmem:[#allocation4 + $0x28] sm:$0xff]
    %v5892 = vld [vmem:[#allocation4 + $0x30] sm:$0xff]
    %v5893 = vld [vmem:[#allocation4 + $0x38] sm:$0xff]
    %v5894 = vld [vmem:[#allocation4 + $0x40] sm:$0xff]
    %v5895 = vld [vmem:[#allocation4 + $0x48] sm:$0xff]
    %v5896 = vld [vmem:[#allocation4 + $0x50] sm:$0x7f]
    %v5897 = vld [vmem:[#allocation3] sm:$0xff]
    %v5898 = vld [vmem:[#allocation3 + $0x8] sm:$0xff]
    %v5899 = vld [vmem:[#allocation3 + $0x10] sm:$0xff]
    %v5900 = vld [vmem:[#allocation3 + $0x18] sm:$0xff]
    %v5901 = vld [vmem:[#allocation3 + $0x20] sm:$0xff]
    %v5902 = vld [vmem:[#allocation3 + $0x28] sm:$0xff]
    %v5903 = vld [vmem:[#allocation3 + $0x30] sm:$0xff]
    %v5904 = vld [vmem:[#allocation3 + $0x38] sm:$0xff]
    %v5905 = vld [vmem:[#allocation3 + $0x40] sm:$0xff]
    %v5906 = vld [vmem:[#allocation3 + $0x48] sm:$0xff]
    %v5907 = vld [vmem:[#allocation3 + $0x50] sm:$0x7f]
    %v5908 = vmul.f32 %v5886, %v5897
    %v5909 = vmul.f32 %v5887, %v5898
    %v5910 = vmul.f32 %v5888, %v5899
    %v5911 = vmul.f32 %v5889, %v5900
    %v5912 = vmul.f32 %v5890, %v5901
    %v5913 = vmul.f32 %v5891, %v5902
    %v5914 = vmul.f32 %v5892, %v5903
    %v5915 = vmul.f32 %v5893, %v5904
    %v5916 = vmul.f32 %v5894, %v5905
    %v5917 = vmul.f32 %v5895, %v5906
    %v5918 = vmul.f32 %v5896, %v5907
    %s5919 = scalar_lea.vmem [#allocation4], 88
    %v5920 = vld [vmem:[%s5919] sm:$0xff]
    %v5921 = vld [vmem:[%s5919 + $0x8] sm:$0xff]
    %v5922 = vld [vmem:[%s5919 + $0x10] sm:$0xff]
    %v5923 = vld [vmem:[%s5919 + $0x18] sm:$0xff]
    %v5924 = vld [vmem:[%s5919 + $0x20] sm:$0xff]
    %v5925 = vld [vmem:[%s5919 + $0x28] sm:$0xff]
    %v5926 = vld [vmem:[%s5919 + $0x30] sm:$0xff]
    %v5927 = vld [vmem:[%s5919 + $0x38] sm:$0xff]
    %v5928 = vld [vmem:[%s5919 + $0x40] sm:$0xff]
    %v5929 = vld [vmem:[%s5919 + $0x48] sm:$0xff]
    %v5930 = vld [vmem:[%s5919 + $0x50] sm:$0x7f]
    %v5931 = vld [vmem:[%s3847] sm:$0xff]
    %v5932 = vld [vmem:[%s3847 + $0x8] sm:$0xff]
    %v5933 = vld [vmem:[%s3847 + $0x10] sm:$0xff]
    %v5934 = vld [vmem:[%s3847 + $0x18] sm:$0xff]
    %v5935 = vld [vmem:[%s3847 + $0x20] sm:$0xff]
    %v5936 = vld [vmem:[%s3847 + $0x28] sm:$0xff]
    %v5937 = vld [vmem:[%s3847 + $0x30] sm:$0xff]
    %v5938 = vld [vmem:[%s3847 + $0x38] sm:$0xff]
    %v5939 = vld [vmem:[%s3847 + $0x40] sm:$0xff]
    %v5940 = vld [vmem:[%s3847 + $0x48] sm:$0xff]
    %v5941 = vld [vmem:[%s3847 + $0x50] sm:$0x7f]
    %v5942 = vmul.f32 %v5920, %v5931
    %v5943 = vmul.f32 %v5921, %v5932
    %v5944 = vmul.f32 %v5922, %v5933
    %v5945 = vmul.f32 %v5923, %v5934
    %v5946 = vmul.f32 %v5924, %v5935
    %v5947 = vmul.f32 %v5925, %v5936
    %v5948 = vmul.f32 %v5926, %v5937
    %v5949 = vmul.f32 %v5927, %v5938
    %v5950 = vmul.f32 %v5928, %v5939
    %v5951 = vmul.f32 %v5929, %v5940
    %v5952 = vmul.f32 %v5930, %v5941
    %v5953 = vadd.f32 %v5908, %v5942
    %v5954 = vadd.f32 %v5909, %v5943
    %v5955 = vadd.f32 %v5910, %v5944
    %v5956 = vadd.f32 %v5911, %v5945
    %v5957 = vadd.f32 %v5912, %v5946
    %v5958 = vadd.f32 %v5913, %v5947
    %v5959 = vadd.f32 %v5914, %v5948
    %v5960 = vadd.f32 %v5915, %v5949
    %v5961 = vadd.f32 %v5916, %v5950
    %v5962 = vadd.f32 %v5917, %v5951
    %v5963 = vadd.f32 %v5918, %v5952
    %s5964 = scalar_lea.vmem [#allocation4], 176
    %v5965 = vld [vmem:[%s5964] sm:$0xff]
    %v5966 = vld [vmem:[%s5964 + $0x8] sm:$0xff]
    %v5967 = vld [vmem:[%s5964 + $0x10] sm:$0xff]
    %v5968 = vld [vmem:[%s5964 + $0x18] sm:$0xff]
    %v5969 = vld [vmem:[%s5964 + $0x20] sm:$0xff]
    %v5970 = vld [vmem:[%s5964 + $0x28] sm:$0xff]
    %v5971 = vld [vmem:[%s5964 + $0x30] sm:$0xff]
    %v5972 = vld [vmem:[%s5964 + $0x38] sm:$0xff]
    %v5973 = vld [vmem:[%s5964 + $0x40] sm:$0xff]
    %v5974 = vld [vmem:[%s5964 + $0x48] sm:$0xff]
    %v5975 = vld [vmem:[%s5964 + $0x50] sm:$0x7f]
    %v5976 = vld [vmem:[%s4858] sm:$0xff]
    %v5977 = vld [vmem:[%s4858 + $0x8] sm:$0xff]
    %v5978 = vld [vmem:[%s4858 + $0x10] sm:$0xff]
    %v5979 = vld [vmem:[%s4858 + $0x18] sm:$0xff]
    %v5980 = vld [vmem:[%s4858 + $0x20] sm:$0xff]
    %v5981 = vld [vmem:[%s4858 + $0x28] sm:$0xff]
    %v5982 = vld [vmem:[%s4858 + $0x30] sm:$0xff]
    %v5983 = vld [vmem:[%s4858 + $0x38] sm:$0xff]
    %v5984 = vld [vmem:[%s4858 + $0x40] sm:$0xff]
    %v5985 = vld [vmem:[%s4858 + $0x48] sm:$0xff]
    %v5986 = vld [vmem:[%s4858 + $0x50] sm:$0x7f]
    %v5987 = vmul.f32 %v5965, %v5976
    %v5988 = vmul.f32 %v5966, %v5977
    %v5989 = vmul.f32 %v5967, %v5978
    %v5990 = vmul.f32 %v5968, %v5979
    %v5991 = vmul.f32 %v5969, %v5980
    %v5992 = vmul.f32 %v5970, %v5981
    %v5993 = vmul.f32 %v5971, %v5982
    %v5994 = vmul.f32 %v5972, %v5983
    %v5995 = vmul.f32 %v5973, %v5984
    %v5996 = vmul.f32 %v5974, %v5985
    %v5997 = vmul.f32 %v5975, %v5986
    %v5998 = vadd.f32 %v5953, %v5987
    %v5999 = vadd.f32 %v5954, %v5988
    %v6000 = vadd.f32 %v5955, %v5989
    %v6001 = vadd.f32 %v5956, %v5990
    %v6002 = vadd.f32 %v5957, %v5991
    %v6003 = vadd.f32 %v5958, %v5992
    %v6004 = vadd.f32 %v5959, %v5993
    %v6005 = vadd.f32 %v5960, %v5994
    %v6006 = vadd.f32 %v5961, %v5995
    %v6007 = vadd.f32 %v5962, %v5996
    %v6008 = vadd.f32 %v5963, %v5997
    %s6009 = scalar_lea.vmem [#allocation4], 264
    %v6010 = vld [vmem:[%s6009] sm:$0xff]
    %v6011 = vld [vmem:[%s6009 + $0x8] sm:$0xff]
    %v6012 = vld [vmem:[%s6009 + $0x10] sm:$0xff]
    %v6013 = vld [vmem:[%s6009 + $0x18] sm:$0xff]
    %v6014 = vld [vmem:[%s6009 + $0x20] sm:$0xff]
    %v6015 = vld [vmem:[%s6009 + $0x28] sm:$0xff]
    %v6016 = vld [vmem:[%s6009 + $0x30] sm:$0xff]
    %v6017 = vld [vmem:[%s6009 + $0x38] sm:$0xff]
    %v6018 = vld [vmem:[%s6009 + $0x40] sm:$0xff]
    %v6019 = vld [vmem:[%s6009 + $0x48] sm:$0xff]
    %v6020 = vld [vmem:[%s6009 + $0x50] sm:$0x7f]
    %v6021 = vld [vmem:[%s5869] sm:$0xff]
    %v6022 = vld [vmem:[%s5869 + $0x8] sm:$0xff]
    %v6023 = vld [vmem:[%s5869 + $0x10] sm:$0xff]
    %v6024 = vld [vmem:[%s5869 + $0x18] sm:$0xff]
    %v6025 = vld [vmem:[%s5869 + $0x20] sm:$0xff]
    %v6026 = vld [vmem:[%s5869 + $0x28] sm:$0xff]
    %v6027 = vld [vmem:[%s5869 + $0x30] sm:$0xff]
    %v6028 = vld [vmem:[%s5869 + $0x38] sm:$0xff]
    %v6029 = vld [vmem:[%s5869 + $0x40] sm:$0xff]
    %v6030 = vld [vmem:[%s5869 + $0x48] sm:$0xff]
    %v6031 = vld [vmem:[%s5869 + $0x50] sm:$0x7f]
    %v6032 = vmul.f32 %v6010, %v6021
    %v6033 = vmul.f32 %v6011, %v6022
    %v6034 = vmul.f32 %v6012, %v6023
    %v6035 = vmul.f32 %v6013, %v6024
    %v6036 = vmul.f32 %v6014, %v6025
    %v6037 = vmul.f32 %v6015, %v6026
    %v6038 = vmul.f32 %v6016, %v6027
    %v6039 = vmul.f32 %v6017, %v6028
    %v6040 = vmul.f32 %v6018, %v6029
    %v6041 = vmul.f32 %v6019, %v6030
    %v6042 = vmul.f32 %v6020, %v6031
    %v6043 = vadd.f32 %v5998, %v6032
    %v6044 = vadd.f32 %v5999, %v6033
    %v6045 = vadd.f32 %v6000, %v6034
    %v6046 = vadd.f32 %v6001, %v6035
    %v6047 = vadd.f32 %v6002, %v6036
    %v6048 = vadd.f32 %v6003, %v6037
    %v6049 = vadd.f32 %v6004, %v6038
    %v6050 = vadd.f32 %v6005, %v6039
    %v6051 = vadd.f32 %v6006, %v6040
    %v6052 = vadd.f32 %v6007, %v6041
    %v6053 = vadd.f32 %v6008, %v6042
    %v6054 = vsel %vm1621, %v6043, 0.0
    %6055 = vadd.xlane.f32.xlu0 %v6054
    %v6056 = vpop.xlane.xlu0 %6055
    %v6057 = vsel %vm1621, %v6044, 0.0
    %6058 = vadd.xlane.f32.xlu0 %v6057
    %v6059 = vpop.xlane.xlu0 %6058
    %v6060 = vsel %vm1621, %v6045, 0.0
    %6061 = vadd.xlane.f32.xlu0 %v6060
    %v6062 = vpop.xlane.xlu0 %6061
    %v6063 = vsel %vm1621, %v6046, 0.0
    %6064 = vadd.xlane.f32.xlu0 %v6063
    %v6065 = vpop.xlane.xlu0 %6064
    %v6066 = vsel %vm1621, %v6047, 0.0
    %6067 = vadd.xlane.f32.xlu0 %v6066
    %v6068 = vpop.xlane.xlu0 %6067
    %v6069 = vsel %vm1621, %v6048, 0.0
    %6070 = vadd.xlane.f32.xlu0 %v6069
    %v6071 = vpop.xlane.xlu0 %6070
    %v6072 = vsel %vm1621, %v6049, 0.0
    %6073 = vadd.xlane.f32.xlu0 %v6072
    %v6074 = vpop.xlane.xlu0 %6073
    %v6075 = vsel %vm1621, %v6050, 0.0
    %6076 = vadd.xlane.f32.xlu0 %v6075
    %v6077 = vpop.xlane.xlu0 %6076
    %v6078 = vsel %vm1621, %v6051, 0.0
    %6079 = vadd.xlane.f32.xlu0 %v6078
    %v6080 = vpop.xlane.xlu0 %6079
    %v6081 = vsel %vm1621, %v6052, 0.0
    %6082 = vadd.xlane.f32.xlu0 %v6081
    %v6083 = vpop.xlane.xlu0 %6082
    %v6084 = vsel %vm2846, %v6053, 0.0
    %6085 = vadd.xlane.f32.xlu0 %v6084
    %v6086 = vpop.xlane.xlu0 %6085
    %v6087 = vadd.f32 %v6056, %v6059
    %v6088 = vadd.f32 %v6087, %v6062
    %v6089 = vadd.f32 %v6088, %v6065
    %v6090 = vadd.f32 %v6089, %v6068
    %v6091 = vadd.f32 %v6090, %v6071
    %v6092 = vadd.f32 %v6091, %v6074
    %v6093 = vadd.f32 %v6092, %v6077
    %v6094 = vadd.f32 %v6093, %v6080
    %v6095 = vadd.f32 %v6094, %v6083
    %vm6096 = vcmask 1046528
    %v6097 = vsel %vm6096, %v6086, 0.0
    %v6098 = vadd.f32 %v6095, %v6097
    %v6099 = vrot.slane %v6098, 4
    %v6100 = vadd.f32 %v6098, %v6099
    %v6101 = vrot.slane %v6100, 2
    %v6102 = vadd.f32 %v6100, %v6101
    %v6103 = vrot.slane %v6102, 1
    %v6104 = vadd.f32 %v6102, %v6103
    %s6105 = sld [smem:[#allocation31]]
    %v6106 = vstv %s6105
    %v6107 = vadd.f32 %v6104, %v6106
    %s6108 = scalar_lea.vmem [#allocation4], 352
    %v6109 = vld [vmem:[%s6108] sm:$0xff]
    %v6110 = vld [vmem:[%s6108 + $0x8] sm:$0xff]
    %v6111 = vld [vmem:[%s6108 + $0x10] sm:$0xff]
    %v6112 = vld [vmem:[%s6108 + $0x18] sm:$0xff]
    %v6113 = vld [vmem:[%s6108 + $0x20] sm:$0xff]
    %v6114 = vld [vmem:[%s6108 + $0x28] sm:$0xff]
    %v6115 = vld [vmem:[%s6108 + $0x30] sm:$0xff]
    %v6116 = vld [vmem:[%s6108 + $0x38] sm:$0xff]
    %v6117 = vld [vmem:[%s6108 + $0x40] sm:$0xff]
    %v6118 = vld [vmem:[%s6108 + $0x48] sm:$0xff]
    %v6119 = vld [vmem:[%s6108 + $0x50] sm:$0x7f]
    %v6120 = vmul.f32 %v6109, %v5897
    %v6121 = vmul.f32 %v6110, %v5898
    %v6122 = vmul.f32 %v6111, %v5899
    %v6123 = vmul.f32 %v6112, %v5900
    %v6124 = vmul.f32 %v6113, %v5901
    %v6125 = vmul.f32 %v6114, %v5902
    %v6126 = vmul.f32 %v6115, %v5903
    %v6127 = vmul.f32 %v6116, %v5904
    %v6128 = vmul.f32 %v6117, %v5905
    %v6129 = vmul.f32 %v6118, %v5906
    %v6130 = vmul.f32 %v6119, %v5907
    %s6131 = scalar_lea.vmem [#allocation4], 440
    %v6132 = vld [vmem:[%s6131] sm:$0xff]
    %v6133 = vld [vmem:[%s6131 + $0x8] sm:$0xff]
    %v6134 = vld [vmem:[%s6131 + $0x10] sm:$0xff]
    %v6135 = vld [vmem:[%s6131 + $0x18] sm:$0xff]
    %v6136 = vld [vmem:[%s6131 + $0x20] sm:$0xff]
    %v6137 = vld [vmem:[%s6131 + $0x28] sm:$0xff]
    %v6138 = vld [vmem:[%s6131 + $0x30] sm:$0xff]
    %v6139 = vld [vmem:[%s6131 + $0x38] sm:$0xff]
    %v6140 = vld [vmem:[%s6131 + $0x40] sm:$0xff]
    %v6141 = vld [vmem:[%s6131 + $0x48] sm:$0xff]
    %v6142 = vld [vmem:[%s6131 + $0x50] sm:$0x7f]
    %v6143 = vmul.f32 %v6132, %v5931
    %v6144 = vmul.f32 %v6133, %v5932
    %v6145 = vmul.f32 %v6134, %v5933
    %v6146 = vmul.f32 %v6135, %v5934
    %v6147 = vmul.f32 %v6136, %v5935
    %v6148 = vmul.f32 %v6137, %v5936
    %v6149 = vmul.f32 %v6138, %v5937
    %v6150 = vmul.f32 %v6139, %v5938
    %v6151 = vmul.f32 %v6140, %v5939
    %v6152 = vmul.f32 %v6141, %v5940
    %v6153 = vmul.f32 %v6142, %v5941
    %v6154 = vadd.f32 %v6120, %v6143
    %v6155 = vadd.f32 %v6121, %v6144
    %v6156 = vadd.f32 %v6122, %v6145
    %v6157 = vadd.f32 %v6123, %v6146
    %v6158 = vadd.f32 %v6124, %v6147
    %v6159 = vadd.f32 %v6125, %v6148
    %v6160 = vadd.f32 %v6126, %v6149
    %v6161 = vadd.f32 %v6127, %v6150
    %v6162 = vadd.f32 %v6128, %v6151
    %v6163 = vadd.f32 %v6129, %v6152
    %v6164 = vadd.f32 %v6130, %v6153
    %s6165 = scalar_lea.vmem [#allocation4], 528
    %v6166 = vld [vmem:[%s6165] sm:$0xff]
    %v6167 = vld [vmem:[%s6165 + $0x8] sm:$0xff]
    %v6168 = vld [vmem:[%s6165 + $0x10] sm:$0xff]
    %v6169 = vld [vmem:[%s6165 + $0x18] sm:$0xff]
    %v6170 = vld [vmem:[%s6165 + $0x20] sm:$0xff]
    %v6171 = vld [vmem:[%s6165 + $0x28] sm:$0xff]
    %v6172 = vld [vmem:[%s6165 + $0x30] sm:$0xff]
    %v6173 = vld [vmem:[%s6165 + $0x38] sm:$0xff]
    %v6174 = vld [vmem:[%s6165 + $0x40] sm:$0xff]
    %v6175 = vld [vmem:[%s6165 + $0x48] sm:$0xff]
    %v6176 = vld [vmem:[%s6165 + $0x50] sm:$0x7f]
    %v6177 = vmul.f32 %v6166, %v5976
    %v6178 = vmul.f32 %v6167, %v5977
    %v6179 = vmul.f32 %v6168, %v5978
    %v6180 = vmul.f32 %v6169, %v5979
    %v6181 = vmul.f32 %v6170, %v5980
    %v6182 = vmul.f32 %v6171, %v5981
    %v6183 = vmul.f32 %v6172, %v5982
    %v6184 = vmul.f32 %v6173, %v5983
    %v6185 = vmul.f32 %v6174, %v5984
    %v6186 = vmul.f32 %v6175, %v5985
    %v6187 = vmul.f32 %v6176, %v5986
    %v6188 = vadd.f32 %v6154, %v6177
    %v6189 = vadd.f32 %v6155, %v6178
    %v6190 = vadd.f32 %v6156, %v6179
    %v6191 = vadd.f32 %v6157, %v6180
    %v6192 = vadd.f32 %v6158, %v6181
    %v6193 = vadd.f32 %v6159, %v6182
    %v6194 = vadd.f32 %v6160, %v6183
    %v6195 = vadd.f32 %v6161, %v6184
    %v6196 = vadd.f32 %v6162, %v6185
    %v6197 = vadd.f32 %v6163, %v6186
    %v6198 = vadd.f32 %v6164, %v6187
    %s6199 = scalar_lea.vmem [#allocation4], 616
    %v6200 = vld [vmem:[%s6199] sm:$0xff]
    %v6201 = vld [vmem:[%s6199 + $0x8] sm:$0xff]
    %v6202 = vld [vmem:[%s6199 + $0x10] sm:$0xff]
    %v6203 = vld [vmem:[%s6199 + $0x18] sm:$0xff]
    %v6204 = vld [vmem:[%s6199 + $0x20] sm:$0xff]
    %v6205 = vld [vmem:[%s6199 + $0x28] sm:$0xff]
    %v6206 = vld [vmem:[%s6199 + $0x30] sm:$0xff]
    %v6207 = vld [vmem:[%s6199 + $0x38] sm:$0xff]
    %v6208 = vld [vmem:[%s6199 + $0x40] sm:$0xff]
    %v6209 = vld [vmem:[%s6199 + $0x48] sm:$0xff]
    %v6210 = vld [vmem:[%s6199 + $0x50] sm:$0x7f]
    %v6211 = vmul.f32 %v6200, %v6021
    %v6212 = vmul.f32 %v6201, %v6022
    %v6213 = vmul.f32 %v6202, %v6023
    %v6214 = vmul.f32 %v6203, %v6024
    %v6215 = vmul.f32 %v6204, %v6025
    %v6216 = vmul.f32 %v6205, %v6026
    %v6217 = vmul.f32 %v6206, %v6027
    %v6218 = vmul.f32 %v6207, %v6028
    %v6219 = vmul.f32 %v6208, %v6029
    %v6220 = vmul.f32 %v6209, %v6030
    %v6221 = vmul.f32 %v6210, %v6031
    %v6222 = vadd.f32 %v6188, %v6211
    %v6223 = vadd.f32 %v6189, %v6212
    %v6224 = vadd.f32 %v6190, %v6213
    %v6225 = vadd.f32 %v6191, %v6214
    %v6226 = vadd.f32 %v6192, %v6215
    %v6227 = vadd.f32 %v6193, %v6216
    %v6228 = vadd.f32 %v6194, %v6217
    %v6229 = vadd.f32 %v6195, %v6218
    %v6230 = vadd.f32 %v6196, %v6219
    %v6231 = vadd.f32 %v6197, %v6220
    %v6232 = vadd.f32 %v6198, %v6221
    %v6233 = vsel %vm1621, %v6222, 0.0
    %6234 = vadd.xlane.f32.xlu0 %v6233
    %v6235 = vpop.xlane.xlu0 %6234
    %v6236 = vsel %vm1621, %v6223, 0.0
    %6237 = vadd.xlane.f32.xlu0 %v6236
    %v6238 = vpop.xlane.xlu0 %6237
    %v6239 = vsel %vm1621, %v6224, 0.0
    %6240 = vadd.xlane.f32.xlu0 %v6239
    %v6241 = vpop.xlane.xlu0 %6240
    %v6242 = vsel %vm1621, %v6225, 0.0
    %6243 = vadd.xlane.f32.xlu0 %v6242
    %v6244 = vpop.xlane.xlu0 %6243
    %v6245 = vsel %vm1621, %v6226, 0.0
    %6246 = vadd.xlane.f32.xlu0 %v6245
    %v6247 = vpop.xlane.xlu0 %6246
    %v6248 = vsel %vm1621, %v6227, 0.0
    %6249 = vadd.xlane.f32.xlu0 %v6248
    %v6250 = vpop.xlane.xlu0 %6249
    %v6251 = vsel %vm1621, %v6228, 0.0
    %6252 = vadd.xlane.f32.xlu0 %v6251
    %v6253 = vpop.xlane.xlu0 %6252
    %v6254 = vsel %vm1621, %v6229, 0.0
    %6255 = vadd.xlane.f32.xlu0 %v6254
    %v6256 = vpop.xlane.xlu0 %6255
    %v6257 = vsel %vm1621, %v6230, 0.0
    %6258 = vadd.xlane.f32.xlu0 %v6257
    %v6259 = vpop.xlane.xlu0 %6258
    %v6260 = vsel %vm1621, %v6231, 0.0
    %6261 = vadd.xlane.f32.xlu0 %v6260
    %v6262 = vpop.xlane.xlu0 %6261
    %v6263 = vsel %vm2846, %v6232, 0.0
    %6264 = vadd.xlane.f32.xlu0 %v6263
    %v6265 = vpop.xlane.xlu0 %6264
    %v6266 = vadd.f32 %v6235, %v6238
    %v6267 = vadd.f32 %v6266, %v6241
    %v6268 = vadd.f32 %v6267, %v6244
    %v6269 = vadd.f32 %v6268, %v6247
    %v6270 = vadd.f32 %v6269, %v6250
    %v6271 = vadd.f32 %v6270, %v6253
    %v6272 = vadd.f32 %v6271, %v6256
    %v6273 = vadd.f32 %v6272, %v6259
    %v6274 = vadd.f32 %v6273, %v6262
    %v6275 = vsel %vm6096, %v6265, 0.0
    %v6276 = vadd.f32 %v6274, %v6275
    %v6277 = vrot.slane %v6276, 4
    %v6278 = vadd.f32 %v6276, %v6277
    %v6279 = vrot.slane %v6278, 2
    %v6280 = vadd.f32 %v6278, %v6279
    %v6281 = vrot.slane %v6280, 1
    %v6282 = vadd.f32 %v6280, %v6281
    %s6283 = sld [smem:[#allocation31 + $0x1]]
    %v6284 = vstv %s6283
    %v6285 = vadd.f32 %v6282, %v6284
    %v6286 = vmax.f32 %v6107, %v6285
    %v6287 = vsub.f32 %v6107, %v6286
    %v6288 = vmul.f32 %v6287, 1.442695
    %v6289 = vpow.pop %v6288
    %v6290 = vsub.f32 %v6285, %v6286
    %v6291 = vmul.f32 %v6290, 1.442695
    %v6292 = vpow.pop %v6291
    %v6293 = vadd.f32 %v6289, %v6292
    %v6294 = vrcp.pop %v6293
    %v6295 = vmul.f32 %v6289, %v6294
    %vm6296 = vcmask 0
    %6297 = vst.msk [vmem:[#allocation32] sm:$0x1] %vm6296, %v6295
    %v6298 = vmul.f32 %v6292, %v6294
    %vm6299 = vcmask 8200
    %6300 = vst.msk [vmem:[#allocation32] sm:$0x1] %vm6299, %v6298
    // Predicated region
    $region79: #{classifn_forward.2} parent=1 // pred_check
      _
    $region80: #{classifn_forward.2} parent=1 // pred_check_branch
      %6302 = sbr.rel (0) target = $region82
    $region81: #{classifn_forward.2} parent=1 // pred_region
      %s6304 = ssub.s32 16, 16
      %6305 = vsyncadd [#allocation27], %s6304
      %s6307 = sshll.u32 [#allocation32], 4
      %s6308 = int_to_ptr.vmem [resolvable:$true] %s6307
      %6310 = dma.vmem_to_hbm [thread:$0]  %s6308, 16, %s9, [#allocation27]
    $region82: #{classifn_forward.2} parent=1 // pred_fallthru
      _
    // Predicated region
    $region83: #{classifn_forward.2} parent=1 // pred_check
      _
    $region84: #{classifn_forward.2} parent=1 // pred_check_branch
      %6312 = sbr.rel (0) target = $region86
    $region85: #{classifn_forward.2} parent=1 // pred_region
      %6313 = dma.done [#allocation27], 16
    $region86: #{classifn_forward.2} parent=1 // pred_fallthru
      _
    %6314 = vsyncpa [#allocation27], 1
    %6315 = vsyncpa [#allocation28], 1
    %6316 = vsyncpa [#allocation30], 1
  %6317 = vsyncmov [#allocation5]
  %s6318 = vpop.sfrf %6317
  %p6319 = scmp.eq.s32.totalorder %s6318, 0
  %p6320 = pneg %p6319
  %6322 = shalt.err (%p6320)

</llo_original>
